<compile_context>
chip_gen: v6e
topology: v6e:2x2x1
jax: 0.10.0
libtpu: 0.0.40
codegen_flags: <defaults>
</compile_context>

<pallas_src>
import math
from functools import partial

import jax
import jax.numpy as jnp
import numpy as np
from jax import lax
from jax.experimental import pallas as pl
from jax.experimental.pallas import tpu as pltpu

LANE = 128  # TPU lane width; channels padded to a multiple of this.


def _round_up(x, m):
    return (x + m - 1) // m * m


# ----------------------------- in-kernel helpers -----------------------------

def _silu(x):
    # exact sigmoid (EUP exp + full-precision reciprocal); math stays f32.
    return x * pl.reciprocal(1.0 + jnp.exp(-x), approx=False)


def _group_norm(v, C, G, HW, eps, gamma, beta):
    """GroupNorm over an (HW, Cp) f32 slab (lanes >= C are zero padding).

    Single pass: per-channel sum / sum-of-squares, then per-group scalar sums
    assembled back onto the lane axis with iota masks -- no (C, C) mixing-matrix
    DMA and no M=1 MXU matmuls.
    """
    Cp = v.shape[1]
    cg = C // G
    inv = 1.0 / float(HW * cg)
    s1 = jnp.sum(v, axis=0, keepdims=True)          # (1, Cp)
    s2 = jnp.sum(v * v, axis=0, keepdims=True)      # (1, Cp)
    lane = lax.broadcasted_iota(jnp.int32, (1, Cp), 1)
    mean = jnp.zeros((1, Cp), jnp.float32)
    ex2 = jnp.zeros((1, Cp), jnp.float32)
    for g in range(G):
        sel = (lane >= g * cg) & (lane < (g + 1) * cg)
        m_g = jnp.sum(jnp.where(sel, s1, 0.0), axis=1, keepdims=True) * inv   # (1, 1)
        e_g = jnp.sum(jnp.where(sel, s2, 0.0), axis=1, keepdims=True) * inv   # (1, 1)
        mean = jnp.where(sel, m_g, mean)
        ex2 = jnp.where(sel, e_g, ex2)
    var = jnp.maximum(ex2 - mean * mean, 0.0)
    rstd = lax.rsqrt(var + eps)
    return (v - mean) * (rstd * gamma) + beta


# --------------------------------- kernel ------------------------------------

def _resnet_block_kernel(H, W, Cin, Cout, Cinp, Coutp, G, T, has_nin, eps, *refs):
    if has_nin:
        (x_ref, tproj_ref,
         gn1_g, gn1_b, w1, b1,
         gn2_g, gn2_b, w2, b2,
         ninw, ninb,
         o_ref, pad_ref) = refs
    else:
        (x_ref, tproj_ref,
         gn1_g, gn1_b, w1, b1,
         gn2_g, gn2_b, w2, b2,
         o_ref, pad_ref) = refs
        ninw = ninb = None

    HW = H * W
    ROWS, CP = pad_ref.shape

    x2 = x_ref[0]                                    # (HW, Cinp) f32, lane-dense

    # Column index (within an image row) of each flattened spatial position; used
    # to mask the intra-row wrap of the +-1 horizontal conv taps.
    ww = lax.broadcasted_iota(jnp.int32, (HW, 1), 0) % W
    w_ok = {-1: ww >= 1, 0: None, 1: ww <= W - 2}

    # Zero only the halo rows of the shared row-padded scratch; the interior is
    # fully overwritten by each conv below.  Per-step so it is correct under
    # megacore "parallel" sharding (each core owns its scratch).
    pad_ref[0:T, :] = jnp.zeros((T, CP), jnp.float32)
    pad_ref[T + HW:ROWS, :] = jnp.zeros((ROWS - T - HW, CP), jnp.float32)

    def conv3x3(v, Kp, w_ref):
        """3x3 / stride-1 / pad-1 conv of a lane-dense (HW, Kp) slab.

        One contiguous interior store into the halo scratch, then 9 contiguous
        sublane-shifted reloads (vertical shifts land in the zero halo,
        horizontal wrap masked), each fed to a bf16 MXU matmul accumulated in
        f32 -- no im2col buffer, no reshapes.
        """
        Np = w_ref.shape[2]
        pad_ref[T:T + HW, 0:Kp] = v
        acc = jnp.zeros((HW, Np), jnp.float32)
        for kh in range(3):
            for kw in range(3):
                dh, dw = kh - 1, kw - 1
                start = T + dh * W + dw
                tap = pad_ref[start:start + HW, 0:Kp]
                if dw != 0:
                    tap = jnp.where(w_ok[dw], tap, 0.0)
                acc = acc + jnp.dot(tap.astype(jnp.bfloat16), w_ref[kh * 3 + kw],
                                    preferred_element_type=jnp.float32)
        return acc

    # --- GroupNorm_1 -> SiLU -> Conv_1 (+ hoisted time-embedding projection) ---
    h = _silu(_group_norm(x2, Cin, G, HW, eps, gn1_g[...], gn1_b[...]))
    h = conv3x3(h, Cinp, w1) + b1[...] + tproj_ref[0]

    # --- GroupNorm_2 -> SiLU -> Dropout (eval: identity) -> Conv_2 ---
    h = _silu(_group_norm(h, Cout, G, HW, eps, gn2_g[...], gn2_b[...]))
    # TODO(synk): Dropout reproduced in eval mode (identity); training-mode RNG masking not implemented.
    h = conv3x3(h, Coutp, w2) + b2[...]

    # --- shortcut: NIN (1x1) when channel counts differ, identity otherwise ---
    if has_nin:
        xs = jnp.dot(x2.astype(jnp.bfloat16), ninw[...],
                     preferred_element_type=jnp.float32) + ninb[...]
    else:
        xs = x2

    o_ref[0] = (h + xs).astype(o_ref.dtype)


# --------------------------------- wrapper -----------------------------------

def resnet_block_forward(x_nchw, t_emb, params, num_groups):
    B, Cin, H, W = x_nchw.shape
    Cout = params["conv2_w"].shape[-1]
    assert Cin % num_groups == 0 and Cout % num_groups == 0, \
        "GroupNorm requires channels divisible by num_groups"
    HW = H * W
    eps = 1e-6
    has_nin = (Cin != Cout)

    Cinp = _round_up(Cin, LANE)       # lane-dense channel padding
    Coutp = _round_up(Cout, LANE)
    Cmaxp = max(Cinp, Coutp)
    T = _round_up(W + 1, 8)           # halo rows above/below the (HW, C) slab
    ROWS = 2 * T + HW

    def pad_lanes(a, target):
        d = target - a.shape[-1]
        if d:
            a = jnp.pad(a, [(0, 0)] * (a.ndim - 1) + [(0, d)])
        return a

    def row(v, target):               # (C,) -> zero-padded (1, target) f32
        return pad_lanes(v.reshape(1, -1).astype(jnp.float32), target)

    def conv_w(w, kp, np_):           # (9, Cin, Cout) taps -> (9, kp, np_) bf16
        w = w.astype(jnp.float32)
        w = jnp.pad(w, ((0, 0), (0, kp - w.shape[1]), (0, np_ - w.shape[2])))
        return w.astype(jnp.bfloat16)

    # Input: NCHW -> (B, HW, Cinp); channels on the lane axis, zero-padded.
    x_flat = pad_lanes(
        jnp.transpose(x_nchw, (0, 2, 3, 1)).reshape(B, HW, Cin).astype(jnp.float32),
        Cinp)

    # Time-embedding Dense hoisted out of the kernel.
    tproj = (t_emb.astype(jnp.float32) @ params["dense_w"].astype(jnp.float32)
             + params["dense_b"].astype(jnp.float32))
    tproj = pad_lanes(tproj, Coutp).reshape(B, 1, Coutp)

    inputs = [
        x_flat, tproj,
        row(params["gn1_g"], Cinp), row(params["gn1_b"], Cinp),
        conv_w(params["conv1_w"], Cinp, Coutp), row(params["conv1_b"], Coutp),
        row(params["gn2_g"], Coutp), row(params["gn2_b"], Coutp),
        conv_w(params["conv2_w"], Coutp, Coutp), row(params["conv2_b"], Coutp),
    ]
    if has_nin:   # NIN weights only DMA'd when the 1x1 shortcut is actually used
        nin_w = jnp.pad(params["nin_w"].astype(jnp.float32),
                        ((0, Cinp - Cin), (0, Coutp - Cout))).astype(jnp.bfloat16)
        inputs += [nin_w, row(params["nin_b"], Coutp)]

    def full(shape):                  # whole-array block, constant index map
        nd = len(shape)
        # NOTE: at large C these constant blocks would benefit from
        # pipeline_mode=pl.Buffered(1) (single buffering); omitted here.
        return pl.BlockSpec(shape, lambda b: (0,) * nd)

    in_specs = [
        pl.BlockSpec((1, HW, Cinp), lambda b: (b, 0, 0)),
        pl.BlockSpec((1, 1, Coutp), lambda b: (b, 0, 0)),
    ] + [full(a.shape) for a in inputs[2:]]

    kernel = partial(_resnet_block_kernel,
                     H, W, Cin, Cout, Cinp, Coutp, num_groups, T, has_nin, eps)

    out_flat = pl.pallas_call(
        kernel,
        out_shape=jax.ShapeDtypeStruct((B, HW, Coutp), jnp.float32),
        grid_spec=pltpu.PrefetchScalarGridSpec(
            num_scalar_prefetch=0,
            grid=(B,),
            in_specs=in_specs,
            out_specs=pl.BlockSpec((1, HW, Coutp), lambda b: (b, 0, 0)),
            scratch_shapes=[
                # single row-padded (halo) slab shared by both convs
                pltpu.VMEM((ROWS, Cmaxp), jnp.float32),
            ],
        ),
        compiler_params=pltpu.CompilerParams(
            dimension_semantics=("parallel",),      # batch elements independent
            vmem_limit_bytes=32 * 1024 * 1024,
        ),
    )(*inputs)

    out = out_flat[:, :, :Cout].reshape(B, H, W, Cout)
    return jnp.transpose(out, (0, 3, 1, 2))


# --------------------------- parameter initialization ------------------------

def xavier_uniform(key, shape, fan_in, fan_out, gain=1.0):
    bound = gain * math.sqrt(6.0 / (fan_in + fan_out))
    return jax.random.uniform(key, shape, jnp.float32, -bound, bound)


def init_params(key, in_ch, out_ch, emb_dim, conv_init_scale=1.0):
    ks = jax.random.split(key, 4)
    # Conv weights as 9 taps of (Cin, Cout): taps[kh*3+kw] == torch_w[:, :, kh, kw].T
    conv1_gain = (1e-10) ** 2          # module: init_scale=0.0 -> 1e-10, gain = init_scale**2
    conv2_gain = conv_init_scale ** 2
    return {
        "gn1_g": jnp.ones((in_ch,), jnp.float32),
        "gn1_b": jnp.zeros((in_ch,), jnp.float32),
        "conv1_w": xavier_uniform(ks[0], (9, in_ch, out_ch), in_ch * 9, out_ch * 9, conv1_gain),
        "conv1_b": jnp.zeros((out_ch,), jnp.float32),
        "dense_w": xavier_uniform(ks[1], (emb_dim, out_ch), emb_dim, out_ch, 1.0),
        "dense_b": jnp.zeros((out_ch,), jnp.float32),
        "gn2_g": jnp.ones((out_ch,), jnp.float32),
        "gn2_b": jnp.zeros((out_ch,), jnp.float32),
        "conv2_w": xavier_uniform(ks[2], (9, out_ch, out_ch), out_ch * 9, out_ch * 9, conv2_gain),
        "conv2_b": jnp.zeros((out_ch,), jnp.float32),
        "nin_w": xavier_uniform(ks[3], (in_ch, out_ch), in_ch, out_ch, 1.0),
        "nin_b": jnp.zeros((out_ch,), jnp.float32),
    }


# ------------------------------ pure-JAX reference ---------------------------

def reference_forward(x_nchw, t_emb, p, num_groups, eps=1e-6):
    def group_norm(x, gamma, beta):
        B, C, H, W = x.shape
        G = num_groups
        xg = x.reshape(B, G, C // G, H, W)
        mean = xg.mean(axis=(2, 3, 4), keepdims=True)
        var = ((xg - mean) ** 2).mean(axis=(2, 3, 4), keepdims=True)
        xn = ((xg - mean) * jax.lax.rsqrt(var + eps)).reshape(B, C, H, W)
        return xn * gamma[None, :, None, None] + beta[None, :, None, None]

    def silu(v):
        return v * (1.0 / (1.0 + jnp.exp(-v)))

    def conv3x3(x, taps, b):
        cin, cout = taps.shape[1], taps.shape[2]
        w = taps.reshape(3, 3, cin, cout)  # HWIO
        y = jax.lax.conv_general_dilated(
            x, w, window_strides=(1, 1), padding=((1, 1), (1, 1)),
            dimension_numbers=("NCHW", "HWIO", "NCHW"),
            precision=jax.lax.Precision.HIGHEST)
        return y + b[None, :, None, None]

    h = silu(group_norm(x_nchw, p["gn1_g"], p["gn1_b"]))
    h = conv3x3(h, p["conv1_w"], p["conv1_b"])
    h = h + (t_emb @ p["dense_w"] + p["dense_b"])[:, :, None, None]
    h = silu(group_norm(h, p["gn2_g"], p["gn2_b"]))
    h = conv3x3(h, p["conv2_w"], p["conv2_b"])
    if x_nchw.shape[1] != p["conv2_w"].shape[-1]:
        xs = jnp.einsum("bchw,cd->bdhw", x_nchw, p["nin_w"],
                        precision=jax.lax.Precision.HIGHEST)
        xs = xs + p["nin_b"][None, :, None, None]
    else:
        xs = x_nchw
    return h + xs


# ----------------------------------- main ------------------------------------

if __name__ == "__main__":
    B, H, W = 2, 16, 16
    EMB, G = 32, 2   # time_embedding emb_dim2 = 32, groupnorm num_groups = 2

    key = jax.random.PRNGKey(0)

    # Case 1: Cin != Cout  -> NIN shortcut path
    Cin, Cout = 4, 8
    k_x, k_t, k_p = jax.random.split(key, 3)
    x = jax.random.normal(k_x, (B, Cin, H, W), jnp.float32)
    t_emb = jax.random.normal(k_t, (B, EMB), jnp.float32)
    params = init_params(k_p, Cin, Cout, EMB)

    out = jax.block_until_ready(resnet_block_forward(x, t_emb, params, G))
    ref = reference_forward(x, t_emb, params, G)
    assert out.shape == (B, Cout, H, W)
    np.testing.assert_allclose(np.asarray(out), np.asarray(ref), rtol=5e-2, atol=5e-2)

    # Case 2: Cin == Cout -> identity shortcut (NIN weights not passed to the kernel)
    Cin2 = Cout2 = 8
    k_x2, k_t2, k_p2 = jax.random.split(jax.random.PRNGKey(1), 3)
    x2 = jax.random.normal(k_x2, (B, Cin2, H, W), jnp.float32)
    t2 = jax.random.normal(k_t2, (B, EMB), jnp.float32)
    params2 = init_params(k_p2, Cin2, Cout2, EMB)

    out2 = jax.block_until_ready(resnet_block_forward(x2, t2, params2, G))
    ref2 = reference_forward(x2, t2, params2, G)
    assert out2.shape == (B, Cout2, H, W)
    np.testing.assert_allclose(np.asarray(out2), np.asarray(ref2), rtol=5e-2, atol=5e-2)

    print("KERNEL_OK")
</pallas_src>

<mosaic_0001>
module attributes {stable_mosaic.version = 11 : i64} {
  func.func @_resnet_block_kernel(%arg0: i32, %arg1: memref<1x256x128xf32, #tpu.memory_space<vmem>>, %arg2: memref<1x1x128xf32, #tpu.memory_space<vmem>>, %arg3: memref<1x128xf32, #tpu.memory_space<vmem>>, %arg4: memref<1x128xf32, #tpu.memory_space<vmem>>, %arg5: memref<9x128x128xbf16, #tpu.memory_space<vmem>>, %arg6: memref<1x128xf32, #tpu.memory_space<vmem>>, %arg7: memref<1x128xf32, #tpu.memory_space<vmem>>, %arg8: memref<1x128xf32, #tpu.memory_space<vmem>>, %arg9: memref<9x128x128xbf16, #tpu.memory_space<vmem>>, %arg10: memref<1x128xf32, #tpu.memory_space<vmem>>, %arg11: memref<128x128xbf16, #tpu.memory_space<vmem>>, %arg12: memref<1x128xf32, #tpu.memory_space<vmem>>, %arg13: memref<1x256x128xf32, #tpu.memory_space<vmem>>, %arg14: memref<304x128xf32, #tpu.memory_space<vmem>>) attributes {dimension_semantics = [#tpu.dimension_semantics<parallel>], iteration_bounds = array<i64: 2>, scalar_prefetch = 0 : i64, scratch_operands = 1 : i64, tpu.core_type = #tpu.core_type<tc>, window_params = [{transform_indices = @transform_0, window_bounds = array<i64: 1, 256, 128>}, {transform_indices = @transform_1, window_bounds = array<i64: 1, 1, 128>}, {pipeline_mode = #tpu.pipeline_mode<synchronous>, transform_indices = @transform_2, window_bounds = array<i64: 1, 128>}, {pipeline_mode = #tpu.pipeline_mode<synchronous>, transform_indices = @transform_3, window_bounds = array<i64: 1, 128>}, {pipeline_mode = #tpu.pipeline_mode<synchronous>, transform_indices = @transform_4, window_bounds = array<i64: 9, 128, 128>}, {pipeline_mode = #tpu.pipeline_mode<synchronous>, transform_indices = @transform_5, window_bounds = array<i64: 1, 128>}, {pipeline_mode = #tpu.pipeline_mode<synchronous>, transform_indices = @transform_6, window_bounds = array<i64: 1, 128>}, {pipeline_mode = #tpu.pipeline_mode<synchronous>, transform_indices = @transform_7, window_bounds = array<i64: 1, 128>}, {pipeline_mode = #tpu.pipeline_mode<synchronous>, transform_indices = @transform_8, window_bounds = array<i64: 9, 128, 128>}, {pipeline_mode = #tpu.pipeline_mode<synchronous>, transform_indices = @transform_9, window_bounds = array<i64: 1, 128>}, {pipeline_mode = #tpu.pipeline_mode<synchronous>, transform_indices = @transform_10, window_bounds = array<i64: 128, 128>}, {pipeline_mode = #tpu.pipeline_mode<synchronous>, transform_indices = @transform_11, window_bounds = array<i64: 1, 128>}, {transform_indices = @transform_12, window_bounds = array<i64: 1, 256, 128>}]} {
    %c0 = arith.constant 0 : index
    %c0_0 = arith.constant 0 : index
    %c0_1 = arith.constant 0 : index
    %0 = vector.load %arg1[%c0, %c0_0, %c0_1] : memref<1x256x128xf32, #tpu.memory_space<vmem>>, vector<1x256x128xf32>
    %1 = vector.shape_cast %0 : vector<1x256x128xf32> to vector<256x128xf32>
    %2 = tpu.iota {dimensions = array<i32: 0>} : vector<256x1xi32>
    %c16_i32 = arith.constant 16 : i32
    %c0_i32 = arith.constant 0 : i32
    %3 = arith.cmpi eq, %c16_i32, %c0_i32 : i32
    %c1_i32 = arith.constant 1 : i32
    %4 = arith.select %3, %c1_i32, %c16_i32 : i32
    %5 = vector.broadcast %4 : i32 to vector<256x1xi32>
    %6 = arith.remsi %2, %5 : vector<256x1xi32>
    %c0_i32_2 = arith.constant 0 : i32
    %7 = vector.broadcast %c0_i32_2 : i32 to vector<256x1xi32>
    %8 = arith.cmpi ne, %6, %7 : vector<256x1xi32>
    %c0_i32_3 = arith.constant 0 : i32
    %9 = vector.broadcast %c0_i32_3 : i32 to vector<256x1xi32>
    %10 = arith.cmpi slt, %6, %9 : vector<256x1xi32>
    %c0_i32_4 = arith.constant 0 : i32
    %11 = arith.cmpi slt, %4, %c0_i32_4 : i32
    %12 = vector.broadcast %11 : i1 to vector<256x1xi1>
    %13 = vector.broadcast %12 : vector<256x1xi1> to vector<256x1xi1>
    %14 = arith.xori %10, %13 : vector<256x1xi1>
    %15 = arith.andi %14, %8 : vector<256x1xi1>
    %16 = vector.broadcast %4 : i32 to vector<256x1xi32>
    %17 = arith.addi %6, %16 : vector<256x1xi32>
    %18 = arith.select %15, %17, %6 : vector<256x1xi1>, vector<256x1xi32>
    %c1_i32_5 = arith.constant 1 : i32
    %19 = vector.broadcast %c1_i32_5 : i32 to vector<256x1xi32>
    %20 = arith.cmpi sge, %18, %19 : vector<256x1xi32>
    %c14_i32 = arith.constant 14 : i32
    %21 = vector.broadcast %c14_i32 : i32 to vector<256x1xi32>
    %22 = arith.cmpi sle, %18, %21 : vector<256x1xi32>
    %cst = arith.constant 0.000000e+00 : f32
    %23 = vector.broadcast %cst : f32 to vector<24x128xf32>
    %c0_6 = arith.constant 0 : index
    %c0_7 = arith.constant 0 : index
    %24 = vector.load %arg14[%c0_6, %c0_7] : memref<304x128xf32, #tpu.memory_space<vmem>>, vector<24x128xf32>
    tpu.vector_store %arg14[%c0_6, %c0_7], %23 {strides = array<i32>} : memref<304x128xf32, #tpu.memory_space<vmem>>, vector<24x128xf32>,
    %cst_8 = arith.constant 0.000000e+00 : f32
    %25 = vector.broadcast %cst_8 : f32 to vector<24x128xf32>
    %c280 = arith.constant 280 : index
    %c0_9 = arith.constant 0 : index
    %26 = vector.load %arg14[%c280, %c0_9] : memref<304x128xf32, #tpu.memory_space<vmem>>, vector<24x128xf32>
    tpu.vector_store %arg14[%c280, %c0_9], %25 {strides = array<i32>} : memref<304x128xf32, #tpu.memory_space<vmem>>, vector<24x128xf32>,
    %c0_10 = arith.constant 0 : index
    %c0_11 = arith.constant 0 : index
    %27 = vector.load %arg3[%c0_10, %c0_11] : memref<1x128xf32, #tpu.memory_space<vmem>>, vector<1x128xf32>
    %c0_12 = arith.constant 0 : index
    %c0_13 = arith.constant 0 : index
    %28 = vector.load %arg4[%c0_12, %c0_13] : memref<1x128xf32, #tpu.memory_space<vmem>>, vector<1x128xf32>
    %cst_14 = arith.constant dense<0.000000e+00> : vector<128xf32>
    %29 = vector.multi_reduction <add>, %1, %cst_14 [0] : vector<256x128xf32> to vector<128xf32>
    %30 = vector.shape_cast %29 : vector<128xf32> to vector<1x128xf32>
    %31 = arith.mulf %1, %1 : vector<256x128xf32>
    %cst_15 = arith.constant dense<0.000000e+00> : vector<128xf32>
    %32 = vector.multi_reduction <add>, %31, %cst_15 [0] : vector<256x128xf32> to vector<128xf32>
    %33 = vector.shape_cast %32 : vector<128xf32> to vector<1x128xf32>
    %34 = tpu.iota {dimensions = array<i32: 1>} : vector<1x128xi32>
    %cst_16 = arith.constant 0.000000e+00 : f32
    %35 = vector.broadcast %cst_16 : f32 to vector<1x128xf32>
    %cst_17 = arith.constant 0.000000e+00 : f32
    %36 = vector.broadcast %cst_17 : f32 to vector<1x128xf32>
    %c0_i32_18 = arith.constant 0 : i32
    %37 = vector.broadcast %c0_i32_18 : i32 to vector<1x128xi32>
    %38 = arith.cmpi sge, %34, %37 : vector<1x128xi32>
    %c2_i32 = arith.constant 2 : i32
    %39 = vector.broadcast %c2_i32 : i32 to vector<1x128xi32>
    %40 = arith.cmpi slt, %34, %39 : vector<1x128xi32>
    %41 = arith.andi %38, %40 : vector<1x128xi1>
    %cst_19 = arith.constant 0.000000e+00 : f32
    %42 = vector.broadcast %cst_19 : f32 to vector<1x128xf32>
    %43 = arith.select %41, %30, %42 : vector<1x128xi1>, vector<1x128xf32>
    %cst_20 = arith.constant dense<0.000000e+00> : vector<1xf32>
    %44 = vector.multi_reduction <add>, %43, %cst_20 [1] : vector<1x128xf32> to vector<1xf32>
    %45 = vector.shape_cast %44 : vector<1xf32> to vector<1x1xf32>
    %cst_21 = arith.constant 0.001953125 : f32
    %46 = vector.broadcast %cst_21 : f32 to vector<1x1xf32>
    %47 = arith.mulf %45, %46 : vector<1x1xf32>
    %cst_22 = arith.constant 0.000000e+00 : f32
    %48 = vector.broadcast %cst_22 : f32 to vector<1x128xf32>
    %49 = arith.select %41, %33, %48 : vector<1x128xi1>, vector<1x128xf32>
    %cst_23 = arith.constant dense<0.000000e+00> : vector<1xf32>
    %50 = vector.multi_reduction <add>, %49, %cst_23 [1] : vector<1x128xf32> to vector<1xf32>
    %51 = vector.shape_cast %50 : vector<1xf32> to vector<1x1xf32>
    %cst_24 = arith.constant 0.001953125 : f32
    %52 = vector.broadcast %cst_24 : f32 to vector<1x1xf32>
    %53 = arith.mulf %51, %52 : vector<1x1xf32>
    %54 = vector.shape_cast %47 : vector<1x1xf32> to vector<1x1xf32>
    %55 = vector.broadcast %54 : vector<1x1xf32> to vector<1x128xf32>
    %56 = arith.select %41, %55, %35 : vector<1x128xi1>, vector<1x128xf32>
    %57 = vector.shape_cast %53 : vector<1x1xf32> to vector<1x1xf32>
    %58 = vector.broadcast %57 : vector<1x1xf32> to vector<1x128xf32>
    %59 = arith.select %41, %58, %36 : vector<1x128xi1>, vector<1x128xf32>
    %c2_i32_25 = arith.constant 2 : i32
    %60 = vector.broadcast %c2_i32_25 : i32 to vector<1x128xi32>
    %61 = arith.cmpi sge, %34, %60 : vector<1x128xi32>
    %c4_i32 = arith.constant 4 : i32
    %62 = vector.broadcast %c4_i32 : i32 to vector<1x128xi32>
    %63 = arith.cmpi slt, %34, %62 : vector<1x128xi32>
    %64 = arith.andi %61, %63 : vector<1x128xi1>
    %cst_26 = arith.constant 0.000000e+00 : f32
    %65 = vector.broadcast %cst_26 : f32 to vector<1x128xf32>
    %66 = arith.select %64, %30, %65 : vector<1x128xi1>, vector<1x128xf32>
    %cst_27 = arith.constant dense<0.000000e+00> : vector<1xf32>
    %67 = vector.multi_reduction <add>, %66, %cst_27 [1] : vector<1x128xf32> to vector<1xf32>
    %68 = vector.shape_cast %67 : vector<1xf32> to vector<1x1xf32>
    %cst_28 = arith.constant 0.001953125 : f32
    %69 = vector.broadcast %cst_28 : f32 to vector<1x1xf32>
    %70 = arith.mulf %68, %69 : vector<1x1xf32>
    %cst_29 = arith.constant 0.000000e+00 : f32
    %71 = vector.broadcast %cst_29 : f32 to vector<1x128xf32>
    %72 = arith.select %64, %33, %71 : vector<1x128xi1>, vector<1x128xf32>
    %cst_30 = arith.constant dense<0.000000e+00> : vector<1xf32>
    %73 = vector.multi_reduction <add>, %72, %cst_30 [1] : vector<1x128xf32> to vector<1xf32>
    %74 = vector.shape_cast %73 : vector<1xf32> to vector<1x1xf32>
    %cst_31 = arith.constant 0.001953125 : f32
    %75 = vector.broadcast %cst_31 : f32 to vector<1x1xf32>
    %76 = arith.mulf %74, %75 : vector<1x1xf32>
    %77 = vector.shape_cast %70 : vector<1x1xf32> to vector<1x1xf32>
    %78 = vector.broadcast %77 : vector<1x1xf32> to vector<1x128xf32>
    %79 = arith.select %64, %78, %56 : vector<1x128xi1>, vector<1x128xf32>
    %80 = vector.shape_cast %76 : vector<1x1xf32> to vector<1x1xf32>
    %81 = vector.broadcast %80 : vector<1x1xf32> to vector<1x128xf32>
    %82 = arith.select %64, %81, %59 : vector<1x128xi1>, vector<1x128xf32>
    %83 = arith.mulf %79, %79 : vector<1x128xf32>
    %84 = arith.subf %82, %83 : vector<1x128xf32>
    %cst_32 = arith.constant 0.000000e+00 : f32
    %85 = vector.broadcast %cst_32 : f32 to vector<1x128xf32>
    %86 = arith.maximumf %84, %85 : vector<1x128xf32>
    %cst_33 = arith.constant 9.99999997E-7 : f32
    %87 = vector.broadcast %cst_33 : f32 to vector<1x128xf32>
    %88 = arith.addf %86, %87 : vector<1x128xf32>
    %89 = math.rsqrt %88 : vector<1x128xf32>
    %90 = vector.broadcast %79 : vector<1x128xf32> to vector<256x128xf32>
    %91 = arith.subf %1, %90 : vector<256x128xf32>
    %92 = arith.mulf %89, %27 : vector<1x128xf32>
    %93 = vector.broadcast %92 : vector<1x128xf32> to vector<256x128xf32>
    %94 = arith.mulf %91, %93 : vector<256x128xf32>
    %95 = vector.broadcast %28 : vector<1x128xf32> to vector<256x128xf32>
    %96 = arith.addf %94, %95 : vector<256x128xf32>
    %cst_34 = arith.constant 0.000000e+00 : f32
    %97 = vector.broadcast %cst_34 : f32 to vector<256x128xf32>
    %98 = arith.subf %97, %96 : vector<256x128xf32>
    %99 = math.exp %98 : vector<256x128xf32>
    %cst_35 = arith.constant 1.000000e+00 : f32
    %100 = vector.broadcast %cst_35 : f32 to vector<256x128xf32>
    %101 = arith.addf %100, %99 : vector<256x128xf32>
    %102 = tpu.reciprocal %101 : vector<256x128xf32> -> vector<256x128xf32>
    %103 = arith.mulf %96, %102 : vector<256x128xf32>
    %c24 = arith.constant 24 : index
    %c0_36 = arith.constant 0 : index
    %104 = vector.load %arg14[%c24, %c0_36] : memref<304x128xf32, #tpu.memory_space<vmem>>, vector<256x128xf32>
    tpu.vector_store %arg14[%c24, %c0_36], %103 {strides = array<i32>} : memref<304x128xf32, #tpu.memory_space<vmem>>, vector<256x128xf32>,
    %cst_37 = arith.constant 0.000000e+00 : f32
    %105 = vector.broadcast %cst_37 : f32 to vector<256x128xf32>
    %c7 = arith.constant 7 : index
    %c0_38 = arith.constant 0 : index
    %106 = vector.load %arg14[%c7, %c0_38] : memref<304x128xf32, #tpu.memory_space<vmem>>, vector<256x128xf32>
    %cst_39 = arith.constant 0.000000e+00 : f32
    %107 = vector.shape_cast %20 : vector<256x1xi1> to vector<256x1xi1>
    %108 = vector.broadcast %107 : vector<256x1xi1> to vector<256x128xi1>
    %109 = vector.broadcast %cst_39 : f32 to vector<256x128xf32>
    %110 = arith.select %108, %106, %109 : vector<256x128xi1>, vector<256x128xf32>
    %111 = arith.truncf %110 : vector<256x128xf32> to vector<256x128xbf16>
    %c0_40 = arith.constant 0 : index
    %c0_41 = arith.constant 0 : index
    %c0_42 = arith.constant 0 : index
    %112 = vector.load %arg5[%c0_40, %c0_41, %c0_42] : memref<9x128x128xbf16, #tpu.memory_space<vmem>>, vector<1x128x128xbf16>
    %113 = vector.shape_cast %112 : vector<1x128x128xbf16> to vector<128x128xbf16>
    %cst_43 = arith.constant dense<0.000000e+00> : vector<256x128xf32>
    %114 = tpu.matmul %111, %113, %cst_43 {dimension_numbers = #tpu.dot_dimension_numbers<[1], [0], [0], [1], [0, 0, 1, 1], [], []>} : vector<256x128xbf16>, vector<128x128xbf16>, vector<256x128xf32> -> vector<256x128xf32>
    %115 = arith.addf %105, %114 : vector<256x128xf32>
    %c8 = arith.constant 8 : index
    %c0_44 = arith.constant 0 : index
    %116 = vector.load %arg14[%c8, %c0_44] : memref<304x128xf32, #tpu.memory_space<vmem>>, vector<256x128xf32>
    %117 = arith.truncf %116 : vector<256x128xf32> to vector<256x128xbf16>
    %c1 = arith.constant 1 : index
    %c0_45 = arith.constant 0 : index
    %c0_46 = arith.constant 0 : index
    %118 = vector.load %arg5[%c1, %c0_45, %c0_46] : memref<9x128x128xbf16, #tpu.memory_space<vmem>>, vector<1x128x128xbf16>
    %119 = vector.shape_cast %118 : vector<1x128x128xbf16> to vector<128x128xbf16>
    %cst_47 = arith.constant dense<0.000000e+00> : vector<256x128xf32>
    %120 = tpu.matmul %117, %119, %cst_47 {dimension_numbers = #tpu.dot_dimension_numbers<[1], [0], [0], [1], [0, 0, 1, 1], [], []>} : vector<256x128xbf16>, vector<128x128xbf16>, vector<256x128xf32> -> vector<256x128xf32>
    %121 = arith.addf %115, %120 : vector<256x128xf32>
    %c9 = arith.constant 9 : index
    %c0_48 = arith.constant 0 : index
    %122 = vector.load %arg14[%c9, %c0_48] : memref<304x128xf32, #tpu.memory_space<vmem>>, vector<256x128xf32>
    %cst_49 = arith.constant 0.000000e+00 : f32
    %123 = vector.shape_cast %22 : vector<256x1xi1> to vector<256x1xi1>
    %124 = vector.broadcast %123 : vector<256x1xi1> to vector<256x128xi1>
    %125 = vector.broadcast %cst_49 : f32 to vector<256x128xf32>
    %126 = arith.select %124, %122, %125 : vector<256x128xi1>, vector<256x128xf32>
    %127 = arith.truncf %126 : vector<256x128xf32> to vector<256x128xbf16>
    %c2 = arith.constant 2 : index
    %c0_50 = arith.constant 0 : index
    %c0_51 = arith.constant 0 : index
    %128 = vector.load %arg5[%c2, %c0_50, %c0_51] : memref<9x128x128xbf16, #tpu.memory_space<vmem>>, vector<1x128x128xbf16>
    %129 = vector.shape_cast %128 : vector<1x128x128xbf16> to vector<128x128xbf16>
    %cst_52 = arith.constant dense<0.000000e+00> : vector<256x128xf32>
    %130 = tpu.matmul %127, %129, %cst_52 {dimension_numbers = #tpu.dot_dimension_numbers<[1], [0], [0], [1], [0, 0, 1, 1], [], []>} : vector<256x128xbf16>, vector<128x128xbf16>, vector<256x128xf32> -> vector<256x128xf32>
    %131 = arith.addf %121, %130 : vector<256x128xf32>
    %c23 = arith.constant 23 : index
    %c0_53 = arith.constant 0 : index
    %132 = vector.load %arg14[%c23, %c0_53] : memref<304x128xf32, #tpu.memory_space<vmem>>, vector<256x128xf32>
    %cst_54 = arith.constant 0.000000e+00 : f32
    %133 = vector.shape_cast %20 : vector<256x1xi1> to vector<256x1xi1>
    %134 = vector.broadcast %133 : vector<256x1xi1> to vector<256x128xi1>
    %135 = vector.broadcast %cst_54 : f32 to vector<256x128xf32>
    %136 = arith.select %134, %132, %135 : vector<256x128xi1>, vector<256x128xf32>
    %137 = arith.truncf %136 : vector<256x128xf32> to vector<256x128xbf16>
    %c3 = arith.constant 3 : index
    %c0_55 = arith.constant 0 : index
    %c0_56 = arith.constant 0 : index
    %138 = vector.load %arg5[%c3, %c0_55, %c0_56] : memref<9x128x128xbf16, #tpu.memory_space<vmem>>, vector<1x128x128xbf16>
    %139 = vector.shape_cast %138 : vector<1x128x128xbf16> to vector<128x128xbf16>
    %cst_57 = arith.constant dense<0.000000e+00> : vector<256x128xf32>
    %140 = tpu.matmul %137, %139, %cst_57 {dimension_numbers = #tpu.dot_dimension_numbers<[1], [0], [0], [1], [0, 0, 1, 1], [], []>} : vector<256x128xbf16>, vector<128x128xbf16>, vector<256x128xf32> -> vector<256x128xf32>
    %141 = arith.addf %131, %140 : vector<256x128xf32>
    %c24_58 = arith.constant 24 : index
    %c0_59 = arith.constant 0 : index
    %142 = vector.load %arg14[%c24_58, %c0_59] : memref<304x128xf32, #tpu.memory_space<vmem>>, vector<256x128xf32>
    %143 = arith.truncf %142 : vector<256x128xf32> to vector<256x128xbf16>
    %c4 = arith.constant 4 : index
    %c0_60 = arith.constant 0 : index
    %c0_61 = arith.constant 0 : index
    %144 = vector.load %arg5[%c4, %c0_60, %c0_61] : memref<9x128x128xbf16, #tpu.memory_space<vmem>>, vector<1x128x128xbf16>
    %145 = vector.shape_cast %144 : vector<1x128x128xbf16> to vector<128x128xbf16>
    %cst_62 = arith.constant dense<0.000000e+00> : vector<256x128xf32>
    %146 = tpu.matmul %143, %145, %cst_62 {dimension_numbers = #tpu.dot_dimension_numbers<[1], [0], [0], [1], [0, 0, 1, 1], [], []>} : vector<256x128xbf16>, vector<128x128xbf16>, vector<256x128xf32> -> vector<256x128xf32>
    %147 = arith.addf %141, %146 : vector<256x128xf32>
    %c25 = arith.constant 25 : index
    %c0_63 = arith.constant 0 : index
    %148 = vector.load %arg14[%c25, %c0_63] : memref<304x128xf32, #tpu.memory_space<vmem>>, vector<256x128xf32>
    %cst_64 = arith.constant 0.000000e+00 : f32
    %149 = vector.shape_cast %22 : vector<256x1xi1> to vector<256x1xi1>
    %150 = vector.broadcast %149 : vector<256x1xi1> to vector<256x128xi1>
    %151 = vector.broadcast %cst_64 : f32 to vector<256x128xf32>
    %152 = arith.select %150, %148, %151 : vector<256x128xi1>, vector<256x128xf32>
    %153 = arith.truncf %152 : vector<256x128xf32> to vector<256x128xbf16>
    %c5 = arith.constant 5 : index
    %c0_65 = arith.constant 0 : index
    %c0_66 = arith.constant 0 : index
    %154 = vector.load %arg5[%c5, %c0_65, %c0_66] : memref<9x128x128xbf16, #tpu.memory_space<vmem>>, vector<1x128x128xbf16>
    %155 = vector.shape_cast %154 : vector<1x128x128xbf16> to vector<128x128xbf16>
    %cst_67 = arith.constant dense<0.000000e+00> : vector<256x128xf32>
    %156 = tpu.matmul %153, %155, %cst_67 {dimension_numbers = #tpu.dot_dimension_numbers<[1], [0], [0], [1], [0, 0, 1, 1], [], []>} : vector<256x128xbf16>, vector<128x128xbf16>, vector<256x128xf32> -> vector<256x128xf32>
    %157 = arith.addf %147, %156 : vector<256x128xf32>
    %c39 = arith.constant 39 : index
    %c0_68 = arith.constant 0 : index
    %158 = vector.load %arg14[%c39, %c0_68] : memref<304x128xf32, #tpu.memory_space<vmem>>, vector<256x128xf32>
    %cst_69 = arith.constant 0.000000e+00 : f32
    %159 = vector.shape_cast %20 : vector<256x1xi1> to vector<256x1xi1>
    %160 = vector.broadcast %159 : vector<256x1xi1> to vector<256x128xi1>
    %161 = vector.broadcast %cst_69 : f32 to vector<256x128xf32>
    %162 = arith.select %160, %158, %161 : vector<256x128xi1>, vector<256x128xf32>
    %163 = arith.truncf %162 : vector<256x128xf32> to vector<256x128xbf16>
    %c6 = arith.constant 6 : index
    %c0_70 = arith.constant 0 : index
    %c0_71 = arith.constant 0 : index
    %164 = vector.load %arg5[%c6, %c0_70, %c0_71] : memref<9x128x128xbf16, #tpu.memory_space<vmem>>, vector<1x128x128xbf16>
    %165 = vector.shape_cast %164 : vector<1x128x128xbf16> to vector<128x128xbf16>
    %cst_72 = arith.constant dense<0.000000e+00> : vector<256x128xf32>
    %166 = tpu.matmul %163, %165, %cst_72 {dimension_numbers = #tpu.dot_dimension_numbers<[1], [0], [0], [1], [0, 0, 1, 1], [], []>} : vector<256x128xbf16>, vector<128x128xbf16>, vector<256x128xf32> -> vector<256x128xf32>
    %167 = arith.addf %157, %166 : vector<256x128xf32>
    %c40 = arith.constant 40 : index
    %c0_73 = arith.constant 0 : index
    %168 = vector.load %arg14[%c40, %c0_73] : memref<304x128xf32, #tpu.memory_space<vmem>>, vector<256x128xf32>
    %169 = arith.truncf %168 : vector<256x128xf32> to vector<256x128xbf16>
    %c7_74 = arith.constant 7 : index
    %c0_75 = arith.constant 0 : index
    %c0_76 = arith.constant 0 : index
    %170 = vector.load %arg5[%c7_74, %c0_75, %c0_76] : memref<9x128x128xbf16, #tpu.memory_space<vmem>>, vector<1x128x128xbf16>
    %171 = vector.shape_cast %170 : vector<1x128x128xbf16> to vector<128x128xbf16>
    %cst_77 = arith.constant dense<0.000000e+00> : vector<256x128xf32>
    %172 = tpu.matmul %169, %171, %cst_77 {dimension_numbers = #tpu.dot_dimension_numbers<[1], [0], [0], [1], [0, 0, 1, 1], [], []>} : vector<256x128xbf16>, vector<128x128xbf16>, vector<256x128xf32> -> vector<256x128xf32>
    %173 = arith.addf %167, %172 : vector<256x128xf32>
    %c41 = arith.constant 41 : index
    %c0_78 = arith.constant 0 : index
    %174 = vector.load %arg14[%c41, %c0_78] : memref<304x128xf32, #tpu.memory_space<vmem>>, vector<256x128xf32>
    %cst_79 = arith.constant 0.000000e+00 : f32
    %175 = vector.shape_cast %22 : vector<256x1xi1> to vector<256x1xi1>
    %176 = vector.broadcast %175 : vector<256x1xi1> to vector<256x128xi1>
    %177 = vector.broadcast %cst_79 : f32 to vector<256x128xf32>
    %178 = arith.select %176, %174, %177 : vector<256x128xi1>, vector<256x128xf32>
    %179 = arith.truncf %178 : vector<256x128xf32> to vector<256x128xbf16>
    %c8_80 = arith.constant 8 : index
    %c0_81 = arith.constant 0 : index
    %c0_82 = arith.constant 0 : index
    %180 = vector.load %arg5[%c8_80, %c0_81, %c0_82] : memref<9x128x128xbf16, #tpu.memory_space<vmem>>, vector<1x128x128xbf16>
    %181 = vector.shape_cast %180 : vector<1x128x128xbf16> to vector<128x128xbf16>
    %cst_83 = arith.constant dense<0.000000e+00> : vector<256x128xf32>
    %182 = tpu.matmul %179, %181, %cst_83 {dimension_numbers = #tpu.dot_dimension_numbers<[1], [0], [0], [1], [0, 0, 1, 1], [], []>} : vector<256x128xbf16>, vector<128x128xbf16>, vector<256x128xf32> -> vector<256x128xf32>
    %183 = arith.addf %173, %182 : vector<256x128xf32>
    %c0_84 = arith.constant 0 : index
    %c0_85 = arith.constant 0 : index
    %184 = vector.load %arg6[%c0_84, %c0_85] : memref<1x128xf32, #tpu.memory_space<vmem>>, vector<1x128xf32>
    %185 = vector.broadcast %184 : vector<1x128xf32> to vector<256x128xf32>
    %186 = arith.addf %183, %185 : vector<256x128xf32>
    %c0_86 = arith.constant 0 : index
    %c0_87 = arith.constant 0 : index
    %c0_88 = arith.constant 0 : index
    %187 = vector.load %arg2[%c0_86, %c0_87, %c0_88] : memref<1x1x128xf32, #tpu.memory_space<vmem>>, vector<1x1x128xf32>
    %188 = vector.shape_cast %187 : vector<1x1x128xf32> to vector<1x128xf32>
    %189 = vector.broadcast %188 : vector<1x128xf32> to vector<256x128xf32>
    %190 = arith.addf %186, %189 : vector<256x128xf32>
    %c0_89 = arith.constant 0 : index
    %c0_90 = arith.constant 0 : index
    %191 = vector.load %arg7[%c0_89, %c0_90] : memref<1x128xf32, #tpu.memory_space<vmem>>, vector<1x128xf32>
    %c0_91 = arith.constant 0 : index
    %c0_92 = arith.constant 0 : index
    %192 = vector.load %arg8[%c0_91, %c0_92] : memref<1x128xf32, #tpu.memory_space<vmem>>, vector<1x128xf32>
    %cst_93 = arith.constant dense<0.000000e+00> : vector<128xf32>
    %193 = vector.multi_reduction <add>, %190, %cst_93 [0] : vector<256x128xf32> to vector<128xf32>
    %194 = vector.shape_cast %193 : vector<128xf32> to vector<1x128xf32>
    %195 = arith.mulf %190, %190 : vector<256x128xf32>
    %cst_94 = arith.constant dense<0.000000e+00> : vector<128xf32>
    %196 = vector.multi_reduction <add>, %195, %cst_94 [0] : vector<256x128xf32> to vector<128xf32>
    %197 = vector.shape_cast %196 : vector<128xf32> to vector<1x128xf32>
    %198 = tpu.iota {dimensions = array<i32: 1>} : vector<1x128xi32>
    %cst_95 = arith.constant 0.000000e+00 : f32
    %199 = vector.broadcast %cst_95 : f32 to vector<1x128xf32>
    %cst_96 = arith.constant 0.000000e+00 : f32
    %200 = vector.broadcast %cst_96 : f32 to vector<1x128xf32>
    %c0_i32_97 = arith.constant 0 : i32
    %201 = vector.broadcast %c0_i32_97 : i32 to vector<1x128xi32>
    %202 = arith.cmpi sge, %198, %201 : vector<1x128xi32>
    %c4_i32_98 = arith.constant 4 : i32
    %203 = vector.broadcast %c4_i32_98 : i32 to vector<1x128xi32>
    %204 = arith.cmpi slt, %198, %203 : vector<1x128xi32>
    %205 = arith.andi %202, %204 : vector<1x128xi1>
    %cst_99 = arith.constant 0.000000e+00 : f32
    %206 = vector.broadcast %cst_99 : f32 to vector<1x128xf32>
    %207 = arith.select %205, %194, %206 : vector<1x128xi1>, vector<1x128xf32>
    %cst_100 = arith.constant dense<0.000000e+00> : vector<1xf32>
    %208 = vector.multi_reduction <add>, %207, %cst_100 [1] : vector<1x128xf32> to vector<1xf32>
    %209 = vector.shape_cast %208 : vector<1xf32> to vector<1x1xf32>
    %cst_101 = arith.constant 9.765625E-4 : f32
    %210 = vector.broadcast %cst_101 : f32 to vector<1x1xf32>
    %211 = arith.mulf %209, %210 : vector<1x1xf32>
    %cst_102 = arith.constant 0.000000e+00 : f32
    %212 = vector.broadcast %cst_102 : f32 to vector<1x128xf32>
    %213 = arith.select %205, %197, %212 : vector<1x128xi1>, vector<1x128xf32>
    %cst_103 = arith.constant dense<0.000000e+00> : vector<1xf32>
    %214 = vector.multi_reduction <add>, %213, %cst_103 [1] : vector<1x128xf32> to vector<1xf32>
    %215 = vector.shape_cast %214 : vector<1xf32> to vector<1x1xf32>
    %cst_104 = arith.constant 9.765625E-4 : f32
    %216 = vector.broadcast %cst_104 : f32 to vector<1x1xf32>
    %217 = arith.mulf %215, %216 : vector<1x1xf32>
    %218 = vector.shape_cast %211 : vector<1x1xf32> to vector<1x1xf32>
    %219 = vector.broadcast %218 : vector<1x1xf32> to vector<1x128xf32>
    %220 = arith.select %205, %219, %199 : vector<1x128xi1>, vector<1x128xf32>
    %221 = vector.shape_cast %217 : vector<1x1xf32> to vector<1x1xf32>
    %222 = vector.broadcast %221 : vector<1x1xf32> to vector<1x128xf32>
    %223 = arith.select %205, %222, %200 : vector<1x128xi1>, vector<1x128xf32>
    %c4_i32_105 = arith.constant 4 : i32
    %224 = vector.broadcast %c4_i32_105 : i32 to vector<1x128xi32>
    %225 = arith.cmpi sge, %198, %224 : vector<1x128xi32>
    %c8_i32 = arith.constant 8 : i32
    %226 = vector.broadcast %c8_i32 : i32 to vector<1x128xi32>
    %227 = arith.cmpi slt, %198, %226 : vector<1x128xi32>
    %228 = arith.andi %225, %227 : vector<1x128xi1>
    %cst_106 = arith.constant 0.000000e+00 : f32
    %229 = vector.broadcast %cst_106 : f32 to vector<1x128xf32>
    %230 = arith.select %228, %194, %229 : vector<1x128xi1>, vector<1x128xf32>
    %cst_107 = arith.constant dense<0.000000e+00> : vector<1xf32>
    %231 = vector.multi_reduction <add>, %230, %cst_107 [1] : vector<1x128xf32> to vector<1xf32>
    %232 = vector.shape_cast %231 : vector<1xf32> to vector<1x1xf32>
    %cst_108 = arith.constant 9.765625E-4 : f32
    %233 = vector.broadcast %cst_108 : f32 to vector<1x1xf32>
    %234 = arith.mulf %232, %233 : vector<1x1xf32>
    %cst_109 = arith.constant 0.000000e+00 : f32
    %235 = vector.broadcast %cst_109 : f32 to vector<1x128xf32>
    %236 = arith.select %228, %197, %235 : vector<1x128xi1>, vector<1x128xf32>
    %cst_110 = arith.constant dense<0.000000e+00> : vector<1xf32>
    %237 = vector.multi_reduction <add>, %236, %cst_110 [1] : vector<1x128xf32> to vector<1xf32>
    %238 = vector.shape_cast %237 : vector<1xf32> to vector<1x1xf32>
    %cst_111 = arith.constant 9.765625E-4 : f32
    %239 = vector.broadcast %cst_111 : f32 to vector<1x1xf32>
    %240 = arith.mulf %238, %239 : vector<1x1xf32>
    %241 = vector.shape_cast %234 : vector<1x1xf32> to vector<1x1xf32>
    %242 = vector.broadcast %241 : vector<1x1xf32> to vector<1x128xf32>
    %243 = arith.select %228, %242, %220 : vector<1x128xi1>, vector<1x128xf32>
    %244 = vector.shape_cast %240 : vector<1x1xf32> to vector<1x1xf32>
    %245 = vector.broadcast %244 : vector<1x1xf32> to vector<1x128xf32>
    %246 = arith.select %228, %245, %223 : vector<1x128xi1>, vector<1x128xf32>
    %247 = arith.mulf %243, %243 : vector<1x128xf32>
    %248 = arith.subf %246, %247 : vector<1x128xf32>
    %cst_112 = arith.constant 0.000000e+00 : f32
    %249 = vector.broadcast %cst_112 : f32 to vector<1x128xf32>
    %250 = arith.maximumf %248, %249 : vector<1x128xf32>
    %cst_113 = arith.constant 9.99999997E-7 : f32
    %251 = vector.broadcast %cst_113 : f32 to vector<1x128xf32>
    %252 = arith.addf %250, %251 : vector<1x128xf32>
    %253 = math.rsqrt %252 : vector<1x128xf32>
    %254 = vector.broadcast %243 : vector<1x128xf32> to vector<256x128xf32>
    %255 = arith.subf %190, %254 : vector<256x128xf32>
    %256 = arith.mulf %253, %191 : vector<1x128xf32>
    %257 = vector.broadcast %256 : vector<1x128xf32> to vector<256x128xf32>
    %258 = arith.mulf %255, %257 : vector<256x128xf32>
    %259 = vector.broadcast %192 : vector<1x128xf32> to vector<256x128xf32>
    %260 = arith.addf %258, %259 : vector<256x128xf32>
    %cst_114 = arith.constant 0.000000e+00 : f32
    %261 = vector.broadcast %cst_114 : f32 to vector<256x128xf32>
    %262 = arith.subf %261, %260 : vector<256x128xf32>
    %263 = math.exp %262 : vector<256x128xf32>
    %cst_115 = arith.constant 1.000000e+00 : f32
    %264 = vector.broadcast %cst_115 : f32 to vector<256x128xf32>
    %265 = arith.addf %264, %263 : vector<256x128xf32>
    %266 = tpu.reciprocal %265 : vector<256x128xf32> -> vector<256x128xf32>
    %267 = arith.mulf %260, %266 : vector<256x128xf32>
    %c24_116 = arith.constant 24 : index
    %c0_117 = arith.constant 0 : index
    %268 = vector.load %arg14[%c24_116, %c0_117] : memref<304x128xf32, #tpu.memory_space<vmem>>, vector<256x128xf32>
    tpu.vector_store %arg14[%c24_116, %c0_117], %267 {strides = array<i32>} : memref<304x128xf32, #tpu.memory_space<vmem>>, vector<256x128xf32>,
    %cst_118 = arith.constant 0.000000e+00 : f32
    %269 = vector.broadcast %cst_118 : f32 to vector<256x128xf32>
    %c7_119 = arith.constant 7 : index
    %c0_120 = arith.constant 0 : index
    %270 = vector.load %arg14[%c7_119, %c0_120] : memref<304x128xf32, #tpu.memory_space<vmem>>, vector<256x128xf32>
    %cst_121 = arith.constant 0.000000e+00 : f32
    %271 = vector.shape_cast %20 : vector<256x1xi1> to vector<256x1xi1>
    %272 = vector.broadcast %271 : vector<256x1xi1> to vector<256x128xi1>
    %273 = vector.broadcast %cst_121 : f32 to vector<256x128xf32>
    %274 = arith.select %272, %270, %273 : vector<256x128xi1>, vector<256x128xf32>
    %275 = arith.truncf %274 : vector<256x128xf32> to vector<256x128xbf16>
    %c0_122 = arith.constant 0 : index
    %c0_123 = arith.constant 0 : index
    %c0_124 = arith.constant 0 : index
    %276 = vector.load %arg9[%c0_122, %c0_123, %c0_124] : memref<9x128x128xbf16, #tpu.memory_space<vmem>>, vector<1x128x128xbf16>
    %277 = vector.shape_cast %276 : vector<1x128x128xbf16> to vector<128x128xbf16>
    %cst_125 = arith.constant dense<0.000000e+00> : vector<256x128xf32>
    %278 = tpu.matmul %275, %277, %cst_125 {dimension_numbers = #tpu.dot_dimension_numbers<[1], [0], [0], [1], [0, 0, 1, 1], [], []>} : vector<256x128xbf16>, vector<128x128xbf16>, vector<256x128xf32> -> vector<256x128xf32>
    %279 = arith.addf %269, %278 : vector<256x128xf32>
    %c8_126 = arith.constant 8 : index
    %c0_127 = arith.constant 0 : index
    %280 = vector.load %arg14[%c8_126, %c0_127] : memref<304x128xf32, #tpu.memory_space<vmem>>, vector<256x128xf32>
    %281 = arith.truncf %280 : vector<256x128xf32> to vector<256x128xbf16>
    %c1_128 = arith.constant 1 : index
    %c0_129 = arith.constant 0 : index
    %c0_130 = arith.constant 0 : index
    %282 = vector.load %arg9[%c1_128, %c0_129, %c0_130] : memref<9x128x128xbf16, #tpu.memory_space<vmem>>, vector<1x128x128xbf16>
    %283 = vector.shape_cast %282 : vector<1x128x128xbf16> to vector<128x128xbf16>
    %cst_131 = arith.constant dense<0.000000e+00> : vector<256x128xf32>
    %284 = tpu.matmul %281, %283, %cst_131 {dimension_numbers = #tpu.dot_dimension_numbers<[1], [0], [0], [1], [0, 0, 1, 1], [], []>} : vector<256x128xbf16>, vector<128x128xbf16>, vector<256x128xf32> -> vector<256x128xf32>
    %285 = arith.addf %279, %284 : vector<256x128xf32>
    %c9_132 = arith.constant 9 : index
    %c0_133 = arith.constant 0 : index
    %286 = vector.load %arg14[%c9_132, %c0_133] : memref<304x128xf32, #tpu.memory_space<vmem>>, vector<256x128xf32>
    %cst_134 = arith.constant 0.000000e+00 : f32
    %287 = vector.shape_cast %22 : vector<256x1xi1> to vector<256x1xi1>
    %288 = vector.broadcast %287 : vector<256x1xi1> to vector<256x128xi1>
    %289 = vector.broadcast %cst_134 : f32 to vector<256x128xf32>
    %290 = arith.select %288, %286, %289 : vector<256x128xi1>, vector<256x128xf32>
    %291 = arith.truncf %290 : vector<256x128xf32> to vector<256x128xbf16>
    %c2_135 = arith.constant 2 : index
    %c0_136 = arith.constant 0 : index
    %c0_137 = arith.constant 0 : index
    %292 = vector.load %arg9[%c2_135, %c0_136, %c0_137] : memref<9x128x128xbf16, #tpu.memory_space<vmem>>, vector<1x128x128xbf16>
    %293 = vector.shape_cast %292 : vector<1x128x128xbf16> to vector<128x128xbf16>
    %cst_138 = arith.constant dense<0.000000e+00> : vector<256x128xf32>
    %294 = tpu.matmul %291, %293, %cst_138 {dimension_numbers = #tpu.dot_dimension_numbers<[1], [0], [0], [1], [0, 0, 1, 1], [], []>} : vector<256x128xbf16>, vector<128x128xbf16>, vector<256x128xf32> -> vector<256x128xf32>
    %295 = arith.addf %285, %294 : vector<256x128xf32>
    %c23_139 = arith.constant 23 : index
    %c0_140 = arith.constant 0 : index
    %296 = vector.load %arg14[%c23_139, %c0_140] : memref<304x128xf32, #tpu.memory_space<vmem>>, vector<256x128xf32>
    %cst_141 = arith.constant 0.000000e+00 : f32
    %297 = vector.shape_cast %20 : vector<256x1xi1> to vector<256x1xi1>
    %298 = vector.broadcast %297 : vector<256x1xi1> to vector<256x128xi1>
    %299 = vector.broadcast %cst_141 : f32 to vector<256x128xf32>
    %300 = arith.select %298, %296, %299 : vector<256x128xi1>, vector<256x128xf32>
    %301 = arith.truncf %300 : vector<256x128xf32> to vector<256x128xbf16>
    %c3_142 = arith.constant 3 : index
    %c0_143 = arith.constant 0 : index
    %c0_144 = arith.constant 0 : index
    %302 = vector.load %arg9[%c3_142, %c0_143, %c0_144] : memref<9x128x128xbf16, #tpu.memory_space<vmem>>, vector<1x128x128xbf16>
    %303 = vector.shape_cast %302 : vector<1x128x128xbf16> to vector<128x128xbf16>
    %cst_145 = arith.constant dense<0.000000e+00> : vector<256x128xf32>
    %304 = tpu.matmul %301, %303, %cst_145 {dimension_numbers = #tpu.dot_dimension_numbers<[1], [0], [0], [1], [0, 0, 1, 1], [], []>} : vector<256x128xbf16>, vector<128x128xbf16>, vector<256x128xf32> -> vector<256x128xf32>
    %305 = arith.addf %295, %304 : vector<256x128xf32>
    %c24_146 = arith.constant 24 : index
    %c0_147 = arith.constant 0 : index
    %306 = vector.load %arg14[%c24_146, %c0_147] : memref<304x128xf32, #tpu.memory_space<vmem>>, vector<256x128xf32>
    %307 = arith.truncf %306 : vector<256x128xf32> to vector<256x128xbf16>
    %c4_148 = arith.constant 4 : index
    %c0_149 = arith.constant 0 : index
    %c0_150 = arith.constant 0 : index
    %308 = vector.load %arg9[%c4_148, %c0_149, %c0_150] : memref<9x128x128xbf16, #tpu.memory_space<vmem>>, vector<1x128x128xbf16>
    %309 = vector.shape_cast %308 : vector<1x128x128xbf16> to vector<128x128xbf16>
    %cst_151 = arith.constant dense<0.000000e+00> : vector<256x128xf32>
    %310 = tpu.matmul %307, %309, %cst_151 {dimension_numbers = #tpu.dot_dimension_numbers<[1], [0], [0], [1], [0, 0, 1, 1], [], []>} : vector<256x128xbf16>, vector<128x128xbf16>, vector<256x128xf32> -> vector<256x128xf32>
    %311 = arith.addf %305, %310 : vector<256x128xf32>
    %c25_152 = arith.constant 25 : index
    %c0_153 = arith.constant 0 : index
    %312 = vector.load %arg14[%c25_152, %c0_153] : memref<304x128xf32, #tpu.memory_space<vmem>>, vector<256x128xf32>
    %cst_154 = arith.constant 0.000000e+00 : f32
    %313 = vector.shape_cast %22 : vector<256x1xi1> to vector<256x1xi1>
    %314 = vector.broadcast %313 : vector<256x1xi1> to vector<256x128xi1>
    %315 = vector.broadcast %cst_154 : f32 to vector<256x128xf32>
    %316 = arith.select %314, %312, %315 : vector<256x128xi1>, vector<256x128xf32>
    %317 = arith.truncf %316 : vector<256x128xf32> to vector<256x128xbf16>
    %c5_155 = arith.constant 5 : index
    %c0_156 = arith.constant 0 : index
    %c0_157 = arith.constant 0 : index
    %318 = vector.load %arg9[%c5_155, %c0_156, %c0_157] : memref<9x128x128xbf16, #tpu.memory_space<vmem>>, vector<1x128x128xbf16>
    %319 = vector.shape_cast %318 : vector<1x128x128xbf16> to vector<128x128xbf16>
    %cst_158 = arith.constant dense<0.000000e+00> : vector<256x128xf32>
    %320 = tpu.matmul %317, %319, %cst_158 {dimension_numbers = #tpu.dot_dimension_numbers<[1], [0], [0], [1], [0, 0, 1, 1], [], []>} : vector<256x128xbf16>, vector<128x128xbf16>, vector<256x128xf32> -> vector<256x128xf32>
    %321 = arith.addf %311, %320 : vector<256x128xf32>
    %c39_159 = arith.constant 39 : index
    %c0_160 = arith.constant 0 : index
    %322 = vector.load %arg14[%c39_159, %c0_160] : memref<304x128xf32, #tpu.memory_space<vmem>>, vector<256x128xf32>
    %cst_161 = arith.constant 0.000000e+00 : f32
    %323 = vector.shape_cast %20 : vector<256x1xi1> to vector<256x1xi1>
    %324 = vector.broadcast %323 : vector<256x1xi1> to vector<256x128xi1>
    %325 = vector.broadcast %cst_161 : f32 to vector<256x128xf32>
    %326 = arith.select %324, %322, %325 : vector<256x128xi1>, vector<256x128xf32>
    %327 = arith.truncf %326 : vector<256x128xf32> to vector<256x128xbf16>
    %c6_162 = arith.constant 6 : index
    %c0_163 = arith.constant 0 : index
    %c0_164 = arith.constant 0 : index
    %328 = vector.load %arg9[%c6_162, %c0_163, %c0_164] : memref<9x128x128xbf16, #tpu.memory_space<vmem>>, vector<1x128x128xbf16>
    %329 = vector.shape_cast %328 : vector<1x128x128xbf16> to vector<128x128xbf16>
    %cst_165 = arith.constant dense<0.000000e+00> : vector<256x128xf32>
    %330 = tpu.matmul %327, %329, %cst_165 {dimension_numbers = #tpu.dot_dimension_numbers<[1], [0], [0], [1], [0, 0, 1, 1], [], []>} : vector<256x128xbf16>, vector<128x128xbf16>, vector<256x128xf32> -> vector<256x128xf32>
    %331 = arith.addf %321, %330 : vector<256x128xf32>
    %c40_166 = arith.constant 40 : index
    %c0_167 = arith.constant 0 : index
    %332 = vector.load %arg14[%c40_166, %c0_167] : memref<304x128xf32, #tpu.memory_space<vmem>>, vector<256x128xf32>
    %333 = arith.truncf %332 : vector<256x128xf32> to vector<256x128xbf16>
    %c7_168 = arith.constant 7 : index
    %c0_169 = arith.constant 0 : index
    %c0_170 = arith.constant 0 : index
    %334 = vector.load %arg9[%c7_168, %c0_169, %c0_170] : memref<9x128x128xbf16, #tpu.memory_space<vmem>>, vector<1x128x128xbf16>
    %335 = vector.shape_cast %334 : vector<1x128x128xbf16> to vector<128x128xbf16>
    %cst_171 = arith.constant dense<0.000000e+00> : vector<256x128xf32>
    %336 = tpu.matmul %333, %335, %cst_171 {dimension_numbers = #tpu.dot_dimension_numbers<[1], [0], [0], [1], [0, 0, 1, 1], [], []>} : vector<256x128xbf16>, vector<128x128xbf16>, vector<256x128xf32> -> vector<256x128xf32>
    %337 = arith.addf %331, %336 : vector<256x128xf32>
    %c41_172 = arith.constant 41 : index
    %c0_173 = arith.constant 0 : index
    %338 = vector.load %arg14[%c41_172, %c0_173] : memref<304x128xf32, #tpu.memory_space<vmem>>, vector<256x128xf32>
    %cst_174 = arith.constant 0.000000e+00 : f32
    %339 = vector.shape_cast %22 : vector<256x1xi1> to vector<256x1xi1>
    %340 = vector.broadcast %339 : vector<256x1xi1> to vector<256x128xi1>
    %341 = vector.broadcast %cst_174 : f32 to vector<256x128xf32>
    %342 = arith.select %340, %338, %341 : vector<256x128xi1>, vector<256x128xf32>
    %343 = arith.truncf %342 : vector<256x128xf32> to vector<256x128xbf16>
    %c8_175 = arith.constant 8 : index
    %c0_176 = arith.constant 0 : index
    %c0_177 = arith.constant 0 : index
    %344 = vector.load %arg9[%c8_175, %c0_176, %c0_177] : memref<9x128x128xbf16, #tpu.memory_space<vmem>>, vector<1x128x128xbf16>
    %345 = vector.shape_cast %344 : vector<1x128x128xbf16> to vector<128x128xbf16>
    %cst_178 = arith.constant dense<0.000000e+00> : vector<256x128xf32>
    %346 = tpu.matmul %343, %345, %cst_178 {dimension_numbers = #tpu.dot_dimension_numbers<[1], [0], [0], [1], [0, 0, 1, 1], [], []>} : vector<256x128xbf16>, vector<128x128xbf16>, vector<256x128xf32> -> vector<256x128xf32>
    %347 = arith.addf %337, %346 : vector<256x128xf32>
    %c0_179 = arith.constant 0 : index
    %c0_180 = arith.constant 0 : index
    %348 = vector.load %arg10[%c0_179, %c0_180] : memref<1x128xf32, #tpu.memory_space<vmem>>, vector<1x128xf32>
    %349 = vector.broadcast %348 : vector<1x128xf32> to vector<256x128xf32>
    %350 = arith.addf %347, %349 : vector<256x128xf32>
    %351 = arith.truncf %1 : vector<256x128xf32> to vector<256x128xbf16>
    %c0_181 = arith.constant 0 : index
    %c0_182 = arith.constant 0 : index
    %352 = vector.load %arg11[%c0_181, %c0_182] : memref<128x128xbf16, #tpu.memory_space<vmem>>, vector<128x128xbf16>
    %cst_183 = arith.constant dense<0.000000e+00> : vector<256x128xf32>
    %353 = tpu.matmul %351, %352, %cst_183 {dimension_numbers = #tpu.dot_dimension_numbers<[1], [0], [0], [1], [0, 0, 1, 1], [], []>} : vector<256x128xbf16>, vector<128x128xbf16>, vector<256x128xf32> -> vector<256x128xf32>
    %c0_184 = arith.constant 0 : index
    %c0_185 = arith.constant 0 : index
    %354 = vector.load %arg12[%c0_184, %c0_185] : memref<1x128xf32, #tpu.memory_space<vmem>>, vector<1x128xf32>
    %355 = vector.broadcast %354 : vector<1x128xf32> to vector<256x128xf32>
    %356 = arith.addf %353, %355 : vector<256x128xf32>
    %357 = arith.addf %350, %356 : vector<256x128xf32>
    %c0_186 = arith.constant 0 : index
    %c0_187 = arith.constant 0 : index
    %c0_188 = arith.constant 0 : index
    %358 = vector.load %arg13[%c0_186, %c0_187, %c0_188] : memref<1x256x128xf32, #tpu.memory_space<vmem>>, vector<1x256x128xf32>
    %359 = vector.shape_cast %358 : vector<1x256x128xf32> to vector<256x128xf32>
    %360 = vector.shape_cast %357 : vector<256x128xf32> to vector<1x256x128xf32>
    tpu.vector_store %arg13[%c0_186, %c0_187, %c0_188], %360 {strides = array<i32>} : memref<1x256x128xf32, #tpu.memory_space<vmem>>, vector<1x256x128xf32>,
    return
  }
  func.func @transform_0(%arg0: i32) -> (i32, i32, i32) {
    %c0_i32 = arith.constant 0 : i32
    %c0_i32_0 = arith.constant 0 : i32
    %c0_i32_1 = arith.constant 0 : i32
    return %arg0, %c0_i32, %c0_i32_0 : i32, i32, i32
  }
  func.func @transform_1(%arg0: i32) -> (i32, i32, i32) {
    %c0_i32 = arith.constant 0 : i32
    %c0_i32_0 = arith.constant 0 : i32
    %c0_i32_1 = arith.constant 0 : i32
    return %arg0, %c0_i32, %c0_i32_0 : i32, i32, i32
  }
  func.func @transform_2(%arg0: i32) -> (i32, i32) {
    %c0_i32 = arith.constant 0 : i32
    %c0_i32_0 = arith.constant 0 : i32
    %c0_i32_1 = arith.constant 0 : i32
    return %c0_i32, %c0_i32_0 : i32, i32
  }
  func.func @transform_3(%arg0: i32) -> (i32, i32) {
    %c0_i32 = arith.constant 0 : i32
    %c0_i32_0 = arith.constant 0 : i32
    %c0_i32_1 = arith.constant 0 : i32
    return %c0_i32, %c0_i32_0 : i32, i32
  }
  func.func @transform_4(%arg0: i32) -> (i32, i32, i32) {
    %c0_i32 = arith.constant 0 : i32
    %c0_i32_0 = arith.constant 0 : i32
    %c0_i32_1 = arith.constant 0 : i32
    %c0_i32_2 = arith.constant 0 : i32
    return %c0_i32, %c0_i32_0, %c0_i32_1 : i32, i32, i32
  }
  func.func @transform_5(%arg0: i32) -> (i32, i32) {
    %c0_i32 = arith.constant 0 : i32
    %c0_i32_0 = arith.constant 0 : i32
    %c0_i32_1 = arith.constant 0 : i32
    return %c0_i32, %c0_i32_0 : i32, i32
  }
  func.func @transform_6(%arg0: i32) -> (i32, i32) {
    %c0_i32 = arith.constant 0 : i32
    %c0_i32_0 = arith.constant 0 : i32
    %c0_i32_1 = arith.constant 0 : i32
    return %c0_i32, %c0_i32_0 : i32, i32
  }
  func.func @transform_7(%arg0: i32) -> (i32, i32) {
    %c0_i32 = arith.constant 0 : i32
    %c0_i32_0 = arith.constant 0 : i32
    %c0_i32_1 = arith.constant 0 : i32
    return %c0_i32, %c0_i32_0 : i32, i32
  }
  func.func @transform_8(%arg0: i32) -> (i32, i32, i32) {
    %c0_i32 = arith.constant 0 : i32
    %c0_i32_0 = arith.constant 0 : i32
    %c0_i32_1 = arith.constant 0 : i32
    %c0_i32_2 = arith.constant 0 : i32
    return %c0_i32, %c0_i32_0, %c0_i32_1 : i32, i32, i32
  }
  func.func @transform_9(%arg0: i32) -> (i32, i32) {
    %c0_i32 = arith.constant 0 : i32
    %c0_i32_0 = arith.constant 0 : i32
    %c0_i32_1 = arith.constant 0 : i32
    return %c0_i32, %c0_i32_0 : i32, i32
  }
  func.func @transform_10(%arg0: i32) -> (i32, i32) {
    %c0_i32 = arith.constant 0 : i32
    %c0_i32_0 = arith.constant 0 : i32
    %c0_i32_1 = arith.constant 0 : i32
    return %c0_i32, %c0_i32_0 : i32, i32
  }
  func.func @transform_11(%arg0: i32) -> (i32, i32) {
    %c0_i32 = arith.constant 0 : i32
    %c0_i32_0 = arith.constant 0 : i32
    %c0_i32_1 = arith.constant 0 : i32
    return %c0_i32, %c0_i32_0 : i32, i32
  }
  func.func @transform_12(%arg0: i32) -> (i32, i32, i32) {
    %c0_i32 = arith.constant 0 : i32
    %c0_i32_0 = arith.constant 0 : i32
    %c0_i32_1 = arith.constant 0 : i32
    return %arg0, %c0_i32, %c0_i32_0 : i32, i32, i32
  }
}

</mosaic_0001>

<llo_original>
// kernel: tpu_custom_call.1
$region0: #{tpu_custom_call.1}
  #allocation0 [shape = 'u32[]', space=smem, size = 0x4, offset = 0x4, fixed_abs, tag = 'smem constant byte address 0x4 - core index']
  #allocation1 [shape = 'u32[144,128]{1,0:T(1,128)}', space=vmem, size = 0x12000, scoped, tag = 'internal scratch']
  #allocation2 [shape = 'f32[304,128]{1,0:T(8,128)}', space=vmem, size = 0x26000, scoped, tag = 'scratch operand']
  %s0 = inlined_call_operand.hbm [shape: f32[2,256,128], index: 0, kind: input, shape index: {}]
  %s1 = inlined_call_operand.hbm [shape: f32[2,1,128], index: 1, kind: input, shape index: {}]
  %s2 = inlined_call_operand.vmem [shape: f32[1,128], index: 2, kind: input, shape index: {}]
  %s3 = inlined_call_operand.vmem [shape: f32[1,128], index: 3, kind: input, shape index: {}]
  %s4 = inlined_call_operand.hbm [shape: bf16[9,128,128], index: 4, kind: input, shape index: {}]
  %s5 = inlined_call_operand.vmem [shape: f32[1,128], index: 5, kind: input, shape index: {}]
  %s6 = inlined_call_operand.vmem [shape: f32[1,128], index: 6, kind: input, shape index: {}]
  %s7 = inlined_call_operand.vmem [shape: f32[1,128], index: 7, kind: input, shape index: {}]
  %s8 = inlined_call_operand.hbm [shape: bf16[9,128,128], index: 8, kind: input, shape index: {}]
  %s9 = inlined_call_operand.vmem [shape: f32[1,128], index: 9, kind: input, shape index: {}]
  %s10 = inlined_call_operand.hbm [shape: bf16[128,128], index: 10, kind: input, shape index: {}]
  %s11 = inlined_call_operand.vmem [shape: f32[1,128], index: 11, kind: input, shape index: {}]
  %s12 = inlined_call_operand.hbm [shape: f32[2,256,128], index: 12, kind: output, shape index: {}]
  %s13 = sld [smem:[#allocation0]]
  $region101: #{tpu_custom_call.1} parent=0
    _
  %s15 = ssub.s32 1, %s13
  %s16 = scalar_select 0, %s15, %s13
  $region1: #{tpu_custom_call.1} parent=0
    #allocation3 [shape = 'u8[262144]{0}', space=vmem, size = 0x40000, scoped, tag = 'input window, operand 0']
    #allocation4 [shape = 's32[2]{0}', space=sflag, size = 0x8, scoped, tag = 'scoped memory for tpu_custom_call.1']
    #allocation5 [shape = 's32[2]{0}', space=sflag, size = 0x8, scoped, tag = 'scoped memory for tpu_custom_call.1']
    #allocation6 [shape = 'u8[1024]{0}', space=vmem, size = 0x400, scoped, tag = 'input window, operand 1']
    #allocation7 [shape = 's32[2]{0}', space=sflag, size = 0x8, scoped, tag = 'scoped memory for tpu_custom_call.1']
    #allocation8 [shape = 'u8[294912]{0}', space=vmem, size = 0x48000, scoped, tag = 'input window, operand 4, single buffered']
    #allocation9 [shape = 'u8[294912]{0}', space=vmem, size = 0x48000, scoped, tag = 'input window, operand 8, single buffered']
    #allocation10 [shape = 's32[1]{0}', space=sflag, size = 0x4, scoped, tag = 'scoped memory for tpu_custom_call.1']
    #allocation11 [shape = 'u8[32768]{0}', space=vmem, size = 0x8000, scoped, tag = 'input window, operand 10, single buffered']
    #allocation12 [shape = 'u8[262144]{0}', space=vmem, size = 0x40000, scoped, tag = 'output window, operand 0']
    %17 = vsyncpa [#allocation4], 0
    %s18 = scalar_lea.sflag [#allocation4], 1
    %19 = vsyncpa %s18, 0
    %20 = vsyncpa [#allocation7], 0
    %s21 = scalar_lea.sflag [#allocation7], 1
    %22 = vsyncpa %s21, 0
    %23 = vsyncpa [#allocation10], 0
    %24 = vsyncpa [#allocation5], 0
    %s25 = scalar_lea.sflag [#allocation5], 1
    %26 = vsyncpa %s25, 0
    loop: start=0, step=1, limit=4
    $region2: #{tpu_custom_call.1} parent=1 // loop_pre_header
      _
    $region3: #{tpu_custom_call.1} parent=1 // loop_header
      %s28 = sphi 0, %s32
      %p29 = scmp.ge.s32.totalorder %s28, 4
      %s38 = sphi 0, %s40
      %s41 = sphi 0, %s38
      %s42 = sphi 0, %s41
      %s58 = sphi 0, %s42
      %s64 = sphi 0, %s66
      %s67 = sphi 0, %s64
      %s68 = sphi 0, %s67
      %s84 = sphi 0, %s68
      %s88 = sphi 0, %s88
      %s90 = sphi 0, %s88
      %s91 = sphi 0, %s90
      %s105 = sphi 0, %s91
      %s109 = sphi 0, %s109
      %s111 = sphi 0, %s109
      %s112 = sphi 0, %s111
      %s126 = sphi 0, %s112
      %s130 = sphi 0, %s130
      %s132 = sphi 0, %s130
      %s133 = sphi 0, %s132
      %s147 = sphi 0, %s133
      %s151 = sphi 0, %s151
      %s153 = sphi 0, %s151
      %s154 = sphi 0, %s153
      %s168 = sphi 0, %s154
      %s172 = sphi 0, %s172
      %s174 = sphi 0, %s172
      %s175 = sphi 0, %s174
      %s189 = sphi 0, %s175
      %s193 = sphi 0, %s193
      %s195 = sphi 0, %s193
      %s196 = sphi 0, %s195
      %s210 = sphi 0, %s196
      %s214 = sphi 0, %s214
      %s216 = sphi 0, %s214
      %s217 = sphi 0, %s216
      %s231 = sphi 0, %s217
      %s235 = sphi 0, %s235
      %s237 = sphi 0, %s235
      %s238 = sphi 0, %s237
      %s252 = sphi 0, %s238
      %s256 = sphi 0, %s256
      %s258 = sphi 0, %s256
      %s259 = sphi 0, %s258
      %s273 = sphi 0, %s259
      %s277 = sphi 0, %s277
      %s279 = sphi 0, %s277
      %s280 = sphi 0, %s279
      %s294 = sphi 0, %s280
      %s300 = sphi 0, %s302
      %s303 = sphi 0, %s300
      %s304 = sphi 0, %s303
      %s320 = sphi 0, %s304
    $region4: #{tpu_custom_call.1} parent=1 // loop_header_branch
      %31 = sbr.rel (%p29) target = $region8
    $region5: #{tpu_custom_call.1} parent=1 // loop_body
      %s33 = ssub.s32 %s28, 1
      %s34 = ssub.s32 %s28, 2
      %s35 = sadd.s32 %s28, 1
      %s36 = ssub.s32 %s28, %s35
      %p37 = scmp.eq.s32.totalorder %s36, 0
      %s39 = sadd.s32 %s38, 1
      %s40 = scalar_select %p37, %s38, %s39
      %p43 = pneg %p37
      %p44 = scmp.eq.s32.totalorder %s28, 1
      %p45 = por %p43, %p44
      %p46 = scmp.ne.s32.totalorder %s38, %s41
      %p47 = scmp.eq.s32.totalorder %s28, 0
      %p48 = por %p46, %p47
      %p49 = scmp.ne.s32.totalorder %s38, %s41
      %p50 = scmp.eq.s32.totalorder %s33, 1
      %p51 = por %p49, %p50
      %p52 = scmp.ne.s32.totalorder %s41, %s42
      %p53 = scmp.eq.s32.totalorder %s33, 0
      %p54 = por %p52, %p53
      %p55 = scmp.ne.s32.totalorder %s41, %s42
      %p56 = scmp.eq.s32.totalorder %s34, 1
      %p57 = por %p55, %p56
      %p59 = scmp.ne.s32.totalorder %s42, %s58
      %p60 = scmp.eq.s32.totalorder %s34, 0
      %p61 = por %p59, %p60
      %s62 = ssub.s32 %s28, %s35
      %p63 = scmp.eq.s32.totalorder %s62, 0
      %s65 = sadd.s32 %s64, 1
      %s66 = scalar_select %p63, %s64, %s65
      %p69 = pneg %p63
      %p70 = scmp.eq.s32.totalorder %s28, 1
      %p71 = por %p69, %p70
      %p72 = scmp.ne.s32.totalorder %s64, %s67
      %p73 = scmp.eq.s32.totalorder %s28, 0
      %p74 = por %p72, %p73
      %p75 = scmp.ne.s32.totalorder %s64, %s67
      %p76 = scmp.eq.s32.totalorder %s33, 1
      %p77 = por %p75, %p76
      %p78 = scmp.ne.s32.totalorder %s67, %s68
      %p79 = scmp.eq.s32.totalorder %s33, 0
      %p80 = por %p78, %p79
      %p81 = scmp.ne.s32.totalorder %s67, %s68
      %p82 = scmp.eq.s32.totalorder %s34, 1
      %p83 = por %p81, %p82
      %p85 = scmp.ne.s32.totalorder %s68, %s84
      %p86 = scmp.eq.s32.totalorder %s34, 0
      %p87 = por %p85, %p86
      %s89 = sadd.s32 %s88, 1
      %p92 = scmp.eq.s32.totalorder %s28, 1
      %p93 = scmp.ne.s32.totalorder %s88, %s90
      %p94 = scmp.eq.s32.totalorder %s28, 0
      %p95 = por %p93, %p94
      %p96 = scmp.ne.s32.totalorder %s88, %s90
      %p97 = scmp.eq.s32.totalorder %s33, 1
      %p98 = por %p96, %p97
      %p99 = scmp.ne.s32.totalorder %s90, %s91
      %p100 = scmp.eq.s32.totalorder %s33, 0
      %p101 = por %p99, %p100
      %p102 = scmp.ne.s32.totalorder %s90, %s91
      %p103 = scmp.eq.s32.totalorder %s34, 1
      %p104 = por %p102, %p103
      %p106 = scmp.ne.s32.totalorder %s91, %s105
      %p107 = scmp.eq.s32.totalorder %s34, 0
      %p108 = por %p106, %p107
      %s110 = sadd.s32 %s109, 1
      %p113 = scmp.eq.s32.totalorder %s28, 1
      %p114 = scmp.ne.s32.totalorder %s109, %s111
      %p115 = scmp.eq.s32.totalorder %s28, 0
      %p116 = por %p114, %p115
      %p117 = scmp.ne.s32.totalorder %s109, %s111
      %p118 = scmp.eq.s32.totalorder %s33, 1
      %p119 = por %p117, %p118
      %p120 = scmp.ne.s32.totalorder %s111, %s112
      %p121 = scmp.eq.s32.totalorder %s33, 0
      %p122 = por %p120, %p121
      %p123 = scmp.ne.s32.totalorder %s111, %s112
      %p124 = scmp.eq.s32.totalorder %s34, 1
      %p125 = por %p123, %p124
      %p127 = scmp.ne.s32.totalorder %s112, %s126
      %p128 = scmp.eq.s32.totalorder %s34, 0
      %p129 = por %p127, %p128
      %s131 = sadd.s32 %s130, 1
      %p134 = scmp.eq.s32.totalorder %s28, 1
      %p135 = scmp.ne.s32.totalorder %s130, %s132
      %p136 = scmp.eq.s32.totalorder %s28, 0
      %p137 = por %p135, %p136
      %p138 = scmp.ne.s32.totalorder %s130, %s132
      %p139 = scmp.eq.s32.totalorder %s33, 1
      %p140 = por %p138, %p139
      %p141 = scmp.ne.s32.totalorder %s132, %s133
      %p142 = scmp.eq.s32.totalorder %s33, 0
      %p143 = por %p141, %p142
      %p144 = scmp.ne.s32.totalorder %s132, %s133
      %p145 = scmp.eq.s32.totalorder %s34, 1
      %p146 = por %p144, %p145
      %p148 = scmp.ne.s32.totalorder %s133, %s147
      %p149 = scmp.eq.s32.totalorder %s34, 0
      %p150 = por %p148, %p149
      %s152 = sadd.s32 %s151, 1
      %p155 = scmp.eq.s32.totalorder %s28, 1
      %p156 = scmp.ne.s32.totalorder %s151, %s153
      %p157 = scmp.eq.s32.totalorder %s28, 0
      %p158 = por %p156, %p157
      %p159 = scmp.ne.s32.totalorder %s151, %s153
      %p160 = scmp.eq.s32.totalorder %s33, 1
      %p161 = por %p159, %p160
      %p162 = scmp.ne.s32.totalorder %s153, %s154
      %p163 = scmp.eq.s32.totalorder %s33, 0
      %p164 = por %p162, %p163
      %p165 = scmp.ne.s32.totalorder %s153, %s154
      %p166 = scmp.eq.s32.totalorder %s34, 1
      %p167 = por %p165, %p166
      %p169 = scmp.ne.s32.totalorder %s154, %s168
      %p170 = scmp.eq.s32.totalorder %s34, 0
      %p171 = por %p169, %p170
      %s173 = sadd.s32 %s172, 1
      %p176 = scmp.eq.s32.totalorder %s28, 1
      %p177 = scmp.ne.s32.totalorder %s172, %s174
      %p178 = scmp.eq.s32.totalorder %s28, 0
      %p179 = por %p177, %p178
      %p180 = scmp.ne.s32.totalorder %s172, %s174
      %p181 = scmp.eq.s32.totalorder %s33, 1
      %p182 = por %p180, %p181
      %p183 = scmp.ne.s32.totalorder %s174, %s175
      %p184 = scmp.eq.s32.totalorder %s33, 0
      %p185 = por %p183, %p184
      %p186 = scmp.ne.s32.totalorder %s174, %s175
      %p187 = scmp.eq.s32.totalorder %s34, 1
      %p188 = por %p186, %p187
      %p190 = scmp.ne.s32.totalorder %s175, %s189
      %p191 = scmp.eq.s32.totalorder %s34, 0
      %p192 = por %p190, %p191
      %s194 = sadd.s32 %s193, 1
      %p197 = scmp.eq.s32.totalorder %s28, 1
      %p198 = scmp.ne.s32.totalorder %s193, %s195
      %p199 = scmp.eq.s32.totalorder %s28, 0
      %p200 = por %p198, %p199
      %p201 = scmp.ne.s32.totalorder %s193, %s195
      %p202 = scmp.eq.s32.totalorder %s33, 1
      %p203 = por %p201, %p202
      %p204 = scmp.ne.s32.totalorder %s195, %s196
      %p205 = scmp.eq.s32.totalorder %s33, 0
      %p206 = por %p204, %p205
      %p207 = scmp.ne.s32.totalorder %s195, %s196
      %p208 = scmp.eq.s32.totalorder %s34, 1
      %p209 = por %p207, %p208
      %p211 = scmp.ne.s32.totalorder %s196, %s210
      %p212 = scmp.eq.s32.totalorder %s34, 0
      %p213 = por %p211, %p212
      %s215 = sadd.s32 %s214, 1
      %p218 = scmp.eq.s32.totalorder %s28, 1
      %p219 = scmp.ne.s32.totalorder %s214, %s216
      %p220 = scmp.eq.s32.totalorder %s28, 0
      %p221 = por %p219, %p220
      %p222 = scmp.ne.s32.totalorder %s214, %s216
      %p223 = scmp.eq.s32.totalorder %s33, 1
      %p224 = por %p222, %p223
      %p225 = scmp.ne.s32.totalorder %s216, %s217
      %p226 = scmp.eq.s32.totalorder %s33, 0
      %p227 = por %p225, %p226
      %p228 = scmp.ne.s32.totalorder %s216, %s217
      %p229 = scmp.eq.s32.totalorder %s34, 1
      %p230 = por %p228, %p229
      %p232 = scmp.ne.s32.totalorder %s217, %s231
      %p233 = scmp.eq.s32.totalorder %s34, 0
      %p234 = por %p232, %p233
      %s236 = sadd.s32 %s235, 1
      %p239 = scmp.eq.s32.totalorder %s28, 1
      %p240 = scmp.ne.s32.totalorder %s235, %s237
      %p241 = scmp.eq.s32.totalorder %s28, 0
      %p242 = por %p240, %p241
      %p243 = scmp.ne.s32.totalorder %s235, %s237
      %p244 = scmp.eq.s32.totalorder %s33, 1
      %p245 = por %p243, %p244
      %p246 = scmp.ne.s32.totalorder %s237, %s238
      %p247 = scmp.eq.s32.totalorder %s33, 0
      %p248 = por %p246, %p247
      %p249 = scmp.ne.s32.totalorder %s237, %s238
      %p250 = scmp.eq.s32.totalorder %s34, 1
      %p251 = por %p249, %p250
      %p253 = scmp.ne.s32.totalorder %s238, %s252
      %p254 = scmp.eq.s32.totalorder %s34, 0
      %p255 = por %p253, %p254
      %s257 = sadd.s32 %s256, 1
      %p260 = scmp.eq.s32.totalorder %s28, 1
      %p261 = scmp.ne.s32.totalorder %s256, %s258
      %p262 = scmp.eq.s32.totalorder %s28, 0
      %p263 = por %p261, %p262
      %p264 = scmp.ne.s32.totalorder %s256, %s258
      %p265 = scmp.eq.s32.totalorder %s33, 1
      %p266 = por %p264, %p265
      %p267 = scmp.ne.s32.totalorder %s258, %s259
      %p268 = scmp.eq.s32.totalorder %s33, 0
      %p269 = por %p267, %p268
      %p270 = scmp.ne.s32.totalorder %s258, %s259
      %p271 = scmp.eq.s32.totalorder %s34, 1
      %p272 = por %p270, %p271
      %p274 = scmp.ne.s32.totalorder %s259, %s273
      %p275 = scmp.eq.s32.totalorder %s34, 0
      %p276 = por %p274, %p275
      %s278 = sadd.s32 %s277, 1
      %p281 = scmp.eq.s32.totalorder %s28, 1
      %p282 = scmp.ne.s32.totalorder %s277, %s279
      %p283 = scmp.eq.s32.totalorder %s28, 0
      %p284 = por %p282, %p283
      %p285 = scmp.ne.s32.totalorder %s277, %s279
      %p286 = scmp.eq.s32.totalorder %s33, 1
      %p287 = por %p285, %p286
      %p288 = scmp.ne.s32.totalorder %s279, %s280
      %p289 = scmp.eq.s32.totalorder %s33, 0
      %p290 = por %p288, %p289
      %p291 = scmp.ne.s32.totalorder %s279, %s280
      %p292 = scmp.eq.s32.totalorder %s34, 1
      %p293 = por %p291, %p292
      %p295 = scmp.ne.s32.totalorder %s280, %s294
      %p296 = scmp.eq.s32.totalorder %s34, 0
      %p297 = por %p295, %p296
      %s298 = ssub.s32 %s28, %s35
      %p299 = scmp.eq.s32.totalorder %s298, 0
      %s301 = sadd.s32 %s300, 1
      %s302 = scalar_select %p299, %s300, %s301
      %p305 = pneg %p299
      %p306 = scmp.eq.s32.totalorder %s28, 1
      %p307 = por %p305, %p306
      %p308 = scmp.ne.s32.totalorder %s300, %s303
      %p309 = scmp.eq.s32.totalorder %s28, 0
      %p310 = por %p308, %p309
      %p311 = scmp.ne.s32.totalorder %s300, %s303
      %p312 = scmp.eq.s32.totalorder %s33, 1
      %p313 = por %p311, %p312
      %p314 = scmp.ne.s32.totalorder %s303, %s304
      %p315 = scmp.eq.s32.totalorder %s33, 0
      %p316 = por %p314, %p315
      %p317 = scmp.ne.s32.totalorder %s303, %s304
      %p318 = scmp.eq.s32.totalorder %s34, 1
      %p319 = por %p317, %p318
      %p321 = scmp.ne.s32.totalorder %s304, %s320
      %p322 = scmp.eq.s32.totalorder %s34, 0
      %p323 = por %p321, %p322
      %p324 = scmp.le.s32.totalorder 1, %s28
      %p325 = scmp.lt.s32.totalorder %s28, 3
      %p326 = pnand %p324, %p325
      %p327 = pneg %p326
      // Predicated region
      $region9: #{tpu_custom_call.1} parent=5 // pred_check
        _
      $region10: #{tpu_custom_call.1} parent=5 // pred_check_branch
        %329 = sbr.rel (%p326) target = $region12
      $region11: #{tpu_custom_call.1} parent=5 // pred_region
        %s330 = ssub.s32 %s28, 1
        // Predicated region
        $region13: #{tpu_custom_call.1} parent=11 // pred_check
          %p331 = pneg %p101
        $region14: #{tpu_custom_call.1} parent=11 // pred_check_branch
          %333 = sbr.rel (%p331) target = $region16
        $region15: #{tpu_custom_call.1} parent=11 // pred_region
          _
        $region16: #{tpu_custom_call.1} parent=11 // pred_fallthru
          _
        // Predicated region
        $region17: #{tpu_custom_call.1} parent=11 // pred_check
          %p334 = pneg %p122
        $region18: #{tpu_custom_call.1} parent=11 // pred_check_branch
          %336 = sbr.rel (%p334) target = $region20
        $region19: #{tpu_custom_call.1} parent=11 // pred_region
          _
        $region20: #{tpu_custom_call.1} parent=11 // pred_fallthru
          _
        // Predicated region
        $region21: #{tpu_custom_call.1} parent=11 // pred_check
          %p337 = pneg %p143
        $region22: #{tpu_custom_call.1} parent=11 // pred_check_branch
          %339 = sbr.rel (%p337) target = $region24
        $region23: #{tpu_custom_call.1} parent=11 // pred_region
          %s341 = ssub.s32 9216, 9216
          %342 = vsyncadd [#allocation7], %s341
          %s343 = sshll.u32 [#allocation8], 4
          %s344 = int_to_ptr.vmem [resolvable:$true] %s343
          %349 = dma.hbm_to_vmem [thread:$0]  %s4, 9216, %s344, [#allocation7], 64, 64, 4
        $region24: #{tpu_custom_call.1} parent=11 // pred_fallthru
          _
        // Predicated region
        $region25: #{tpu_custom_call.1} parent=11 // pred_check
          %p350 = pneg %p164
        $region26: #{tpu_custom_call.1} parent=11 // pred_check_branch
          %352 = sbr.rel (%p350) target = $region28
        $region27: #{tpu_custom_call.1} parent=11 // pred_region
          _
        $region28: #{tpu_custom_call.1} parent=11 // pred_fallthru
          _
        // Predicated region
        $region29: #{tpu_custom_call.1} parent=11 // pred_check
          %p353 = pneg %p185
        $region30: #{tpu_custom_call.1} parent=11 // pred_check_branch
          %355 = sbr.rel (%p353) target = $region32
        $region31: #{tpu_custom_call.1} parent=11 // pred_region
          _
        $region32: #{tpu_custom_call.1} parent=11 // pred_fallthru
          _
        // Predicated region
        $region33: #{tpu_custom_call.1} parent=11 // pred_check
          %p356 = pneg %p206
        $region34: #{tpu_custom_call.1} parent=11 // pred_check_branch
          %358 = sbr.rel (%p356) target = $region36
        $region35: #{tpu_custom_call.1} parent=11 // pred_region
          _
        $region36: #{tpu_custom_call.1} parent=11 // pred_fallthru
          _
        // Predicated region
        $region37: #{tpu_custom_call.1} parent=11 // pred_check
          %p359 = pneg %p227
        $region38: #{tpu_custom_call.1} parent=11 // pred_check_branch
          %361 = sbr.rel (%p359) target = $region40
        $region39: #{tpu_custom_call.1} parent=11 // pred_region
          %s363 = ssub.s32 9216, 9216
          %364 = vsyncadd [#allocation10], %s363
          %s365 = sshll.u32 [#allocation9], 4
          %s366 = int_to_ptr.vmem [resolvable:$true] %s365
          %371 = dma.hbm_to_vmem [thread:$0]  %s8, 9216, %s366, [#allocation10], 64, 64, 4
        $region40: #{tpu_custom_call.1} parent=11 // pred_fallthru
          _
        // Predicated region
        $region41: #{tpu_custom_call.1} parent=11 // pred_check
          %p372 = pneg %p248
        $region42: #{tpu_custom_call.1} parent=11 // pred_check_branch
          %374 = sbr.rel (%p372) target = $region44
        $region43: #{tpu_custom_call.1} parent=11 // pred_region
          _
        $region44: #{tpu_custom_call.1} parent=11 // pred_fallthru
          _
        // Predicated region
        $region45: #{tpu_custom_call.1} parent=11 // pred_check
          %p375 = pneg %p269
        $region46: #{tpu_custom_call.1} parent=11 // pred_check_branch
          %377 = sbr.rel (%p375) target = $region48
        $region47: #{tpu_custom_call.1} parent=11 // pred_region
          %s379 = ssub.s32 1024, 1024
          %380 = vsyncadd [#allocation10], %s379
          %s381 = sshll.u32 [#allocation11], 4
          %s382 = int_to_ptr.vmem [resolvable:$true] %s381
          %387 = dma.hbm_to_vmem [thread:$0]  %s10, 1024, %s382, [#allocation10], 64, 64, 4
        $region48: #{tpu_custom_call.1} parent=11 // pred_fallthru
          _
        // Predicated region
        $region49: #{tpu_custom_call.1} parent=11 // pred_check
          %p388 = pneg %p290
        $region50: #{tpu_custom_call.1} parent=11 // pred_check_branch
          %390 = sbr.rel (%p388) target = $region52
        $region51: #{tpu_custom_call.1} parent=11 // pred_region
          _
        $region52: #{tpu_custom_call.1} parent=11 // pred_fallthru
          _
      $region12: #{tpu_custom_call.1} parent=5 // pred_fallthru
        _
      %p391 = scmp.lt.s32.totalorder %s28, 2
      // Predicated region
      $region53: #{tpu_custom_call.1} parent=5 // pred_check
        %p392 = pneg %p391
      $region54: #{tpu_custom_call.1} parent=5 // pred_check_branch
        %394 = sbr.rel (%p392) target = $region56
      $region55: #{tpu_custom_call.1} parent=5 // pred_region
        // Predicated region
        $region57: #{tpu_custom_call.1} parent=55 // pred_check
          %p395 = pneg %p48
        $region58: #{tpu_custom_call.1} parent=55 // pred_check_branch
          %397 = sbr.rel (%p395) target = $region60
        $region59: #{tpu_custom_call.1} parent=55 // pred_region
          %s398 = sand.u32 %s38, 1
          %s399 = scalar_lea.sflag [#allocation4], %s398
          %s400 = sand.u32 %s38, 1
          %s401 = smul.addr %s400, 256
          %s402 = scalar_lea.vmem [#allocation3], %s401
          %s404 = ssub.s32 4096, 4096
          %405 = vsyncadd %s399, %s404
          %s406 = smul.addr %s28, 32
          %s407 = smul.addr %s406, 128
          %s408 = scalar_lea.hbm %s0, %s407
          %s409 = sshll.u32 %s402, 4
          %s410 = int_to_ptr.vmem [resolvable:$true] %s409
          %415 = dma.hbm_to_vmem [thread:$0]  %s408, 4096, %s410, %s399, 128, 128, 8
        $region60: #{tpu_custom_call.1} parent=55 // pred_fallthru
          _
        // Predicated region
        $region61: #{tpu_custom_call.1} parent=55 // pred_check
          %p416 = pneg %p74
        $region62: #{tpu_custom_call.1} parent=55 // pred_check_branch
          %418 = sbr.rel (%p416) target = $region64
        $region63: #{tpu_custom_call.1} parent=55 // pred_region
          %s419 = sand.u32 %s28, 1
          %s420 = scalar_lea.sflag [#allocation7], %s419
          %s421 = sand.u32 %s64, 1
          %s422 = scalar_lea.vmem [#allocation6], %s421
          %s424 = ssub.s32 16, 16
          %425 = vsyncadd %s420, %s424
          %s426 = smul.addr %s28, 16
          %s427 = scalar_lea.hbm %s1, %s426
          %s429 = sshll.u32 %s422, 4
          %s430 = int_to_ptr.vmem [resolvable:$true] %s429
          %432 = dma.hbm_to_vmem [thread:$0]  %s427, 16, %s430, %s420
        $region64: #{tpu_custom_call.1} parent=55 // pred_fallthru
          _
      $region56: #{tpu_custom_call.1} parent=5 // pred_fallthru
        _
      %p433 = scmp.le.s32.totalorder 1, %s28
      %p434 = scmp.lt.s32.totalorder %s28, 3
      %p435 = pnand %p433, %p434
      %p436 = pneg %p435
      // Predicated region
      $region65: #{tpu_custom_call.1} parent=5 // pred_check
        _
      $region66: #{tpu_custom_call.1} parent=5 // pred_check_branch
        %438 = sbr.rel (%p435) target = $region68
      $region67: #{tpu_custom_call.1} parent=5 // pred_region
        %s439 = ssub.s32 %s28, 1
        %s440 = sand.u32 %s41, 1
        %s441 = scalar_lea.sflag [#allocation4], %s440
        %s442 = sand.u32 %s41, 1
        %s443 = smul.addr %s442, 256
        %s444 = scalar_lea.vmem [#allocation3], %s443
        // Predicated region
        $region69: #{tpu_custom_call.1} parent=67 // pred_check
          %p445 = pneg %p54
        $region70: #{tpu_custom_call.1} parent=67 // pred_check_branch
          %447 = sbr.rel (%p445) target = $region72
        $region71: #{tpu_custom_call.1} parent=67 // pred_region
          %448 = dma.done %s441, 4096
        $region72: #{tpu_custom_call.1} parent=67 // pred_fallthru
          _
        %s449 = sand.u32 %s33, 1
        %s450 = scalar_lea.sflag [#allocation7], %s449
        %s451 = sand.u32 %s67, 1
        %s452 = scalar_lea.vmem [#allocation6], %s451
        // Predicated region
        $region73: #{tpu_custom_call.1} parent=67 // pred_check
          %p453 = pneg %p80
        $region74: #{tpu_custom_call.1} parent=67 // pred_check_branch
          %455 = sbr.rel (%p453) target = $region76
        $region75: #{tpu_custom_call.1} parent=67 // pred_region
          %456 = dma.done %s450, 16
        $region76: #{tpu_custom_call.1} parent=67 // pred_fallthru
          _
        // Predicated region
        $region77: #{tpu_custom_call.1} parent=67 // pred_check
          %p457 = pneg %p143
        $region78: #{tpu_custom_call.1} parent=67 // pred_check_branch
          %459 = sbr.rel (%p457) target = $region80
        $region79: #{tpu_custom_call.1} parent=67 // pred_region
          %460 = dma.done [#allocation7], 9216
        $region80: #{tpu_custom_call.1} parent=67 // pred_fallthru
          _
        // Predicated region
        $region81: #{tpu_custom_call.1} parent=67 // pred_check
          %p461 = pneg %p227
        $region82: #{tpu_custom_call.1} parent=67 // pred_check_branch
          %463 = sbr.rel (%p461) target = $region84
        $region83: #{tpu_custom_call.1} parent=67 // pred_region
          %464 = dma.done [#allocation10], 9216
        $region84: #{tpu_custom_call.1} parent=67 // pred_fallthru
          _
        // Predicated region
        $region85: #{tpu_custom_call.1} parent=67 // pred_check
          %p465 = pneg %p269
        $region86: #{tpu_custom_call.1} parent=67 // pred_check_branch
          %467 = sbr.rel (%p465) target = $region88
        $region87: #{tpu_custom_call.1} parent=67 // pred_region
          %468 = dma.done [#allocation10], 1024
        $region88: #{tpu_custom_call.1} parent=67 // pred_fallthru
          _
        %s469 = sand.u32 %s41, 1
        %s470 = scalar_lea.sflag [#allocation4], %s469
        %s471 = sand.u32 %s41, 1
        %s472 = smul.addr %s471, 256
        %s473 = scalar_lea.vmem [#allocation3], %s472
        %p474 = pneg %p54
        %p475 = pneg %p51
        %s476 = sand.u32 %s33, 1
        %s477 = scalar_lea.sflag [#allocation7], %s476
        %s478 = sand.u32 %s67, 1
        %s479 = scalar_lea.vmem [#allocation6], %s478
        %p480 = pneg %p80
        %p481 = pneg %p77
        %p482 = pneg %p101
        %p483 = pneg %p98
        %p484 = pneg %p122
        %p485 = pneg %p119
        %p486 = pneg %p143
        %p487 = pneg %p140
        %p488 = pneg %p164
        %p489 = pneg %p161
        %p490 = pneg %p185
        %p491 = pneg %p182
        %p492 = pneg %p206
        %p493 = pneg %p203
        %p494 = pneg %p227
        %p495 = pneg %p224
        %p496 = pneg %p248
        %p497 = pneg %p245
        %p498 = pneg %p269
        %p499 = pneg %p266
        %p500 = pneg %p290
        %p501 = pneg %p287
        %p502 = pneg %p316
        %p503 = pneg %p313
        %s504 = sand.u32 %s303, 1
        %s505 = scalar_lea.sflag [#allocation5], %s504
        %s506 = sand.u32 %s303, 1
        %s507 = smul.addr %s506, 256
        %s508 = scalar_lea.vmem [#allocation12], %s507
        %v510 = vld [vmem:[%s444] sm:$0xff]
        %v511 = vld [vmem:[%s444 + $0x8] sm:$0xff]
        %v512 = vld [vmem:[%s444 + $0x10] sm:$0xff]
        %v513 = vld [vmem:[%s444 + $0x18] sm:$0xff]
        %v514 = vld [vmem:[%s444 + $0x20] sm:$0xff]
        %v515 = vld [vmem:[%s444 + $0x28] sm:$0xff]
        %v516 = vld [vmem:[%s444 + $0x30] sm:$0xff]
        %v517 = vld [vmem:[%s444 + $0x38] sm:$0xff]
        %v518 = vld [vmem:[%s444 + $0x40] sm:$0xff]
        %v519 = vld [vmem:[%s444 + $0x48] sm:$0xff]
        %v520 = vld [vmem:[%s444 + $0x50] sm:$0xff]
        %v521 = vld [vmem:[%s444 + $0x58] sm:$0xff]
        %v522 = vld [vmem:[%s444 + $0x60] sm:$0xff]
        %v523 = vld [vmem:[%s444 + $0x68] sm:$0xff]
        %v524 = vld [vmem:[%s444 + $0x70] sm:$0xff]
        %v525 = vld [vmem:[%s444 + $0x78] sm:$0xff]
        %v526 = vld [vmem:[%s444 + $0x80] sm:$0xff]
        %v527 = vld [vmem:[%s444 + $0x88] sm:$0xff]
        %v528 = vld [vmem:[%s444 + $0x90] sm:$0xff]
        %v529 = vld [vmem:[%s444 + $0x98] sm:$0xff]
        %v530 = vld [vmem:[%s444 + $0xa0] sm:$0xff]
        %v531 = vld [vmem:[%s444 + $0xa8] sm:$0xff]
        %v532 = vld [vmem:[%s444 + $0xb0] sm:$0xff]
        %v533 = vld [vmem:[%s444 + $0xb8] sm:$0xff]
        %v534 = vld [vmem:[%s444 + $0xc0] sm:$0xff]
        %v535 = vld [vmem:[%s444 + $0xc8] sm:$0xff]
        %v536 = vld [vmem:[%s444 + $0xd0] sm:$0xff]
        %v537 = vld [vmem:[%s444 + $0xd8] sm:$0xff]
        %v538 = vld [vmem:[%s444 + $0xe0] sm:$0xff]
        %v539 = vld [vmem:[%s444 + $0xe8] sm:$0xff]
        %v540 = vld [vmem:[%s444 + $0xf0] sm:$0xff]
        %v541 = vld [vmem:[%s444 + $0xf8] sm:$0xff]
        %v542 = vlaneseq
        %v543 = vshrl.u32 %v542, 7
        %v544 = vadd.s32 %v543, 8
        %v545 = vadd.s32 %v543, 16
        %v546 = vadd.s32 %v543, 24
        %v547 = vadd.s32 %v543, 32
        %v548 = vadd.s32 %v543, 40
        %v549 = vadd.s32 %v543, 48
        %v550 = vadd.s32 %v543, 56
        %v551 = vadd.s32 %v543, 64
        %v552 = vadd.s32 %v543, 72
        %v553 = vadd.s32 %v543, 80
        %v554 = vadd.s32 %v543, 88
        %v555 = vadd.s32 %v543, 96
        %v556 = vadd.s32 %v543, 104
        %v557 = vadd.s32 %v543, 112
        %v558 = vadd.s32 %v543, 120
        %v559 = vadd.s32 %v543, 128
        %v560 = vadd.s32 %v543, 136
        %v561 = vadd.s32 %v543, 144
        %v562 = vadd.s32 %v543, 152
        %v563 = vadd.s32 %v543, 160
        %v564 = vadd.s32 %v543, 168
        %v565 = vadd.s32 %v543, 176
        %v566 = vadd.s32 %v543, 184
        %v567 = vadd.s32 %v543, 192
        %v568 = vadd.s32 %v543, 200
        %v569 = vadd.s32 %v543, 208
        %v570 = vadd.s32 %v543, 216
        %v571 = vadd.s32 %v543, 224
        %v572 = vadd.s32 %v543, 232
        %v573 = vadd.s32 %v543, 240
        %v574 = vadd.s32 %v543, 248
        %vm575 = vcmp.lt.s32.totalorder %v543, 0
        %v576 = vsub.s32 0, %v543
        %v577 = vsel %vm575, %v576, %v543
        %v578 = vshrl.u32 %v577, 4
        %v579 = vand.u32 %v577, 15
        %v580 = vsub.s32 0, %v579
        %v581 = vsel %vm575, %v580, %v579
        %vm582 = vcmp.lt.s32.totalorder %v544, 0
        %v583 = vsub.s32 0, %v544
        %v584 = vsel %vm582, %v583, %v544
        %v585 = vshrl.u32 %v584, 4
        %v586 = vand.u32 %v584, 15
        %v587 = vsub.s32 0, %v586
        %v588 = vsel %vm582, %v587, %v586
        %vm589 = vcmp.lt.s32.totalorder %v545, 0
        %v590 = vsub.s32 0, %v545
        %v591 = vsel %vm589, %v590, %v545
        %v592 = vshrl.u32 %v591, 4
        %v593 = vand.u32 %v591, 15
        %v594 = vsub.s32 0, %v593
        %v595 = vsel %vm589, %v594, %v593
        %vm596 = vcmp.lt.s32.totalorder %v546, 0
        %v597 = vsub.s32 0, %v546
        %v598 = vsel %vm596, %v597, %v546
        %v599 = vshrl.u32 %v598, 4
        %v600 = vand.u32 %v598, 15
        %v601 = vsub.s32 0, %v600
        %v602 = vsel %vm596, %v601, %v600
        %vm603 = vcmp.lt.s32.totalorder %v547, 0
        %v604 = vsub.s32 0, %v547
        %v605 = vsel %vm603, %v604, %v547
        %v606 = vshrl.u32 %v605, 4
        %v607 = vand.u32 %v605, 15
        %v608 = vsub.s32 0, %v607
        %v609 = vsel %vm603, %v608, %v607
        %vm610 = vcmp.lt.s32.totalorder %v548, 0
        %v611 = vsub.s32 0, %v548
        %v612 = vsel %vm610, %v611, %v548
        %v613 = vshrl.u32 %v612, 4
        %v614 = vand.u32 %v612, 15
        %v615 = vsub.s32 0, %v614
        %v616 = vsel %vm610, %v615, %v614
        %vm617 = vcmp.lt.s32.totalorder %v549, 0
        %v618 = vsub.s32 0, %v549
        %v619 = vsel %vm617, %v618, %v549
        %v620 = vshrl.u32 %v619, 4
        %v621 = vand.u32 %v619, 15
        %v622 = vsub.s32 0, %v621
        %v623 = vsel %vm617, %v622, %v621
        %vm624 = vcmp.lt.s32.totalorder %v550, 0
        %v625 = vsub.s32 0, %v550
        %v626 = vsel %vm624, %v625, %v550
        %v627 = vshrl.u32 %v626, 4
        %v628 = vand.u32 %v626, 15
        %v629 = vsub.s32 0, %v628
        %v630 = vsel %vm624, %v629, %v628
        %vm631 = vcmp.lt.s32.totalorder %v551, 0
        %v632 = vsub.s32 0, %v551
        %v633 = vsel %vm631, %v632, %v551
        %v634 = vshrl.u32 %v633, 4
        %v635 = vand.u32 %v633, 15
        %v636 = vsub.s32 0, %v635
        %v637 = vsel %vm631, %v636, %v635
        %vm638 = vcmp.lt.s32.totalorder %v552, 0
        %v639 = vsub.s32 0, %v552
        %v640 = vsel %vm638, %v639, %v552
        %v641 = vshrl.u32 %v640, 4
        %v642 = vand.u32 %v640, 15
        %v643 = vsub.s32 0, %v642
        %v644 = vsel %vm638, %v643, %v642
        %vm645 = vcmp.lt.s32.totalorder %v553, 0
        %v646 = vsub.s32 0, %v553
        %v647 = vsel %vm645, %v646, %v553
        %v648 = vshrl.u32 %v647, 4
        %v649 = vand.u32 %v647, 15
        %v650 = vsub.s32 0, %v649
        %v651 = vsel %vm645, %v650, %v649
        %vm652 = vcmp.lt.s32.totalorder %v554, 0
        %v653 = vsub.s32 0, %v554
        %v654 = vsel %vm652, %v653, %v554
        %v655 = vshrl.u32 %v654, 4
        %v656 = vand.u32 %v654, 15
        %v657 = vsub.s32 0, %v656
        %v658 = vsel %vm652, %v657, %v656
        %vm659 = vcmp.lt.s32.totalorder %v555, 0
        %v660 = vsub.s32 0, %v555
        %v661 = vsel %vm659, %v660, %v555
        %v662 = vshrl.u32 %v661, 4
        %v663 = vand.u32 %v661, 15
        %v664 = vsub.s32 0, %v663
        %v665 = vsel %vm659, %v664, %v663
        %vm666 = vcmp.lt.s32.totalorder %v556, 0
        %v667 = vsub.s32 0, %v556
        %v668 = vsel %vm666, %v667, %v556
        %v669 = vshrl.u32 %v668, 4
        %v670 = vand.u32 %v668, 15
        %v671 = vsub.s32 0, %v670
        %v672 = vsel %vm666, %v671, %v670
        %vm673 = vcmp.lt.s32.totalorder %v557, 0
        %v674 = vsub.s32 0, %v557
        %v675 = vsel %vm673, %v674, %v557
        %v676 = vshrl.u32 %v675, 4
        %v677 = vand.u32 %v675, 15
        %v678 = vsub.s32 0, %v677
        %v679 = vsel %vm673, %v678, %v677
        %vm680 = vcmp.lt.s32.totalorder %v558, 0
        %v681 = vsub.s32 0, %v558
        %v682 = vsel %vm680, %v681, %v558
        %v683 = vshrl.u32 %v682, 4
        %v684 = vand.u32 %v682, 15
        %v685 = vsub.s32 0, %v684
        %v686 = vsel %vm680, %v685, %v684
        %vm687 = vcmp.lt.s32.totalorder %v559, 0
        %v688 = vsub.s32 0, %v559
        %v689 = vsel %vm687, %v688, %v559
        %v690 = vshrl.u32 %v689, 4
        %v691 = vand.u32 %v689, 15
        %v692 = vsub.s32 0, %v691
        %v693 = vsel %vm687, %v692, %v691
        %vm694 = vcmp.lt.s32.totalorder %v560, 0
        %v695 = vsub.s32 0, %v560
        %v696 = vsel %vm694, %v695, %v560
        %v697 = vshrl.u32 %v696, 4
        %v698 = vand.u32 %v696, 15
        %v699 = vsub.s32 0, %v698
        %v700 = vsel %vm694, %v699, %v698
        %vm701 = vcmp.lt.s32.totalorder %v561, 0
        %v702 = vsub.s32 0, %v561
        %v703 = vsel %vm701, %v702, %v561
        %v704 = vshrl.u32 %v703, 4
        %v705 = vand.u32 %v703, 15
        %v706 = vsub.s32 0, %v705
        %v707 = vsel %vm701, %v706, %v705
        %vm708 = vcmp.lt.s32.totalorder %v562, 0
        %v709 = vsub.s32 0, %v562
        %v710 = vsel %vm708, %v709, %v562
        %v711 = vshrl.u32 %v710, 4
        %v712 = vand.u32 %v710, 15
        %v713 = vsub.s32 0, %v712
        %v714 = vsel %vm708, %v713, %v712
        %vm715 = vcmp.lt.s32.totalorder %v563, 0
        %v716 = vsub.s32 0, %v563
        %v717 = vsel %vm715, %v716, %v563
        %v718 = vshrl.u32 %v717, 4
        %v719 = vand.u32 %v717, 15
        %v720 = vsub.s32 0, %v719
        %v721 = vsel %vm715, %v720, %v719
        %vm722 = vcmp.lt.s32.totalorder %v564, 0
        %v723 = vsub.s32 0, %v564
        %v724 = vsel %vm722, %v723, %v564
        %v725 = vshrl.u32 %v724, 4
        %v726 = vand.u32 %v724, 15
        %v727 = vsub.s32 0, %v726
        %v728 = vsel %vm722, %v727, %v726
        %vm729 = vcmp.lt.s32.totalorder %v565, 0
        %v730 = vsub.s32 0, %v565
        %v731 = vsel %vm729, %v730, %v565
        %v732 = vshrl.u32 %v731, 4
        %v733 = vand.u32 %v731, 15
        %v734 = vsub.s32 0, %v733
        %v735 = vsel %vm729, %v734, %v733
        %vm736 = vcmp.lt.s32.totalorder %v566, 0
        %v737 = vsub.s32 0, %v566
        %v738 = vsel %vm736, %v737, %v566
        %v739 = vshrl.u32 %v738, 4
        %v740 = vand.u32 %v738, 15
        %v741 = vsub.s32 0, %v740
        %v742 = vsel %vm736, %v741, %v740
        %vm743 = vcmp.lt.s32.totalorder %v567, 0
        %v744 = vsub.s32 0, %v567
        %v745 = vsel %vm743, %v744, %v567
        %v746 = vshrl.u32 %v745, 4
        %v747 = vand.u32 %v745, 15
        %v748 = vsub.s32 0, %v747
        %v749 = vsel %vm743, %v748, %v747
        %vm750 = vcmp.lt.s32.totalorder %v568, 0
        %v751 = vsub.s32 0, %v568
        %v752 = vsel %vm750, %v751, %v568
        %v753 = vshrl.u32 %v752, 4
        %v754 = vand.u32 %v752, 15
        %v755 = vsub.s32 0, %v754
        %v756 = vsel %vm750, %v755, %v754
        %vm757 = vcmp.lt.s32.totalorder %v569, 0
        %v758 = vsub.s32 0, %v569
        %v759 = vsel %vm757, %v758, %v569
        %v760 = vshrl.u32 %v759, 4
        %v761 = vand.u32 %v759, 15
        %v762 = vsub.s32 0, %v761
        %v763 = vsel %vm757, %v762, %v761
        %vm764 = vcmp.lt.s32.totalorder %v570, 0
        %v765 = vsub.s32 0, %v570
        %v766 = vsel %vm764, %v765, %v570
        %v767 = vshrl.u32 %v766, 4
        %v768 = vand.u32 %v766, 15
        %v769 = vsub.s32 0, %v768
        %v770 = vsel %vm764, %v769, %v768
        %vm771 = vcmp.lt.s32.totalorder %v571, 0
        %v772 = vsub.s32 0, %v571
        %v773 = vsel %vm771, %v772, %v571
        %v774 = vshrl.u32 %v773, 4
        %v775 = vand.u32 %v773, 15
        %v776 = vsub.s32 0, %v775
        %v777 = vsel %vm771, %v776, %v775
        %vm778 = vcmp.lt.s32.totalorder %v572, 0
        %v779 = vsub.s32 0, %v572
        %v780 = vsel %vm778, %v779, %v572
        %v781 = vshrl.u32 %v780, 4
        %v782 = vand.u32 %v780, 15
        %v783 = vsub.s32 0, %v782
        %v784 = vsel %vm778, %v783, %v782
        %vm785 = vcmp.lt.s32.totalorder %v573, 0
        %v786 = vsub.s32 0, %v573
        %v787 = vsel %vm785, %v786, %v573
        %v788 = vshrl.u32 %v787, 4
        %v789 = vand.u32 %v787, 15
        %v790 = vsub.s32 0, %v789
        %v791 = vsel %vm785, %v790, %v789
        %vm792 = vcmp.lt.s32.totalorder %v574, 0
        %v793 = vsub.s32 0, %v574
        %v794 = vsel %vm792, %v793, %v574
        %v795 = vshrl.u32 %v794, 4
        %v796 = vand.u32 %v794, 15
        %v797 = vsub.s32 0, %v796
        %v798 = vsel %vm792, %v797, %v796
        %vm799 = vcmp.ne.s32.totalorder %v581, 0
        %vm800 = vcmp.ne.s32.totalorder %v588, 0
        %vm801 = vcmp.ne.s32.totalorder %v595, 0
        %vm802 = vcmp.ne.s32.totalorder %v602, 0
        %vm803 = vcmp.ne.s32.totalorder %v609, 0
        %vm804 = vcmp.ne.s32.totalorder %v616, 0
        %vm805 = vcmp.ne.s32.totalorder %v623, 0
        %vm806 = vcmp.ne.s32.totalorder %v630, 0
        %vm807 = vcmp.ne.s32.totalorder %v637, 0
        %vm808 = vcmp.ne.s32.totalorder %v644, 0
        %vm809 = vcmp.ne.s32.totalorder %v651, 0
        %vm810 = vcmp.ne.s32.totalorder %v658, 0
        %vm811 = vcmp.ne.s32.totalorder %v665, 0
        %vm812 = vcmp.ne.s32.totalorder %v672, 0
        %vm813 = vcmp.ne.s32.totalorder %v679, 0
        %vm814 = vcmp.ne.s32.totalorder %v686, 0
        %vm815 = vcmp.ne.s32.totalorder %v693, 0
        %vm816 = vcmp.ne.s32.totalorder %v700, 0
        %vm817 = vcmp.ne.s32.totalorder %v707, 0
        %vm818 = vcmp.ne.s32.totalorder %v714, 0
        %vm819 = vcmp.ne.s32.totalorder %v721, 0
        %vm820 = vcmp.ne.s32.totalorder %v728, 0
        %vm821 = vcmp.ne.s32.totalorder %v735, 0
        %vm822 = vcmp.ne.s32.totalorder %v742, 0
        %vm823 = vcmp.ne.s32.totalorder %v749, 0
        %vm824 = vcmp.ne.s32.totalorder %v756, 0
        %vm825 = vcmp.ne.s32.totalorder %v763, 0
        %vm826 = vcmp.ne.s32.totalorder %v770, 0
        %vm827 = vcmp.ne.s32.totalorder %v777, 0
        %vm828 = vcmp.ne.s32.totalorder %v784, 0
        %vm829 = vcmp.ne.s32.totalorder %v791, 0
        %vm830 = vcmp.ne.s32.totalorder %v798, 0
        %vm831 = vcmp.lt.s32.totalorder %v581, 0
        %vm832 = vcmp.lt.s32.totalorder %v588, 0
        %vm833 = vcmp.lt.s32.totalorder %v595, 0
        %vm834 = vcmp.lt.s32.totalorder %v602, 0
        %vm835 = vcmp.lt.s32.totalorder %v609, 0
        %vm836 = vcmp.lt.s32.totalorder %v616, 0
        %vm837 = vcmp.lt.s32.totalorder %v623, 0
        %vm838 = vcmp.lt.s32.totalorder %v630, 0
        %vm839 = vcmp.lt.s32.totalorder %v637, 0
        %vm840 = vcmp.lt.s32.totalorder %v644, 0
        %vm841 = vcmp.lt.s32.totalorder %v651, 0
        %vm842 = vcmp.lt.s32.totalorder %v658, 0
        %vm843 = vcmp.lt.s32.totalorder %v665, 0
        %vm844 = vcmp.lt.s32.totalorder %v672, 0
        %vm845 = vcmp.lt.s32.totalorder %v679, 0
        %vm846 = vcmp.lt.s32.totalorder %v686, 0
        %vm847 = vcmp.lt.s32.totalorder %v693, 0
        %vm848 = vcmp.lt.s32.totalorder %v700, 0
        %vm849 = vcmp.lt.s32.totalorder %v707, 0
        %vm850 = vcmp.lt.s32.totalorder %v714, 0
        %vm851 = vcmp.lt.s32.totalorder %v721, 0
        %vm852 = vcmp.lt.s32.totalorder %v728, 0
        %vm853 = vcmp.lt.s32.totalorder %v735, 0
        %vm854 = vcmp.lt.s32.totalorder %v742, 0
        %vm855 = vcmp.lt.s32.totalorder %v749, 0
        %vm856 = vcmp.lt.s32.totalorder %v756, 0
        %vm857 = vcmp.lt.s32.totalorder %v763, 0
        %vm858 = vcmp.lt.s32.totalorder %v770, 0
        %vm859 = vcmp.lt.s32.totalorder %v777, 0
        %vm860 = vcmp.lt.s32.totalorder %v784, 0
        %vm861 = vcmp.lt.s32.totalorder %v791, 0
        %vm862 = vcmp.lt.s32.totalorder %v798, 0
        %vm863 = vmand %vm831, %vm799
        %vm864 = vmand %vm832, %vm800
        %vm865 = vmand %vm833, %vm801
        %vm866 = vmand %vm834, %vm802
        %vm867 = vmand %vm835, %vm803
        %vm868 = vmand %vm836, %vm804
        %vm869 = vmand %vm837, %vm805
        %vm870 = vmand %vm838, %vm806
        %vm871 = vmand %vm839, %vm807
        %vm872 = vmand %vm840, %vm808
        %vm873 = vmand %vm841, %vm809
        %vm874 = vmand %vm842, %vm810
        %vm875 = vmand %vm843, %vm811
        %vm876 = vmand %vm844, %vm812
        %vm877 = vmand %vm845, %vm813
        %vm878 = vmand %vm846, %vm814
        %vm879 = vmand %vm847, %vm815
        %vm880 = vmand %vm848, %vm816
        %vm881 = vmand %vm849, %vm817
        %vm882 = vmand %vm850, %vm818
        %vm883 = vmand %vm851, %vm819
        %vm884 = vmand %vm852, %vm820
        %vm885 = vmand %vm853, %vm821
        %vm886 = vmand %vm854, %vm822
        %vm887 = vmand %vm855, %vm823
        %vm888 = vmand %vm856, %vm824
        %vm889 = vmand %vm857, %vm825
        %vm890 = vmand %vm858, %vm826
        %vm891 = vmand %vm859, %vm827
        %vm892 = vmand %vm860, %vm828
        %vm893 = vmand %vm861, %vm829
        %vm894 = vmand %vm862, %vm830
        %v895 = vadd.s32 %v581, 16
        %v896 = vadd.s32 %v588, 16
        %v897 = vadd.s32 %v595, 16
        %v898 = vadd.s32 %v602, 16
        %v899 = vadd.s32 %v609, 16
        %v900 = vadd.s32 %v616, 16
        %v901 = vadd.s32 %v623, 16
        %v902 = vadd.s32 %v630, 16
        %v903 = vadd.s32 %v637, 16
        %v904 = vadd.s32 %v644, 16
        %v905 = vadd.s32 %v651, 16
        %v906 = vadd.s32 %v658, 16
        %v907 = vadd.s32 %v665, 16
        %v908 = vadd.s32 %v672, 16
        %v909 = vadd.s32 %v679, 16
        %v910 = vadd.s32 %v686, 16
        %v911 = vadd.s32 %v693, 16
        %v912 = vadd.s32 %v700, 16
        %v913 = vadd.s32 %v707, 16
        %v914 = vadd.s32 %v714, 16
        %v915 = vadd.s32 %v721, 16
        %v916 = vadd.s32 %v728, 16
        %v917 = vadd.s32 %v735, 16
        %v918 = vadd.s32 %v742, 16
        %v919 = vadd.s32 %v749, 16
        %v920 = vadd.s32 %v756, 16
        %v921 = vadd.s32 %v763, 16
        %v922 = vadd.s32 %v770, 16
        %v923 = vadd.s32 %v777, 16
        %v924 = vadd.s32 %v784, 16
        %v925 = vadd.s32 %v791, 16
        %v926 = vadd.s32 %v798, 16
        %v927 = vsel %vm863, %v895, %v581
        %v928 = vsel %vm864, %v896, %v588
        %v929 = vsel %vm865, %v897, %v595
        %v930 = vsel %vm866, %v898, %v602
        %v931 = vsel %vm867, %v899, %v609
        %v932 = vsel %vm868, %v900, %v616
        %v933 = vsel %vm869, %v901, %v623
        %v934 = vsel %vm870, %v902, %v630
        %v935 = vsel %vm871, %v903, %v637
        %v936 = vsel %vm872, %v904, %v644
        %v937 = vsel %vm873, %v905, %v651
        %v938 = vsel %vm874, %v906, %v658
        %v939 = vsel %vm875, %v907, %v665
        %v940 = vsel %vm876, %v908, %v672
        %v941 = vsel %vm877, %v909, %v679
        %v942 = vsel %vm878, %v910, %v686
        %v943 = vsel %vm879, %v911, %v693
        %v944 = vsel %vm880, %v912, %v700
        %v945 = vsel %vm881, %v913, %v707
        %v946 = vsel %vm882, %v914, %v714
        %v947 = vsel %vm883, %v915, %v721
        %v948 = vsel %vm884, %v916, %v728
        %v949 = vsel %vm885, %v917, %v735
        %v950 = vsel %vm886, %v918, %v742
        %v951 = vsel %vm887, %v919, %v749
        %v952 = vsel %vm888, %v920, %v756
        %v953 = vsel %vm889, %v921, %v763
        %v954 = vsel %vm890, %v922, %v770
        %v955 = vsel %vm891, %v923, %v777
        %v956 = vsel %vm892, %v924, %v784
        %v957 = vsel %vm893, %v925, %v791
        %v958 = vsel %vm894, %v926, %v798
        %vm959 = vcmp.ge.s32.totalorder %v927, 1
        %vm960 = vcmp.ge.s32.totalorder %v928, 1
        %vm961 = vcmp.ge.s32.totalorder %v929, 1
        %vm962 = vcmp.ge.s32.totalorder %v930, 1
        %vm963 = vcmp.ge.s32.totalorder %v931, 1
        %vm964 = vcmp.ge.s32.totalorder %v932, 1
        %vm965 = vcmp.ge.s32.totalorder %v933, 1
        %vm966 = vcmp.ge.s32.totalorder %v934, 1
        %vm967 = vcmp.ge.s32.totalorder %v935, 1
        %vm968 = vcmp.ge.s32.totalorder %v936, 1
        %vm969 = vcmp.ge.s32.totalorder %v937, 1
        %vm970 = vcmp.ge.s32.totalorder %v938, 1
        %vm971 = vcmp.ge.s32.totalorder %v939, 1
        %vm972 = vcmp.ge.s32.totalorder %v940, 1
        %vm973 = vcmp.ge.s32.totalorder %v941, 1
        %vm974 = vcmp.ge.s32.totalorder %v942, 1
        %vm975 = vcmp.ge.s32.totalorder %v943, 1
        %vm976 = vcmp.ge.s32.totalorder %v944, 1
        %vm977 = vcmp.ge.s32.totalorder %v945, 1
        %vm978 = vcmp.ge.s32.totalorder %v946, 1
        %vm979 = vcmp.ge.s32.totalorder %v947, 1
        %vm980 = vcmp.ge.s32.totalorder %v948, 1
        %vm981 = vcmp.ge.s32.totalorder %v949, 1
        %vm982 = vcmp.ge.s32.totalorder %v950, 1
        %vm983 = vcmp.ge.s32.totalorder %v951, 1
        %vm984 = vcmp.ge.s32.totalorder %v952, 1
        %vm985 = vcmp.ge.s32.totalorder %v953, 1
        %vm986 = vcmp.ge.s32.totalorder %v954, 1
        %vm987 = vcmp.ge.s32.totalorder %v955, 1
        %vm988 = vcmp.ge.s32.totalorder %v956, 1
        %vm989 = vcmp.ge.s32.totalorder %v957, 1
        %vm990 = vcmp.ge.s32.totalorder %v958, 1
        %vm991 = vcmp.le.s32.totalorder %v927, 14
        %vm992 = vcmp.le.s32.totalorder %v928, 14
        %vm993 = vcmp.le.s32.totalorder %v929, 14
        %vm994 = vcmp.le.s32.totalorder %v930, 14
        %vm995 = vcmp.le.s32.totalorder %v931, 14
        %vm996 = vcmp.le.s32.totalorder %v932, 14
        %vm997 = vcmp.le.s32.totalorder %v933, 14
        %vm998 = vcmp.le.s32.totalorder %v934, 14
        %vm999 = vcmp.le.s32.totalorder %v935, 14
        %vm1000 = vcmp.le.s32.totalorder %v936, 14
        %vm1001 = vcmp.le.s32.totalorder %v937, 14
        %vm1002 = vcmp.le.s32.totalorder %v938, 14
        %vm1003 = vcmp.le.s32.totalorder %v939, 14
        %vm1004 = vcmp.le.s32.totalorder %v940, 14
        %vm1005 = vcmp.le.s32.totalorder %v941, 14
        %vm1006 = vcmp.le.s32.totalorder %v942, 14
        %vm1007 = vcmp.le.s32.totalorder %v943, 14
        %vm1008 = vcmp.le.s32.totalorder %v944, 14
        %vm1009 = vcmp.le.s32.totalorder %v945, 14
        %vm1010 = vcmp.le.s32.totalorder %v946, 14
        %vm1011 = vcmp.le.s32.totalorder %v947, 14
        %vm1012 = vcmp.le.s32.totalorder %v948, 14
        %vm1013 = vcmp.le.s32.totalorder %v949, 14
        %vm1014 = vcmp.le.s32.totalorder %v950, 14
        %vm1015 = vcmp.le.s32.totalorder %v951, 14
        %vm1016 = vcmp.le.s32.totalorder %v952, 14
        %vm1017 = vcmp.le.s32.totalorder %v953, 14
        %vm1018 = vcmp.le.s32.totalorder %v954, 14
        %vm1019 = vcmp.le.s32.totalorder %v955, 14
        %vm1020 = vcmp.le.s32.totalorder %v956, 14
        %vm1021 = vcmp.le.s32.totalorder %v957, 14
        %vm1022 = vcmp.le.s32.totalorder %v958, 14
        %1023 = vst [vmem:[#allocation2] sm:$0xff] 0.0
        %1024 = vst [vmem:[#allocation2 + $0x8] sm:$0xff] 0.0
        %1025 = vst [vmem:[#allocation2 + $0x10] sm:$0xff] 0.0
        %1026 = vst [vmem:[#allocation2 + $0x118] sm:$0xff] 0.0
        %1027 = vst [vmem:[#allocation2 + $0x120] sm:$0xff] 0.0
        %1028 = vst [vmem:[#allocation2 + $0x128] sm:$0xff] 0.0
        %v1029 = vld [vmem:[%s2] sm:$0x1]
        %v1030 = vld [vmem:[%s3] sm:$0x1]
        %v1031 = vadd.f32 %v510, %v511
        %v1032 = vadd.f32 %v1031, %v512
        %v1033 = vadd.f32 %v1032, %v513
        %v1034 = vadd.f32 %v1033, %v514
        %v1035 = vadd.f32 %v1034, %v515
        %v1036 = vadd.f32 %v1035, %v516
        %v1037 = vadd.f32 %v1036, %v517
        %v1038 = vadd.f32 %v1037, %v518
        %v1039 = vadd.f32 %v1038, %v519
        %v1040 = vadd.f32 %v1039, %v520
        %v1041 = vadd.f32 %v1040, %v521
        %v1042 = vadd.f32 %v1041, %v522
        %v1043 = vadd.f32 %v1042, %v523
        %v1044 = vadd.f32 %v1043, %v524
        %v1045 = vadd.f32 %v1044, %v525
        %v1046 = vadd.f32 %v1045, %v526
        %v1047 = vadd.f32 %v1046, %v527
        %v1048 = vadd.f32 %v1047, %v528
        %v1049 = vadd.f32 %v1048, %v529
        %v1050 = vadd.f32 %v1049, %v530
        %v1051 = vadd.f32 %v1050, %v531
        %v1052 = vadd.f32 %v1051, %v532
        %v1053 = vadd.f32 %v1052, %v533
        %v1054 = vadd.f32 %v1053, %v534
        %v1055 = vadd.f32 %v1054, %v535
        %v1056 = vadd.f32 %v1055, %v536
        %v1057 = vadd.f32 %v1056, %v537
        %v1058 = vadd.f32 %v1057, %v538
        %v1059 = vadd.f32 %v1058, %v539
        %v1060 = vadd.f32 %v1059, %v540
        %v1061 = vadd.f32 %v1060, %v541
        %v1062 = vrot.slane %v1061, 4
        %v1063 = vadd.f32 %v1061, %v1062
        %v1064 = vrot.slane %v1063, 2
        %v1065 = vadd.f32 %v1063, %v1064
        %v1066 = vrot.slane %v1065, 1
        %v1067 = vadd.f32 %v1065, %v1066
        %v1068 = vmul.f32 %v510, %v510
        %v1069 = vmul.f32 %v511, %v511
        %v1070 = vmul.f32 %v512, %v512
        %v1071 = vmul.f32 %v513, %v513
        %v1072 = vmul.f32 %v514, %v514
        %v1073 = vmul.f32 %v515, %v515
        %v1074 = vmul.f32 %v516, %v516
        %v1075 = vmul.f32 %v517, %v517
        %v1076 = vmul.f32 %v518, %v518
        %v1077 = vmul.f32 %v519, %v519
        %v1078 = vmul.f32 %v520, %v520
        %v1079 = vmul.f32 %v521, %v521
        %v1080 = vmul.f32 %v522, %v522
        %v1081 = vmul.f32 %v523, %v523
        %v1082 = vmul.f32 %v524, %v524
        %v1083 = vmul.f32 %v525, %v525
        %v1084 = vmul.f32 %v526, %v526
        %v1085 = vmul.f32 %v527, %v527
        %v1086 = vmul.f32 %v528, %v528
        %v1087 = vmul.f32 %v529, %v529
        %v1088 = vmul.f32 %v530, %v530
        %v1089 = vmul.f32 %v531, %v531
        %v1090 = vmul.f32 %v532, %v532
        %v1091 = vmul.f32 %v533, %v533
        %v1092 = vmul.f32 %v534, %v534
        %v1093 = vmul.f32 %v535, %v535
        %v1094 = vmul.f32 %v536, %v536
        %v1095 = vmul.f32 %v537, %v537
        %v1096 = vmul.f32 %v538, %v538
        %v1097 = vmul.f32 %v539, %v539
        %v1098 = vmul.f32 %v540, %v540
        %v1099 = vmul.f32 %v541, %v541
        %v1100 = vadd.f32 %v1068, %v1069
        %v1101 = vadd.f32 %v1100, %v1070
        %v1102 = vadd.f32 %v1101, %v1071
        %v1103 = vadd.f32 %v1102, %v1072
        %v1104 = vadd.f32 %v1103, %v1073
        %v1105 = vadd.f32 %v1104, %v1074
        %v1106 = vadd.f32 %v1105, %v1075
        %v1107 = vadd.f32 %v1106, %v1076
        %v1108 = vadd.f32 %v1107, %v1077
        %v1109 = vadd.f32 %v1108, %v1078
        %v1110 = vadd.f32 %v1109, %v1079
        %v1111 = vadd.f32 %v1110, %v1080
        %v1112 = vadd.f32 %v1111, %v1081
        %v1113 = vadd.f32 %v1112, %v1082
        %v1114 = vadd.f32 %v1113, %v1083
        %v1115 = vadd.f32 %v1114, %v1084
        %v1116 = vadd.f32 %v1115, %v1085
        %v1117 = vadd.f32 %v1116, %v1086
        %v1118 = vadd.f32 %v1117, %v1087
        %v1119 = vadd.f32 %v1118, %v1088
        %v1120 = vadd.f32 %v1119, %v1089
        %v1121 = vadd.f32 %v1120, %v1090
        %v1122 = vadd.f32 %v1121, %v1091
        %v1123 = vadd.f32 %v1122, %v1092
        %v1124 = vadd.f32 %v1123, %v1093
        %v1125 = vadd.f32 %v1124, %v1094
        %v1126 = vadd.f32 %v1125, %v1095
        %v1127 = vadd.f32 %v1126, %v1096
        %v1128 = vadd.f32 %v1127, %v1097
        %v1129 = vadd.f32 %v1128, %v1098
        %v1130 = vadd.f32 %v1129, %v1099
        %v1131 = vrot.slane %v1130, 4
        %v1132 = vadd.f32 %v1130, %v1131
        %v1133 = vrot.slane %v1132, 2
        %v1134 = vadd.f32 %v1132, %v1133
        %v1135 = vrot.slane %v1134, 1
        %v1136 = vadd.f32 %v1134, %v1135
        %v1137 = vlaneseq
        %v1138 = vand.u32 %v1137, 127
        %vm1139 = vcmp.ge.s32.totalorder %v1138, 0
        %vm1140 = vcmp.lt.s32.totalorder %v1138, 2
        %vm1141 = vmand %vm1139, %vm1140
        %v1142 = vsel %vm1141, %v1067, 0.0
        %1143 = vadd.xlane.f32.xlu0 %v1142
        %v1144 = vpop.xlane.xlu0 %1143
        %v1145 = vmul.f32 %v1144, 0.001953125
        %v1146 = vsel %vm1141, %v1136, 0.0
        %1147 = vadd.xlane.f32.xlu0 %v1146
        %v1148 = vpop.xlane.xlu0 %1147
        %v1149 = vmul.f32 %v1148, 0.001953125
        %v1150 = vsel %vm1141, %v1145, 0.0
        %v1151 = vsel %vm1141, %v1149, 0.0
        %vm1152 = vcmp.ge.s32.totalorder %v1138, 2
        %vm1153 = vcmp.lt.s32.totalorder %v1138, 4
        %vm1154 = vmand %vm1152, %vm1153
        %v1155 = vsel %vm1154, %v1067, 0.0
        %1156 = vadd.xlane.f32.xlu0 %v1155
        %v1157 = vpop.xlane.xlu0 %1156
        %v1158 = vmul.f32 %v1157, 0.001953125
        %v1159 = vsel %vm1154, %v1136, 0.0
        %1160 = vadd.xlane.f32.xlu0 %v1159
        %v1161 = vpop.xlane.xlu0 %1160
        %v1162 = vmul.f32 %v1161, 0.001953125
        %v1163 = vsel %vm1154, %v1158, %v1150
        %v1164 = vsel %vm1154, %v1162, %v1151
        %v1165 = vmul.f32 %v1163, %v1163
        %v1166 = vsub.f32 %v1164, %v1165
        %v1167 = vmax.f32 %v1166, 0.0
        %v1168 = vadd.f32 %v1167, 1e-06
        %v1169 = vrsqrt.pop %v1168
        %v1170 = vsub.f32 %v510, %v1163
        %v1171 = vsub.f32 %v511, %v1163
        %v1172 = vsub.f32 %v512, %v1163
        %v1173 = vsub.f32 %v513, %v1163
        %v1174 = vsub.f32 %v514, %v1163
        %v1175 = vsub.f32 %v515, %v1163
        %v1176 = vsub.f32 %v516, %v1163
        %v1177 = vsub.f32 %v517, %v1163
        %v1178 = vsub.f32 %v518, %v1163
        %v1179 = vsub.f32 %v519, %v1163
        %v1180 = vsub.f32 %v520, %v1163
        %v1181 = vsub.f32 %v521, %v1163
        %v1182 = vsub.f32 %v522, %v1163
        %v1183 = vsub.f32 %v523, %v1163
        %v1184 = vsub.f32 %v524, %v1163
        %v1185 = vsub.f32 %v525, %v1163
        %v1186 = vsub.f32 %v526, %v1163
        %v1187 = vsub.f32 %v527, %v1163
        %v1188 = vsub.f32 %v528, %v1163
        %v1189 = vsub.f32 %v529, %v1163
        %v1190 = vsub.f32 %v530, %v1163
        %v1191 = vsub.f32 %v531, %v1163
        %v1192 = vsub.f32 %v532, %v1163
        %v1193 = vsub.f32 %v533, %v1163
        %v1194 = vsub.f32 %v534, %v1163
        %v1195 = vsub.f32 %v535, %v1163
        %v1196 = vsub.f32 %v536, %v1163
        %v1197 = vsub.f32 %v537, %v1163
        %v1198 = vsub.f32 %v538, %v1163
        %v1199 = vsub.f32 %v539, %v1163
        %v1200 = vsub.f32 %v540, %v1163
        %v1201 = vsub.f32 %v541, %v1163
        %v1202 = vmul.f32 %v1169, %v1029
        %v1203 = vlaneseq
        %v1204 = vshrl.u32 %v1203, 7
        %v1205 = vsub.s32 0, %v1204
        %v1206 = vrot.slane %v1202, %v1205
        %v1207 = vmul.f32 %v1170, %v1206
        %v1208 = vmul.f32 %v1171, %v1206
        %v1209 = vmul.f32 %v1172, %v1206
        %v1210 = vmul.f32 %v1173, %v1206
        %v1211 = vmul.f32 %v1174, %v1206
        %v1212 = vmul.f32 %v1175, %v1206
        %v1213 = vmul.f32 %v1176, %v1206
        %v1214 = vmul.f32 %v1177, %v1206
        %v1215 = vmul.f32 %v1178, %v1206
        %v1216 = vmul.f32 %v1179, %v1206
        %v1217 = vmul.f32 %v1180, %v1206
        %v1218 = vmul.f32 %v1181, %v1206
        %v1219 = vmul.f32 %v1182, %v1206
        %v1220 = vmul.f32 %v1183, %v1206
        %v1221 = vmul.f32 %v1184, %v1206
        %v1222 = vmul.f32 %v1185, %v1206
        %v1223 = vmul.f32 %v1186, %v1206
        %v1224 = vmul.f32 %v1187, %v1206
        %v1225 = vmul.f32 %v1188, %v1206
        %v1226 = vmul.f32 %v1189, %v1206
        %v1227 = vmul.f32 %v1190, %v1206
        %v1228 = vmul.f32 %v1191, %v1206
        %v1229 = vmul.f32 %v1192, %v1206
        %v1230 = vmul.f32 %v1193, %v1206
        %v1231 = vmul.f32 %v1194, %v1206
        %v1232 = vmul.f32 %v1195, %v1206
        %v1233 = vmul.f32 %v1196, %v1206
        %v1234 = vmul.f32 %v1197, %v1206
        %v1235 = vmul.f32 %v1198, %v1206
        %v1236 = vmul.f32 %v1199, %v1206
        %v1237 = vmul.f32 %v1200, %v1206
        %v1238 = vmul.f32 %v1201, %v1206
        %v1240 = vlaneseq
        %v1241 = vshrl.u32 %v1240, 7
        %v1242 = vsub.s32 0, %v1241
        %v1243 = vrot.slane %v1030, %v1242
        %v1245 = vadd.f32 %v1207, %v1243
        %v1246 = vadd.f32 %v1208, %v1243
        %v1247 = vadd.f32 %v1209, %v1243
        %v1248 = vadd.f32 %v1210, %v1243
        %v1249 = vadd.f32 %v1211, %v1243
        %v1250 = vadd.f32 %v1212, %v1243
        %v1251 = vadd.f32 %v1213, %v1243
        %v1252 = vadd.f32 %v1214, %v1243
        %v1253 = vadd.f32 %v1215, %v1243
        %v1254 = vadd.f32 %v1216, %v1243
        %v1255 = vadd.f32 %v1217, %v1243
        %v1256 = vadd.f32 %v1218, %v1243
        %v1257 = vadd.f32 %v1219, %v1243
        %v1258 = vadd.f32 %v1220, %v1243
        %v1259 = vadd.f32 %v1221, %v1243
        %v1260 = vadd.f32 %v1222, %v1243
        %v1261 = vadd.f32 %v1223, %v1243
        %v1262 = vadd.f32 %v1224, %v1243
        %v1263 = vadd.f32 %v1225, %v1243
        %v1264 = vadd.f32 %v1226, %v1243
        %v1265 = vadd.f32 %v1227, %v1243
        %v1266 = vadd.f32 %v1228, %v1243
        %v1267 = vadd.f32 %v1229, %v1243
        %v1268 = vadd.f32 %v1230, %v1243
        %v1269 = vadd.f32 %v1231, %v1243
        %v1270 = vadd.f32 %v1232, %v1243
        %v1271 = vadd.f32 %v1233, %v1243
        %v1272 = vadd.f32 %v1234, %v1243
        %v1273 = vadd.f32 %v1235, %v1243
        %v1274 = vadd.f32 %v1236, %v1243
        %v1275 = vadd.f32 %v1237, %v1243
        %v1276 = vadd.f32 %v1238, %v1243
        %v1277 = vsub.f32 0.0, %v1245
        %v1278 = vsub.f32 0.0, %v1246
        %v1279 = vsub.f32 0.0, %v1247
        %v1280 = vsub.f32 0.0, %v1248
        %v1281 = vsub.f32 0.0, %v1249
        %v1282 = vsub.f32 0.0, %v1250
        %v1283 = vsub.f32 0.0, %v1251
        %v1284 = vsub.f32 0.0, %v1252
        %v1285 = vsub.f32 0.0, %v1253
        %v1286 = vsub.f32 0.0, %v1254
        %v1287 = vsub.f32 0.0, %v1255
        %v1288 = vsub.f32 0.0, %v1256
        %v1289 = vsub.f32 0.0, %v1257
        %v1290 = vsub.f32 0.0, %v1258
        %v1291 = vsub.f32 0.0, %v1259
        %v1292 = vsub.f32 0.0, %v1260
        %v1293 = vsub.f32 0.0, %v1261
        %v1294 = vsub.f32 0.0, %v1262
        %v1295 = vsub.f32 0.0, %v1263
        %v1296 = vsub.f32 0.0, %v1264
        %v1297 = vsub.f32 0.0, %v1265
        %v1298 = vsub.f32 0.0, %v1266
        %v1299 = vsub.f32 0.0, %v1267
        %v1300 = vsub.f32 0.0, %v1268
        %v1301 = vsub.f32 0.0, %v1269
        %v1302 = vsub.f32 0.0, %v1270
        %v1303 = vsub.f32 0.0, %v1271
        %v1304 = vsub.f32 0.0, %v1272
        %v1305 = vsub.f32 0.0, %v1273
        %v1306 = vsub.f32 0.0, %v1274
        %v1307 = vsub.f32 0.0, %v1275
        %v1308 = vsub.f32 0.0, %v1276
        %v1309 = vmul.f32 %v1277, 1.442695
        %v1310 = vpow.pop %v1309
        %v1311 = vmul.f32 %v1278, 1.442695
        %v1312 = vpow.pop %v1311
        %v1313 = vmul.f32 %v1279, 1.442695
        %v1314 = vpow.pop %v1313
        %v1315 = vmul.f32 %v1280, 1.442695
        %v1316 = vpow.pop %v1315
        %v1317 = vmul.f32 %v1281, 1.442695
        %v1318 = vpow.pop %v1317
        %v1319 = vmul.f32 %v1282, 1.442695
        %v1320 = vpow.pop %v1319
        %v1321 = vmul.f32 %v1283, 1.442695
        %v1322 = vpow.pop %v1321
        %v1323 = vmul.f32 %v1284, 1.442695
        %v1324 = vpow.pop %v1323
        %v1325 = vmul.f32 %v1285, 1.442695
        %v1326 = vpow.pop %v1325
        %v1327 = vmul.f32 %v1286, 1.442695
        %v1328 = vpow.pop %v1327
        %v1329 = vmul.f32 %v1287, 1.442695
        %v1330 = vpow.pop %v1329
        %v1331 = vmul.f32 %v1288, 1.442695
        %v1332 = vpow.pop %v1331
        %v1333 = vmul.f32 %v1289, 1.442695
        %v1334 = vpow.pop %v1333
        %v1335 = vmul.f32 %v1290, 1.442695
        %v1336 = vpow.pop %v1335
        %v1337 = vmul.f32 %v1291, 1.442695
        %v1338 = vpow.pop %v1337
        %v1339 = vmul.f32 %v1292, 1.442695
        %v1340 = vpow.pop %v1339
        %v1341 = vmul.f32 %v1293, 1.442695
        %v1342 = vpow.pop %v1341
        %v1343 = vmul.f32 %v1294, 1.442695
        %v1344 = vpow.pop %v1343
        %v1345 = vmul.f32 %v1295, 1.442695
        %v1346 = vpow.pop %v1345
        %v1347 = vmul.f32 %v1296, 1.442695
        %v1348 = vpow.pop %v1347
        %v1349 = vmul.f32 %v1297, 1.442695
        %v1350 = vpow.pop %v1349
        %v1351 = vmul.f32 %v1298, 1.442695
        %v1352 = vpow.pop %v1351
        %v1353 = vmul.f32 %v1299, 1.442695
        %v1354 = vpow.pop %v1353
        %v1355 = vmul.f32 %v1300, 1.442695
        %v1356 = vpow.pop %v1355
        %v1357 = vmul.f32 %v1301, 1.442695
        %v1358 = vpow.pop %v1357
        %v1359 = vmul.f32 %v1302, 1.442695
        %v1360 = vpow.pop %v1359
        %v1361 = vmul.f32 %v1303, 1.442695
        %v1362 = vpow.pop %v1361
        %v1363 = vmul.f32 %v1304, 1.442695
        %v1364 = vpow.pop %v1363
        %v1365 = vmul.f32 %v1305, 1.442695
        %v1366 = vpow.pop %v1365
        %v1367 = vmul.f32 %v1306, 1.442695
        %v1368 = vpow.pop %v1367
        %v1369 = vmul.f32 %v1307, 1.442695
        %v1370 = vpow.pop %v1369
        %v1371 = vmul.f32 %v1308, 1.442695
        %v1372 = vpow.pop %v1371
        %v1373 = vadd.f32 %v1310, 1.0
        %v1374 = vadd.f32 %v1312, 1.0
        %v1375 = vadd.f32 %v1314, 1.0
        %v1376 = vadd.f32 %v1316, 1.0
        %v1377 = vadd.f32 %v1318, 1.0
        %v1378 = vadd.f32 %v1320, 1.0
        %v1379 = vadd.f32 %v1322, 1.0
        %v1380 = vadd.f32 %v1324, 1.0
        %v1381 = vadd.f32 %v1326, 1.0
        %v1382 = vadd.f32 %v1328, 1.0
        %v1383 = vadd.f32 %v1330, 1.0
        %v1384 = vadd.f32 %v1332, 1.0
        %v1385 = vadd.f32 %v1334, 1.0
        %v1386 = vadd.f32 %v1336, 1.0
        %v1387 = vadd.f32 %v1338, 1.0
        %v1388 = vadd.f32 %v1340, 1.0
        %v1389 = vadd.f32 %v1342, 1.0
        %v1390 = vadd.f32 %v1344, 1.0
        %v1391 = vadd.f32 %v1346, 1.0
        %v1392 = vadd.f32 %v1348, 1.0
        %v1393 = vadd.f32 %v1350, 1.0
        %v1394 = vadd.f32 %v1352, 1.0
        %v1395 = vadd.f32 %v1354, 1.0
        %v1396 = vadd.f32 %v1356, 1.0
        %v1397 = vadd.f32 %v1358, 1.0
        %v1398 = vadd.f32 %v1360, 1.0
        %v1399 = vadd.f32 %v1362, 1.0
        %v1400 = vadd.f32 %v1364, 1.0
        %v1401 = vadd.f32 %v1366, 1.0
        %v1402 = vadd.f32 %v1368, 1.0
        %v1403 = vadd.f32 %v1370, 1.0
        %v1404 = vadd.f32 %v1372, 1.0
        %v1405 = vrcp.pop %v1373
        %v1406 = vrcp.pop %v1374
        %v1407 = vrcp.pop %v1375
        %v1408 = vrcp.pop %v1376
        %v1409 = vrcp.pop %v1377
        %v1410 = vrcp.pop %v1378
        %v1411 = vrcp.pop %v1379
        %v1412 = vrcp.pop %v1380
        %v1413 = vrcp.pop %v1381
        %v1414 = vrcp.pop %v1382
        %v1415 = vrcp.pop %v1383
        %v1416 = vrcp.pop %v1384
        %v1417 = vrcp.pop %v1385
        %v1418 = vrcp.pop %v1386
        %v1419 = vrcp.pop %v1387
        %v1420 = vrcp.pop %v1388
        %v1421 = vrcp.pop %v1389
        %v1422 = vrcp.pop %v1390
        %v1423 = vrcp.pop %v1391
        %v1424 = vrcp.pop %v1392
        %v1425 = vrcp.pop %v1393
        %v1426 = vrcp.pop %v1394
        %v1427 = vrcp.pop %v1395
        %v1428 = vrcp.pop %v1396
        %v1429 = vrcp.pop %v1397
        %v1430 = vrcp.pop %v1398
        %v1431 = vrcp.pop %v1399
        %v1432 = vrcp.pop %v1400
        %v1433 = vrcp.pop %v1401
        %v1434 = vrcp.pop %v1402
        %v1435 = vrcp.pop %v1403
        %v1436 = vrcp.pop %v1404
        %v1437 = vmul.f32 %v1245, %v1405
        %v1438 = vmul.f32 %v1246, %v1406
        %v1439 = vmul.f32 %v1247, %v1407
        %v1440 = vmul.f32 %v1248, %v1408
        %v1441 = vmul.f32 %v1249, %v1409
        %v1442 = vmul.f32 %v1250, %v1410
        %v1443 = vmul.f32 %v1251, %v1411
        %v1444 = vmul.f32 %v1252, %v1412
        %v1445 = vmul.f32 %v1253, %v1413
        %v1446 = vmul.f32 %v1254, %v1414
        %v1447 = vmul.f32 %v1255, %v1415
        %v1448 = vmul.f32 %v1256, %v1416
        %v1449 = vmul.f32 %v1257, %v1417
        %v1450 = vmul.f32 %v1258, %v1418
        %v1451 = vmul.f32 %v1259, %v1419
        %v1452 = vmul.f32 %v1260, %v1420
        %v1453 = vmul.f32 %v1261, %v1421
        %v1454 = vmul.f32 %v1262, %v1422
        %v1455 = vmul.f32 %v1263, %v1423
        %v1456 = vmul.f32 %v1264, %v1424
        %v1457 = vmul.f32 %v1265, %v1425
        %v1458 = vmul.f32 %v1266, %v1426
        %v1459 = vmul.f32 %v1267, %v1427
        %v1460 = vmul.f32 %v1268, %v1428
        %v1461 = vmul.f32 %v1269, %v1429
        %v1462 = vmul.f32 %v1270, %v1430
        %v1463 = vmul.f32 %v1271, %v1431
        %v1464 = vmul.f32 %v1272, %v1432
        %v1465 = vmul.f32 %v1273, %v1433
        %v1466 = vmul.f32 %v1274, %v1434
        %v1467 = vmul.f32 %v1275, %v1435
        %v1468 = vmul.f32 %v1276, %v1436
        %1469 = vst [vmem:[#allocation2 + $0x18] sm:$0xff] %v1437
        %1470 = vst [vmem:[#allocation2 + $0x20] sm:$0xff] %v1438
        %1471 = vst [vmem:[#allocation2 + $0x28] sm:$0xff] %v1439
        %1472 = vst [vmem:[#allocation2 + $0x30] sm:$0xff] %v1440
        %1473 = vst [vmem:[#allocation2 + $0x38] sm:$0xff] %v1441
        %1474 = vst [vmem:[#allocation2 + $0x40] sm:$0xff] %v1442
        %1475 = vst [vmem:[#allocation2 + $0x48] sm:$0xff] %v1443
        %1476 = vst [vmem:[#allocation2 + $0x50] sm:$0xff] %v1444
        %1477 = vst [vmem:[#allocation2 + $0x58] sm:$0xff] %v1445
        %1478 = vst [vmem:[#allocation2 + $0x60] sm:$0xff] %v1446
        %1479 = vst [vmem:[#allocation2 + $0x68] sm:$0xff] %v1447
        %1480 = vst [vmem:[#allocation2 + $0x70] sm:$0xff] %v1448
        %1481 = vst [vmem:[#allocation2 + $0x78] sm:$0xff] %v1449
        %1482 = vst [vmem:[#allocation2 + $0x80] sm:$0xff] %v1450
        %1483 = vst [vmem:[#allocation2 + $0x88] sm:$0xff] %v1451
        %1484 = vst [vmem:[#allocation2 + $0x90] sm:$0xff] %v1452
        %1485 = vst [vmem:[#allocation2 + $0x98] sm:$0xff] %v1453
        %1486 = vst [vmem:[#allocation2 + $0xa0] sm:$0xff] %v1454
        %1487 = vst [vmem:[#allocation2 + $0xa8] sm:$0xff] %v1455
        %1488 = vst [vmem:[#allocation2 + $0xb0] sm:$0xff] %v1456
        %1489 = vst [vmem:[#allocation2 + $0xb8] sm:$0xff] %v1457
        %1490 = vst [vmem:[#allocation2 + $0xc0] sm:$0xff] %v1458
        %1491 = vst [vmem:[#allocation2 + $0xc8] sm:$0xff] %v1459
        %1492 = vst [vmem:[#allocation2 + $0xd0] sm:$0xff] %v1460
        %1493 = vst [vmem:[#allocation2 + $0xd8] sm:$0xff] %v1461
        %1494 = vst [vmem:[#allocation2 + $0xe0] sm:$0xff] %v1462
        %1495 = vst [vmem:[#allocation2 + $0xe8] sm:$0xff] %v1463
        %1496 = vst [vmem:[#allocation2 + $0xf0] sm:$0xff] %v1464
        %1497 = vst [vmem:[#allocation2 + $0xf8] sm:$0xff] %v1465
        %1498 = vst [vmem:[#allocation2 + $0x100] sm:$0xff] %v1466
        %1499 = vst [vmem:[#allocation2 + $0x108] sm:$0xff] %v1467
        %1500 = vst [vmem:[#allocation2 + $0x110] sm:$0xff] %v1468
        %v1501 = vld [vmem:[#allocation2 + $0x7] sm:$0xff]
        %v1502 = vld [vmem:[#allocation2 + $0xf] sm:$0xff]
        %v1503 = vld [vmem:[#allocation2 + $0x17] sm:$0xff]
        %v1504 = vld [vmem:[#allocation2 + $0x1f] sm:$0xff]
        %v1505 = vld [vmem:[#allocation2 + $0x27] sm:$0xff]
        %v1506 = vld [vmem:[#allocation2 + $0x2f] sm:$0xff]
        %v1507 = vld [vmem:[#allocation2 + $0x37] sm:$0xff]
        %v1508 = vld [vmem:[#allocation2 + $0x3f] sm:$0xff]
        %v1509 = vld [vmem:[#allocation2 + $0x47] sm:$0xff]
        %v1510 = vld [vmem:[#allocation2 + $0x4f] sm:$0xff]
        %v1511 = vld [vmem:[#allocation2 + $0x57] sm:$0xff]
        %v1512 = vld [vmem:[#allocation2 + $0x5f] sm:$0xff]
        %v1513 = vld [vmem:[#allocation2 + $0x67] sm:$0xff]
        %v1514 = vld [vmem:[#allocation2 + $0x6f] sm:$0xff]
        %v1515 = vld [vmem:[#allocation2 + $0x77] sm:$0xff]
        %v1516 = vld [vmem:[#allocation2 + $0x7f] sm:$0xff]
        %v1517 = vld [vmem:[#allocation2 + $0x87] sm:$0xff]
        %v1518 = vld [vmem:[#allocation2 + $0x8f] sm:$0xff]
        %v1519 = vld [vmem:[#allocation2 + $0x97] sm:$0xff]
        %v1520 = vld [vmem:[#allocation2 + $0x9f] sm:$0xff]
        %v1521 = vld [vmem:[#allocation2 + $0xa7] sm:$0xff]
        %v1522 = vld [vmem:[#allocation2 + $0xaf] sm:$0xff]
        %v1523 = vld [vmem:[#allocation2 + $0xb7] sm:$0xff]
        %v1524 = vld [vmem:[#allocation2 + $0xbf] sm:$0xff]
        %v1525 = vld [vmem:[#allocation2 + $0xc7] sm:$0xff]
        %v1526 = vld [vmem:[#allocation2 + $0xcf] sm:$0xff]
        %v1527 = vld [vmem:[#allocation2 + $0xd7] sm:$0xff]
        %v1528 = vld [vmem:[#allocation2 + $0xdf] sm:$0xff]
        %v1529 = vld [vmem:[#allocation2 + $0xe7] sm:$0xff]
        %v1530 = vld [vmem:[#allocation2 + $0xef] sm:$0xff]
        %v1531 = vld [vmem:[#allocation2 + $0xf7] sm:$0xff]
        %v1532 = vld [vmem:[#allocation2 + $0xff] sm:$0xff]
        %v1533 = vsel %vm959, 1, 0
        %v1534 = vsel %vm960, 1, 0
        %v1535 = vsel %vm961, 1, 0
        %v1536 = vsel %vm962, 1, 0
        %v1537 = vsel %vm963, 1, 0
        %v1538 = vsel %vm964, 1, 0
        %v1539 = vsel %vm965, 1, 0
        %v1540 = vsel %vm966, 1, 0
        %v1541 = vsel %vm967, 1, 0
        %v1542 = vsel %vm968, 1, 0
        %v1543 = vsel %vm969, 1, 0
        %v1544 = vsel %vm970, 1, 0
        %v1545 = vsel %vm971, 1, 0
        %v1546 = vsel %vm972, 1, 0
        %v1547 = vsel %vm973, 1, 0
        %v1548 = vsel %vm974, 1, 0
        %v1549 = vsel %vm975, 1, 0
        %v1550 = vsel %vm976, 1, 0
        %v1551 = vsel %vm977, 1, 0
        %v1552 = vsel %vm978, 1, 0
        %v1553 = vsel %vm979, 1, 0
        %v1554 = vsel %vm980, 1, 0
        %v1555 = vsel %vm981, 1, 0
        %v1556 = vsel %vm982, 1, 0
        %v1557 = vsel %vm983, 1, 0
        %v1558 = vsel %vm984, 1, 0
        %v1559 = vsel %vm985, 1, 0
        %v1560 = vsel %vm986, 1, 0
        %v1561 = vsel %vm987, 1, 0
        %v1562 = vsel %vm988, 1, 0
        %v1563 = vsel %vm989, 1, 0
        %v1564 = vsel %vm990, 1, 0
        %vm1565 = vcmp.eq.s32.totalorder %v1533, 1
        %vm1566 = vcmp.eq.s32.totalorder %v1534, 1
        %vm1567 = vcmp.eq.s32.totalorder %v1535, 1
        %vm1568 = vcmp.eq.s32.totalorder %v1536, 1
        %vm1569 = vcmp.eq.s32.totalorder %v1537, 1
        %vm1570 = vcmp.eq.s32.totalorder %v1538, 1
        %vm1571 = vcmp.eq.s32.totalorder %v1539, 1
        %vm1572 = vcmp.eq.s32.totalorder %v1540, 1
        %vm1573 = vcmp.eq.s32.totalorder %v1541, 1
        %vm1574 = vcmp.eq.s32.totalorder %v1542, 1
        %vm1575 = vcmp.eq.s32.totalorder %v1543, 1
        %vm1576 = vcmp.eq.s32.totalorder %v1544, 1
        %vm1577 = vcmp.eq.s32.totalorder %v1545, 1
        %vm1578 = vcmp.eq.s32.totalorder %v1546, 1
        %vm1579 = vcmp.eq.s32.totalorder %v1547, 1
        %vm1580 = vcmp.eq.s32.totalorder %v1548, 1
        %vm1581 = vcmp.eq.s32.totalorder %v1549, 1
        %vm1582 = vcmp.eq.s32.totalorder %v1550, 1
        %vm1583 = vcmp.eq.s32.totalorder %v1551, 1
        %vm1584 = vcmp.eq.s32.totalorder %v1552, 1
        %vm1585 = vcmp.eq.s32.totalorder %v1553, 1
        %vm1586 = vcmp.eq.s32.totalorder %v1554, 1
        %vm1587 = vcmp.eq.s32.totalorder %v1555, 1
        %vm1588 = vcmp.eq.s32.totalorder %v1556, 1
        %vm1589 = vcmp.eq.s32.totalorder %v1557, 1
        %vm1590 = vcmp.eq.s32.totalorder %v1558, 1
        %vm1591 = vcmp.eq.s32.totalorder %v1559, 1
        %vm1592 = vcmp.eq.s32.totalorder %v1560, 1
        %vm1593 = vcmp.eq.s32.totalorder %v1561, 1
        %vm1594 = vcmp.eq.s32.totalorder %v1562, 1
        %vm1595 = vcmp.eq.s32.totalorder %v1563, 1
        %vm1596 = vcmp.eq.s32.totalorder %v1564, 1
        %v1597 = vsel %vm1565, %v1501, 0.0
        %v1598 = vsel %vm1566, %v1502, 0.0
        %v1599 = vsel %vm1567, %v1503, 0.0
        %v1600 = vsel %vm1568, %v1504, 0.0
        %v1601 = vsel %vm1569, %v1505, 0.0
        %v1602 = vsel %vm1570, %v1506, 0.0
        %v1603 = vsel %vm1571, %v1507, 0.0
        %v1604 = vsel %vm1572, %v1508, 0.0
        %v1605 = vsel %vm1573, %v1509, 0.0
        %v1606 = vsel %vm1574, %v1510, 0.0
        %v1607 = vsel %vm1575, %v1511, 0.0
        %v1608 = vsel %vm1576, %v1512, 0.0
        %v1609 = vsel %vm1577, %v1513, 0.0
        %v1610 = vsel %vm1578, %v1514, 0.0
        %v1611 = vsel %vm1579, %v1515, 0.0
        %v1612 = vsel %vm1580, %v1516, 0.0
        %v1613 = vsel %vm1581, %v1517, 0.0
        %v1614 = vsel %vm1582, %v1518, 0.0
        %v1615 = vsel %vm1583, %v1519, 0.0
        %v1616 = vsel %vm1584, %v1520, 0.0
        %v1617 = vsel %vm1585, %v1521, 0.0
        %v1618 = vsel %vm1586, %v1522, 0.0
        %v1619 = vsel %vm1587, %v1523, 0.0
        %v1620 = vsel %vm1588, %v1524, 0.0
        %v1621 = vsel %vm1589, %v1525, 0.0
        %v1622 = vsel %vm1590, %v1526, 0.0
        %v1623 = vsel %vm1591, %v1527, 0.0
        %v1624 = vsel %vm1592, %v1528, 0.0
        %v1625 = vsel %vm1593, %v1529, 0.0
        %v1626 = vsel %vm1594, %v1530, 0.0
        %v1627 = vsel %vm1595, %v1531, 0.0
        %v1628 = vsel %vm1596, %v1532, 0.0
        %v1629 = vpack.c.bf16 %v1598, %v1597
        %v1630 = vpack.c.bf16 %v1600, %v1599
        %v1631 = vpack.c.bf16 %v1602, %v1601
        %v1632 = vpack.c.bf16 %v1604, %v1603
        %v1633 = vpack.c.bf16 %v1606, %v1605
        %v1634 = vpack.c.bf16 %v1608, %v1607
        %v1635 = vpack.c.bf16 %v1610, %v1609
        %v1636 = vpack.c.bf16 %v1612, %v1611
        %v1637 = vpack.c.bf16 %v1614, %v1613
        %v1638 = vpack.c.bf16 %v1616, %v1615
        %v1639 = vpack.c.bf16 %v1618, %v1617
        %v1640 = vpack.c.bf16 %v1620, %v1619
        %v1641 = vpack.c.bf16 %v1622, %v1621
        %v1642 = vpack.c.bf16 %v1624, %v1623
        %v1643 = vpack.c.bf16 %v1626, %v1625
        %v1644 = vpack.c.bf16 %v1628, %v1627
        %v1645 = vld [vmem:[#allocation8] sm:$0xf]
        %v1646 = vld [vmem:[#allocation8 + $0x4] sm:$0xf]
        %v1647 = vld [vmem:[#allocation8 + $0x8] sm:$0xf]
        %v1648 = vld [vmem:[#allocation8 + $0xc] sm:$0xf]
        %v1649 = vld [vmem:[#allocation8 + $0x10] sm:$0xf]
        %v1650 = vld [vmem:[#allocation8 + $0x14] sm:$0xf]
        %v1651 = vld [vmem:[#allocation8 + $0x18] sm:$0xf]
        %v1652 = vld [vmem:[#allocation8 + $0x1c] sm:$0xf]
        %v1653 = vld [vmem:[#allocation8 + $0x20] sm:$0xf]
        %v1654 = vld [vmem:[#allocation8 + $0x24] sm:$0xf]
        %v1655 = vld [vmem:[#allocation8 + $0x28] sm:$0xf]
        %v1656 = vld [vmem:[#allocation8 + $0x2c] sm:$0xf]
        %v1657 = vld [vmem:[#allocation8 + $0x30] sm:$0xf]
        %v1658 = vld [vmem:[#allocation8 + $0x34] sm:$0xf]
        %v1659 = vld [vmem:[#allocation8 + $0x38] sm:$0xf]
        %v1660 = vld [vmem:[#allocation8 + $0x3c] sm:$0xf]
        %v1661 = vld [vmem:[#allocation2 + $0x8] sm:$0xff]
        %v1662 = vld [vmem:[#allocation2 + $0x10] sm:$0xff]
        %v1663 = vld [vmem:[#allocation2 + $0x18] sm:$0xff]
        %v1664 = vld [vmem:[#allocation2 + $0x20] sm:$0xff]
        %v1665 = vld [vmem:[#allocation2 + $0x28] sm:$0xff]
        %v1666 = vld [vmem:[#allocation2 + $0x30] sm:$0xff]
        %v1667 = vld [vmem:[#allocation2 + $0x38] sm:$0xff]
        %v1668 = vld [vmem:[#allocation2 + $0x40] sm:$0xff]
        %v1669 = vld [vmem:[#allocation2 + $0x48] sm:$0xff]
        %v1670 = vld [vmem:[#allocation2 + $0x50] sm:$0xff]
        %v1671 = vld [vmem:[#allocation2 + $0x58] sm:$0xff]
        %v1672 = vld [vmem:[#allocation2 + $0x60] sm:$0xff]
        %v1673 = vld [vmem:[#allocation2 + $0x68] sm:$0xff]
        %v1674 = vld [vmem:[#allocation2 + $0x70] sm:$0xff]
        %v1675 = vld [vmem:[#allocation2 + $0x78] sm:$0xff]
        %v1676 = vld [vmem:[#allocation2 + $0x80] sm:$0xff]
        %v1677 = vld [vmem:[#allocation2 + $0x88] sm:$0xff]
        %v1678 = vld [vmem:[#allocation2 + $0x90] sm:$0xff]
        %v1679 = vld [vmem:[#allocation2 + $0x98] sm:$0xff]
        %v1680 = vld [vmem:[#allocation2 + $0xa0] sm:$0xff]
        %v1681 = vld [vmem:[#allocation2 + $0xa8] sm:$0xff]
        %v1682 = vld [vmem:[#allocation2 + $0xb0] sm:$0xff]
        %v1683 = vld [vmem:[#allocation2 + $0xb8] sm:$0xff]
        %v1684 = vld [vmem:[#allocation2 + $0xc0] sm:$0xff]
        %v1685 = vld [vmem:[#allocation2 + $0xc8] sm:$0xff]
        %v1686 = vld [vmem:[#allocation2 + $0xd0] sm:$0xff]
        %v1687 = vld [vmem:[#allocation2 + $0xd8] sm:$0xff]
        %v1688 = vld [vmem:[#allocation2 + $0xe0] sm:$0xff]
        %v1689 = vld [vmem:[#allocation2 + $0xe8] sm:$0xff]
        %v1690 = vld [vmem:[#allocation2 + $0xf0] sm:$0xff]
        %v1691 = vld [vmem:[#allocation2 + $0xf8] sm:$0xff]
        %v1692 = vld [vmem:[#allocation2 + $0x100] sm:$0xff]
        %v1693 = vpack.c.bf16 %v1662, %v1661
        %v1694 = vpack.c.bf16 %v1664, %v1663
        %v1695 = vpack.c.bf16 %v1666, %v1665
        %v1696 = vpack.c.bf16 %v1668, %v1667
        %v1697 = vpack.c.bf16 %v1670, %v1669
        %v1698 = vpack.c.bf16 %v1672, %v1671
        %v1699 = vpack.c.bf16 %v1674, %v1673
        %v1700 = vpack.c.bf16 %v1676, %v1675
        %v1701 = vpack.c.bf16 %v1678, %v1677
        %v1702 = vpack.c.bf16 %v1680, %v1679
        %v1703 = vpack.c.bf16 %v1682, %v1681
        %v1704 = vpack.c.bf16 %v1684, %v1683
        %v1705 = vpack.c.bf16 %v1686, %v1685
        %v1706 = vpack.c.bf16 %v1688, %v1687
        %v1707 = vpack.c.bf16 %v1690, %v1689
        %v1708 = vpack.c.bf16 %v1692, %v1691
        %s1709 = scalar_lea.vmem [#allocation8], 64
        %v1710 = vld [vmem:[%s1709] sm:$0xf]
        %v1711 = vld [vmem:[%s1709 + $0x4] sm:$0xf]
        %v1712 = vld [vmem:[%s1709 + $0x8] sm:$0xf]
        %v1713 = vld [vmem:[%s1709 + $0xc] sm:$0xf]
        %v1714 = vld [vmem:[%s1709 + $0x10] sm:$0xf]
        %v1715 = vld [vmem:[%s1709 + $0x14] sm:$0xf]
        %v1716 = vld [vmem:[%s1709 + $0x18] sm:$0xf]
        %v1717 = vld [vmem:[%s1709 + $0x1c] sm:$0xf]
        %v1718 = vld [vmem:[%s1709 + $0x20] sm:$0xf]
        %v1719 = vld [vmem:[%s1709 + $0x24] sm:$0xf]
        %v1720 = vld [vmem:[%s1709 + $0x28] sm:$0xf]
        %v1721 = vld [vmem:[%s1709 + $0x2c] sm:$0xf]
        %v1722 = vld [vmem:[%s1709 + $0x30] sm:$0xf]
        %v1723 = vld [vmem:[%s1709 + $0x34] sm:$0xf]
        %v1724 = vld [vmem:[%s1709 + $0x38] sm:$0xf]
        %v1725 = vld [vmem:[%s1709 + $0x3c] sm:$0xf]
        %v1742 = vunpack.c.l.b16 %v1710
        %v1743 = vunpack.c.l.b16 %v1711
        %v1744 = vunpack.c.l.b16 %v1712
        %v1745 = vunpack.c.l.b16 %v1713
        %v1746 = vunpack.c.l.b16 %v1714
        %v1747 = vunpack.c.l.b16 %v1715
        %v1748 = vunpack.c.l.b16 %v1716
        %v1749 = vunpack.c.l.b16 %v1717
        %v1750 = vunpack.c.l.b16 %v1718
        %v1751 = vunpack.c.l.b16 %v1719
        %v1752 = vunpack.c.l.b16 %v1720
        %v1753 = vunpack.c.l.b16 %v1721
        %v1754 = vunpack.c.l.b16 %v1722
        %v1755 = vunpack.c.l.b16 %v1723
        %v1756 = vunpack.c.l.b16 %v1724
        %v1757 = vunpack.c.l.b16 %v1725
        %v1758 = vpack.c.b16 %v1743, %v1742
        %v1759 = vpack.c.b16 %v1745, %v1744
        %v1760 = vpack.c.b16 %v1747, %v1746
        %v1761 = vpack.c.b16 %v1749, %v1748
        %v1762 = vpack.c.b16 %v1751, %v1750
        %v1763 = vpack.c.b16 %v1753, %v1752
        %v1764 = vpack.c.b16 %v1755, %v1754
        %v1765 = vpack.c.b16 %v1757, %v1756
        %1774 = vmatprep.subr.bf16.mxu0 0
        %1775 = vmatpush1.bf16.msra.mxu0 %v1765
        %1776 = vmatprep.subr.bf16.mxu0 0
        %1777 = vmatpush1.bf16.msra.mxu0 %v1764
        %1778 = vmatprep.subr.bf16.mxu0 0
        %1779 = vmatpush1.bf16.msra.mxu0 %v1763
        %1780 = vmatprep.subr.bf16.mxu0 0
        %1781 = vmatpush1.bf16.msra.mxu0 %v1762
        %1782 = vmatprep.subr.bf16.mxu0 0
        %1783 = vmatpush1.bf16.msra.mxu0 %v1761
        %1784 = vmatprep.subr.bf16.mxu0 0
        %1785 = vmatpush1.bf16.msra.mxu0 %v1760
        %1786 = vmatprep.subr.bf16.mxu0 0
        %1787 = vmatpush1.bf16.msra.mxu0 %v1759
        %1788 = vmatprep.subr.bf16.mxu0 0
        %1789 = vmatpush1.bf16.msra.mxu0 %v1758
        %1790 = vmatprep.subr.bf16.mxu0 0
        %1791 = vmatpush2.bf16.msra.mxu0 0
        %1792 = vmatprep.subr.bf16.mxu0 0
        %1793 = vmatpush2.bf16.msra.mxu0 0
        %1794 = vmatprep.subr.bf16.mxu0 0
        %1795 = vmatpush2.bf16.msra.mxu0 0
        %1796 = vmatprep.subr.bf16.mxu0 0
        %1797 = vmatpush2.bf16.msra.mxu0 0
        %1798 = vmatprep.subr.bf16.mxu0 0
        %1799 = vmatpush2.bf16.msra.mxu0 0
        %1800 = vmatprep.subr.bf16.mxu0 0
        %1801 = vmatpush2.bf16.msra.mxu0 0
        %1802 = vmatprep.subr.bf16.mxu0 0
        %1803 = vmatpush2.bf16.msra.mxu0 0
        %1804 = vmatprep.subr.bf16.mxu0 0
        %1805 = vmatpush2.bf16.msra.mxu0 0
        %1806 = vmatprep.mubr.bf16.mxu0 0
        %1807 = vmatmul.mubr.bf16.gmra.mxu0 %v1693
        %v1808 = vpop.f32.mrf.mxu0
        %v1809 = vadd.f32 0.0, %v1808
        %v1810 = vpop.f32.mrf.mxu0
        %v1811 = vpop.f32.mrf.mxu0
        %v1812 = vadd.f32 0.0, %v1811
        %v1813 = vpop.f32.mrf.mxu0
        %1814 = vmatprep.mubr.bf16.mxu0 0
        %1815 = vmatmul.mubr.bf16.gmra.mxu0 %v1694
        %v1816 = vpop.f32.mrf.mxu0
        %v1817 = vadd.f32 0.0, %v1816
        %v1818 = vpop.f32.mrf.mxu0
        %v1819 = vpop.f32.mrf.mxu0
        %v1820 = vadd.f32 0.0, %v1819
        %v1821 = vpop.f32.mrf.mxu0
        %1822 = vmatprep.mubr.bf16.mxu0 0
        %1823 = vmatmul.mubr.bf16.gmra.mxu0 %v1695
        %v1824 = vpop.f32.mrf.mxu0
        %v1825 = vadd.f32 0.0, %v1824
        %v1826 = vpop.f32.mrf.mxu0
        %v1827 = vpop.f32.mrf.mxu0
        %v1828 = vadd.f32 0.0, %v1827
        %v1829 = vpop.f32.mrf.mxu0
        %1830 = vmatprep.mubr.bf16.mxu0 0
        %1831 = vmatmul.mubr.bf16.gmra.mxu0 %v1696
        %v1832 = vpop.f32.mrf.mxu0
        %v1833 = vadd.f32 0.0, %v1832
        %v1834 = vpop.f32.mrf.mxu0
        %v1835 = vpop.f32.mrf.mxu0
        %v1836 = vadd.f32 0.0, %v1835
        %v1837 = vpop.f32.mrf.mxu0
        %1838 = vmatprep.mubr.bf16.mxu0 0
        %1839 = vmatmul.mubr.bf16.gmra.mxu0 %v1697
        %v1840 = vpop.f32.mrf.mxu0
        %v1841 = vadd.f32 0.0, %v1840
        %v1842 = vpop.f32.mrf.mxu0
        %v1843 = vpop.f32.mrf.mxu0
        %v1844 = vadd.f32 0.0, %v1843
        %v1845 = vpop.f32.mrf.mxu0
        %1846 = vmatprep.mubr.bf16.mxu0 0
        %1847 = vmatmul.mubr.bf16.gmra.mxu0 %v1698
        %v1848 = vpop.f32.mrf.mxu0
        %v1849 = vadd.f32 0.0, %v1848
        %v1850 = vpop.f32.mrf.mxu0
        %v1851 = vpop.f32.mrf.mxu0
        %v1852 = vadd.f32 0.0, %v1851
        %v1853 = vpop.f32.mrf.mxu0
        %1854 = vmatprep.mubr.bf16.mxu0 0
        %1855 = vmatmul.mubr.bf16.gmra.mxu0 %v1699
        %v1856 = vpop.f32.mrf.mxu0
        %v1857 = vadd.f32 0.0, %v1856
        %v1858 = vpop.f32.mrf.mxu0
        %v1859 = vpop.f32.mrf.mxu0
        %v1860 = vadd.f32 0.0, %v1859
        %v1861 = vpop.f32.mrf.mxu0
        %1862 = vmatprep.mubr.bf16.mxu0 0
        %1863 = vmatmul.mubr.bf16.gmra.mxu0 %v1700
        %v1864 = vpop.f32.mrf.mxu0
        %v1865 = vadd.f32 0.0, %v1864
        %v1866 = vpop.f32.mrf.mxu0
        %v1867 = vpop.f32.mrf.mxu0
        %v1868 = vadd.f32 0.0, %v1867
        %v1869 = vpop.f32.mrf.mxu0
        %1870 = vmatprep.mubr.bf16.mxu0 0
        %1871 = vmatmul.mubr.bf16.gmra.mxu0 %v1701
        %v1872 = vpop.f32.mrf.mxu0
        %v1873 = vadd.f32 0.0, %v1872
        %v1874 = vpop.f32.mrf.mxu0
        %v1875 = vpop.f32.mrf.mxu0
        %v1876 = vadd.f32 0.0, %v1875
        %v1877 = vpop.f32.mrf.mxu0
        %1878 = vmatprep.mubr.bf16.mxu0 0
        %1879 = vmatmul.mubr.bf16.gmra.mxu0 %v1702
        %v1880 = vpop.f32.mrf.mxu0
        %v1881 = vadd.f32 0.0, %v1880
        %v1882 = vpop.f32.mrf.mxu0
        %v1883 = vpop.f32.mrf.mxu0
        %v1884 = vadd.f32 0.0, %v1883
        %v1885 = vpop.f32.mrf.mxu0
        %1886 = vmatprep.mubr.bf16.mxu0 0
        %1887 = vmatmul.mubr.bf16.gmra.mxu0 %v1703
        %v1888 = vpop.f32.mrf.mxu0
        %v1889 = vadd.f32 0.0, %v1888
        %v1890 = vpop.f32.mrf.mxu0
        %v1891 = vpop.f32.mrf.mxu0
        %v1892 = vadd.f32 0.0, %v1891
        %v1893 = vpop.f32.mrf.mxu0
        %1894 = vmatprep.mubr.bf16.mxu0 0
        %1895 = vmatmul.mubr.bf16.gmra.mxu0 %v1704
        %v1896 = vpop.f32.mrf.mxu0
        %v1897 = vadd.f32 0.0, %v1896
        %v1898 = vpop.f32.mrf.mxu0
        %v1899 = vpop.f32.mrf.mxu0
        %v1900 = vadd.f32 0.0, %v1899
        %v1901 = vpop.f32.mrf.mxu0
        %1902 = vmatprep.mubr.bf16.mxu0 0
        %1903 = vmatmul.mubr.bf16.gmra.mxu0 %v1705
        %v1904 = vpop.f32.mrf.mxu0
        %v1905 = vadd.f32 0.0, %v1904
        %v1906 = vpop.f32.mrf.mxu0
        %v1907 = vpop.f32.mrf.mxu0
        %v1908 = vadd.f32 0.0, %v1907
        %v1909 = vpop.f32.mrf.mxu0
        %1910 = vmatprep.mubr.bf16.mxu0 0
        %1911 = vmatmul.mubr.bf16.gmra.mxu0 %v1706
        %v1912 = vpop.f32.mrf.mxu0
        %v1913 = vadd.f32 0.0, %v1912
        %v1914 = vpop.f32.mrf.mxu0
        %v1915 = vpop.f32.mrf.mxu0
        %v1916 = vadd.f32 0.0, %v1915
        %v1917 = vpop.f32.mrf.mxu0
        %1918 = vmatprep.mubr.bf16.mxu0 0
        %1919 = vmatmul.mubr.bf16.gmra.mxu0 %v1707
        %v1920 = vpop.f32.mrf.mxu0
        %v1921 = vadd.f32 0.0, %v1920
        %v1922 = vpop.f32.mrf.mxu0
        %v1923 = vpop.f32.mrf.mxu0
        %v1924 = vadd.f32 0.0, %v1923
        %v1925 = vpop.f32.mrf.mxu0
        %1926 = vmatprep.mubr.bf16.mxu0 0
        %1927 = vmatmul.mubr.bf16.gmra.mxu0 %v1708
        %v1928 = vpop.f32.mrf.mxu0
        %v1929 = vadd.f32 0.0, %v1928
        %v1930 = vpop.f32.mrf.mxu0
        %v1931 = vpop.f32.mrf.mxu0
        %v1932 = vadd.f32 0.0, %v1931
        %v1933 = vpop.f32.mrf.mxu0
        %1934 = vdwg.mxu0
        %v1951 = vunpack.c.l.b16 %v1645
        %v1952 = vunpack.c.l.b16 %v1646
        %v1953 = vunpack.c.l.b16 %v1647
        %v1954 = vunpack.c.l.b16 %v1648
        %v1955 = vunpack.c.l.b16 %v1649
        %v1956 = vunpack.c.l.b16 %v1650
        %v1957 = vunpack.c.l.b16 %v1651
        %v1958 = vunpack.c.l.b16 %v1652
        %v1959 = vunpack.c.l.b16 %v1653
        %v1960 = vunpack.c.l.b16 %v1654
        %v1961 = vunpack.c.l.b16 %v1655
        %v1962 = vunpack.c.l.b16 %v1656
        %v1963 = vunpack.c.l.b16 %v1657
        %v1964 = vunpack.c.l.b16 %v1658
        %v1965 = vunpack.c.l.b16 %v1659
        %v1966 = vunpack.c.l.b16 %v1660
        %v1967 = vpack.c.b16 %v1952, %v1951
        %v1968 = vpack.c.b16 %v1954, %v1953
        %v1969 = vpack.c.b16 %v1956, %v1955
        %v1970 = vpack.c.b16 %v1958, %v1957
        %v1971 = vpack.c.b16 %v1960, %v1959
        %v1972 = vpack.c.b16 %v1962, %v1961
        %v1973 = vpack.c.b16 %v1964, %v1963
        %v1974 = vpack.c.b16 %v1966, %v1965
        %1983 = vmatprep.subr.bf16.mxu0 0
        %1984 = vmatpush1.bf16.msra.mxu0 %v1974
        %1985 = vmatprep.subr.bf16.mxu0 0
        %1986 = vmatpush1.bf16.msra.mxu0 %v1973
        %1987 = vmatprep.subr.bf16.mxu0 0
        %1988 = vmatpush1.bf16.msra.mxu0 %v1972
        %1989 = vmatprep.subr.bf16.mxu0 0
        %1990 = vmatpush1.bf16.msra.mxu0 %v1971
        %1991 = vmatprep.subr.bf16.mxu0 0
        %1992 = vmatpush1.bf16.msra.mxu0 %v1970
        %1993 = vmatprep.subr.bf16.mxu0 0
        %1994 = vmatpush1.bf16.msra.mxu0 %v1969
        %1995 = vmatprep.subr.bf16.mxu0 0
        %1996 = vmatpush1.bf16.msra.mxu0 %v1968
        %1997 = vmatprep.subr.bf16.mxu0 0
        %1998 = vmatpush1.bf16.msra.mxu0 %v1967
        %1999 = vmatprep.subr.bf16.mxu0 0
        %2000 = vmatpush2.bf16.msra.mxu0 0
        %2001 = vmatprep.subr.bf16.mxu0 0
        %2002 = vmatpush2.bf16.msra.mxu0 0
        %2003 = vmatprep.subr.bf16.mxu0 0
        %2004 = vmatpush2.bf16.msra.mxu0 0
        %2005 = vmatprep.subr.bf16.mxu0 0
        %2006 = vmatpush2.bf16.msra.mxu0 0
        %2007 = vmatprep.subr.bf16.mxu0 0
        %2008 = vmatpush2.bf16.msra.mxu0 0
        %2009 = vmatprep.subr.bf16.mxu0 0
        %2010 = vmatpush2.bf16.msra.mxu0 0
        %2011 = vmatprep.subr.bf16.mxu0 0
        %2012 = vmatpush2.bf16.msra.mxu0 0
        %2013 = vmatprep.subr.bf16.mxu0 0
        %2014 = vmatpush2.bf16.msra.mxu0 0
        %2015 = vmatprep.mubr.bf16.mxu0 0
        %2016 = vmatmul.mubr.bf16.gmra.mxu0 %v1629
        %v2017 = vpop.f32.mrf.mxu0
        %v2018 = vadd.f32 %v1809, %v2017
        %v2019 = vpop.f32.mrf.mxu0
        %v2020 = vpop.f32.mrf.mxu0
        %v2021 = vadd.f32 %v1812, %v2020
        %v2022 = vpop.f32.mrf.mxu0
        %2023 = vmatprep.mubr.bf16.mxu0 0
        %2024 = vmatmul.mubr.bf16.gmra.mxu0 %v1630
        %v2025 = vpop.f32.mrf.mxu0
        %v2026 = vadd.f32 %v1817, %v2025
        %v2027 = vpop.f32.mrf.mxu0
        %v2028 = vpop.f32.mrf.mxu0
        %v2029 = vadd.f32 %v1820, %v2028
        %v2030 = vpop.f32.mrf.mxu0
        %2031 = vmatprep.mubr.bf16.mxu0 0
        %2032 = vmatmul.mubr.bf16.gmra.mxu0 %v1631
        %v2033 = vpop.f32.mrf.mxu0
        %v2034 = vadd.f32 %v1825, %v2033
        %v2035 = vpop.f32.mrf.mxu0
        %v2036 = vpop.f32.mrf.mxu0
        %v2037 = vadd.f32 %v1828, %v2036
        %v2038 = vpop.f32.mrf.mxu0
        %2039 = vmatprep.mubr.bf16.mxu0 0
        %2040 = vmatmul.mubr.bf16.gmra.mxu0 %v1632
        %v2041 = vpop.f32.mrf.mxu0
        %v2042 = vadd.f32 %v1833, %v2041
        %v2043 = vpop.f32.mrf.mxu0
        %v2044 = vpop.f32.mrf.mxu0
        %v2045 = vadd.f32 %v1836, %v2044
        %v2046 = vpop.f32.mrf.mxu0
        %2047 = vmatprep.mubr.bf16.mxu0 0
        %2048 = vmatmul.mubr.bf16.gmra.mxu0 %v1633
        %v2049 = vpop.f32.mrf.mxu0
        %v2050 = vadd.f32 %v1841, %v2049
        %v2051 = vpop.f32.mrf.mxu0
        %v2052 = vpop.f32.mrf.mxu0
        %v2053 = vadd.f32 %v1844, %v2052
        %v2054 = vpop.f32.mrf.mxu0
        %2055 = vmatprep.mubr.bf16.mxu0 0
        %2056 = vmatmul.mubr.bf16.gmra.mxu0 %v1634
        %v2057 = vpop.f32.mrf.mxu0
        %v2058 = vadd.f32 %v1849, %v2057
        %v2059 = vpop.f32.mrf.mxu0
        %v2060 = vpop.f32.mrf.mxu0
        %v2061 = vadd.f32 %v1852, %v2060
        %v2062 = vpop.f32.mrf.mxu0
        %2063 = vmatprep.mubr.bf16.mxu0 0
        %2064 = vmatmul.mubr.bf16.gmra.mxu0 %v1635
        %v2065 = vpop.f32.mrf.mxu0
        %v2066 = vadd.f32 %v1857, %v2065
        %v2067 = vpop.f32.mrf.mxu0
        %v2068 = vpop.f32.mrf.mxu0
        %v2069 = vadd.f32 %v1860, %v2068
        %v2070 = vpop.f32.mrf.mxu0
        %2071 = vmatprep.mubr.bf16.mxu0 0
        %2072 = vmatmul.mubr.bf16.gmra.mxu0 %v1636
        %v2073 = vpop.f32.mrf.mxu0
        %v2074 = vadd.f32 %v1865, %v2073
        %v2075 = vpop.f32.mrf.mxu0
        %v2076 = vpop.f32.mrf.mxu0
        %v2077 = vadd.f32 %v1868, %v2076
        %v2078 = vpop.f32.mrf.mxu0
        %2079 = vmatprep.mubr.bf16.mxu0 0
        %2080 = vmatmul.mubr.bf16.gmra.mxu0 %v1637
        %v2081 = vpop.f32.mrf.mxu0
        %v2082 = vadd.f32 %v1873, %v2081
        %v2083 = vpop.f32.mrf.mxu0
        %v2084 = vpop.f32.mrf.mxu0
        %v2085 = vadd.f32 %v1876, %v2084
        %v2086 = vpop.f32.mrf.mxu0
        %2087 = vmatprep.mubr.bf16.mxu0 0
        %2088 = vmatmul.mubr.bf16.gmra.mxu0 %v1638
        %v2089 = vpop.f32.mrf.mxu0
        %v2090 = vadd.f32 %v1881, %v2089
        %v2091 = vpop.f32.mrf.mxu0
        %v2092 = vpop.f32.mrf.mxu0
        %v2093 = vadd.f32 %v1884, %v2092
        %v2094 = vpop.f32.mrf.mxu0
        %2095 = vmatprep.mubr.bf16.mxu0 0
        %2096 = vmatmul.mubr.bf16.gmra.mxu0 %v1639
        %v2097 = vpop.f32.mrf.mxu0
        %v2098 = vadd.f32 %v1889, %v2097
        %v2099 = vpop.f32.mrf.mxu0
        %v2100 = vpop.f32.mrf.mxu0
        %v2101 = vadd.f32 %v1892, %v2100
        %v2102 = vpop.f32.mrf.mxu0
        %2103 = vmatprep.mubr.bf16.mxu0 0
        %2104 = vmatmul.mubr.bf16.gmra.mxu0 %v1640
        %v2105 = vpop.f32.mrf.mxu0
        %v2106 = vadd.f32 %v1897, %v2105
        %v2107 = vpop.f32.mrf.mxu0
        %v2108 = vpop.f32.mrf.mxu0
        %v2109 = vadd.f32 %v1900, %v2108
        %v2110 = vpop.f32.mrf.mxu0
        %2111 = vmatprep.mubr.bf16.mxu0 0
        %2112 = vmatmul.mubr.bf16.gmra.mxu0 %v1641
        %v2113 = vpop.f32.mrf.mxu0
        %v2114 = vadd.f32 %v1905, %v2113
        %v2115 = vpop.f32.mrf.mxu0
        %v2116 = vpop.f32.mrf.mxu0
        %v2117 = vadd.f32 %v1908, %v2116
        %v2118 = vpop.f32.mrf.mxu0
        %2119 = vmatprep.mubr.bf16.mxu0 0
        %2120 = vmatmul.mubr.bf16.gmra.mxu0 %v1642
        %v2121 = vpop.f32.mrf.mxu0
        %v2122 = vadd.f32 %v1913, %v2121
        %v2123 = vpop.f32.mrf.mxu0
        %v2124 = vpop.f32.mrf.mxu0
        %v2125 = vadd.f32 %v1916, %v2124
        %v2126 = vpop.f32.mrf.mxu0
        %2127 = vmatprep.mubr.bf16.mxu0 0
        %2128 = vmatmul.mubr.bf16.gmra.mxu0 %v1643
        %v2129 = vpop.f32.mrf.mxu0
        %v2130 = vadd.f32 %v1921, %v2129
        %v2131 = vpop.f32.mrf.mxu0
        %v2132 = vpop.f32.mrf.mxu0
        %v2133 = vadd.f32 %v1924, %v2132
        %v2134 = vpop.f32.mrf.mxu0
        %2135 = vmatprep.mubr.bf16.mxu0 0
        %2136 = vmatmul.mubr.bf16.gmra.mxu0 %v1644
        %v2137 = vpop.f32.mrf.mxu0
        %v2138 = vadd.f32 %v1929, %v2137
        %v2139 = vpop.f32.mrf.mxu0
        %v2140 = vpop.f32.mrf.mxu0
        %v2141 = vadd.f32 %v1932, %v2140
        %v2142 = vpop.f32.mrf.mxu0
        %2143 = vdwg.mxu0
        %v2144 = vld [vmem:[#allocation2 + $0x9] sm:$0xff]
        %v2145 = vld [vmem:[#allocation2 + $0x11] sm:$0xff]
        %v2146 = vld [vmem:[#allocation2 + $0x19] sm:$0xff]
        %v2147 = vld [vmem:[#allocation2 + $0x21] sm:$0xff]
        %v2148 = vld [vmem:[#allocation2 + $0x29] sm:$0xff]
        %v2149 = vld [vmem:[#allocation2 + $0x31] sm:$0xff]
        %v2150 = vld [vmem:[#allocation2 + $0x39] sm:$0xff]
        %v2151 = vld [vmem:[#allocation2 + $0x41] sm:$0xff]
        %v2152 = vld [vmem:[#allocation2 + $0x49] sm:$0xff]
        %v2153 = vld [vmem:[#allocation2 + $0x51] sm:$0xff]
        %v2154 = vld [vmem:[#allocation2 + $0x59] sm:$0xff]
        %v2155 = vld [vmem:[#allocation2 + $0x61] sm:$0xff]
        %v2156 = vld [vmem:[#allocation2 + $0x69] sm:$0xff]
        %v2157 = vld [vmem:[#allocation2 + $0x71] sm:$0xff]
        %v2158 = vld [vmem:[#allocation2 + $0x79] sm:$0xff]
        %v2159 = vld [vmem:[#allocation2 + $0x81] sm:$0xff]
        %v2160 = vld [vmem:[#allocation2 + $0x89] sm:$0xff]
        %v2161 = vld [vmem:[#allocation2 + $0x91] sm:$0xff]
        %v2162 = vld [vmem:[#allocation2 + $0x99] sm:$0xff]
        %v2163 = vld [vmem:[#allocation2 + $0xa1] sm:$0xff]
        %v2164 = vld [vmem:[#allocation2 + $0xa9] sm:$0xff]
        %v2165 = vld [vmem:[#allocation2 + $0xb1] sm:$0xff]
        %v2166 = vld [vmem:[#allocation2 + $0xb9] sm:$0xff]
        %v2167 = vld [vmem:[#allocation2 + $0xc1] sm:$0xff]
        %v2168 = vld [vmem:[#allocation2 + $0xc9] sm:$0xff]
        %v2169 = vld [vmem:[#allocation2 + $0xd1] sm:$0xff]
        %v2170 = vld [vmem:[#allocation2 + $0xd9] sm:$0xff]
        %v2171 = vld [vmem:[#allocation2 + $0xe1] sm:$0xff]
        %v2172 = vld [vmem:[#allocation2 + $0xe9] sm:$0xff]
        %v2173 = vld [vmem:[#allocation2 + $0xf1] sm:$0xff]
        %v2174 = vld [vmem:[#allocation2 + $0xf9] sm:$0xff]
        %v2175 = vld [vmem:[#allocation2 + $0x101] sm:$0xff]
        %v2176 = vsel %vm991, 1, 0
        %v2177 = vsel %vm992, 1, 0
        %v2178 = vsel %vm993, 1, 0
        %v2179 = vsel %vm994, 1, 0
        %v2180 = vsel %vm995, 1, 0
        %v2181 = vsel %vm996, 1, 0
        %v2182 = vsel %vm997, 1, 0
        %v2183 = vsel %vm998, 1, 0
        %v2184 = vsel %vm999, 1, 0
        %v2185 = vsel %vm1000, 1, 0
        %v2186 = vsel %vm1001, 1, 0
        %v2187 = vsel %vm1002, 1, 0
        %v2188 = vsel %vm1003, 1, 0
        %v2189 = vsel %vm1004, 1, 0
        %v2190 = vsel %vm1005, 1, 0
        %v2191 = vsel %vm1006, 1, 0
        %v2192 = vsel %vm1007, 1, 0
        %v2193 = vsel %vm1008, 1, 0
        %v2194 = vsel %vm1009, 1, 0
        %v2195 = vsel %vm1010, 1, 0
        %v2196 = vsel %vm1011, 1, 0
        %v2197 = vsel %vm1012, 1, 0
        %v2198 = vsel %vm1013, 1, 0
        %v2199 = vsel %vm1014, 1, 0
        %v2200 = vsel %vm1015, 1, 0
        %v2201 = vsel %vm1016, 1, 0
        %v2202 = vsel %vm1017, 1, 0
        %v2203 = vsel %vm1018, 1, 0
        %v2204 = vsel %vm1019, 1, 0
        %v2205 = vsel %vm1020, 1, 0
        %v2206 = vsel %vm1021, 1, 0
        %v2207 = vsel %vm1022, 1, 0
        %vm2208 = vcmp.eq.s32.totalorder %v2176, 1
        %vm2209 = vcmp.eq.s32.totalorder %v2177, 1
        %vm2210 = vcmp.eq.s32.totalorder %v2178, 1
        %vm2211 = vcmp.eq.s32.totalorder %v2179, 1
        %vm2212 = vcmp.eq.s32.totalorder %v2180, 1
        %vm2213 = vcmp.eq.s32.totalorder %v2181, 1
        %vm2214 = vcmp.eq.s32.totalorder %v2182, 1
        %vm2215 = vcmp.eq.s32.totalorder %v2183, 1
        %vm2216 = vcmp.eq.s32.totalorder %v2184, 1
        %vm2217 = vcmp.eq.s32.totalorder %v2185, 1
        %vm2218 = vcmp.eq.s32.totalorder %v2186, 1
        %vm2219 = vcmp.eq.s32.totalorder %v2187, 1
        %vm2220 = vcmp.eq.s32.totalorder %v2188, 1
        %vm2221 = vcmp.eq.s32.totalorder %v2189, 1
        %vm2222 = vcmp.eq.s32.totalorder %v2190, 1
        %vm2223 = vcmp.eq.s32.totalorder %v2191, 1
        %vm2224 = vcmp.eq.s32.totalorder %v2192, 1
        %vm2225 = vcmp.eq.s32.totalorder %v2193, 1
        %vm2226 = vcmp.eq.s32.totalorder %v2194, 1
        %vm2227 = vcmp.eq.s32.totalorder %v2195, 1
        %vm2228 = vcmp.eq.s32.totalorder %v2196, 1
        %vm2229 = vcmp.eq.s32.totalorder %v2197, 1
        %vm2230 = vcmp.eq.s32.totalorder %v2198, 1
        %vm2231 = vcmp.eq.s32.totalorder %v2199, 1
        %vm2232 = vcmp.eq.s32.totalorder %v2200, 1
        %vm2233 = vcmp.eq.s32.totalorder %v2201, 1
        %vm2234 = vcmp.eq.s32.totalorder %v2202, 1
        %vm2235 = vcmp.eq.s32.totalorder %v2203, 1
        %vm2236 = vcmp.eq.s32.totalorder %v2204, 1
        %vm2237 = vcmp.eq.s32.totalorder %v2205, 1
        %vm2238 = vcmp.eq.s32.totalorder %v2206, 1
        %vm2239 = vcmp.eq.s32.totalorder %v2207, 1
        %v2240 = vsel %vm2208, %v2144, 0.0
        %v2241 = vsel %vm2209, %v2145, 0.0
        %v2242 = vsel %vm2210, %v2146, 0.0
        %v2243 = vsel %vm2211, %v2147, 0.0
        %v2244 = vsel %vm2212, %v2148, 0.0
        %v2245 = vsel %vm2213, %v2149, 0.0
        %v2246 = vsel %vm2214, %v2150, 0.0
        %v2247 = vsel %vm2215, %v2151, 0.0
        %v2248 = vsel %vm2216, %v2152, 0.0
        %v2249 = vsel %vm2217, %v2153, 0.0
        %v2250 = vsel %vm2218, %v2154, 0.0
        %v2251 = vsel %vm2219, %v2155, 0.0
        %v2252 = vsel %vm2220, %v2156, 0.0
        %v2253 = vsel %vm2221, %v2157, 0.0
        %v2254 = vsel %vm2222, %v2158, 0.0
        %v2255 = vsel %vm2223, %v2159, 0.0
        %v2256 = vsel %vm2224, %v2160, 0.0
        %v2257 = vsel %vm2225, %v2161, 0.0
        %v2258 = vsel %vm2226, %v2162, 0.0
        %v2259 = vsel %vm2227, %v2163, 0.0
        %v2260 = vsel %vm2228, %v2164, 0.0
        %v2261 = vsel %vm2229, %v2165, 0.0
        %v2262 = vsel %vm2230, %v2166, 0.0
        %v2263 = vsel %vm2231, %v2167, 0.0
        %v2264 = vsel %vm2232, %v2168, 0.0
        %v2265 = vsel %vm2233, %v2169, 0.0
        %v2266 = vsel %vm2234, %v2170, 0.0
        %v2267 = vsel %vm2235, %v2171, 0.0
        %v2268 = vsel %vm2236, %v2172, 0.0
        %v2269 = vsel %vm2237, %v2173, 0.0
        %v2270 = vsel %vm2238, %v2174, 0.0
        %v2271 = vsel %vm2239, %v2175, 0.0
        %v2272 = vpack.c.bf16 %v2241, %v2240
        %v2273 = vpack.c.bf16 %v2243, %v2242
        %v2274 = vpack.c.bf16 %v2245, %v2244
        %v2275 = vpack.c.bf16 %v2247, %v2246
        %v2276 = vpack.c.bf16 %v2249, %v2248
        %v2277 = vpack.c.bf16 %v2251, %v2250
        %v2278 = vpack.c.bf16 %v2253, %v2252
        %v2279 = vpack.c.bf16 %v2255, %v2254
        %v2280 = vpack.c.bf16 %v2257, %v2256
        %v2281 = vpack.c.bf16 %v2259, %v2258
        %v2282 = vpack.c.bf16 %v2261, %v2260
        %v2283 = vpack.c.bf16 %v2263, %v2262
        %v2284 = vpack.c.bf16 %v2265, %v2264
        %v2285 = vpack.c.bf16 %v2267, %v2266
        %v2286 = vpack.c.bf16 %v2269, %v2268
        %v2287 = vpack.c.bf16 %v2271, %v2270
        %s2288 = scalar_lea.vmem [#allocation8], 128
        %v2289 = vld [vmem:[%s2288] sm:$0xf]
        %v2290 = vld [vmem:[%s2288 + $0x4] sm:$0xf]
        %v2291 = vld [vmem:[%s2288 + $0x8] sm:$0xf]
        %v2292 = vld [vmem:[%s2288 + $0xc] sm:$0xf]
        %v2293 = vld [vmem:[%s2288 + $0x10] sm:$0xf]
        %v2294 = vld [vmem:[%s2288 + $0x14] sm:$0xf]
        %v2295 = vld [vmem:[%s2288 + $0x18] sm:$0xf]
        %v2296 = vld [vmem:[%s2288 + $0x1c] sm:$0xf]
        %v2297 = vld [vmem:[%s2288 + $0x20] sm:$0xf]
        %v2298 = vld [vmem:[%s2288 + $0x24] sm:$0xf]
        %v2299 = vld [vmem:[%s2288 + $0x28] sm:$0xf]
        %v2300 = vld [vmem:[%s2288 + $0x2c] sm:$0xf]
        %v2301 = vld [vmem:[%s2288 + $0x30] sm:$0xf]
        %v2302 = vld [vmem:[%s2288 + $0x34] sm:$0xf]
        %v2303 = vld [vmem:[%s2288 + $0x38] sm:$0xf]
        %v2304 = vld [vmem:[%s2288 + $0x3c] sm:$0xf]
        %v2321 = vunpack.c.l.b16 %v2289
        %v2322 = vunpack.c.l.b16 %v2290
        %v2323 = vunpack.c.l.b16 %v2291
        %v2324 = vunpack.c.l.b16 %v2292
        %v2325 = vunpack.c.l.b16 %v2293
        %v2326 = vunpack.c.l.b16 %v2294
        %v2327 = vunpack.c.l.b16 %v2295
        %v2328 = vunpack.c.l.b16 %v2296
        %v2329 = vunpack.c.l.b16 %v2297
        %v2330 = vunpack.c.l.b16 %v2298
        %v2331 = vunpack.c.l.b16 %v2299
        %v2332 = vunpack.c.l.b16 %v2300
        %v2333 = vunpack.c.l.b16 %v2301
        %v2334 = vunpack.c.l.b16 %v2302
        %v2335 = vunpack.c.l.b16 %v2303
        %v2336 = vunpack.c.l.b16 %v2304
        %v2337 = vpack.c.b16 %v2322, %v2321
        %v2338 = vpack.c.b16 %v2324, %v2323
        %v2339 = vpack.c.b16 %v2326, %v2325
        %v2340 = vpack.c.b16 %v2328, %v2327
        %v2341 = vpack.c.b16 %v2330, %v2329
        %v2342 = vpack.c.b16 %v2332, %v2331
        %v2343 = vpack.c.b16 %v2334, %v2333
        %v2344 = vpack.c.b16 %v2336, %v2335
        %2353 = vmatprep.subr.bf16.mxu0 0
        %2354 = vmatpush1.bf16.msra.mxu0 %v2344
        %2355 = vmatprep.subr.bf16.mxu0 0
        %2356 = vmatpush1.bf16.msra.mxu0 %v2343
        %2357 = vmatprep.subr.bf16.mxu0 0
        %2358 = vmatpush1.bf16.msra.mxu0 %v2342
        %2359 = vmatprep.subr.bf16.mxu0 0
        %2360 = vmatpush1.bf16.msra.mxu0 %v2341
        %2361 = vmatprep.subr.bf16.mxu0 0
        %2362 = vmatpush1.bf16.msra.mxu0 %v2340
        %2363 = vmatprep.subr.bf16.mxu0 0
        %2364 = vmatpush1.bf16.msra.mxu0 %v2339
        %2365 = vmatprep.subr.bf16.mxu0 0
        %2366 = vmatpush1.bf16.msra.mxu0 %v2338
        %2367 = vmatprep.subr.bf16.mxu0 0
        %2368 = vmatpush1.bf16.msra.mxu0 %v2337
        %2369 = vmatprep.subr.bf16.mxu0 0
        %2370 = vmatpush2.bf16.msra.mxu0 0
        %2371 = vmatprep.subr.bf16.mxu0 0
        %2372 = vmatpush2.bf16.msra.mxu0 0
        %2373 = vmatprep.subr.bf16.mxu0 0
        %2374 = vmatpush2.bf16.msra.mxu0 0
        %2375 = vmatprep.subr.bf16.mxu0 0
        %2376 = vmatpush2.bf16.msra.mxu0 0
        %2377 = vmatprep.subr.bf16.mxu0 0
        %2378 = vmatpush2.bf16.msra.mxu0 0
        %2379 = vmatprep.subr.bf16.mxu0 0
        %2380 = vmatpush2.bf16.msra.mxu0 0
        %2381 = vmatprep.subr.bf16.mxu0 0
        %2382 = vmatpush2.bf16.msra.mxu0 0
        %2383 = vmatprep.subr.bf16.mxu0 0
        %2384 = vmatpush2.bf16.msra.mxu0 0
        %2385 = vmatprep.mubr.bf16.mxu0 0
        %2386 = vmatmul.mubr.bf16.gmra.mxu0 %v2272
        %v2387 = vpop.f32.mrf.mxu0
        %v2388 = vadd.f32 0.0, %v2387
        %v2389 = vpop.f32.mrf.mxu0
        %v2390 = vpop.f32.mrf.mxu0
        %v2391 = vadd.f32 0.0, %v2390
        %v2392 = vpop.f32.mrf.mxu0
        %2393 = vmatprep.mubr.bf16.mxu0 0
        %2394 = vmatmul.mubr.bf16.gmra.mxu0 %v2273
        %v2395 = vpop.f32.mrf.mxu0
        %v2396 = vadd.f32 0.0, %v2395
        %v2397 = vpop.f32.mrf.mxu0
        %v2398 = vpop.f32.mrf.mxu0
        %v2399 = vadd.f32 0.0, %v2398
        %v2400 = vpop.f32.mrf.mxu0
        %2401 = vmatprep.mubr.bf16.mxu0 0
        %2402 = vmatmul.mubr.bf16.gmra.mxu0 %v2274
        %v2403 = vpop.f32.mrf.mxu0
        %v2404 = vadd.f32 0.0, %v2403
        %v2405 = vpop.f32.mrf.mxu0
        %v2406 = vpop.f32.mrf.mxu0
        %v2407 = vadd.f32 0.0, %v2406
        %v2408 = vpop.f32.mrf.mxu0
        %2409 = vmatprep.mubr.bf16.mxu0 0
        %2410 = vmatmul.mubr.bf16.gmra.mxu0 %v2275
        %v2411 = vpop.f32.mrf.mxu0
        %v2412 = vadd.f32 0.0, %v2411
        %v2413 = vpop.f32.mrf.mxu0
        %v2414 = vpop.f32.mrf.mxu0
        %v2415 = vadd.f32 0.0, %v2414
        %v2416 = vpop.f32.mrf.mxu0
        %2417 = vmatprep.mubr.bf16.mxu0 0
        %2418 = vmatmul.mubr.bf16.gmra.mxu0 %v2276
        %v2419 = vpop.f32.mrf.mxu0
        %v2420 = vadd.f32 0.0, %v2419
        %v2421 = vpop.f32.mrf.mxu0
        %v2422 = vpop.f32.mrf.mxu0
        %v2423 = vadd.f32 0.0, %v2422
        %v2424 = vpop.f32.mrf.mxu0
        %2425 = vmatprep.mubr.bf16.mxu0 0
        %2426 = vmatmul.mubr.bf16.gmra.mxu0 %v2277
        %v2427 = vpop.f32.mrf.mxu0
        %v2428 = vadd.f32 0.0, %v2427
        %v2429 = vpop.f32.mrf.mxu0
        %v2430 = vpop.f32.mrf.mxu0
        %v2431 = vadd.f32 0.0, %v2430
        %v2432 = vpop.f32.mrf.mxu0
        %2433 = vmatprep.mubr.bf16.mxu0 0
        %2434 = vmatmul.mubr.bf16.gmra.mxu0 %v2278
        %v2435 = vpop.f32.mrf.mxu0
        %v2436 = vadd.f32 0.0, %v2435
        %v2437 = vpop.f32.mrf.mxu0
        %v2438 = vpop.f32.mrf.mxu0
        %v2439 = vadd.f32 0.0, %v2438
        %v2440 = vpop.f32.mrf.mxu0
        %2441 = vmatprep.mubr.bf16.mxu0 0
        %2442 = vmatmul.mubr.bf16.gmra.mxu0 %v2279
        %v2443 = vpop.f32.mrf.mxu0
        %v2444 = vadd.f32 0.0, %v2443
        %v2445 = vpop.f32.mrf.mxu0
        %v2446 = vpop.f32.mrf.mxu0
        %v2447 = vadd.f32 0.0, %v2446
        %v2448 = vpop.f32.mrf.mxu0
        %2449 = vmatprep.mubr.bf16.mxu0 0
        %2450 = vmatmul.mubr.bf16.gmra.mxu0 %v2280
        %v2451 = vpop.f32.mrf.mxu0
        %v2452 = vadd.f32 0.0, %v2451
        %v2453 = vpop.f32.mrf.mxu0
        %v2454 = vpop.f32.mrf.mxu0
        %v2455 = vadd.f32 0.0, %v2454
        %v2456 = vpop.f32.mrf.mxu0
        %2457 = vmatprep.mubr.bf16.mxu0 0
        %2458 = vmatmul.mubr.bf16.gmra.mxu0 %v2281
        %v2459 = vpop.f32.mrf.mxu0
        %v2460 = vadd.f32 0.0, %v2459
        %v2461 = vpop.f32.mrf.mxu0
        %v2462 = vpop.f32.mrf.mxu0
        %v2463 = vadd.f32 0.0, %v2462
        %v2464 = vpop.f32.mrf.mxu0
        %2465 = vmatprep.mubr.bf16.mxu0 0
        %2466 = vmatmul.mubr.bf16.gmra.mxu0 %v2282
        %v2467 = vpop.f32.mrf.mxu0
        %v2468 = vadd.f32 0.0, %v2467
        %v2469 = vpop.f32.mrf.mxu0
        %v2470 = vpop.f32.mrf.mxu0
        %v2471 = vadd.f32 0.0, %v2470
        %v2472 = vpop.f32.mrf.mxu0
        %2473 = vmatprep.mubr.bf16.mxu0 0
        %2474 = vmatmul.mubr.bf16.gmra.mxu0 %v2283
        %v2475 = vpop.f32.mrf.mxu0
        %v2476 = vadd.f32 0.0, %v2475
        %v2477 = vpop.f32.mrf.mxu0
        %v2478 = vpop.f32.mrf.mxu0
        %v2479 = vadd.f32 0.0, %v2478
        %v2480 = vpop.f32.mrf.mxu0
        %2481 = vmatprep.mubr.bf16.mxu0 0
        %2482 = vmatmul.mubr.bf16.gmra.mxu0 %v2284
        %v2483 = vpop.f32.mrf.mxu0
        %v2484 = vadd.f32 0.0, %v2483
        %v2485 = vpop.f32.mrf.mxu0
        %v2486 = vpop.f32.mrf.mxu0
        %v2487 = vadd.f32 0.0, %v2486
        %v2488 = vpop.f32.mrf.mxu0
        %2489 = vmatprep.mubr.bf16.mxu0 0
        %2490 = vmatmul.mubr.bf16.gmra.mxu0 %v2285
        %v2491 = vpop.f32.mrf.mxu0
        %v2492 = vadd.f32 0.0, %v2491
        %v2493 = vpop.f32.mrf.mxu0
        %v2494 = vpop.f32.mrf.mxu0
        %v2495 = vadd.f32 0.0, %v2494
        %v2496 = vpop.f32.mrf.mxu0
        %2497 = vmatprep.mubr.bf16.mxu0 0
        %2498 = vmatmul.mubr.bf16.gmra.mxu0 %v2286
        %v2499 = vpop.f32.mrf.mxu0
        %v2500 = vadd.f32 0.0, %v2499
        %v2501 = vpop.f32.mrf.mxu0
        %v2502 = vpop.f32.mrf.mxu0
        %v2503 = vadd.f32 0.0, %v2502
        %v2504 = vpop.f32.mrf.mxu0
        %2505 = vmatprep.mubr.bf16.mxu0 0
        %2506 = vmatmul.mubr.bf16.gmra.mxu0 %v2287
        %v2507 = vpop.f32.mrf.mxu0
        %v2508 = vadd.f32 0.0, %v2507
        %v2509 = vpop.f32.mrf.mxu0
        %v2510 = vpop.f32.mrf.mxu0
        %v2511 = vadd.f32 0.0, %v2510
        %v2512 = vpop.f32.mrf.mxu0
        %2513 = vdwg.mxu0
        %v2514 = vadd.f32 %v2018, %v2388
        %v2515 = vadd.f32 %v2021, %v2391
        %v2516 = vadd.f32 %v2026, %v2396
        %v2517 = vadd.f32 %v2029, %v2399
        %v2518 = vadd.f32 %v2034, %v2404
        %v2519 = vadd.f32 %v2037, %v2407
        %v2520 = vadd.f32 %v2042, %v2412
        %v2521 = vadd.f32 %v2045, %v2415
        %v2522 = vadd.f32 %v2050, %v2420
        %v2523 = vadd.f32 %v2053, %v2423
        %v2524 = vadd.f32 %v2058, %v2428
        %v2525 = vadd.f32 %v2061, %v2431
        %v2526 = vadd.f32 %v2066, %v2436
        %v2527 = vadd.f32 %v2069, %v2439
        %v2528 = vadd.f32 %v2074, %v2444
        %v2529 = vadd.f32 %v2077, %v2447
        %v2530 = vadd.f32 %v2082, %v2452
        %v2531 = vadd.f32 %v2085, %v2455
        %v2532 = vadd.f32 %v2090, %v2460
        %v2533 = vadd.f32 %v2093, %v2463
        %v2534 = vadd.f32 %v2098, %v2468
        %v2535 = vadd.f32 %v2101, %v2471
        %v2536 = vadd.f32 %v2106, %v2476
        %v2537 = vadd.f32 %v2109, %v2479
        %v2538 = vadd.f32 %v2114, %v2484
        %v2539 = vadd.f32 %v2117, %v2487
        %v2540 = vadd.f32 %v2122, %v2492
        %v2541 = vadd.f32 %v2125, %v2495
        %v2542 = vadd.f32 %v2130, %v2500
        %v2543 = vadd.f32 %v2133, %v2503
        %v2544 = vadd.f32 %v2138, %v2508
        %v2545 = vadd.f32 %v2141, %v2511
        %v2546 = vld [vmem:[#allocation2 + $0x17] sm:$0xff]
        %v2547 = vld [vmem:[#allocation2 + $0x1f] sm:$0xff]
        %v2548 = vld [vmem:[#allocation2 + $0x27] sm:$0xff]
        %v2549 = vld [vmem:[#allocation2 + $0x2f] sm:$0xff]
        %v2550 = vld [vmem:[#allocation2 + $0x37] sm:$0xff]
        %v2551 = vld [vmem:[#allocation2 + $0x3f] sm:$0xff]
        %v2552 = vld [vmem:[#allocation2 + $0x47] sm:$0xff]
        %v2553 = vld [vmem:[#allocation2 + $0x4f] sm:$0xff]
        %v2554 = vld [vmem:[#allocation2 + $0x57] sm:$0xff]
        %v2555 = vld [vmem:[#allocation2 + $0x5f] sm:$0xff]
        %v2556 = vld [vmem:[#allocation2 + $0x67] sm:$0xff]
        %v2557 = vld [vmem:[#allocation2 + $0x6f] sm:$0xff]
        %v2558 = vld [vmem:[#allocation2 + $0x77] sm:$0xff]
        %v2559 = vld [vmem:[#allocation2 + $0x7f] sm:$0xff]
        %v2560 = vld [vmem:[#allocation2 + $0x87] sm:$0xff]
        %v2561 = vld [vmem:[#allocation2 + $0x8f] sm:$0xff]
        %v2562 = vld [vmem:[#allocation2 + $0x97] sm:$0xff]
        %v2563 = vld [vmem:[#allocation2 + $0x9f] sm:$0xff]
        %v2564 = vld [vmem:[#allocation2 + $0xa7] sm:$0xff]
        %v2565 = vld [vmem:[#allocation2 + $0xaf] sm:$0xff]
        %v2566 = vld [vmem:[#allocation2 + $0xb7] sm:$0xff]
        %v2567 = vld [vmem:[#allocation2 + $0xbf] sm:$0xff]
        %v2568 = vld [vmem:[#allocation2 + $0xc7] sm:$0xff]
        %v2569 = vld [vmem:[#allocation2 + $0xcf] sm:$0xff]
        %v2570 = vld [vmem:[#allocation2 + $0xd7] sm:$0xff]
        %v2571 = vld [vmem:[#allocation2 + $0xdf] sm:$0xff]
        %v2572 = vld [vmem:[#allocation2 + $0xe7] sm:$0xff]
        %v2573 = vld [vmem:[#allocation2 + $0xef] sm:$0xff]
        %v2574 = vld [vmem:[#allocation2 + $0xf7] sm:$0xff]
        %v2575 = vld [vmem:[#allocation2 + $0xff] sm:$0xff]
        %v2576 = vld [vmem:[#allocation2 + $0x107] sm:$0xff]
        %v2577 = vld [vmem:[#allocation2 + $0x10f] sm:$0xff]
        %v2578 = vsel %vm1565, %v2546, 0.0
        %v2579 = vsel %vm1566, %v2547, 0.0
        %v2580 = vsel %vm1567, %v2548, 0.0
        %v2581 = vsel %vm1568, %v2549, 0.0
        %v2582 = vsel %vm1569, %v2550, 0.0
        %v2583 = vsel %vm1570, %v2551, 0.0
        %v2584 = vsel %vm1571, %v2552, 0.0
        %v2585 = vsel %vm1572, %v2553, 0.0
        %v2586 = vsel %vm1573, %v2554, 0.0
        %v2587 = vsel %vm1574, %v2555, 0.0
        %v2588 = vsel %vm1575, %v2556, 0.0
        %v2589 = vsel %vm1576, %v2557, 0.0
        %v2590 = vsel %vm1577, %v2558, 0.0
        %v2591 = vsel %vm1578, %v2559, 0.0
        %v2592 = vsel %vm1579, %v2560, 0.0
        %v2593 = vsel %vm1580, %v2561, 0.0
        %v2594 = vsel %vm1581, %v2562, 0.0
        %v2595 = vsel %vm1582, %v2563, 0.0
        %v2596 = vsel %vm1583, %v2564, 0.0
        %v2597 = vsel %vm1584, %v2565, 0.0
        %v2598 = vsel %vm1585, %v2566, 0.0
        %v2599 = vsel %vm1586, %v2567, 0.0
        %v2600 = vsel %vm1587, %v2568, 0.0
        %v2601 = vsel %vm1588, %v2569, 0.0
        %v2602 = vsel %vm1589, %v2570, 0.0
        %v2603 = vsel %vm1590, %v2571, 0.0
        %v2604 = vsel %vm1591, %v2572, 0.0
        %v2605 = vsel %vm1592, %v2573, 0.0
        %v2606 = vsel %vm1593, %v2574, 0.0
        %v2607 = vsel %vm1594, %v2575, 0.0
        %v2608 = vsel %vm1595, %v2576, 0.0
        %v2609 = vsel %vm1596, %v2577, 0.0
        %v2610 = vpack.c.bf16 %v2579, %v2578
        %v2611 = vpack.c.bf16 %v2581, %v2580
        %v2612 = vpack.c.bf16 %v2583, %v2582
        %v2613 = vpack.c.bf16 %v2585, %v2584
        %v2614 = vpack.c.bf16 %v2587, %v2586
        %v2615 = vpack.c.bf16 %v2589, %v2588
        %v2616 = vpack.c.bf16 %v2591, %v2590
        %v2617 = vpack.c.bf16 %v2593, %v2592
        %v2618 = vpack.c.bf16 %v2595, %v2594
        %v2619 = vpack.c.bf16 %v2597, %v2596
        %v2620 = vpack.c.bf16 %v2599, %v2598
        %v2621 = vpack.c.bf16 %v2601, %v2600
        %v2622 = vpack.c.bf16 %v2603, %v2602
        %v2623 = vpack.c.bf16 %v2605, %v2604
        %v2624 = vpack.c.bf16 %v2607, %v2606
        %v2625 = vpack.c.bf16 %v2609, %v2608
        %s2626 = scalar_lea.vmem [#allocation8], 192
        %v2627 = vld [vmem:[%s2626] sm:$0xf]
        %v2628 = vld [vmem:[%s2626 + $0x4] sm:$0xf]
        %v2629 = vld [vmem:[%s2626 + $0x8] sm:$0xf]
        %v2630 = vld [vmem:[%s2626 + $0xc] sm:$0xf]
        %v2631 = vld [vmem:[%s2626 + $0x10] sm:$0xf]
        %v2632 = vld [vmem:[%s2626 + $0x14] sm:$0xf]
        %v2633 = vld [vmem:[%s2626 + $0x18] sm:$0xf]
        %v2634 = vld [vmem:[%s2626 + $0x1c] sm:$0xf]
        %v2635 = vld [vmem:[%s2626 + $0x20] sm:$0xf]
        %v2636 = vld [vmem:[%s2626 + $0x24] sm:$0xf]
        %v2637 = vld [vmem:[%s2626 + $0x28] sm:$0xf]
        %v2638 = vld [vmem:[%s2626 + $0x2c] sm:$0xf]
        %v2639 = vld [vmem:[%s2626 + $0x30] sm:$0xf]
        %v2640 = vld [vmem:[%s2626 + $0x34] sm:$0xf]
        %v2641 = vld [vmem:[%s2626 + $0x38] sm:$0xf]
        %v2642 = vld [vmem:[%s2626 + $0x3c] sm:$0xf]
        %v2659 = vunpack.c.l.b16 %v2627
        %v2660 = vunpack.c.l.b16 %v2628
        %v2661 = vunpack.c.l.b16 %v2629
        %v2662 = vunpack.c.l.b16 %v2630
        %v2663 = vunpack.c.l.b16 %v2631
        %v2664 = vunpack.c.l.b16 %v2632
        %v2665 = vunpack.c.l.b16 %v2633
        %v2666 = vunpack.c.l.b16 %v2634
        %v2667 = vunpack.c.l.b16 %v2635
        %v2668 = vunpack.c.l.b16 %v2636
        %v2669 = vunpack.c.l.b16 %v2637
        %v2670 = vunpack.c.l.b16 %v2638
        %v2671 = vunpack.c.l.b16 %v2639
        %v2672 = vunpack.c.l.b16 %v2640
        %v2673 = vunpack.c.l.b16 %v2641
        %v2674 = vunpack.c.l.b16 %v2642
        %v2675 = vpack.c.b16 %v2660, %v2659
        %v2676 = vpack.c.b16 %v2662, %v2661
        %v2677 = vpack.c.b16 %v2664, %v2663
        %v2678 = vpack.c.b16 %v2666, %v2665
        %v2679 = vpack.c.b16 %v2668, %v2667
        %v2680 = vpack.c.b16 %v2670, %v2669
        %v2681 = vpack.c.b16 %v2672, %v2671
        %v2682 = vpack.c.b16 %v2674, %v2673
        %2691 = vmatprep.subr.bf16.mxu0 0
        %2692 = vmatpush1.bf16.msra.mxu0 %v2682
        %2693 = vmatprep.subr.bf16.mxu0 0
        %2694 = vmatpush1.bf16.msra.mxu0 %v2681
        %2695 = vmatprep.subr.bf16.mxu0 0
        %2696 = vmatpush1.bf16.msra.mxu0 %v2680
        %2697 = vmatprep.subr.bf16.mxu0 0
        %2698 = vmatpush1.bf16.msra.mxu0 %v2679
        %2699 = vmatprep.subr.bf16.mxu0 0
        %2700 = vmatpush1.bf16.msra.mxu0 %v2678
        %2701 = vmatprep.subr.bf16.mxu0 0
        %2702 = vmatpush1.bf16.msra.mxu0 %v2677
        %2703 = vmatprep.subr.bf16.mxu0 0
        %2704 = vmatpush1.bf16.msra.mxu0 %v2676
        %2705 = vmatprep.subr.bf16.mxu0 0
        %2706 = vmatpush1.bf16.msra.mxu0 %v2675
        %2707 = vmatprep.subr.bf16.mxu0 0
        %2708 = vmatpush2.bf16.msra.mxu0 0
        %2709 = vmatprep.subr.bf16.mxu0 0
        %2710 = vmatpush2.bf16.msra.mxu0 0
        %2711 = vmatprep.subr.bf16.mxu0 0
        %2712 = vmatpush2.bf16.msra.mxu0 0
        %2713 = vmatprep.subr.bf16.mxu0 0
        %2714 = vmatpush2.bf16.msra.mxu0 0
        %2715 = vmatprep.subr.bf16.mxu0 0
        %2716 = vmatpush2.bf16.msra.mxu0 0
        %2717 = vmatprep.subr.bf16.mxu0 0
        %2718 = vmatpush2.bf16.msra.mxu0 0
        %2719 = vmatprep.subr.bf16.mxu0 0
        %2720 = vmatpush2.bf16.msra.mxu0 0
        %2721 = vmatprep.subr.bf16.mxu0 0
        %2722 = vmatpush2.bf16.msra.mxu0 0
        %2723 = vmatprep.mubr.bf16.mxu0 0
        %2724 = vmatmul.mubr.bf16.gmra.mxu0 %v2610
        %v2725 = vpop.f32.mrf.mxu0
        %v2726 = vadd.f32 0.0, %v2725
        %v2727 = vpop.f32.mrf.mxu0
        %v2728 = vpop.f32.mrf.mxu0
        %v2729 = vadd.f32 0.0, %v2728
        %v2730 = vpop.f32.mrf.mxu0
        %2731 = vmatprep.mubr.bf16.mxu0 0
        %2732 = vmatmul.mubr.bf16.gmra.mxu0 %v2611
        %v2733 = vpop.f32.mrf.mxu0
        %v2734 = vadd.f32 0.0, %v2733
        %v2735 = vpop.f32.mrf.mxu0
        %v2736 = vpop.f32.mrf.mxu0
        %v2737 = vadd.f32 0.0, %v2736
        %v2738 = vpop.f32.mrf.mxu0
        %2739 = vmatprep.mubr.bf16.mxu0 0
        %2740 = vmatmul.mubr.bf16.gmra.mxu0 %v2612
        %v2741 = vpop.f32.mrf.mxu0
        %v2742 = vadd.f32 0.0, %v2741
        %v2743 = vpop.f32.mrf.mxu0
        %v2744 = vpop.f32.mrf.mxu0
        %v2745 = vadd.f32 0.0, %v2744
        %v2746 = vpop.f32.mrf.mxu0
        %2747 = vmatprep.mubr.bf16.mxu0 0
        %2748 = vmatmul.mubr.bf16.gmra.mxu0 %v2613
        %v2749 = vpop.f32.mrf.mxu0
        %v2750 = vadd.f32 0.0, %v2749
        %v2751 = vpop.f32.mrf.mxu0
        %v2752 = vpop.f32.mrf.mxu0
        %v2753 = vadd.f32 0.0, %v2752
        %v2754 = vpop.f32.mrf.mxu0
        %2755 = vmatprep.mubr.bf16.mxu0 0
        %2756 = vmatmul.mubr.bf16.gmra.mxu0 %v2614
        %v2757 = vpop.f32.mrf.mxu0
        %v2758 = vadd.f32 0.0, %v2757
        %v2759 = vpop.f32.mrf.mxu0
        %v2760 = vpop.f32.mrf.mxu0
        %v2761 = vadd.f32 0.0, %v2760
        %v2762 = vpop.f32.mrf.mxu0
        %2763 = vmatprep.mubr.bf16.mxu0 0
        %2764 = vmatmul.mubr.bf16.gmra.mxu0 %v2615
        %v2765 = vpop.f32.mrf.mxu0
        %v2766 = vadd.f32 0.0, %v2765
        %v2767 = vpop.f32.mrf.mxu0
        %v2768 = vpop.f32.mrf.mxu0
        %v2769 = vadd.f32 0.0, %v2768
        %v2770 = vpop.f32.mrf.mxu0
        %2771 = vmatprep.mubr.bf16.mxu0 0
        %2772 = vmatmul.mubr.bf16.gmra.mxu0 %v2616
        %v2773 = vpop.f32.mrf.mxu0
        %v2774 = vadd.f32 0.0, %v2773
        %v2775 = vpop.f32.mrf.mxu0
        %v2776 = vpop.f32.mrf.mxu0
        %v2777 = vadd.f32 0.0, %v2776
        %v2778 = vpop.f32.mrf.mxu0
        %2779 = vmatprep.mubr.bf16.mxu0 0
        %2780 = vmatmul.mubr.bf16.gmra.mxu0 %v2617
        %v2781 = vpop.f32.mrf.mxu0
        %v2782 = vadd.f32 0.0, %v2781
        %v2783 = vpop.f32.mrf.mxu0
        %v2784 = vpop.f32.mrf.mxu0
        %v2785 = vadd.f32 0.0, %v2784
        %v2786 = vpop.f32.mrf.mxu0
        %2787 = vmatprep.mubr.bf16.mxu0 0
        %2788 = vmatmul.mubr.bf16.gmra.mxu0 %v2618
        %v2789 = vpop.f32.mrf.mxu0
        %v2790 = vadd.f32 0.0, %v2789
        %v2791 = vpop.f32.mrf.mxu0
        %v2792 = vpop.f32.mrf.mxu0
        %v2793 = vadd.f32 0.0, %v2792
        %v2794 = vpop.f32.mrf.mxu0
        %2795 = vmatprep.mubr.bf16.mxu0 0
        %2796 = vmatmul.mubr.bf16.gmra.mxu0 %v2619
        %v2797 = vpop.f32.mrf.mxu0
        %v2798 = vadd.f32 0.0, %v2797
        %v2799 = vpop.f32.mrf.mxu0
        %v2800 = vpop.f32.mrf.mxu0
        %v2801 = vadd.f32 0.0, %v2800
        %v2802 = vpop.f32.mrf.mxu0
        %2803 = vmatprep.mubr.bf16.mxu0 0
        %2804 = vmatmul.mubr.bf16.gmra.mxu0 %v2620
        %v2805 = vpop.f32.mrf.mxu0
        %v2806 = vadd.f32 0.0, %v2805
        %v2807 = vpop.f32.mrf.mxu0
        %v2808 = vpop.f32.mrf.mxu0
        %v2809 = vadd.f32 0.0, %v2808
        %v2810 = vpop.f32.mrf.mxu0
        %2811 = vmatprep.mubr.bf16.mxu0 0
        %2812 = vmatmul.mubr.bf16.gmra.mxu0 %v2621
        %v2813 = vpop.f32.mrf.mxu0
        %v2814 = vadd.f32 0.0, %v2813
        %v2815 = vpop.f32.mrf.mxu0
        %v2816 = vpop.f32.mrf.mxu0
        %v2817 = vadd.f32 0.0, %v2816
        %v2818 = vpop.f32.mrf.mxu0
        %2819 = vmatprep.mubr.bf16.mxu0 0
        %2820 = vmatmul.mubr.bf16.gmra.mxu0 %v2622
        %v2821 = vpop.f32.mrf.mxu0
        %v2822 = vadd.f32 0.0, %v2821
        %v2823 = vpop.f32.mrf.mxu0
        %v2824 = vpop.f32.mrf.mxu0
        %v2825 = vadd.f32 0.0, %v2824
        %v2826 = vpop.f32.mrf.mxu0
        %2827 = vmatprep.mubr.bf16.mxu0 0
        %2828 = vmatmul.mubr.bf16.gmra.mxu0 %v2623
        %v2829 = vpop.f32.mrf.mxu0
        %v2830 = vadd.f32 0.0, %v2829
        %v2831 = vpop.f32.mrf.mxu0
        %v2832 = vpop.f32.mrf.mxu0
        %v2833 = vadd.f32 0.0, %v2832
        %v2834 = vpop.f32.mrf.mxu0
        %2835 = vmatprep.mubr.bf16.mxu0 0
        %2836 = vmatmul.mubr.bf16.gmra.mxu0 %v2624
        %v2837 = vpop.f32.mrf.mxu0
        %v2838 = vadd.f32 0.0, %v2837
        %v2839 = vpop.f32.mrf.mxu0
        %v2840 = vpop.f32.mrf.mxu0
        %v2841 = vadd.f32 0.0, %v2840
        %v2842 = vpop.f32.mrf.mxu0
        %2843 = vmatprep.mubr.bf16.mxu0 0
        %2844 = vmatmul.mubr.bf16.gmra.mxu0 %v2625
        %v2845 = vpop.f32.mrf.mxu0
        %v2846 = vadd.f32 0.0, %v2845
        %v2847 = vpop.f32.mrf.mxu0
        %v2848 = vpop.f32.mrf.mxu0
        %v2849 = vadd.f32 0.0, %v2848
        %v2850 = vpop.f32.mrf.mxu0
        %2851 = vdwg.mxu0
        %v2852 = vadd.f32 %v2514, %v2726
        %v2853 = vadd.f32 %v2515, %v2729
        %v2854 = vadd.f32 %v2516, %v2734
        %v2855 = vadd.f32 %v2517, %v2737
        %v2856 = vadd.f32 %v2518, %v2742
        %v2857 = vadd.f32 %v2519, %v2745
        %v2858 = vadd.f32 %v2520, %v2750
        %v2859 = vadd.f32 %v2521, %v2753
        %v2860 = vadd.f32 %v2522, %v2758
        %v2861 = vadd.f32 %v2523, %v2761
        %v2862 = vadd.f32 %v2524, %v2766
        %v2863 = vadd.f32 %v2525, %v2769
        %v2864 = vadd.f32 %v2526, %v2774
        %v2865 = vadd.f32 %v2527, %v2777
        %v2866 = vadd.f32 %v2528, %v2782
        %v2867 = vadd.f32 %v2529, %v2785
        %v2868 = vadd.f32 %v2530, %v2790
        %v2869 = vadd.f32 %v2531, %v2793
        %v2870 = vadd.f32 %v2532, %v2798
        %v2871 = vadd.f32 %v2533, %v2801
        %v2872 = vadd.f32 %v2534, %v2806
        %v2873 = vadd.f32 %v2535, %v2809
        %v2874 = vadd.f32 %v2536, %v2814
        %v2875 = vadd.f32 %v2537, %v2817
        %v2876 = vadd.f32 %v2538, %v2822
        %v2877 = vadd.f32 %v2539, %v2825
        %v2878 = vadd.f32 %v2540, %v2830
        %v2879 = vadd.f32 %v2541, %v2833
        %v2880 = vadd.f32 %v2542, %v2838
        %v2881 = vadd.f32 %v2543, %v2841
        %v2882 = vadd.f32 %v2544, %v2846
        %v2883 = vadd.f32 %v2545, %v2849
        %v2884 = vld [vmem:[#allocation2 + $0x18] sm:$0xff]
        %v2885 = vld [vmem:[#allocation2 + $0x20] sm:$0xff]
        %v2886 = vld [vmem:[#allocation2 + $0x28] sm:$0xff]
        %v2887 = vld [vmem:[#allocation2 + $0x30] sm:$0xff]
        %v2888 = vld [vmem:[#allocation2 + $0x38] sm:$0xff]
        %v2889 = vld [vmem:[#allocation2 + $0x40] sm:$0xff]
        %v2890 = vld [vmem:[#allocation2 + $0x48] sm:$0xff]
        %v2891 = vld [vmem:[#allocation2 + $0x50] sm:$0xff]
        %v2892 = vld [vmem:[#allocation2 + $0x58] sm:$0xff]
        %v2893 = vld [vmem:[#allocation2 + $0x60] sm:$0xff]
        %v2894 = vld [vmem:[#allocation2 + $0x68] sm:$0xff]
        %v2895 = vld [vmem:[#allocation2 + $0x70] sm:$0xff]
        %v2896 = vld [vmem:[#allocation2 + $0x78] sm:$0xff]
        %v2897 = vld [vmem:[#allocation2 + $0x80] sm:$0xff]
        %v2898 = vld [vmem:[#allocation2 + $0x88] sm:$0xff]
        %v2899 = vld [vmem:[#allocation2 + $0x90] sm:$0xff]
        %v2900 = vld [vmem:[#allocation2 + $0x98] sm:$0xff]
        %v2901 = vld [vmem:[#allocation2 + $0xa0] sm:$0xff]
        %v2902 = vld [vmem:[#allocation2 + $0xa8] sm:$0xff]
        %v2903 = vld [vmem:[#allocation2 + $0xb0] sm:$0xff]
        %v2904 = vld [vmem:[#allocation2 + $0xb8] sm:$0xff]
        %v2905 = vld [vmem:[#allocation2 + $0xc0] sm:$0xff]
        %v2906 = vld [vmem:[#allocation2 + $0xc8] sm:$0xff]
        %v2907 = vld [vmem:[#allocation2 + $0xd0] sm:$0xff]
        %v2908 = vld [vmem:[#allocation2 + $0xd8] sm:$0xff]
        %v2909 = vld [vmem:[#allocation2 + $0xe0] sm:$0xff]
        %v2910 = vld [vmem:[#allocation2 + $0xe8] sm:$0xff]
        %v2911 = vld [vmem:[#allocation2 + $0xf0] sm:$0xff]
        %v2912 = vld [vmem:[#allocation2 + $0xf8] sm:$0xff]
        %v2913 = vld [vmem:[#allocation2 + $0x100] sm:$0xff]
        %v2914 = vld [vmem:[#allocation2 + $0x108] sm:$0xff]
        %v2915 = vld [vmem:[#allocation2 + $0x110] sm:$0xff]
        %v2916 = vpack.c.bf16 %v2885, %v2884
        %v2917 = vpack.c.bf16 %v2887, %v2886
        %v2918 = vpack.c.bf16 %v2889, %v2888
        %v2919 = vpack.c.bf16 %v2891, %v2890
        %v2920 = vpack.c.bf16 %v2893, %v2892
        %v2921 = vpack.c.bf16 %v2895, %v2894
        %v2922 = vpack.c.bf16 %v2897, %v2896
        %v2923 = vpack.c.bf16 %v2899, %v2898
        %v2924 = vpack.c.bf16 %v2901, %v2900
        %v2925 = vpack.c.bf16 %v2903, %v2902
        %v2926 = vpack.c.bf16 %v2905, %v2904
        %v2927 = vpack.c.bf16 %v2907, %v2906
        %v2928 = vpack.c.bf16 %v2909, %v2908
        %v2929 = vpack.c.bf16 %v2911, %v2910
        %v2930 = vpack.c.bf16 %v2913, %v2912
        %v2931 = vpack.c.bf16 %v2915, %v2914
        %s2932 = scalar_lea.vmem [#allocation8], 256
        %v2933 = vld [vmem:[%s2932] sm:$0xf]
        %v2934 = vld [vmem:[%s2932 + $0x4] sm:$0xf]
        %v2935 = vld [vmem:[%s2932 + $0x8] sm:$0xf]
        %v2936 = vld [vmem:[%s2932 + $0xc] sm:$0xf]
        %v2937 = vld [vmem:[%s2932 + $0x10] sm:$0xf]
        %v2938 = vld [vmem:[%s2932 + $0x14] sm:$0xf]
        %v2939 = vld [vmem:[%s2932 + $0x18] sm:$0xf]
        %v2940 = vld [vmem:[%s2932 + $0x1c] sm:$0xf]
        %v2941 = vld [vmem:[%s2932 + $0x20] sm:$0xf]
        %v2942 = vld [vmem:[%s2932 + $0x24] sm:$0xf]
        %v2943 = vld [vmem:[%s2932 + $0x28] sm:$0xf]
        %v2944 = vld [vmem:[%s2932 + $0x2c] sm:$0xf]
        %v2945 = vld [vmem:[%s2932 + $0x30] sm:$0xf]
        %v2946 = vld [vmem:[%s2932 + $0x34] sm:$0xf]
        %v2947 = vld [vmem:[%s2932 + $0x38] sm:$0xf]
        %v2948 = vld [vmem:[%s2932 + $0x3c] sm:$0xf]
        %v2965 = vunpack.c.l.b16 %v2933
        %v2966 = vunpack.c.l.b16 %v2934
        %v2967 = vunpack.c.l.b16 %v2935
        %v2968 = vunpack.c.l.b16 %v2936
        %v2969 = vunpack.c.l.b16 %v2937
        %v2970 = vunpack.c.l.b16 %v2938
        %v2971 = vunpack.c.l.b16 %v2939
        %v2972 = vunpack.c.l.b16 %v2940
        %v2973 = vunpack.c.l.b16 %v2941
        %v2974 = vunpack.c.l.b16 %v2942
        %v2975 = vunpack.c.l.b16 %v2943
        %v2976 = vunpack.c.l.b16 %v2944
        %v2977 = vunpack.c.l.b16 %v2945
        %v2978 = vunpack.c.l.b16 %v2946
        %v2979 = vunpack.c.l.b16 %v2947
        %v2980 = vunpack.c.l.b16 %v2948
        %v2981 = vpack.c.b16 %v2966, %v2965
        %v2982 = vpack.c.b16 %v2968, %v2967
        %v2983 = vpack.c.b16 %v2970, %v2969
        %v2984 = vpack.c.b16 %v2972, %v2971
        %v2985 = vpack.c.b16 %v2974, %v2973
        %v2986 = vpack.c.b16 %v2976, %v2975
        %v2987 = vpack.c.b16 %v2978, %v2977
        %v2988 = vpack.c.b16 %v2980, %v2979
        %2997 = vmatprep.subr.bf16.mxu0 0
        %2998 = vmatpush1.bf16.msra.mxu0 %v2988
        %2999 = vmatprep.subr.bf16.mxu0 0
        %3000 = vmatpush1.bf16.msra.mxu0 %v2987
        %3001 = vmatprep.subr.bf16.mxu0 0
        %3002 = vmatpush1.bf16.msra.mxu0 %v2986
        %3003 = vmatprep.subr.bf16.mxu0 0
        %3004 = vmatpush1.bf16.msra.mxu0 %v2985
        %3005 = vmatprep.subr.bf16.mxu0 0
        %3006 = vmatpush1.bf16.msra.mxu0 %v2984
        %3007 = vmatprep.subr.bf16.mxu0 0
        %3008 = vmatpush1.bf16.msra.mxu0 %v2983
        %3009 = vmatprep.subr.bf16.mxu0 0
        %3010 = vmatpush1.bf16.msra.mxu0 %v2982
        %3011 = vmatprep.subr.bf16.mxu0 0
        %3012 = vmatpush1.bf16.msra.mxu0 %v2981
        %3013 = vmatprep.subr.bf16.mxu0 0
        %3014 = vmatpush2.bf16.msra.mxu0 0
        %3015 = vmatprep.subr.bf16.mxu0 0
        %3016 = vmatpush2.bf16.msra.mxu0 0
        %3017 = vmatprep.subr.bf16.mxu0 0
        %3018 = vmatpush2.bf16.msra.mxu0 0
        %3019 = vmatprep.subr.bf16.mxu0 0
        %3020 = vmatpush2.bf16.msra.mxu0 0
        %3021 = vmatprep.subr.bf16.mxu0 0
        %3022 = vmatpush2.bf16.msra.mxu0 0
        %3023 = vmatprep.subr.bf16.mxu0 0
        %3024 = vmatpush2.bf16.msra.mxu0 0
        %3025 = vmatprep.subr.bf16.mxu0 0
        %3026 = vmatpush2.bf16.msra.mxu0 0
        %3027 = vmatprep.subr.bf16.mxu0 0
        %3028 = vmatpush2.bf16.msra.mxu0 0
        %3029 = vmatprep.mubr.bf16.mxu0 0
        %3030 = vmatmul.mubr.bf16.gmra.mxu0 %v2916
        %v3031 = vpop.f32.mrf.mxu0
        %v3032 = vadd.f32 0.0, %v3031
        %v3033 = vpop.f32.mrf.mxu0
        %v3034 = vpop.f32.mrf.mxu0
        %v3035 = vadd.f32 0.0, %v3034
        %v3036 = vpop.f32.mrf.mxu0
        %3037 = vmatprep.mubr.bf16.mxu0 0
        %3038 = vmatmul.mubr.bf16.gmra.mxu0 %v2917
        %v3039 = vpop.f32.mrf.mxu0
        %v3040 = vadd.f32 0.0, %v3039
        %v3041 = vpop.f32.mrf.mxu0
        %v3042 = vpop.f32.mrf.mxu0
        %v3043 = vadd.f32 0.0, %v3042
        %v3044 = vpop.f32.mrf.mxu0
        %3045 = vmatprep.mubr.bf16.mxu0 0
        %3046 = vmatmul.mubr.bf16.gmra.mxu0 %v2918
        %v3047 = vpop.f32.mrf.mxu0
        %v3048 = vadd.f32 0.0, %v3047
        %v3049 = vpop.f32.mrf.mxu0
        %v3050 = vpop.f32.mrf.mxu0
        %v3051 = vadd.f32 0.0, %v3050
        %v3052 = vpop.f32.mrf.mxu0
        %3053 = vmatprep.mubr.bf16.mxu0 0
        %3054 = vmatmul.mubr.bf16.gmra.mxu0 %v2919
        %v3055 = vpop.f32.mrf.mxu0
        %v3056 = vadd.f32 0.0, %v3055
        %v3057 = vpop.f32.mrf.mxu0
        %v3058 = vpop.f32.mrf.mxu0
        %v3059 = vadd.f32 0.0, %v3058
        %v3060 = vpop.f32.mrf.mxu0
        %3061 = vmatprep.mubr.bf16.mxu0 0
        %3062 = vmatmul.mubr.bf16.gmra.mxu0 %v2920
        %v3063 = vpop.f32.mrf.mxu0
        %v3064 = vadd.f32 0.0, %v3063
        %v3065 = vpop.f32.mrf.mxu0
        %v3066 = vpop.f32.mrf.mxu0
        %v3067 = vadd.f32 0.0, %v3066
        %v3068 = vpop.f32.mrf.mxu0
        %3069 = vmatprep.mubr.bf16.mxu0 0
        %3070 = vmatmul.mubr.bf16.gmra.mxu0 %v2921
        %v3071 = vpop.f32.mrf.mxu0
        %v3072 = vadd.f32 0.0, %v3071
        %v3073 = vpop.f32.mrf.mxu0
        %v3074 = vpop.f32.mrf.mxu0
        %v3075 = vadd.f32 0.0, %v3074
        %v3076 = vpop.f32.mrf.mxu0
        %3077 = vmatprep.mubr.bf16.mxu0 0
        %3078 = vmatmul.mubr.bf16.gmra.mxu0 %v2922
        %v3079 = vpop.f32.mrf.mxu0
        %v3080 = vadd.f32 0.0, %v3079
        %v3081 = vpop.f32.mrf.mxu0
        %v3082 = vpop.f32.mrf.mxu0
        %v3083 = vadd.f32 0.0, %v3082
        %v3084 = vpop.f32.mrf.mxu0
        %3085 = vmatprep.mubr.bf16.mxu0 0
        %3086 = vmatmul.mubr.bf16.gmra.mxu0 %v2923
        %v3087 = vpop.f32.mrf.mxu0
        %v3088 = vadd.f32 0.0, %v3087
        %v3089 = vpop.f32.mrf.mxu0
        %v3090 = vpop.f32.mrf.mxu0
        %v3091 = vadd.f32 0.0, %v3090
        %v3092 = vpop.f32.mrf.mxu0
        %3093 = vmatprep.mubr.bf16.mxu0 0
        %3094 = vmatmul.mubr.bf16.gmra.mxu0 %v2924
        %v3095 = vpop.f32.mrf.mxu0
        %v3096 = vadd.f32 0.0, %v3095
        %v3097 = vpop.f32.mrf.mxu0
        %v3098 = vpop.f32.mrf.mxu0
        %v3099 = vadd.f32 0.0, %v3098
        %v3100 = vpop.f32.mrf.mxu0
        %3101 = vmatprep.mubr.bf16.mxu0 0
        %3102 = vmatmul.mubr.bf16.gmra.mxu0 %v2925
        %v3103 = vpop.f32.mrf.mxu0
        %v3104 = vadd.f32 0.0, %v3103
        %v3105 = vpop.f32.mrf.mxu0
        %v3106 = vpop.f32.mrf.mxu0
        %v3107 = vadd.f32 0.0, %v3106
        %v3108 = vpop.f32.mrf.mxu0
        %3109 = vmatprep.mubr.bf16.mxu0 0
        %3110 = vmatmul.mubr.bf16.gmra.mxu0 %v2926
        %v3111 = vpop.f32.mrf.mxu0
        %v3112 = vadd.f32 0.0, %v3111
        %v3113 = vpop.f32.mrf.mxu0
        %v3114 = vpop.f32.mrf.mxu0
        %v3115 = vadd.f32 0.0, %v3114
        %v3116 = vpop.f32.mrf.mxu0
        %3117 = vmatprep.mubr.bf16.mxu0 0
        %3118 = vmatmul.mubr.bf16.gmra.mxu0 %v2927
        %v3119 = vpop.f32.mrf.mxu0
        %v3120 = vadd.f32 0.0, %v3119
        %v3121 = vpop.f32.mrf.mxu0
        %v3122 = vpop.f32.mrf.mxu0
        %v3123 = vadd.f32 0.0, %v3122
        %v3124 = vpop.f32.mrf.mxu0
        %3125 = vmatprep.mubr.bf16.mxu0 0
        %3126 = vmatmul.mubr.bf16.gmra.mxu0 %v2928
        %v3127 = vpop.f32.mrf.mxu0
        %v3128 = vadd.f32 0.0, %v3127
        %v3129 = vpop.f32.mrf.mxu0
        %v3130 = vpop.f32.mrf.mxu0
        %v3131 = vadd.f32 0.0, %v3130
        %v3132 = vpop.f32.mrf.mxu0
        %3133 = vmatprep.mubr.bf16.mxu0 0
        %3134 = vmatmul.mubr.bf16.gmra.mxu0 %v2929
        %v3135 = vpop.f32.mrf.mxu0
        %v3136 = vadd.f32 0.0, %v3135
        %v3137 = vpop.f32.mrf.mxu0
        %v3138 = vpop.f32.mrf.mxu0
        %v3139 = vadd.f32 0.0, %v3138
        %v3140 = vpop.f32.mrf.mxu0
        %3141 = vmatprep.mubr.bf16.mxu0 0
        %3142 = vmatmul.mubr.bf16.gmra.mxu0 %v2930
        %v3143 = vpop.f32.mrf.mxu0
        %v3144 = vadd.f32 0.0, %v3143
        %v3145 = vpop.f32.mrf.mxu0
        %v3146 = vpop.f32.mrf.mxu0
        %v3147 = vadd.f32 0.0, %v3146
        %v3148 = vpop.f32.mrf.mxu0
        %3149 = vmatprep.mubr.bf16.mxu0 0
        %3150 = vmatmul.mubr.bf16.gmra.mxu0 %v2931
        %v3151 = vpop.f32.mrf.mxu0
        %v3152 = vadd.f32 0.0, %v3151
        %v3153 = vpop.f32.mrf.mxu0
        %v3154 = vpop.f32.mrf.mxu0
        %v3155 = vadd.f32 0.0, %v3154
        %v3156 = vpop.f32.mrf.mxu0
        %3157 = vdwg.mxu0
        %v3158 = vadd.f32 %v2852, %v3032
        %v3159 = vadd.f32 %v2853, %v3035
        %v3160 = vadd.f32 %v2854, %v3040
        %v3161 = vadd.f32 %v2855, %v3043
        %v3162 = vadd.f32 %v2856, %v3048
        %v3163 = vadd.f32 %v2857, %v3051
        %v3164 = vadd.f32 %v2858, %v3056
        %v3165 = vadd.f32 %v2859, %v3059
        %v3166 = vadd.f32 %v2860, %v3064
        %v3167 = vadd.f32 %v2861, %v3067
        %v3168 = vadd.f32 %v2862, %v3072
        %v3169 = vadd.f32 %v2863, %v3075
        %v3170 = vadd.f32 %v2864, %v3080
        %v3171 = vadd.f32 %v2865, %v3083
        %v3172 = vadd.f32 %v2866, %v3088
        %v3173 = vadd.f32 %v2867, %v3091
        %v3174 = vadd.f32 %v2868, %v3096
        %v3175 = vadd.f32 %v2869, %v3099
        %v3176 = vadd.f32 %v2870, %v3104
        %v3177 = vadd.f32 %v2871, %v3107
        %v3178 = vadd.f32 %v2872, %v3112
        %v3179 = vadd.f32 %v2873, %v3115
        %v3180 = vadd.f32 %v2874, %v3120
        %v3181 = vadd.f32 %v2875, %v3123
        %v3182 = vadd.f32 %v2876, %v3128
        %v3183 = vadd.f32 %v2877, %v3131
        %v3184 = vadd.f32 %v2878, %v3136
        %v3185 = vadd.f32 %v2879, %v3139
        %v3186 = vadd.f32 %v2880, %v3144
        %v3187 = vadd.f32 %v2881, %v3147
        %v3188 = vadd.f32 %v2882, %v3152
        %v3189 = vadd.f32 %v2883, %v3155
        %v3190 = vld [vmem:[#allocation2 + $0x19] sm:$0xff]
        %v3191 = vld [vmem:[#allocation2 + $0x21] sm:$0xff]
        %v3192 = vld [vmem:[#allocation2 + $0x29] sm:$0xff]
        %v3193 = vld [vmem:[#allocation2 + $0x31] sm:$0xff]
        %v3194 = vld [vmem:[#allocation2 + $0x39] sm:$0xff]
        %v3195 = vld [vmem:[#allocation2 + $0x41] sm:$0xff]
        %v3196 = vld [vmem:[#allocation2 + $0x49] sm:$0xff]
        %v3197 = vld [vmem:[#allocation2 + $0x51] sm:$0xff]
        %v3198 = vld [vmem:[#allocation2 + $0x59] sm:$0xff]
        %v3199 = vld [vmem:[#allocation2 + $0x61] sm:$0xff]
        %v3200 = vld [vmem:[#allocation2 + $0x69] sm:$0xff]
        %v3201 = vld [vmem:[#allocation2 + $0x71] sm:$0xff]
        %v3202 = vld [vmem:[#allocation2 + $0x79] sm:$0xff]
        %v3203 = vld [vmem:[#allocation2 + $0x81] sm:$0xff]
        %v3204 = vld [vmem:[#allocation2 + $0x89] sm:$0xff]
        %v3205 = vld [vmem:[#allocation2 + $0x91] sm:$0xff]
        %v3206 = vld [vmem:[#allocation2 + $0x99] sm:$0xff]
        %v3207 = vld [vmem:[#allocation2 + $0xa1] sm:$0xff]
        %v3208 = vld [vmem:[#allocation2 + $0xa9] sm:$0xff]
        %v3209 = vld [vmem:[#allocation2 + $0xb1] sm:$0xff]
        %v3210 = vld [vmem:[#allocation2 + $0xb9] sm:$0xff]
        %v3211 = vld [vmem:[#allocation2 + $0xc1] sm:$0xff]
        %v3212 = vld [vmem:[#allocation2 + $0xc9] sm:$0xff]
        %v3213 = vld [vmem:[#allocation2 + $0xd1] sm:$0xff]
        %v3214 = vld [vmem:[#allocation2 + $0xd9] sm:$0xff]
        %v3215 = vld [vmem:[#allocation2 + $0xe1] sm:$0xff]
        %v3216 = vld [vmem:[#allocation2 + $0xe9] sm:$0xff]
        %v3217 = vld [vmem:[#allocation2 + $0xf1] sm:$0xff]
        %v3218 = vld [vmem:[#allocation2 + $0xf9] sm:$0xff]
        %v3219 = vld [vmem:[#allocation2 + $0x101] sm:$0xff]
        %v3220 = vld [vmem:[#allocation2 + $0x109] sm:$0xff]
        %v3221 = vld [vmem:[#allocation2 + $0x111] sm:$0xff]
        %v3222 = vsel %vm2208, %v3190, 0.0
        %v3223 = vsel %vm2209, %v3191, 0.0
        %v3224 = vsel %vm2210, %v3192, 0.0
        %v3225 = vsel %vm2211, %v3193, 0.0
        %v3226 = vsel %vm2212, %v3194, 0.0
        %v3227 = vsel %vm2213, %v3195, 0.0
        %v3228 = vsel %vm2214, %v3196, 0.0
        %v3229 = vsel %vm2215, %v3197, 0.0
        %v3230 = vsel %vm2216, %v3198, 0.0
        %v3231 = vsel %vm2217, %v3199, 0.0
        %v3232 = vsel %vm2218, %v3200, 0.0
        %v3233 = vsel %vm2219, %v3201, 0.0
        %v3234 = vsel %vm2220, %v3202, 0.0
        %v3235 = vsel %vm2221, %v3203, 0.0
        %v3236 = vsel %vm2222, %v3204, 0.0
        %v3237 = vsel %vm2223, %v3205, 0.0
        %v3238 = vsel %vm2224, %v3206, 0.0
        %v3239 = vsel %vm2225, %v3207, 0.0
        %v3240 = vsel %vm2226, %v3208, 0.0
        %v3241 = vsel %vm2227, %v3209, 0.0
        %v3242 = vsel %vm2228, %v3210, 0.0
        %v3243 = vsel %vm2229, %v3211, 0.0
        %v3244 = vsel %vm2230, %v3212, 0.0
        %v3245 = vsel %vm2231, %v3213, 0.0
        %v3246 = vsel %vm2232, %v3214, 0.0
        %v3247 = vsel %vm2233, %v3215, 0.0
        %v3248 = vsel %vm2234, %v3216, 0.0
        %v3249 = vsel %vm2235, %v3217, 0.0
        %v3250 = vsel %vm2236, %v3218, 0.0
        %v3251 = vsel %vm2237, %v3219, 0.0
        %v3252 = vsel %vm2238, %v3220, 0.0
        %v3253 = vsel %vm2239, %v3221, 0.0
        %v3254 = vpack.c.bf16 %v3223, %v3222
        %v3255 = vpack.c.bf16 %v3225, %v3224
        %v3256 = vpack.c.bf16 %v3227, %v3226
        %v3257 = vpack.c.bf16 %v3229, %v3228
        %v3258 = vpack.c.bf16 %v3231, %v3230
        %v3259 = vpack.c.bf16 %v3233, %v3232
        %v3260 = vpack.c.bf16 %v3235, %v3234
        %v3261 = vpack.c.bf16 %v3237, %v3236
        %v3262 = vpack.c.bf16 %v3239, %v3238
        %v3263 = vpack.c.bf16 %v3241, %v3240
        %v3264 = vpack.c.bf16 %v3243, %v3242
        %v3265 = vpack.c.bf16 %v3245, %v3244
        %v3266 = vpack.c.bf16 %v3247, %v3246
        %v3267 = vpack.c.bf16 %v3249, %v3248
        %v3268 = vpack.c.bf16 %v3251, %v3250
        %v3269 = vpack.c.bf16 %v3253, %v3252
        %s3270 = scalar_lea.vmem [#allocation8], 320
        %v3271 = vld [vmem:[%s3270] sm:$0xf]
        %v3272 = vld [vmem:[%s3270 + $0x4] sm:$0xf]
        %v3273 = vld [vmem:[%s3270 + $0x8] sm:$0xf]
        %v3274 = vld [vmem:[%s3270 + $0xc] sm:$0xf]
        %v3275 = vld [vmem:[%s3270 + $0x10] sm:$0xf]
        %v3276 = vld [vmem:[%s3270 + $0x14] sm:$0xf]
        %v3277 = vld [vmem:[%s3270 + $0x18] sm:$0xf]
        %v3278 = vld [vmem:[%s3270 + $0x1c] sm:$0xf]
        %v3279 = vld [vmem:[%s3270 + $0x20] sm:$0xf]
        %v3280 = vld [vmem:[%s3270 + $0x24] sm:$0xf]
        %v3281 = vld [vmem:[%s3270 + $0x28] sm:$0xf]
        %v3282 = vld [vmem:[%s3270 + $0x2c] sm:$0xf]
        %v3283 = vld [vmem:[%s3270 + $0x30] sm:$0xf]
        %v3284 = vld [vmem:[%s3270 + $0x34] sm:$0xf]
        %v3285 = vld [vmem:[%s3270 + $0x38] sm:$0xf]
        %v3286 = vld [vmem:[%s3270 + $0x3c] sm:$0xf]
        %v3303 = vunpack.c.l.b16 %v3271
        %v3304 = vunpack.c.l.b16 %v3272
        %v3305 = vunpack.c.l.b16 %v3273
        %v3306 = vunpack.c.l.b16 %v3274
        %v3307 = vunpack.c.l.b16 %v3275
        %v3308 = vunpack.c.l.b16 %v3276
        %v3309 = vunpack.c.l.b16 %v3277
        %v3310 = vunpack.c.l.b16 %v3278
        %v3311 = vunpack.c.l.b16 %v3279
        %v3312 = vunpack.c.l.b16 %v3280
        %v3313 = vunpack.c.l.b16 %v3281
        %v3314 = vunpack.c.l.b16 %v3282
        %v3315 = vunpack.c.l.b16 %v3283
        %v3316 = vunpack.c.l.b16 %v3284
        %v3317 = vunpack.c.l.b16 %v3285
        %v3318 = vunpack.c.l.b16 %v3286
        %v3319 = vpack.c.b16 %v3304, %v3303
        %v3320 = vpack.c.b16 %v3306, %v3305
        %v3321 = vpack.c.b16 %v3308, %v3307
        %v3322 = vpack.c.b16 %v3310, %v3309
        %v3323 = vpack.c.b16 %v3312, %v3311
        %v3324 = vpack.c.b16 %v3314, %v3313
        %v3325 = vpack.c.b16 %v3316, %v3315
        %v3326 = vpack.c.b16 %v3318, %v3317
        %3335 = vmatprep.subr.bf16.mxu0 0
        %3336 = vmatpush1.bf16.msra.mxu0 %v3326
        %3337 = vmatprep.subr.bf16.mxu0 0
        %3338 = vmatpush1.bf16.msra.mxu0 %v3325
        %3339 = vmatprep.subr.bf16.mxu0 0
        %3340 = vmatpush1.bf16.msra.mxu0 %v3324
        %3341 = vmatprep.subr.bf16.mxu0 0
        %3342 = vmatpush1.bf16.msra.mxu0 %v3323
        %3343 = vmatprep.subr.bf16.mxu0 0
        %3344 = vmatpush1.bf16.msra.mxu0 %v3322
        %3345 = vmatprep.subr.bf16.mxu0 0
        %3346 = vmatpush1.bf16.msra.mxu0 %v3321
        %3347 = vmatprep.subr.bf16.mxu0 0
        %3348 = vmatpush1.bf16.msra.mxu0 %v3320
        %3349 = vmatprep.subr.bf16.mxu0 0
        %3350 = vmatpush1.bf16.msra.mxu0 %v3319
        %3351 = vmatprep.subr.bf16.mxu0 0
        %3352 = vmatpush2.bf16.msra.mxu0 0
        %3353 = vmatprep.subr.bf16.mxu0 0
        %3354 = vmatpush2.bf16.msra.mxu0 0
        %3355 = vmatprep.subr.bf16.mxu0 0
        %3356 = vmatpush2.bf16.msra.mxu0 0
        %3357 = vmatprep.subr.bf16.mxu0 0
        %3358 = vmatpush2.bf16.msra.mxu0 0
        %3359 = vmatprep.subr.bf16.mxu0 0
        %3360 = vmatpush2.bf16.msra.mxu0 0
        %3361 = vmatprep.subr.bf16.mxu0 0
        %3362 = vmatpush2.bf16.msra.mxu0 0
        %3363 = vmatprep.subr.bf16.mxu0 0
        %3364 = vmatpush2.bf16.msra.mxu0 0
        %3365 = vmatprep.subr.bf16.mxu0 0
        %3366 = vmatpush2.bf16.msra.mxu0 0
        %3367 = vmatprep.mubr.bf16.mxu0 0
        %3368 = vmatmul.mubr.bf16.gmra.mxu0 %v3254
        %v3369 = vpop.f32.mrf.mxu0
        %v3370 = vadd.f32 0.0, %v3369
        %v3371 = vpop.f32.mrf.mxu0
        %v3372 = vpop.f32.mrf.mxu0
        %v3373 = vadd.f32 0.0, %v3372
        %v3374 = vpop.f32.mrf.mxu0
        %3375 = vmatprep.mubr.bf16.mxu0 0
        %3376 = vmatmul.mubr.bf16.gmra.mxu0 %v3255
        %v3377 = vpop.f32.mrf.mxu0
        %v3378 = vadd.f32 0.0, %v3377
        %v3379 = vpop.f32.mrf.mxu0
        %v3380 = vpop.f32.mrf.mxu0
        %v3381 = vadd.f32 0.0, %v3380
        %v3382 = vpop.f32.mrf.mxu0
        %3383 = vmatprep.mubr.bf16.mxu0 0
        %3384 = vmatmul.mubr.bf16.gmra.mxu0 %v3256
        %v3385 = vpop.f32.mrf.mxu0
        %v3386 = vadd.f32 0.0, %v3385
        %v3387 = vpop.f32.mrf.mxu0
        %v3388 = vpop.f32.mrf.mxu0
        %v3389 = vadd.f32 0.0, %v3388
        %v3390 = vpop.f32.mrf.mxu0
        %3391 = vmatprep.mubr.bf16.mxu0 0
        %3392 = vmatmul.mubr.bf16.gmra.mxu0 %v3257
        %v3393 = vpop.f32.mrf.mxu0
        %v3394 = vadd.f32 0.0, %v3393
        %v3395 = vpop.f32.mrf.mxu0
        %v3396 = vpop.f32.mrf.mxu0
        %v3397 = vadd.f32 0.0, %v3396
        %v3398 = vpop.f32.mrf.mxu0
        %3399 = vmatprep.mubr.bf16.mxu0 0
        %3400 = vmatmul.mubr.bf16.gmra.mxu0 %v3258
        %v3401 = vpop.f32.mrf.mxu0
        %v3402 = vadd.f32 0.0, %v3401
        %v3403 = vpop.f32.mrf.mxu0
        %v3404 = vpop.f32.mrf.mxu0
        %v3405 = vadd.f32 0.0, %v3404
        %v3406 = vpop.f32.mrf.mxu0
        %3407 = vmatprep.mubr.bf16.mxu0 0
        %3408 = vmatmul.mubr.bf16.gmra.mxu0 %v3259
        %v3409 = vpop.f32.mrf.mxu0
        %v3410 = vadd.f32 0.0, %v3409
        %v3411 = vpop.f32.mrf.mxu0
        %v3412 = vpop.f32.mrf.mxu0
        %v3413 = vadd.f32 0.0, %v3412
        %v3414 = vpop.f32.mrf.mxu0
        %3415 = vmatprep.mubr.bf16.mxu0 0
        %3416 = vmatmul.mubr.bf16.gmra.mxu0 %v3260
        %v3417 = vpop.f32.mrf.mxu0
        %v3418 = vadd.f32 0.0, %v3417
        %v3419 = vpop.f32.mrf.mxu0
        %v3420 = vpop.f32.mrf.mxu0
        %v3421 = vadd.f32 0.0, %v3420
        %v3422 = vpop.f32.mrf.mxu0
        %3423 = vmatprep.mubr.bf16.mxu0 0
        %3424 = vmatmul.mubr.bf16.gmra.mxu0 %v3261
        %v3425 = vpop.f32.mrf.mxu0
        %v3426 = vadd.f32 0.0, %v3425
        %v3427 = vpop.f32.mrf.mxu0
        %v3428 = vpop.f32.mrf.mxu0
        %v3429 = vadd.f32 0.0, %v3428
        %v3430 = vpop.f32.mrf.mxu0
        %3431 = vmatprep.mubr.bf16.mxu0 0
        %3432 = vmatmul.mubr.bf16.gmra.mxu0 %v3262
        %v3433 = vpop.f32.mrf.mxu0
        %v3434 = vadd.f32 0.0, %v3433
        %v3435 = vpop.f32.mrf.mxu0
        %v3436 = vpop.f32.mrf.mxu0
        %v3437 = vadd.f32 0.0, %v3436
        %v3438 = vpop.f32.mrf.mxu0
        %3439 = vmatprep.mubr.bf16.mxu0 0
        %3440 = vmatmul.mubr.bf16.gmra.mxu0 %v3263
        %v3441 = vpop.f32.mrf.mxu0
        %v3442 = vadd.f32 0.0, %v3441
        %v3443 = vpop.f32.mrf.mxu0
        %v3444 = vpop.f32.mrf.mxu0
        %v3445 = vadd.f32 0.0, %v3444
        %v3446 = vpop.f32.mrf.mxu0
        %3447 = vmatprep.mubr.bf16.mxu0 0
        %3448 = vmatmul.mubr.bf16.gmra.mxu0 %v3264
        %v3449 = vpop.f32.mrf.mxu0
        %v3450 = vadd.f32 0.0, %v3449
        %v3451 = vpop.f32.mrf.mxu0
        %v3452 = vpop.f32.mrf.mxu0
        %v3453 = vadd.f32 0.0, %v3452
        %v3454 = vpop.f32.mrf.mxu0
        %3455 = vmatprep.mubr.bf16.mxu0 0
        %3456 = vmatmul.mubr.bf16.gmra.mxu0 %v3265
        %v3457 = vpop.f32.mrf.mxu0
        %v3458 = vadd.f32 0.0, %v3457
        %v3459 = vpop.f32.mrf.mxu0
        %v3460 = vpop.f32.mrf.mxu0
        %v3461 = vadd.f32 0.0, %v3460
        %v3462 = vpop.f32.mrf.mxu0
        %3463 = vmatprep.mubr.bf16.mxu0 0
        %3464 = vmatmul.mubr.bf16.gmra.mxu0 %v3266
        %v3465 = vpop.f32.mrf.mxu0
        %v3466 = vadd.f32 0.0, %v3465
        %v3467 = vpop.f32.mrf.mxu0
        %v3468 = vpop.f32.mrf.mxu0
        %v3469 = vadd.f32 0.0, %v3468
        %v3470 = vpop.f32.mrf.mxu0
        %3471 = vmatprep.mubr.bf16.mxu0 0
        %3472 = vmatmul.mubr.bf16.gmra.mxu0 %v3267
        %v3473 = vpop.f32.mrf.mxu0
        %v3474 = vadd.f32 0.0, %v3473
        %v3475 = vpop.f32.mrf.mxu0
        %v3476 = vpop.f32.mrf.mxu0
        %v3477 = vadd.f32 0.0, %v3476
        %v3478 = vpop.f32.mrf.mxu0
        %3479 = vmatprep.mubr.bf16.mxu0 0
        %3480 = vmatmul.mubr.bf16.gmra.mxu0 %v3268
        %v3481 = vpop.f32.mrf.mxu0
        %v3482 = vadd.f32 0.0, %v3481
        %v3483 = vpop.f32.mrf.mxu0
        %v3484 = vpop.f32.mrf.mxu0
        %v3485 = vadd.f32 0.0, %v3484
        %v3486 = vpop.f32.mrf.mxu0
        %3487 = vmatprep.mubr.bf16.mxu0 0
        %3488 = vmatmul.mubr.bf16.gmra.mxu0 %v3269
        %v3489 = vpop.f32.mrf.mxu0
        %v3490 = vadd.f32 0.0, %v3489
        %v3491 = vpop.f32.mrf.mxu0
        %v3492 = vpop.f32.mrf.mxu0
        %v3493 = vadd.f32 0.0, %v3492
        %v3494 = vpop.f32.mrf.mxu0
        %3495 = vdwg.mxu0
        %v3496 = vadd.f32 %v3158, %v3370
        %v3497 = vadd.f32 %v3159, %v3373
        %v3498 = vadd.f32 %v3160, %v3378
        %v3499 = vadd.f32 %v3161, %v3381
        %v3500 = vadd.f32 %v3162, %v3386
        %v3501 = vadd.f32 %v3163, %v3389
        %v3502 = vadd.f32 %v3164, %v3394
        %v3503 = vadd.f32 %v3165, %v3397
        %v3504 = vadd.f32 %v3166, %v3402
        %v3505 = vadd.f32 %v3167, %v3405
        %v3506 = vadd.f32 %v3168, %v3410
        %v3507 = vadd.f32 %v3169, %v3413
        %v3508 = vadd.f32 %v3170, %v3418
        %v3509 = vadd.f32 %v3171, %v3421
        %v3510 = vadd.f32 %v3172, %v3426
        %v3511 = vadd.f32 %v3173, %v3429
        %v3512 = vadd.f32 %v3174, %v3434
        %v3513 = vadd.f32 %v3175, %v3437
        %v3514 = vadd.f32 %v3176, %v3442
        %v3515 = vadd.f32 %v3177, %v3445
        %v3516 = vadd.f32 %v3178, %v3450
        %v3517 = vadd.f32 %v3179, %v3453
        %v3518 = vadd.f32 %v3180, %v3458
        %v3519 = vadd.f32 %v3181, %v3461
        %v3520 = vadd.f32 %v3182, %v3466
        %v3521 = vadd.f32 %v3183, %v3469
        %v3522 = vadd.f32 %v3184, %v3474
        %v3523 = vadd.f32 %v3185, %v3477
        %v3524 = vadd.f32 %v3186, %v3482
        %v3525 = vadd.f32 %v3187, %v3485
        %v3526 = vadd.f32 %v3188, %v3490
        %v3527 = vadd.f32 %v3189, %v3493
        %v3528 = vld [vmem:[#allocation2 + $0x27] sm:$0xff]
        %v3529 = vld [vmem:[#allocation2 + $0x2f] sm:$0xff]
        %v3530 = vld [vmem:[#allocation2 + $0x37] sm:$0xff]
        %v3531 = vld [vmem:[#allocation2 + $0x3f] sm:$0xff]
        %v3532 = vld [vmem:[#allocation2 + $0x47] sm:$0xff]
        %v3533 = vld [vmem:[#allocation2 + $0x4f] sm:$0xff]
        %v3534 = vld [vmem:[#allocation2 + $0x57] sm:$0xff]
        %v3535 = vld [vmem:[#allocation2 + $0x5f] sm:$0xff]
        %v3536 = vld [vmem:[#allocation2 + $0x67] sm:$0xff]
        %v3537 = vld [vmem:[#allocation2 + $0x6f] sm:$0xff]
        %v3538 = vld [vmem:[#allocation2 + $0x77] sm:$0xff]
        %v3539 = vld [vmem:[#allocation2 + $0x7f] sm:$0xff]
        %v3540 = vld [vmem:[#allocation2 + $0x87] sm:$0xff]
        %v3541 = vld [vmem:[#allocation2 + $0x8f] sm:$0xff]
        %v3542 = vld [vmem:[#allocation2 + $0x97] sm:$0xff]
        %v3543 = vld [vmem:[#allocation2 + $0x9f] sm:$0xff]
        %v3544 = vld [vmem:[#allocation2 + $0xa7] sm:$0xff]
        %v3545 = vld [vmem:[#allocation2 + $0xaf] sm:$0xff]
        %v3546 = vld [vmem:[#allocation2 + $0xb7] sm:$0xff]
        %v3547 = vld [vmem:[#allocation2 + $0xbf] sm:$0xff]
        %v3548 = vld [vmem:[#allocation2 + $0xc7] sm:$0xff]
        %v3549 = vld [vmem:[#allocation2 + $0xcf] sm:$0xff]
        %v3550 = vld [vmem:[#allocation2 + $0xd7] sm:$0xff]
        %v3551 = vld [vmem:[#allocation2 + $0xdf] sm:$0xff]
        %v3552 = vld [vmem:[#allocation2 + $0xe7] sm:$0xff]
        %v3553 = vld [vmem:[#allocation2 + $0xef] sm:$0xff]
        %v3554 = vld [vmem:[#allocation2 + $0xf7] sm:$0xff]
        %v3555 = vld [vmem:[#allocation2 + $0xff] sm:$0xff]
        %v3556 = vld [vmem:[#allocation2 + $0x107] sm:$0xff]
        %v3557 = vld [vmem:[#allocation2 + $0x10f] sm:$0xff]
        %v3558 = vld [vmem:[#allocation2 + $0x117] sm:$0xff]
        %v3559 = vld [vmem:[#allocation2 + $0x11f] sm:$0xff]
        %v3560 = vsel %vm1565, %v3528, 0.0
        %v3561 = vsel %vm1566, %v3529, 0.0
        %v3562 = vsel %vm1567, %v3530, 0.0
        %v3563 = vsel %vm1568, %v3531, 0.0
        %v3564 = vsel %vm1569, %v3532, 0.0
        %v3565 = vsel %vm1570, %v3533, 0.0
        %v3566 = vsel %vm1571, %v3534, 0.0
        %v3567 = vsel %vm1572, %v3535, 0.0
        %v3568 = vsel %vm1573, %v3536, 0.0
        %v3569 = vsel %vm1574, %v3537, 0.0
        %v3570 = vsel %vm1575, %v3538, 0.0
        %v3571 = vsel %vm1576, %v3539, 0.0
        %v3572 = vsel %vm1577, %v3540, 0.0
        %v3573 = vsel %vm1578, %v3541, 0.0
        %v3574 = vsel %vm1579, %v3542, 0.0
        %v3575 = vsel %vm1580, %v3543, 0.0
        %v3576 = vsel %vm1581, %v3544, 0.0
        %v3577 = vsel %vm1582, %v3545, 0.0
        %v3578 = vsel %vm1583, %v3546, 0.0
        %v3579 = vsel %vm1584, %v3547, 0.0
        %v3580 = vsel %vm1585, %v3548, 0.0
        %v3581 = vsel %vm1586, %v3549, 0.0
        %v3582 = vsel %vm1587, %v3550, 0.0
        %v3583 = vsel %vm1588, %v3551, 0.0
        %v3584 = vsel %vm1589, %v3552, 0.0
        %v3585 = vsel %vm1590, %v3553, 0.0
        %v3586 = vsel %vm1591, %v3554, 0.0
        %v3587 = vsel %vm1592, %v3555, 0.0
        %v3588 = vsel %vm1593, %v3556, 0.0
        %v3589 = vsel %vm1594, %v3557, 0.0
        %v3590 = vsel %vm1595, %v3558, 0.0
        %v3591 = vsel %vm1596, %v3559, 0.0
        %v3592 = vpack.c.bf16 %v3561, %v3560
        %v3593 = vpack.c.bf16 %v3563, %v3562
        %v3594 = vpack.c.bf16 %v3565, %v3564
        %v3595 = vpack.c.bf16 %v3567, %v3566
        %v3596 = vpack.c.bf16 %v3569, %v3568
        %v3597 = vpack.c.bf16 %v3571, %v3570
        %v3598 = vpack.c.bf16 %v3573, %v3572
        %v3599 = vpack.c.bf16 %v3575, %v3574
        %v3600 = vpack.c.bf16 %v3577, %v3576
        %v3601 = vpack.c.bf16 %v3579, %v3578
        %v3602 = vpack.c.bf16 %v3581, %v3580
        %v3603 = vpack.c.bf16 %v3583, %v3582
        %v3604 = vpack.c.bf16 %v3585, %v3584
        %v3605 = vpack.c.bf16 %v3587, %v3586
        %v3606 = vpack.c.bf16 %v3589, %v3588
        %v3607 = vpack.c.bf16 %v3591, %v3590
        %s3608 = scalar_lea.vmem [#allocation8], 384
        %v3609 = vld [vmem:[%s3608] sm:$0xf]
        %v3610 = vld [vmem:[%s3608 + $0x4] sm:$0xf]
        %v3611 = vld [vmem:[%s3608 + $0x8] sm:$0xf]
        %v3612 = vld [vmem:[%s3608 + $0xc] sm:$0xf]
        %v3613 = vld [vmem:[%s3608 + $0x10] sm:$0xf]
        %v3614 = vld [vmem:[%s3608 + $0x14] sm:$0xf]
        %v3615 = vld [vmem:[%s3608 + $0x18] sm:$0xf]
        %v3616 = vld [vmem:[%s3608 + $0x1c] sm:$0xf]
        %v3617 = vld [vmem:[%s3608 + $0x20] sm:$0xf]
        %v3618 = vld [vmem:[%s3608 + $0x24] sm:$0xf]
        %v3619 = vld [vmem:[%s3608 + $0x28] sm:$0xf]
        %v3620 = vld [vmem:[%s3608 + $0x2c] sm:$0xf]
        %v3621 = vld [vmem:[%s3608 + $0x30] sm:$0xf]
        %v3622 = vld [vmem:[%s3608 + $0x34] sm:$0xf]
        %v3623 = vld [vmem:[%s3608 + $0x38] sm:$0xf]
        %v3624 = vld [vmem:[%s3608 + $0x3c] sm:$0xf]
        %v3641 = vunpack.c.l.b16 %v3609
        %v3642 = vunpack.c.l.b16 %v3610
        %v3643 = vunpack.c.l.b16 %v3611
        %v3644 = vunpack.c.l.b16 %v3612
        %v3645 = vunpack.c.l.b16 %v3613
        %v3646 = vunpack.c.l.b16 %v3614
        %v3647 = vunpack.c.l.b16 %v3615
        %v3648 = vunpack.c.l.b16 %v3616
        %v3649 = vunpack.c.l.b16 %v3617
        %v3650 = vunpack.c.l.b16 %v3618
        %v3651 = vunpack.c.l.b16 %v3619
        %v3652 = vunpack.c.l.b16 %v3620
        %v3653 = vunpack.c.l.b16 %v3621
        %v3654 = vunpack.c.l.b16 %v3622
        %v3655 = vunpack.c.l.b16 %v3623
        %v3656 = vunpack.c.l.b16 %v3624
        %v3657 = vpack.c.b16 %v3642, %v3641
        %v3658 = vpack.c.b16 %v3644, %v3643
        %v3659 = vpack.c.b16 %v3646, %v3645
        %v3660 = vpack.c.b16 %v3648, %v3647
        %v3661 = vpack.c.b16 %v3650, %v3649
        %v3662 = vpack.c.b16 %v3652, %v3651
        %v3663 = vpack.c.b16 %v3654, %v3653
        %v3664 = vpack.c.b16 %v3656, %v3655
        %3673 = vmatprep.subr.bf16.mxu0 0
        %3674 = vmatpush1.bf16.msra.mxu0 %v3664
        %3675 = vmatprep.subr.bf16.mxu0 0
        %3676 = vmatpush1.bf16.msra.mxu0 %v3663
        %3677 = vmatprep.subr.bf16.mxu0 0
        %3678 = vmatpush1.bf16.msra.mxu0 %v3662
        %3679 = vmatprep.subr.bf16.mxu0 0
        %3680 = vmatpush1.bf16.msra.mxu0 %v3661
        %3681 = vmatprep.subr.bf16.mxu0 0
        %3682 = vmatpush1.bf16.msra.mxu0 %v3660
        %3683 = vmatprep.subr.bf16.mxu0 0
        %3684 = vmatpush1.bf16.msra.mxu0 %v3659
        %3685 = vmatprep.subr.bf16.mxu0 0
        %3686 = vmatpush1.bf16.msra.mxu0 %v3658
        %3687 = vmatprep.subr.bf16.mxu0 0
        %3688 = vmatpush1.bf16.msra.mxu0 %v3657
        %3689 = vmatprep.subr.bf16.mxu0 0
        %3690 = vmatpush2.bf16.msra.mxu0 0
        %3691 = vmatprep.subr.bf16.mxu0 0
        %3692 = vmatpush2.bf16.msra.mxu0 0
        %3693 = vmatprep.subr.bf16.mxu0 0
        %3694 = vmatpush2.bf16.msra.mxu0 0
        %3695 = vmatprep.subr.bf16.mxu0 0
        %3696 = vmatpush2.bf16.msra.mxu0 0
        %3697 = vmatprep.subr.bf16.mxu0 0
        %3698 = vmatpush2.bf16.msra.mxu0 0
        %3699 = vmatprep.subr.bf16.mxu0 0
        %3700 = vmatpush2.bf16.msra.mxu0 0
        %3701 = vmatprep.subr.bf16.mxu0 0
        %3702 = vmatpush2.bf16.msra.mxu0 0
        %3703 = vmatprep.subr.bf16.mxu0 0
        %3704 = vmatpush2.bf16.msra.mxu0 0
        %3705 = vmatprep.mubr.bf16.mxu0 0
        %3706 = vmatmul.mubr.bf16.gmra.mxu0 %v3592
        %v3707 = vpop.f32.mrf.mxu0
        %v3708 = vadd.f32 0.0, %v3707
        %v3709 = vpop.f32.mrf.mxu0
        %v3710 = vpop.f32.mrf.mxu0
        %v3711 = vadd.f32 0.0, %v3710
        %v3712 = vpop.f32.mrf.mxu0
        %3713 = vmatprep.mubr.bf16.mxu0 0
        %3714 = vmatmul.mubr.bf16.gmra.mxu0 %v3593
        %v3715 = vpop.f32.mrf.mxu0
        %v3716 = vadd.f32 0.0, %v3715
        %v3717 = vpop.f32.mrf.mxu0
        %v3718 = vpop.f32.mrf.mxu0
        %v3719 = vadd.f32 0.0, %v3718
        %v3720 = vpop.f32.mrf.mxu0
        %3721 = vmatprep.mubr.bf16.mxu0 0
        %3722 = vmatmul.mubr.bf16.gmra.mxu0 %v3594
        %v3723 = vpop.f32.mrf.mxu0
        %v3724 = vadd.f32 0.0, %v3723
        %v3725 = vpop.f32.mrf.mxu0
        %v3726 = vpop.f32.mrf.mxu0
        %v3727 = vadd.f32 0.0, %v3726
        %v3728 = vpop.f32.mrf.mxu0
        %3729 = vmatprep.mubr.bf16.mxu0 0
        %3730 = vmatmul.mubr.bf16.gmra.mxu0 %v3595
        %v3731 = vpop.f32.mrf.mxu0
        %v3732 = vadd.f32 0.0, %v3731
        %v3733 = vpop.f32.mrf.mxu0
        %v3734 = vpop.f32.mrf.mxu0
        %v3735 = vadd.f32 0.0, %v3734
        %v3736 = vpop.f32.mrf.mxu0
        %3737 = vmatprep.mubr.bf16.mxu0 0
        %3738 = vmatmul.mubr.bf16.gmra.mxu0 %v3596
        %v3739 = vpop.f32.mrf.mxu0
        %v3740 = vadd.f32 0.0, %v3739
        %v3741 = vpop.f32.mrf.mxu0
        %v3742 = vpop.f32.mrf.mxu0
        %v3743 = vadd.f32 0.0, %v3742
        %v3744 = vpop.f32.mrf.mxu0
        %3745 = vmatprep.mubr.bf16.mxu0 0
        %3746 = vmatmul.mubr.bf16.gmra.mxu0 %v3597
        %v3747 = vpop.f32.mrf.mxu0
        %v3748 = vadd.f32 0.0, %v3747
        %v3749 = vpop.f32.mrf.mxu0
        %v3750 = vpop.f32.mrf.mxu0
        %v3751 = vadd.f32 0.0, %v3750
        %v3752 = vpop.f32.mrf.mxu0
        %3753 = vmatprep.mubr.bf16.mxu0 0
        %3754 = vmatmul.mubr.bf16.gmra.mxu0 %v3598
        %v3755 = vpop.f32.mrf.mxu0
        %v3756 = vadd.f32 0.0, %v3755
        %v3757 = vpop.f32.mrf.mxu0
        %v3758 = vpop.f32.mrf.mxu0
        %v3759 = vadd.f32 0.0, %v3758
        %v3760 = vpop.f32.mrf.mxu0
        %3761 = vmatprep.mubr.bf16.mxu0 0
        %3762 = vmatmul.mubr.bf16.gmra.mxu0 %v3599
        %v3763 = vpop.f32.mrf.mxu0
        %v3764 = vadd.f32 0.0, %v3763
        %v3765 = vpop.f32.mrf.mxu0
        %v3766 = vpop.f32.mrf.mxu0
        %v3767 = vadd.f32 0.0, %v3766
        %v3768 = vpop.f32.mrf.mxu0
        %3769 = vmatprep.mubr.bf16.mxu0 0
        %3770 = vmatmul.mubr.bf16.gmra.mxu0 %v3600
        %v3771 = vpop.f32.mrf.mxu0
        %v3772 = vadd.f32 0.0, %v3771
        %v3773 = vpop.f32.mrf.mxu0
        %v3774 = vpop.f32.mrf.mxu0
        %v3775 = vadd.f32 0.0, %v3774
        %v3776 = vpop.f32.mrf.mxu0
        %3777 = vmatprep.mubr.bf16.mxu0 0
        %3778 = vmatmul.mubr.bf16.gmra.mxu0 %v3601
        %v3779 = vpop.f32.mrf.mxu0
        %v3780 = vadd.f32 0.0, %v3779
        %v3781 = vpop.f32.mrf.mxu0
        %v3782 = vpop.f32.mrf.mxu0
        %v3783 = vadd.f32 0.0, %v3782
        %v3784 = vpop.f32.mrf.mxu0
        %3785 = vmatprep.mubr.bf16.mxu0 0
        %3786 = vmatmul.mubr.bf16.gmra.mxu0 %v3602
        %v3787 = vpop.f32.mrf.mxu0
        %v3788 = vadd.f32 0.0, %v3787
        %v3789 = vpop.f32.mrf.mxu0
        %v3790 = vpop.f32.mrf.mxu0
        %v3791 = vadd.f32 0.0, %v3790
        %v3792 = vpop.f32.mrf.mxu0
        %3793 = vmatprep.mubr.bf16.mxu0 0
        %3794 = vmatmul.mubr.bf16.gmra.mxu0 %v3603
        %v3795 = vpop.f32.mrf.mxu0
        %v3796 = vadd.f32 0.0, %v3795
        %v3797 = vpop.f32.mrf.mxu0
        %v3798 = vpop.f32.mrf.mxu0
        %v3799 = vadd.f32 0.0, %v3798
        %v3800 = vpop.f32.mrf.mxu0
        %3801 = vmatprep.mubr.bf16.mxu0 0
        %3802 = vmatmul.mubr.bf16.gmra.mxu0 %v3604
        %v3803 = vpop.f32.mrf.mxu0
        %v3804 = vadd.f32 0.0, %v3803
        %v3805 = vpop.f32.mrf.mxu0
        %v3806 = vpop.f32.mrf.mxu0
        %v3807 = vadd.f32 0.0, %v3806
        %v3808 = vpop.f32.mrf.mxu0
        %3809 = vmatprep.mubr.bf16.mxu0 0
        %3810 = vmatmul.mubr.bf16.gmra.mxu0 %v3605
        %v3811 = vpop.f32.mrf.mxu0
        %v3812 = vadd.f32 0.0, %v3811
        %v3813 = vpop.f32.mrf.mxu0
        %v3814 = vpop.f32.mrf.mxu0
        %v3815 = vadd.f32 0.0, %v3814
        %v3816 = vpop.f32.mrf.mxu0
        %3817 = vmatprep.mubr.bf16.mxu0 0
        %3818 = vmatmul.mubr.bf16.gmra.mxu0 %v3606
        %v3819 = vpop.f32.mrf.mxu0
        %v3820 = vadd.f32 0.0, %v3819
        %v3821 = vpop.f32.mrf.mxu0
        %v3822 = vpop.f32.mrf.mxu0
        %v3823 = vadd.f32 0.0, %v3822
        %v3824 = vpop.f32.mrf.mxu0
        %3825 = vmatprep.mubr.bf16.mxu0 0
        %3826 = vmatmul.mubr.bf16.gmra.mxu0 %v3607
        %v3827 = vpop.f32.mrf.mxu0
        %v3828 = vadd.f32 0.0, %v3827
        %v3829 = vpop.f32.mrf.mxu0
        %v3830 = vpop.f32.mrf.mxu0
        %v3831 = vadd.f32 0.0, %v3830
        %v3832 = vpop.f32.mrf.mxu0
        %3833 = vdwg.mxu0
        %v3834 = vadd.f32 %v3496, %v3708
        %v3835 = vadd.f32 %v3497, %v3711
        %v3836 = vadd.f32 %v3498, %v3716
        %v3837 = vadd.f32 %v3499, %v3719
        %v3838 = vadd.f32 %v3500, %v3724
        %v3839 = vadd.f32 %v3501, %v3727
        %v3840 = vadd.f32 %v3502, %v3732
        %v3841 = vadd.f32 %v3503, %v3735
        %v3842 = vadd.f32 %v3504, %v3740
        %v3843 = vadd.f32 %v3505, %v3743
        %v3844 = vadd.f32 %v3506, %v3748
        %v3845 = vadd.f32 %v3507, %v3751
        %v3846 = vadd.f32 %v3508, %v3756
        %v3847 = vadd.f32 %v3509, %v3759
        %v3848 = vadd.f32 %v3510, %v3764
        %v3849 = vadd.f32 %v3511, %v3767
        %v3850 = vadd.f32 %v3512, %v3772
        %v3851 = vadd.f32 %v3513, %v3775
        %v3852 = vadd.f32 %v3514, %v3780
        %v3853 = vadd.f32 %v3515, %v3783
        %v3854 = vadd.f32 %v3516, %v3788
        %v3855 = vadd.f32 %v3517, %v3791
        %v3856 = vadd.f32 %v3518, %v3796
        %v3857 = vadd.f32 %v3519, %v3799
        %v3858 = vadd.f32 %v3520, %v3804
        %v3859 = vadd.f32 %v3521, %v3807
        %v3860 = vadd.f32 %v3522, %v3812
        %v3861 = vadd.f32 %v3523, %v3815
        %v3862 = vadd.f32 %v3524, %v3820
        %v3863 = vadd.f32 %v3525, %v3823
        %v3864 = vadd.f32 %v3526, %v3828
        %v3865 = vadd.f32 %v3527, %v3831
        %v3866 = vld [vmem:[#allocation2 + $0x28] sm:$0xff]
        %v3867 = vld [vmem:[#allocation2 + $0x30] sm:$0xff]
        %v3868 = vld [vmem:[#allocation2 + $0x38] sm:$0xff]
        %v3869 = vld [vmem:[#allocation2 + $0x40] sm:$0xff]
        %v3870 = vld [vmem:[#allocation2 + $0x48] sm:$0xff]
        %v3871 = vld [vmem:[#allocation2 + $0x50] sm:$0xff]
        %v3872 = vld [vmem:[#allocation2 + $0x58] sm:$0xff]
        %v3873 = vld [vmem:[#allocation2 + $0x60] sm:$0xff]
        %v3874 = vld [vmem:[#allocation2 + $0x68] sm:$0xff]
        %v3875 = vld [vmem:[#allocation2 + $0x70] sm:$0xff]
        %v3876 = vld [vmem:[#allocation2 + $0x78] sm:$0xff]
        %v3877 = vld [vmem:[#allocation2 + $0x80] sm:$0xff]
        %v3878 = vld [vmem:[#allocation2 + $0x88] sm:$0xff]
        %v3879 = vld [vmem:[#allocation2 + $0x90] sm:$0xff]
        %v3880 = vld [vmem:[#allocation2 + $0x98] sm:$0xff]
        %v3881 = vld [vmem:[#allocation2 + $0xa0] sm:$0xff]
        %v3882 = vld [vmem:[#allocation2 + $0xa8] sm:$0xff]
        %v3883 = vld [vmem:[#allocation2 + $0xb0] sm:$0xff]
        %v3884 = vld [vmem:[#allocation2 + $0xb8] sm:$0xff]
        %v3885 = vld [vmem:[#allocation2 + $0xc0] sm:$0xff]
        %v3886 = vld [vmem:[#allocation2 + $0xc8] sm:$0xff]
        %v3887 = vld [vmem:[#allocation2 + $0xd0] sm:$0xff]
        %v3888 = vld [vmem:[#allocation2 + $0xd8] sm:$0xff]
        %v3889 = vld [vmem:[#allocation2 + $0xe0] sm:$0xff]
        %v3890 = vld [vmem:[#allocation2 + $0xe8] sm:$0xff]
        %v3891 = vld [vmem:[#allocation2 + $0xf0] sm:$0xff]
        %v3892 = vld [vmem:[#allocation2 + $0xf8] sm:$0xff]
        %v3893 = vld [vmem:[#allocation2 + $0x100] sm:$0xff]
        %v3894 = vld [vmem:[#allocation2 + $0x108] sm:$0xff]
        %v3895 = vld [vmem:[#allocation2 + $0x110] sm:$0xff]
        %v3896 = vld [vmem:[#allocation2 + $0x118] sm:$0xff]
        %v3897 = vld [vmem:[#allocation2 + $0x120] sm:$0xff]
        %v3898 = vpack.c.bf16 %v3867, %v3866
        %v3899 = vpack.c.bf16 %v3869, %v3868
        %v3900 = vpack.c.bf16 %v3871, %v3870
        %v3901 = vpack.c.bf16 %v3873, %v3872
        %v3902 = vpack.c.bf16 %v3875, %v3874
        %v3903 = vpack.c.bf16 %v3877, %v3876
        %v3904 = vpack.c.bf16 %v3879, %v3878
        %v3905 = vpack.c.bf16 %v3881, %v3880
        %v3906 = vpack.c.bf16 %v3883, %v3882
        %v3907 = vpack.c.bf16 %v3885, %v3884
        %v3908 = vpack.c.bf16 %v3887, %v3886
        %v3909 = vpack.c.bf16 %v3889, %v3888
        %v3910 = vpack.c.bf16 %v3891, %v3890
        %v3911 = vpack.c.bf16 %v3893, %v3892
        %v3912 = vpack.c.bf16 %v3895, %v3894
        %v3913 = vpack.c.bf16 %v3897, %v3896
        %s3914 = scalar_lea.vmem [#allocation8], 448
        %v3915 = vld [vmem:[%s3914] sm:$0xf]
        %v3916 = vld [vmem:[%s3914 + $0x4] sm:$0xf]
        %v3917 = vld [vmem:[%s3914 + $0x8] sm:$0xf]
        %v3918 = vld [vmem:[%s3914 + $0xc] sm:$0xf]
        %v3919 = vld [vmem:[%s3914 + $0x10] sm:$0xf]
        %v3920 = vld [vmem:[%s3914 + $0x14] sm:$0xf]
        %v3921 = vld [vmem:[%s3914 + $0x18] sm:$0xf]
        %v3922 = vld [vmem:[%s3914 + $0x1c] sm:$0xf]
        %v3923 = vld [vmem:[%s3914 + $0x20] sm:$0xf]
        %v3924 = vld [vmem:[%s3914 + $0x24] sm:$0xf]
        %v3925 = vld [vmem:[%s3914 + $0x28] sm:$0xf]
        %v3926 = vld [vmem:[%s3914 + $0x2c] sm:$0xf]
        %v3927 = vld [vmem:[%s3914 + $0x30] sm:$0xf]
        %v3928 = vld [vmem:[%s3914 + $0x34] sm:$0xf]
        %v3929 = vld [vmem:[%s3914 + $0x38] sm:$0xf]
        %v3930 = vld [vmem:[%s3914 + $0x3c] sm:$0xf]
        %v3947 = vunpack.c.l.b16 %v3915
        %v3948 = vunpack.c.l.b16 %v3916
        %v3949 = vunpack.c.l.b16 %v3917
        %v3950 = vunpack.c.l.b16 %v3918
        %v3951 = vunpack.c.l.b16 %v3919
        %v3952 = vunpack.c.l.b16 %v3920
        %v3953 = vunpack.c.l.b16 %v3921
        %v3954 = vunpack.c.l.b16 %v3922
        %v3955 = vunpack.c.l.b16 %v3923
        %v3956 = vunpack.c.l.b16 %v3924
        %v3957 = vunpack.c.l.b16 %v3925
        %v3958 = vunpack.c.l.b16 %v3926
        %v3959 = vunpack.c.l.b16 %v3927
        %v3960 = vunpack.c.l.b16 %v3928
        %v3961 = vunpack.c.l.b16 %v3929
        %v3962 = vunpack.c.l.b16 %v3930
        %v3963 = vpack.c.b16 %v3948, %v3947
        %v3964 = vpack.c.b16 %v3950, %v3949
        %v3965 = vpack.c.b16 %v3952, %v3951
        %v3966 = vpack.c.b16 %v3954, %v3953
        %v3967 = vpack.c.b16 %v3956, %v3955
        %v3968 = vpack.c.b16 %v3958, %v3957
        %v3969 = vpack.c.b16 %v3960, %v3959
        %v3970 = vpack.c.b16 %v3962, %v3961
        %3979 = vmatprep.subr.bf16.mxu0 0
        %3980 = vmatpush1.bf16.msra.mxu0 %v3970
        %3981 = vmatprep.subr.bf16.mxu0 0
        %3982 = vmatpush1.bf16.msra.mxu0 %v3969
        %3983 = vmatprep.subr.bf16.mxu0 0
        %3984 = vmatpush1.bf16.msra.mxu0 %v3968
        %3985 = vmatprep.subr.bf16.mxu0 0
        %3986 = vmatpush1.bf16.msra.mxu0 %v3967
        %3987 = vmatprep.subr.bf16.mxu0 0
        %3988 = vmatpush1.bf16.msra.mxu0 %v3966
        %3989 = vmatprep.subr.bf16.mxu0 0
        %3990 = vmatpush1.bf16.msra.mxu0 %v3965
        %3991 = vmatprep.subr.bf16.mxu0 0
        %3992 = vmatpush1.bf16.msra.mxu0 %v3964
        %3993 = vmatprep.subr.bf16.mxu0 0
        %3994 = vmatpush1.bf16.msra.mxu0 %v3963
        %3995 = vmatprep.subr.bf16.mxu0 0
        %3996 = vmatpush2.bf16.msra.mxu0 0
        %3997 = vmatprep.subr.bf16.mxu0 0
        %3998 = vmatpush2.bf16.msra.mxu0 0
        %3999 = vmatprep.subr.bf16.mxu0 0
        %4000 = vmatpush2.bf16.msra.mxu0 0
        %4001 = vmatprep.subr.bf16.mxu0 0
        %4002 = vmatpush2.bf16.msra.mxu0 0
        %4003 = vmatprep.subr.bf16.mxu0 0
        %4004 = vmatpush2.bf16.msra.mxu0 0
        %4005 = vmatprep.subr.bf16.mxu0 0
        %4006 = vmatpush2.bf16.msra.mxu0 0
        %4007 = vmatprep.subr.bf16.mxu0 0
        %4008 = vmatpush2.bf16.msra.mxu0 0
        %4009 = vmatprep.subr.bf16.mxu0 0
        %4010 = vmatpush2.bf16.msra.mxu0 0
        %4011 = vmatprep.mubr.bf16.mxu0 0
        %4012 = vmatmul.mubr.bf16.gmra.mxu0 %v3898
        %v4013 = vpop.f32.mrf.mxu0
        %v4014 = vadd.f32 0.0, %v4013
        %v4015 = vpop.f32.mrf.mxu0
        %v4016 = vpop.f32.mrf.mxu0
        %v4017 = vadd.f32 0.0, %v4016
        %v4018 = vpop.f32.mrf.mxu0
        %4019 = vmatprep.mubr.bf16.mxu0 0
        %4020 = vmatmul.mubr.bf16.gmra.mxu0 %v3899
        %v4021 = vpop.f32.mrf.mxu0
        %v4022 = vadd.f32 0.0, %v4021
        %v4023 = vpop.f32.mrf.mxu0
        %v4024 = vpop.f32.mrf.mxu0
        %v4025 = vadd.f32 0.0, %v4024
        %v4026 = vpop.f32.mrf.mxu0
        %4027 = vmatprep.mubr.bf16.mxu0 0
        %4028 = vmatmul.mubr.bf16.gmra.mxu0 %v3900
        %v4029 = vpop.f32.mrf.mxu0
        %v4030 = vadd.f32 0.0, %v4029
        %v4031 = vpop.f32.mrf.mxu0
        %v4032 = vpop.f32.mrf.mxu0
        %v4033 = vadd.f32 0.0, %v4032
        %v4034 = vpop.f32.mrf.mxu0
        %4035 = vmatprep.mubr.bf16.mxu0 0
        %4036 = vmatmul.mubr.bf16.gmra.mxu0 %v3901
        %v4037 = vpop.f32.mrf.mxu0
        %v4038 = vadd.f32 0.0, %v4037
        %v4039 = vpop.f32.mrf.mxu0
        %v4040 = vpop.f32.mrf.mxu0
        %v4041 = vadd.f32 0.0, %v4040
        %v4042 = vpop.f32.mrf.mxu0
        %4043 = vmatprep.mubr.bf16.mxu0 0
        %4044 = vmatmul.mubr.bf16.gmra.mxu0 %v3902
        %v4045 = vpop.f32.mrf.mxu0
        %v4046 = vadd.f32 0.0, %v4045
        %v4047 = vpop.f32.mrf.mxu0
        %v4048 = vpop.f32.mrf.mxu0
        %v4049 = vadd.f32 0.0, %v4048
        %v4050 = vpop.f32.mrf.mxu0
        %4051 = vmatprep.mubr.bf16.mxu0 0
        %4052 = vmatmul.mubr.bf16.gmra.mxu0 %v3903
        %v4053 = vpop.f32.mrf.mxu0
        %v4054 = vadd.f32 0.0, %v4053
        %v4055 = vpop.f32.mrf.mxu0
        %v4056 = vpop.f32.mrf.mxu0
        %v4057 = vadd.f32 0.0, %v4056
        %v4058 = vpop.f32.mrf.mxu0
        %4059 = vmatprep.mubr.bf16.mxu0 0
        %4060 = vmatmul.mubr.bf16.gmra.mxu0 %v3904
        %v4061 = vpop.f32.mrf.mxu0
        %v4062 = vadd.f32 0.0, %v4061
        %v4063 = vpop.f32.mrf.mxu0
        %v4064 = vpop.f32.mrf.mxu0
        %v4065 = vadd.f32 0.0, %v4064
        %v4066 = vpop.f32.mrf.mxu0
        %4067 = vmatprep.mubr.bf16.mxu0 0
        %4068 = vmatmul.mubr.bf16.gmra.mxu0 %v3905
        %v4069 = vpop.f32.mrf.mxu0
        %v4070 = vadd.f32 0.0, %v4069
        %v4071 = vpop.f32.mrf.mxu0
        %v4072 = vpop.f32.mrf.mxu0
        %v4073 = vadd.f32 0.0, %v4072
        %v4074 = vpop.f32.mrf.mxu0
        %4075 = vmatprep.mubr.bf16.mxu0 0
        %4076 = vmatmul.mubr.bf16.gmra.mxu0 %v3906
        %v4077 = vpop.f32.mrf.mxu0
        %v4078 = vadd.f32 0.0, %v4077
        %v4079 = vpop.f32.mrf.mxu0
        %v4080 = vpop.f32.mrf.mxu0
        %v4081 = vadd.f32 0.0, %v4080
        %v4082 = vpop.f32.mrf.mxu0
        %4083 = vmatprep.mubr.bf16.mxu0 0
        %4084 = vmatmul.mubr.bf16.gmra.mxu0 %v3907
        %v4085 = vpop.f32.mrf.mxu0
        %v4086 = vadd.f32 0.0, %v4085
        %v4087 = vpop.f32.mrf.mxu0
        %v4088 = vpop.f32.mrf.mxu0
        %v4089 = vadd.f32 0.0, %v4088
        %v4090 = vpop.f32.mrf.mxu0
        %4091 = vmatprep.mubr.bf16.mxu0 0
        %4092 = vmatmul.mubr.bf16.gmra.mxu0 %v3908
        %v4093 = vpop.f32.mrf.mxu0
        %v4094 = vadd.f32 0.0, %v4093
        %v4095 = vpop.f32.mrf.mxu0
        %v4096 = vpop.f32.mrf.mxu0
        %v4097 = vadd.f32 0.0, %v4096
        %v4098 = vpop.f32.mrf.mxu0
        %4099 = vmatprep.mubr.bf16.mxu0 0
        %4100 = vmatmul.mubr.bf16.gmra.mxu0 %v3909
        %v4101 = vpop.f32.mrf.mxu0
        %v4102 = vadd.f32 0.0, %v4101
        %v4103 = vpop.f32.mrf.mxu0
        %v4104 = vpop.f32.mrf.mxu0
        %v4105 = vadd.f32 0.0, %v4104
        %v4106 = vpop.f32.mrf.mxu0
        %4107 = vmatprep.mubr.bf16.mxu0 0
        %4108 = vmatmul.mubr.bf16.gmra.mxu0 %v3910
        %v4109 = vpop.f32.mrf.mxu0
        %v4110 = vadd.f32 0.0, %v4109
        %v4111 = vpop.f32.mrf.mxu0
        %v4112 = vpop.f32.mrf.mxu0
        %v4113 = vadd.f32 0.0, %v4112
        %v4114 = vpop.f32.mrf.mxu0
        %4115 = vmatprep.mubr.bf16.mxu0 0
        %4116 = vmatmul.mubr.bf16.gmra.mxu0 %v3911
        %v4117 = vpop.f32.mrf.mxu0
        %v4118 = vadd.f32 0.0, %v4117
        %v4119 = vpop.f32.mrf.mxu0
        %v4120 = vpop.f32.mrf.mxu0
        %v4121 = vadd.f32 0.0, %v4120
        %v4122 = vpop.f32.mrf.mxu0
        %4123 = vmatprep.mubr.bf16.mxu0 0
        %4124 = vmatmul.mubr.bf16.gmra.mxu0 %v3912
        %v4125 = vpop.f32.mrf.mxu0
        %v4126 = vadd.f32 0.0, %v4125
        %v4127 = vpop.f32.mrf.mxu0
        %v4128 = vpop.f32.mrf.mxu0
        %v4129 = vadd.f32 0.0, %v4128
        %v4130 = vpop.f32.mrf.mxu0
        %4131 = vmatprep.mubr.bf16.mxu0 0
        %4132 = vmatmul.mubr.bf16.gmra.mxu0 %v3913
        %v4133 = vpop.f32.mrf.mxu0
        %v4134 = vadd.f32 0.0, %v4133
        %v4135 = vpop.f32.mrf.mxu0
        %v4136 = vpop.f32.mrf.mxu0
        %v4137 = vadd.f32 0.0, %v4136
        %v4138 = vpop.f32.mrf.mxu0
        %4139 = vdwg.mxu0
        %v4140 = vadd.f32 %v3834, %v4014
        %v4141 = vadd.f32 %v3835, %v4017
        %v4142 = vadd.f32 %v3836, %v4022
        %v4143 = vadd.f32 %v3837, %v4025
        %v4144 = vadd.f32 %v3838, %v4030
        %v4145 = vadd.f32 %v3839, %v4033
        %v4146 = vadd.f32 %v3840, %v4038
        %v4147 = vadd.f32 %v3841, %v4041
        %v4148 = vadd.f32 %v3842, %v4046
        %v4149 = vadd.f32 %v3843, %v4049
        %v4150 = vadd.f32 %v3844, %v4054
        %v4151 = vadd.f32 %v3845, %v4057
        %v4152 = vadd.f32 %v3846, %v4062
        %v4153 = vadd.f32 %v3847, %v4065
        %v4154 = vadd.f32 %v3848, %v4070
        %v4155 = vadd.f32 %v3849, %v4073
        %v4156 = vadd.f32 %v3850, %v4078
        %v4157 = vadd.f32 %v3851, %v4081
        %v4158 = vadd.f32 %v3852, %v4086
        %v4159 = vadd.f32 %v3853, %v4089
        %v4160 = vadd.f32 %v3854, %v4094
        %v4161 = vadd.f32 %v3855, %v4097
        %v4162 = vadd.f32 %v3856, %v4102
        %v4163 = vadd.f32 %v3857, %v4105
        %v4164 = vadd.f32 %v3858, %v4110
        %v4165 = vadd.f32 %v3859, %v4113
        %v4166 = vadd.f32 %v3860, %v4118
        %v4167 = vadd.f32 %v3861, %v4121
        %v4168 = vadd.f32 %v3862, %v4126
        %v4169 = vadd.f32 %v3863, %v4129
        %v4170 = vadd.f32 %v3864, %v4134
        %v4171 = vadd.f32 %v3865, %v4137
        %v4172 = vld [vmem:[#allocation2 + $0x29] sm:$0xff]
        %v4173 = vld [vmem:[#allocation2 + $0x31] sm:$0xff]
        %v4174 = vld [vmem:[#allocation2 + $0x39] sm:$0xff]
        %v4175 = vld [vmem:[#allocation2 + $0x41] sm:$0xff]
        %v4176 = vld [vmem:[#allocation2 + $0x49] sm:$0xff]
        %v4177 = vld [vmem:[#allocation2 + $0x51] sm:$0xff]
        %v4178 = vld [vmem:[#allocation2 + $0x59] sm:$0xff]
        %v4179 = vld [vmem:[#allocation2 + $0x61] sm:$0xff]
        %v4180 = vld [vmem:[#allocation2 + $0x69] sm:$0xff]
        %v4181 = vld [vmem:[#allocation2 + $0x71] sm:$0xff]
        %v4182 = vld [vmem:[#allocation2 + $0x79] sm:$0xff]
        %v4183 = vld [vmem:[#allocation2 + $0x81] sm:$0xff]
        %v4184 = vld [vmem:[#allocation2 + $0x89] sm:$0xff]
        %v4185 = vld [vmem:[#allocation2 + $0x91] sm:$0xff]
        %v4186 = vld [vmem:[#allocation2 + $0x99] sm:$0xff]
        %v4187 = vld [vmem:[#allocation2 + $0xa1] sm:$0xff]
        %v4188 = vld [vmem:[#allocation2 + $0xa9] sm:$0xff]
        %v4189 = vld [vmem:[#allocation2 + $0xb1] sm:$0xff]
        %v4190 = vld [vmem:[#allocation2 + $0xb9] sm:$0xff]
        %v4191 = vld [vmem:[#allocation2 + $0xc1] sm:$0xff]
        %v4192 = vld [vmem:[#allocation2 + $0xc9] sm:$0xff]
        %v4193 = vld [vmem:[#allocation2 + $0xd1] sm:$0xff]
        %v4194 = vld [vmem:[#allocation2 + $0xd9] sm:$0xff]
        %v4195 = vld [vmem:[#allocation2 + $0xe1] sm:$0xff]
        %v4196 = vld [vmem:[#allocation2 + $0xe9] sm:$0xff]
        %v4197 = vld [vmem:[#allocation2 + $0xf1] sm:$0xff]
        %v4198 = vld [vmem:[#allocation2 + $0xf9] sm:$0xff]
        %v4199 = vld [vmem:[#allocation2 + $0x101] sm:$0xff]
        %v4200 = vld [vmem:[#allocation2 + $0x109] sm:$0xff]
        %v4201 = vld [vmem:[#allocation2 + $0x111] sm:$0xff]
        %v4202 = vld [vmem:[#allocation2 + $0x119] sm:$0xff]
        %v4203 = vld [vmem:[#allocation2 + $0x121] sm:$0xff]
        %v4204 = vsel %vm2208, %v4172, 0.0
        %v4205 = vsel %vm2209, %v4173, 0.0
        %v4206 = vsel %vm2210, %v4174, 0.0
        %v4207 = vsel %vm2211, %v4175, 0.0
        %v4208 = vsel %vm2212, %v4176, 0.0
        %v4209 = vsel %vm2213, %v4177, 0.0
        %v4210 = vsel %vm2214, %v4178, 0.0
        %v4211 = vsel %vm2215, %v4179, 0.0
        %v4212 = vsel %vm2216, %v4180, 0.0
        %v4213 = vsel %vm2217, %v4181, 0.0
        %v4214 = vsel %vm2218, %v4182, 0.0
        %v4215 = vsel %vm2219, %v4183, 0.0
        %v4216 = vsel %vm2220, %v4184, 0.0
        %v4217 = vsel %vm2221, %v4185, 0.0
        %v4218 = vsel %vm2222, %v4186, 0.0
        %v4219 = vsel %vm2223, %v4187, 0.0
        %v4220 = vsel %vm2224, %v4188, 0.0
        %v4221 = vsel %vm2225, %v4189, 0.0
        %v4222 = vsel %vm2226, %v4190, 0.0
        %v4223 = vsel %vm2227, %v4191, 0.0
        %v4224 = vsel %vm2228, %v4192, 0.0
        %v4225 = vsel %vm2229, %v4193, 0.0
        %v4226 = vsel %vm2230, %v4194, 0.0
        %v4227 = vsel %vm2231, %v4195, 0.0
        %v4228 = vsel %vm2232, %v4196, 0.0
        %v4229 = vsel %vm2233, %v4197, 0.0
        %v4230 = vsel %vm2234, %v4198, 0.0
        %v4231 = vsel %vm2235, %v4199, 0.0
        %v4232 = vsel %vm2236, %v4200, 0.0
        %v4233 = vsel %vm2237, %v4201, 0.0
        %v4234 = vsel %vm2238, %v4202, 0.0
        %v4235 = vsel %vm2239, %v4203, 0.0
        %v4236 = vpack.c.bf16 %v4205, %v4204
        %v4237 = vpack.c.bf16 %v4207, %v4206
        %v4238 = vpack.c.bf16 %v4209, %v4208
        %v4239 = vpack.c.bf16 %v4211, %v4210
        %v4240 = vpack.c.bf16 %v4213, %v4212
        %v4241 = vpack.c.bf16 %v4215, %v4214
        %v4242 = vpack.c.bf16 %v4217, %v4216
        %v4243 = vpack.c.bf16 %v4219, %v4218
        %v4244 = vpack.c.bf16 %v4221, %v4220
        %v4245 = vpack.c.bf16 %v4223, %v4222
        %v4246 = vpack.c.bf16 %v4225, %v4224
        %v4247 = vpack.c.bf16 %v4227, %v4226
        %v4248 = vpack.c.bf16 %v4229, %v4228
        %v4249 = vpack.c.bf16 %v4231, %v4230
        %v4250 = vpack.c.bf16 %v4233, %v4232
        %v4251 = vpack.c.bf16 %v4235, %v4234
        %s4252 = scalar_lea.vmem [#allocation8], 512
        %v4253 = vld [vmem:[%s4252] sm:$0xf]
        %v4254 = vld [vmem:[%s4252 + $0x4] sm:$0xf]
        %v4255 = vld [vmem:[%s4252 + $0x8] sm:$0xf]
        %v4256 = vld [vmem:[%s4252 + $0xc] sm:$0xf]
        %v4257 = vld [vmem:[%s4252 + $0x10] sm:$0xf]
        %v4258 = vld [vmem:[%s4252 + $0x14] sm:$0xf]
        %v4259 = vld [vmem:[%s4252 + $0x18] sm:$0xf]
        %v4260 = vld [vmem:[%s4252 + $0x1c] sm:$0xf]
        %v4261 = vld [vmem:[%s4252 + $0x20] sm:$0xf]
        %v4262 = vld [vmem:[%s4252 + $0x24] sm:$0xf]
        %v4263 = vld [vmem:[%s4252 + $0x28] sm:$0xf]
        %v4264 = vld [vmem:[%s4252 + $0x2c] sm:$0xf]
        %v4265 = vld [vmem:[%s4252 + $0x30] sm:$0xf]
        %v4266 = vld [vmem:[%s4252 + $0x34] sm:$0xf]
        %v4267 = vld [vmem:[%s4252 + $0x38] sm:$0xf]
        %v4268 = vld [vmem:[%s4252 + $0x3c] sm:$0xf]
        %v4285 = vunpack.c.l.b16 %v4253
        %v4286 = vunpack.c.l.b16 %v4254
        %v4287 = vunpack.c.l.b16 %v4255
        %v4288 = vunpack.c.l.b16 %v4256
        %v4289 = vunpack.c.l.b16 %v4257
        %v4290 = vunpack.c.l.b16 %v4258
        %v4291 = vunpack.c.l.b16 %v4259
        %v4292 = vunpack.c.l.b16 %v4260
        %v4293 = vunpack.c.l.b16 %v4261
        %v4294 = vunpack.c.l.b16 %v4262
        %v4295 = vunpack.c.l.b16 %v4263
        %v4296 = vunpack.c.l.b16 %v4264
        %v4297 = vunpack.c.l.b16 %v4265
        %v4298 = vunpack.c.l.b16 %v4266
        %v4299 = vunpack.c.l.b16 %v4267
        %v4300 = vunpack.c.l.b16 %v4268
        %v4301 = vpack.c.b16 %v4286, %v4285
        %v4302 = vpack.c.b16 %v4288, %v4287
        %v4303 = vpack.c.b16 %v4290, %v4289
        %v4304 = vpack.c.b16 %v4292, %v4291
        %v4305 = vpack.c.b16 %v4294, %v4293
        %v4306 = vpack.c.b16 %v4296, %v4295
        %v4307 = vpack.c.b16 %v4298, %v4297
        %v4308 = vpack.c.b16 %v4300, %v4299
        %4317 = vmatprep.subr.bf16.mxu0 0
        %4318 = vmatpush1.bf16.msra.mxu0 %v4308
        %4319 = vmatprep.subr.bf16.mxu0 0
        %4320 = vmatpush1.bf16.msra.mxu0 %v4307
        %4321 = vmatprep.subr.bf16.mxu0 0
        %4322 = vmatpush1.bf16.msra.mxu0 %v4306
        %4323 = vmatprep.subr.bf16.mxu0 0
        %4324 = vmatpush1.bf16.msra.mxu0 %v4305
        %4325 = vmatprep.subr.bf16.mxu0 0
        %4326 = vmatpush1.bf16.msra.mxu0 %v4304
        %4327 = vmatprep.subr.bf16.mxu0 0
        %4328 = vmatpush1.bf16.msra.mxu0 %v4303
        %4329 = vmatprep.subr.bf16.mxu0 0
        %4330 = vmatpush1.bf16.msra.mxu0 %v4302
        %4331 = vmatprep.subr.bf16.mxu0 0
        %4332 = vmatpush1.bf16.msra.mxu0 %v4301
        %4333 = vmatprep.subr.bf16.mxu0 0
        %4334 = vmatpush2.bf16.msra.mxu0 0
        %4335 = vmatprep.subr.bf16.mxu0 0
        %4336 = vmatpush2.bf16.msra.mxu0 0
        %4337 = vmatprep.subr.bf16.mxu0 0
        %4338 = vmatpush2.bf16.msra.mxu0 0
        %4339 = vmatprep.subr.bf16.mxu0 0
        %4340 = vmatpush2.bf16.msra.mxu0 0
        %4341 = vmatprep.subr.bf16.mxu0 0
        %4342 = vmatpush2.bf16.msra.mxu0 0
        %4343 = vmatprep.subr.bf16.mxu0 0
        %4344 = vmatpush2.bf16.msra.mxu0 0
        %4345 = vmatprep.subr.bf16.mxu0 0
        %4346 = vmatpush2.bf16.msra.mxu0 0
        %4347 = vmatprep.subr.bf16.mxu0 0
        %4348 = vmatpush2.bf16.msra.mxu0 0
        %4349 = vmatprep.mubr.bf16.mxu0 0
        %4350 = vmatmul.mubr.bf16.gmra.mxu0 %v4236
        %v4351 = vpop.f32.mrf.mxu0
        %v4352 = vadd.f32 0.0, %v4351
        %v4353 = vpop.f32.mrf.mxu0
        %v4354 = vpop.f32.mrf.mxu0
        %v4355 = vadd.f32 0.0, %v4354
        %v4356 = vpop.f32.mrf.mxu0
        %4357 = vmatprep.mubr.bf16.mxu0 0
        %4358 = vmatmul.mubr.bf16.gmra.mxu0 %v4237
        %v4359 = vpop.f32.mrf.mxu0
        %v4360 = vadd.f32 0.0, %v4359
        %v4361 = vpop.f32.mrf.mxu0
        %v4362 = vpop.f32.mrf.mxu0
        %v4363 = vadd.f32 0.0, %v4362
        %v4364 = vpop.f32.mrf.mxu0
        %4365 = vmatprep.mubr.bf16.mxu0 0
        %4366 = vmatmul.mubr.bf16.gmra.mxu0 %v4238
        %v4367 = vpop.f32.mrf.mxu0
        %v4368 = vadd.f32 0.0, %v4367
        %v4369 = vpop.f32.mrf.mxu0
        %v4370 = vpop.f32.mrf.mxu0
        %v4371 = vadd.f32 0.0, %v4370
        %v4372 = vpop.f32.mrf.mxu0
        %4373 = vmatprep.mubr.bf16.mxu0 0
        %4374 = vmatmul.mubr.bf16.gmra.mxu0 %v4239
        %v4375 = vpop.f32.mrf.mxu0
        %v4376 = vadd.f32 0.0, %v4375
        %v4377 = vpop.f32.mrf.mxu0
        %v4378 = vpop.f32.mrf.mxu0
        %v4379 = vadd.f32 0.0, %v4378
        %v4380 = vpop.f32.mrf.mxu0
        %4381 = vmatprep.mubr.bf16.mxu0 0
        %4382 = vmatmul.mubr.bf16.gmra.mxu0 %v4240
        %v4383 = vpop.f32.mrf.mxu0
        %v4384 = vadd.f32 0.0, %v4383
        %v4385 = vpop.f32.mrf.mxu0
        %v4386 = vpop.f32.mrf.mxu0
        %v4387 = vadd.f32 0.0, %v4386
        %v4388 = vpop.f32.mrf.mxu0
        %4389 = vmatprep.mubr.bf16.mxu0 0
        %4390 = vmatmul.mubr.bf16.gmra.mxu0 %v4241
        %v4391 = vpop.f32.mrf.mxu0
        %v4392 = vadd.f32 0.0, %v4391
        %v4393 = vpop.f32.mrf.mxu0
        %v4394 = vpop.f32.mrf.mxu0
        %v4395 = vadd.f32 0.0, %v4394
        %v4396 = vpop.f32.mrf.mxu0
        %4397 = vmatprep.mubr.bf16.mxu0 0
        %4398 = vmatmul.mubr.bf16.gmra.mxu0 %v4242
        %v4399 = vpop.f32.mrf.mxu0
        %v4400 = vadd.f32 0.0, %v4399
        %v4401 = vpop.f32.mrf.mxu0
        %v4402 = vpop.f32.mrf.mxu0
        %v4403 = vadd.f32 0.0, %v4402
        %v4404 = vpop.f32.mrf.mxu0
        %4405 = vmatprep.mubr.bf16.mxu0 0
        %4406 = vmatmul.mubr.bf16.gmra.mxu0 %v4243
        %v4407 = vpop.f32.mrf.mxu0
        %v4408 = vadd.f32 0.0, %v4407
        %v4409 = vpop.f32.mrf.mxu0
        %v4410 = vpop.f32.mrf.mxu0
        %v4411 = vadd.f32 0.0, %v4410
        %v4412 = vpop.f32.mrf.mxu0
        %4413 = vmatprep.mubr.bf16.mxu0 0
        %4414 = vmatmul.mubr.bf16.gmra.mxu0 %v4244
        %v4415 = vpop.f32.mrf.mxu0
        %v4416 = vadd.f32 0.0, %v4415
        %v4417 = vpop.f32.mrf.mxu0
        %v4418 = vpop.f32.mrf.mxu0
        %v4419 = vadd.f32 0.0, %v4418
        %v4420 = vpop.f32.mrf.mxu0
        %4421 = vmatprep.mubr.bf16.mxu0 0
        %4422 = vmatmul.mubr.bf16.gmra.mxu0 %v4245
        %v4423 = vpop.f32.mrf.mxu0
        %v4424 = vadd.f32 0.0, %v4423
        %v4425 = vpop.f32.mrf.mxu0
        %v4426 = vpop.f32.mrf.mxu0
        %v4427 = vadd.f32 0.0, %v4426
        %v4428 = vpop.f32.mrf.mxu0
        %4429 = vmatprep.mubr.bf16.mxu0 0
        %4430 = vmatmul.mubr.bf16.gmra.mxu0 %v4246
        %v4431 = vpop.f32.mrf.mxu0
        %v4432 = vadd.f32 0.0, %v4431
        %v4433 = vpop.f32.mrf.mxu0
        %v4434 = vpop.f32.mrf.mxu0
        %v4435 = vadd.f32 0.0, %v4434
        %v4436 = vpop.f32.mrf.mxu0
        %4437 = vmatprep.mubr.bf16.mxu0 0
        %4438 = vmatmul.mubr.bf16.gmra.mxu0 %v4247
        %v4439 = vpop.f32.mrf.mxu0
        %v4440 = vadd.f32 0.0, %v4439
        %v4441 = vpop.f32.mrf.mxu0
        %v4442 = vpop.f32.mrf.mxu0
        %v4443 = vadd.f32 0.0, %v4442
        %v4444 = vpop.f32.mrf.mxu0
        %4445 = vmatprep.mubr.bf16.mxu0 0
        %4446 = vmatmul.mubr.bf16.gmra.mxu0 %v4248
        %v4447 = vpop.f32.mrf.mxu0
        %v4448 = vadd.f32 0.0, %v4447
        %v4449 = vpop.f32.mrf.mxu0
        %v4450 = vpop.f32.mrf.mxu0
        %v4451 = vadd.f32 0.0, %v4450
        %v4452 = vpop.f32.mrf.mxu0
        %4453 = vmatprep.mubr.bf16.mxu0 0
        %4454 = vmatmul.mubr.bf16.gmra.mxu0 %v4249
        %v4455 = vpop.f32.mrf.mxu0
        %v4456 = vadd.f32 0.0, %v4455
        %v4457 = vpop.f32.mrf.mxu0
        %v4458 = vpop.f32.mrf.mxu0
        %v4459 = vadd.f32 0.0, %v4458
        %v4460 = vpop.f32.mrf.mxu0
        %4461 = vmatprep.mubr.bf16.mxu0 0
        %4462 = vmatmul.mubr.bf16.gmra.mxu0 %v4250
        %v4463 = vpop.f32.mrf.mxu0
        %v4464 = vadd.f32 0.0, %v4463
        %v4465 = vpop.f32.mrf.mxu0
        %v4466 = vpop.f32.mrf.mxu0
        %v4467 = vadd.f32 0.0, %v4466
        %v4468 = vpop.f32.mrf.mxu0
        %4469 = vmatprep.mubr.bf16.mxu0 0
        %4470 = vmatmul.mubr.bf16.gmra.mxu0 %v4251
        %v4471 = vpop.f32.mrf.mxu0
        %v4472 = vadd.f32 0.0, %v4471
        %v4473 = vpop.f32.mrf.mxu0
        %v4474 = vpop.f32.mrf.mxu0
        %v4475 = vadd.f32 0.0, %v4474
        %v4476 = vpop.f32.mrf.mxu0
        %4477 = vdwg.mxu0
        %v4478 = vadd.f32 %v4140, %v4352
        %v4479 = vadd.f32 %v4141, %v4355
        %v4480 = vadd.f32 %v4142, %v4360
        %v4481 = vadd.f32 %v4143, %v4363
        %v4482 = vadd.f32 %v4144, %v4368
        %v4483 = vadd.f32 %v4145, %v4371
        %v4484 = vadd.f32 %v4146, %v4376
        %v4485 = vadd.f32 %v4147, %v4379
        %v4486 = vadd.f32 %v4148, %v4384
        %v4487 = vadd.f32 %v4149, %v4387
        %v4488 = vadd.f32 %v4150, %v4392
        %v4489 = vadd.f32 %v4151, %v4395
        %v4490 = vadd.f32 %v4152, %v4400
        %v4491 = vadd.f32 %v4153, %v4403
        %v4492 = vadd.f32 %v4154, %v4408
        %v4493 = vadd.f32 %v4155, %v4411
        %v4494 = vadd.f32 %v4156, %v4416
        %v4495 = vadd.f32 %v4157, %v4419
        %v4496 = vadd.f32 %v4158, %v4424
        %v4497 = vadd.f32 %v4159, %v4427
        %v4498 = vadd.f32 %v4160, %v4432
        %v4499 = vadd.f32 %v4161, %v4435
        %v4500 = vadd.f32 %v4162, %v4440
        %v4501 = vadd.f32 %v4163, %v4443
        %v4502 = vadd.f32 %v4164, %v4448
        %v4503 = vadd.f32 %v4165, %v4451
        %v4504 = vadd.f32 %v4166, %v4456
        %v4505 = vadd.f32 %v4167, %v4459
        %v4506 = vadd.f32 %v4168, %v4464
        %v4507 = vadd.f32 %v4169, %v4467
        %v4508 = vadd.f32 %v4170, %v4472
        %v4509 = vadd.f32 %v4171, %v4475
        %v4510 = vld [vmem:[%s5] sm:$0x1]
        %v4512 = vlaneseq
        %v4513 = vshrl.u32 %v4512, 7
        %v4514 = vsub.s32 0, %v4513
        %v4515 = vrot.slane %v4510, %v4514
        %v4517 = vadd.f32 %v4478, %v4515
        %v4518 = vadd.f32 %v4479, %v4515
        %v4519 = vadd.f32 %v4480, %v4515
        %v4520 = vadd.f32 %v4481, %v4515
        %v4521 = vadd.f32 %v4482, %v4515
        %v4522 = vadd.f32 %v4483, %v4515
        %v4523 = vadd.f32 %v4484, %v4515
        %v4524 = vadd.f32 %v4485, %v4515
        %v4525 = vadd.f32 %v4486, %v4515
        %v4526 = vadd.f32 %v4487, %v4515
        %v4527 = vadd.f32 %v4488, %v4515
        %v4528 = vadd.f32 %v4489, %v4515
        %v4529 = vadd.f32 %v4490, %v4515
        %v4530 = vadd.f32 %v4491, %v4515
        %v4531 = vadd.f32 %v4492, %v4515
        %v4532 = vadd.f32 %v4493, %v4515
        %v4533 = vadd.f32 %v4494, %v4515
        %v4534 = vadd.f32 %v4495, %v4515
        %v4535 = vadd.f32 %v4496, %v4515
        %v4536 = vadd.f32 %v4497, %v4515
        %v4537 = vadd.f32 %v4498, %v4515
        %v4538 = vadd.f32 %v4499, %v4515
        %v4539 = vadd.f32 %v4500, %v4515
        %v4540 = vadd.f32 %v4501, %v4515
        %v4541 = vadd.f32 %v4502, %v4515
        %v4542 = vadd.f32 %v4503, %v4515
        %v4543 = vadd.f32 %v4504, %v4515
        %v4544 = vadd.f32 %v4505, %v4515
        %v4545 = vadd.f32 %v4506, %v4515
        %v4546 = vadd.f32 %v4507, %v4515
        %v4547 = vadd.f32 %v4508, %v4515
        %v4548 = vadd.f32 %v4509, %v4515
        %v4549 = vld [vmem:[%s452] sm:$0x1]
        %v4551 = vlaneseq
        %v4552 = vshrl.u32 %v4551, 7
        %v4553 = vsub.s32 0, %v4552
        %v4554 = vrot.slane %v4549, %v4553
        %v4556 = vadd.f32 %v4517, %v4554
        %v4557 = vadd.f32 %v4518, %v4554
        %v4558 = vadd.f32 %v4519, %v4554
        %v4559 = vadd.f32 %v4520, %v4554
        %v4560 = vadd.f32 %v4521, %v4554
        %v4561 = vadd.f32 %v4522, %v4554
        %v4562 = vadd.f32 %v4523, %v4554
        %v4563 = vadd.f32 %v4524, %v4554
        %v4564 = vadd.f32 %v4525, %v4554
        %v4565 = vadd.f32 %v4526, %v4554
        %v4566 = vadd.f32 %v4527, %v4554
        %v4567 = vadd.f32 %v4528, %v4554
        %v4568 = vadd.f32 %v4529, %v4554
        %v4569 = vadd.f32 %v4530, %v4554
        %v4570 = vadd.f32 %v4531, %v4554
        %v4571 = vadd.f32 %v4532, %v4554
        %v4572 = vadd.f32 %v4533, %v4554
        %v4573 = vadd.f32 %v4534, %v4554
        %v4574 = vadd.f32 %v4535, %v4554
        %v4575 = vadd.f32 %v4536, %v4554
        %v4576 = vadd.f32 %v4537, %v4554
        %v4577 = vadd.f32 %v4538, %v4554
        %v4578 = vadd.f32 %v4539, %v4554
        %v4579 = vadd.f32 %v4540, %v4554
        %v4580 = vadd.f32 %v4541, %v4554
        %v4581 = vadd.f32 %v4542, %v4554
        %v4582 = vadd.f32 %v4543, %v4554
        %v4583 = vadd.f32 %v4544, %v4554
        %v4584 = vadd.f32 %v4545, %v4554
        %v4585 = vadd.f32 %v4546, %v4554
        %v4586 = vadd.f32 %v4547, %v4554
        %v4587 = vadd.f32 %v4548, %v4554
        %v4588 = vld [vmem:[%s6] sm:$0x1]
        %v4589 = vld [vmem:[%s7] sm:$0x1]
        %v4590 = vadd.f32 %v4556, %v4557
        %v4591 = vadd.f32 %v4590, %v4558
        %v4592 = vadd.f32 %v4591, %v4559
        %v4593 = vadd.f32 %v4592, %v4560
        %v4594 = vadd.f32 %v4593, %v4561
        %v4595 = vadd.f32 %v4594, %v4562
        %v4596 = vadd.f32 %v4595, %v4563
        %v4597 = vadd.f32 %v4596, %v4564
        %v4598 = vadd.f32 %v4597, %v4565
        %v4599 = vadd.f32 %v4598, %v4566
        %v4600 = vadd.f32 %v4599, %v4567
        %v4601 = vadd.f32 %v4600, %v4568
        %v4602 = vadd.f32 %v4601, %v4569
        %v4603 = vadd.f32 %v4602, %v4570
        %v4604 = vadd.f32 %v4603, %v4571
        %v4605 = vadd.f32 %v4604, %v4572
        %v4606 = vadd.f32 %v4605, %v4573
        %v4607 = vadd.f32 %v4606, %v4574
        %v4608 = vadd.f32 %v4607, %v4575
        %v4609 = vadd.f32 %v4608, %v4576
        %v4610 = vadd.f32 %v4609, %v4577
        %v4611 = vadd.f32 %v4610, %v4578
        %v4612 = vadd.f32 %v4611, %v4579
        %v4613 = vadd.f32 %v4612, %v4580
        %v4614 = vadd.f32 %v4613, %v4581
        %v4615 = vadd.f32 %v4614, %v4582
        %v4616 = vadd.f32 %v4615, %v4583
        %v4617 = vadd.f32 %v4616, %v4584
        %v4618 = vadd.f32 %v4617, %v4585
        %v4619 = vadd.f32 %v4618, %v4586
        %v4620 = vadd.f32 %v4619, %v4587
        %v4621 = vrot.slane %v4620, 4
        %v4622 = vadd.f32 %v4620, %v4621
        %v4623 = vrot.slane %v4622, 2
        %v4624 = vadd.f32 %v4622, %v4623
        %v4625 = vrot.slane %v4624, 1
        %v4626 = vadd.f32 %v4624, %v4625
        %v4627 = vmul.f32 %v4556, %v4556
        %v4628 = vmul.f32 %v4557, %v4557
        %v4629 = vmul.f32 %v4558, %v4558
        %v4630 = vmul.f32 %v4559, %v4559
        %v4631 = vmul.f32 %v4560, %v4560
        %v4632 = vmul.f32 %v4561, %v4561
        %v4633 = vmul.f32 %v4562, %v4562
        %v4634 = vmul.f32 %v4563, %v4563
        %v4635 = vmul.f32 %v4564, %v4564
        %v4636 = vmul.f32 %v4565, %v4565
        %v4637 = vmul.f32 %v4566, %v4566
        %v4638 = vmul.f32 %v4567, %v4567
        %v4639 = vmul.f32 %v4568, %v4568
        %v4640 = vmul.f32 %v4569, %v4569
        %v4641 = vmul.f32 %v4570, %v4570
        %v4642 = vmul.f32 %v4571, %v4571
        %v4643 = vmul.f32 %v4572, %v4572
        %v4644 = vmul.f32 %v4573, %v4573
        %v4645 = vmul.f32 %v4574, %v4574
        %v4646 = vmul.f32 %v4575, %v4575
        %v4647 = vmul.f32 %v4576, %v4576
        %v4648 = vmul.f32 %v4577, %v4577
        %v4649 = vmul.f32 %v4578, %v4578
        %v4650 = vmul.f32 %v4579, %v4579
        %v4651 = vmul.f32 %v4580, %v4580
        %v4652 = vmul.f32 %v4581, %v4581
        %v4653 = vmul.f32 %v4582, %v4582
        %v4654 = vmul.f32 %v4583, %v4583
        %v4655 = vmul.f32 %v4584, %v4584
        %v4656 = vmul.f32 %v4585, %v4585
        %v4657 = vmul.f32 %v4586, %v4586
        %v4658 = vmul.f32 %v4587, %v4587
        %v4659 = vadd.f32 %v4627, %v4628
        %v4660 = vadd.f32 %v4659, %v4629
        %v4661 = vadd.f32 %v4660, %v4630
        %v4662 = vadd.f32 %v4661, %v4631
        %v4663 = vadd.f32 %v4662, %v4632
        %v4664 = vadd.f32 %v4663, %v4633
        %v4665 = vadd.f32 %v4664, %v4634
        %v4666 = vadd.f32 %v4665, %v4635
        %v4667 = vadd.f32 %v4666, %v4636
        %v4668 = vadd.f32 %v4667, %v4637
        %v4669 = vadd.f32 %v4668, %v4638
        %v4670 = vadd.f32 %v4669, %v4639
        %v4671 = vadd.f32 %v4670, %v4640
        %v4672 = vadd.f32 %v4671, %v4641
        %v4673 = vadd.f32 %v4672, %v4642
        %v4674 = vadd.f32 %v4673, %v4643
        %v4675 = vadd.f32 %v4674, %v4644
        %v4676 = vadd.f32 %v4675, %v4645
        %v4677 = vadd.f32 %v4676, %v4646
        %v4678 = vadd.f32 %v4677, %v4647
        %v4679 = vadd.f32 %v4678, %v4648
        %v4680 = vadd.f32 %v4679, %v4649
        %v4681 = vadd.f32 %v4680, %v4650
        %v4682 = vadd.f32 %v4681, %v4651
        %v4683 = vadd.f32 %v4682, %v4652
        %v4684 = vadd.f32 %v4683, %v4653
        %v4685 = vadd.f32 %v4684, %v4654
        %v4686 = vadd.f32 %v4685, %v4655
        %v4687 = vadd.f32 %v4686, %v4656
        %v4688 = vadd.f32 %v4687, %v4657
        %v4689 = vadd.f32 %v4688, %v4658
        %v4690 = vrot.slane %v4689, 4
        %v4691 = vadd.f32 %v4689, %v4690
        %v4692 = vrot.slane %v4691, 2
        %v4693 = vadd.f32 %v4691, %v4692
        %v4694 = vrot.slane %v4693, 1
        %v4695 = vadd.f32 %v4693, %v4694
        %vm4696 = vmand %vm1139, %vm1153
        %v4697 = vsel %vm4696, %v4626, 0.0
        %4698 = vadd.xlane.f32.xlu0 %v4697
        %v4699 = vpop.xlane.xlu0 %4698
        %v4700 = vmul.f32 %v4699, 0.0009765625
        %v4701 = vsel %vm4696, %v4695, 0.0
        %4702 = vadd.xlane.f32.xlu0 %v4701
        %v4703 = vpop.xlane.xlu0 %4702
        %v4704 = vmul.f32 %v4703, 0.0009765625
        %v4705 = vsel %vm4696, %v4700, 0.0
        %v4706 = vsel %vm4696, %v4704, 0.0
        %vm4707 = vcmp.ge.s32.totalorder %v1138, 4
        %vm4708 = vcmp.lt.s32.totalorder %v1138, 8
        %vm4709 = vmand %vm4707, %vm4708
        %v4710 = vsel %vm4709, %v4626, 0.0
        %4711 = vadd.xlane.f32.xlu0 %v4710
        %v4712 = vpop.xlane.xlu0 %4711
        %v4713 = vmul.f32 %v4712, 0.0009765625
        %v4714 = vsel %vm4709, %v4695, 0.0
        %4715 = vadd.xlane.f32.xlu0 %v4714
        %v4716 = vpop.xlane.xlu0 %4715
        %v4717 = vmul.f32 %v4716, 0.0009765625
        %v4718 = vsel %vm4709, %v4713, %v4705
        %v4719 = vsel %vm4709, %v4717, %v4706
        %v4720 = vmul.f32 %v4718, %v4718
        %v4721 = vsub.f32 %v4719, %v4720
        %v4722 = vmax.f32 %v4721, 0.0
        %v4723 = vadd.f32 %v4722, 1e-06
        %v4724 = vrsqrt.pop %v4723
        %v4725 = vsub.f32 %v4556, %v4718
        %v4726 = vsub.f32 %v4557, %v4718
        %v4727 = vsub.f32 %v4558, %v4718
        %v4728 = vsub.f32 %v4559, %v4718
        %v4729 = vsub.f32 %v4560, %v4718
        %v4730 = vsub.f32 %v4561, %v4718
        %v4731 = vsub.f32 %v4562, %v4718
        %v4732 = vsub.f32 %v4563, %v4718
        %v4733 = vsub.f32 %v4564, %v4718
        %v4734 = vsub.f32 %v4565, %v4718
        %v4735 = vsub.f32 %v4566, %v4718
        %v4736 = vsub.f32 %v4567, %v4718
        %v4737 = vsub.f32 %v4568, %v4718
        %v4738 = vsub.f32 %v4569, %v4718
        %v4739 = vsub.f32 %v4570, %v4718
        %v4740 = vsub.f32 %v4571, %v4718
        %v4741 = vsub.f32 %v4572, %v4718
        %v4742 = vsub.f32 %v4573, %v4718
        %v4743 = vsub.f32 %v4574, %v4718
        %v4744 = vsub.f32 %v4575, %v4718
        %v4745 = vsub.f32 %v4576, %v4718
        %v4746 = vsub.f32 %v4577, %v4718
        %v4747 = vsub.f32 %v4578, %v4718
        %v4748 = vsub.f32 %v4579, %v4718
        %v4749 = vsub.f32 %v4580, %v4718
        %v4750 = vsub.f32 %v4581, %v4718
        %v4751 = vsub.f32 %v4582, %v4718
        %v4752 = vsub.f32 %v4583, %v4718
        %v4753 = vsub.f32 %v4584, %v4718
        %v4754 = vsub.f32 %v4585, %v4718
        %v4755 = vsub.f32 %v4586, %v4718
        %v4756 = vsub.f32 %v4587, %v4718
        %v4757 = vmul.f32 %v4724, %v4588
        %v4758 = vlaneseq
        %v4759 = vshrl.u32 %v4758, 7
        %v4760 = vsub.s32 0, %v4759
        %v4761 = vrot.slane %v4757, %v4760
        %v4762 = vmul.f32 %v4725, %v4761
        %v4763 = vmul.f32 %v4726, %v4761
        %v4764 = vmul.f32 %v4727, %v4761
        %v4765 = vmul.f32 %v4728, %v4761
        %v4766 = vmul.f32 %v4729, %v4761
        %v4767 = vmul.f32 %v4730, %v4761
        %v4768 = vmul.f32 %v4731, %v4761
        %v4769 = vmul.f32 %v4732, %v4761
        %v4770 = vmul.f32 %v4733, %v4761
        %v4771 = vmul.f32 %v4734, %v4761
        %v4772 = vmul.f32 %v4735, %v4761
        %v4773 = vmul.f32 %v4736, %v4761
        %v4774 = vmul.f32 %v4737, %v4761
        %v4775 = vmul.f32 %v4738, %v4761
        %v4776 = vmul.f32 %v4739, %v4761
        %v4777 = vmul.f32 %v4740, %v4761
        %v4778 = vmul.f32 %v4741, %v4761
        %v4779 = vmul.f32 %v4742, %v4761
        %v4780 = vmul.f32 %v4743, %v4761
        %v4781 = vmul.f32 %v4744, %v4761
        %v4782 = vmul.f32 %v4745, %v4761
        %v4783 = vmul.f32 %v4746, %v4761
        %v4784 = vmul.f32 %v4747, %v4761
        %v4785 = vmul.f32 %v4748, %v4761
        %v4786 = vmul.f32 %v4749, %v4761
        %v4787 = vmul.f32 %v4750, %v4761
        %v4788 = vmul.f32 %v4751, %v4761
        %v4789 = vmul.f32 %v4752, %v4761
        %v4790 = vmul.f32 %v4753, %v4761
        %v4791 = vmul.f32 %v4754, %v4761
        %v4792 = vmul.f32 %v4755, %v4761
        %v4793 = vmul.f32 %v4756, %v4761
        %v4795 = vlaneseq
        %v4796 = vshrl.u32 %v4795, 7
        %v4797 = vsub.s32 0, %v4796
        %v4798 = vrot.slane %v4589, %v4797
        %v4800 = vadd.f32 %v4762, %v4798
        %v4801 = vadd.f32 %v4763, %v4798
        %v4802 = vadd.f32 %v4764, %v4798
        %v4803 = vadd.f32 %v4765, %v4798
        %v4804 = vadd.f32 %v4766, %v4798
        %v4805 = vadd.f32 %v4767, %v4798
        %v4806 = vadd.f32 %v4768, %v4798
        %v4807 = vadd.f32 %v4769, %v4798
        %v4808 = vadd.f32 %v4770, %v4798
        %v4809 = vadd.f32 %v4771, %v4798
        %v4810 = vadd.f32 %v4772, %v4798
        %v4811 = vadd.f32 %v4773, %v4798
        %v4812 = vadd.f32 %v4774, %v4798
        %v4813 = vadd.f32 %v4775, %v4798
        %v4814 = vadd.f32 %v4776, %v4798
        %v4815 = vadd.f32 %v4777, %v4798
        %v4816 = vadd.f32 %v4778, %v4798
        %v4817 = vadd.f32 %v4779, %v4798
        %v4818 = vadd.f32 %v4780, %v4798
        %v4819 = vadd.f32 %v4781, %v4798
        %v4820 = vadd.f32 %v4782, %v4798
        %v4821 = vadd.f32 %v4783, %v4798
        %v4822 = vadd.f32 %v4784, %v4798
        %v4823 = vadd.f32 %v4785, %v4798
        %v4824 = vadd.f32 %v4786, %v4798
        %v4825 = vadd.f32 %v4787, %v4798
        %v4826 = vadd.f32 %v4788, %v4798
        %v4827 = vadd.f32 %v4789, %v4798
        %v4828 = vadd.f32 %v4790, %v4798
        %v4829 = vadd.f32 %v4791, %v4798
        %v4830 = vadd.f32 %v4792, %v4798
        %v4831 = vadd.f32 %v4793, %v4798
        %v4832 = vsub.f32 0.0, %v4800
        %v4833 = vsub.f32 0.0, %v4801
        %v4834 = vsub.f32 0.0, %v4802
        %v4835 = vsub.f32 0.0, %v4803
        %v4836 = vsub.f32 0.0, %v4804
        %v4837 = vsub.f32 0.0, %v4805
        %v4838 = vsub.f32 0.0, %v4806
        %v4839 = vsub.f32 0.0, %v4807
        %v4840 = vsub.f32 0.0, %v4808
        %v4841 = vsub.f32 0.0, %v4809
        %v4842 = vsub.f32 0.0, %v4810
        %v4843 = vsub.f32 0.0, %v4811
        %v4844 = vsub.f32 0.0, %v4812
        %v4845 = vsub.f32 0.0, %v4813
        %v4846 = vsub.f32 0.0, %v4814
        %v4847 = vsub.f32 0.0, %v4815
        %v4848 = vsub.f32 0.0, %v4816
        %v4849 = vsub.f32 0.0, %v4817
        %v4850 = vsub.f32 0.0, %v4818
        %v4851 = vsub.f32 0.0, %v4819
        %v4852 = vsub.f32 0.0, %v4820
        %v4853 = vsub.f32 0.0, %v4821
        %v4854 = vsub.f32 0.0, %v4822
        %v4855 = vsub.f32 0.0, %v4823
        %v4856 = vsub.f32 0.0, %v4824
        %v4857 = vsub.f32 0.0, %v4825
        %v4858 = vsub.f32 0.0, %v4826
        %v4859 = vsub.f32 0.0, %v4827
        %v4860 = vsub.f32 0.0, %v4828
        %v4861 = vsub.f32 0.0, %v4829
        %v4862 = vsub.f32 0.0, %v4830
        %v4863 = vsub.f32 0.0, %v4831
        %v4864 = vmul.f32 %v4832, 1.442695
        %v4865 = vpow.pop %v4864
        %v4866 = vmul.f32 %v4833, 1.442695
        %v4867 = vpow.pop %v4866
        %v4868 = vmul.f32 %v4834, 1.442695
        %v4869 = vpow.pop %v4868
        %v4870 = vmul.f32 %v4835, 1.442695
        %v4871 = vpow.pop %v4870
        %v4872 = vmul.f32 %v4836, 1.442695
        %v4873 = vpow.pop %v4872
        %v4874 = vmul.f32 %v4837, 1.442695
        %v4875 = vpow.pop %v4874
        %v4876 = vmul.f32 %v4838, 1.442695
        %v4877 = vpow.pop %v4876
        %v4878 = vmul.f32 %v4839, 1.442695
        %v4879 = vpow.pop %v4878
        %v4880 = vmul.f32 %v4840, 1.442695
        %v4881 = vpow.pop %v4880
        %v4882 = vmul.f32 %v4841, 1.442695
        %v4883 = vpow.pop %v4882
        %v4884 = vmul.f32 %v4842, 1.442695
        %v4885 = vpow.pop %v4884
        %v4886 = vmul.f32 %v4843, 1.442695
        %v4887 = vpow.pop %v4886
        %v4888 = vmul.f32 %v4844, 1.442695
        %v4889 = vpow.pop %v4888
        %v4890 = vmul.f32 %v4845, 1.442695
        %v4891 = vpow.pop %v4890
        %v4892 = vmul.f32 %v4846, 1.442695
        %v4893 = vpow.pop %v4892
        %v4894 = vmul.f32 %v4847, 1.442695
        %v4895 = vpow.pop %v4894
        %v4896 = vmul.f32 %v4848, 1.442695
        %v4897 = vpow.pop %v4896
        %v4898 = vmul.f32 %v4849, 1.442695
        %v4899 = vpow.pop %v4898
        %v4900 = vmul.f32 %v4850, 1.442695
        %v4901 = vpow.pop %v4900
        %v4902 = vmul.f32 %v4851, 1.442695
        %v4903 = vpow.pop %v4902
        %v4904 = vmul.f32 %v4852, 1.442695
        %v4905 = vpow.pop %v4904
        %v4906 = vmul.f32 %v4853, 1.442695
        %v4907 = vpow.pop %v4906
        %v4908 = vmul.f32 %v4854, 1.442695
        %v4909 = vpow.pop %v4908
        %v4910 = vmul.f32 %v4855, 1.442695
        %v4911 = vpow.pop %v4910
        %v4912 = vmul.f32 %v4856, 1.442695
        %v4913 = vpow.pop %v4912
        %v4914 = vmul.f32 %v4857, 1.442695
        %v4915 = vpow.pop %v4914
        %v4916 = vmul.f32 %v4858, 1.442695
        %v4917 = vpow.pop %v4916
        %v4918 = vmul.f32 %v4859, 1.442695
        %v4919 = vpow.pop %v4918
        %v4920 = vmul.f32 %v4860, 1.442695
        %v4921 = vpow.pop %v4920
        %v4922 = vmul.f32 %v4861, 1.442695
        %v4923 = vpow.pop %v4922
        %v4924 = vmul.f32 %v4862, 1.442695
        %v4925 = vpow.pop %v4924
        %v4926 = vmul.f32 %v4863, 1.442695
        %v4927 = vpow.pop %v4926
        %v4928 = vadd.f32 %v4865, 1.0
        %v4929 = vadd.f32 %v4867, 1.0
        %v4930 = vadd.f32 %v4869, 1.0
        %v4931 = vadd.f32 %v4871, 1.0
        %v4932 = vadd.f32 %v4873, 1.0
        %v4933 = vadd.f32 %v4875, 1.0
        %v4934 = vadd.f32 %v4877, 1.0
        %v4935 = vadd.f32 %v4879, 1.0
        %v4936 = vadd.f32 %v4881, 1.0
        %v4937 = vadd.f32 %v4883, 1.0
        %v4938 = vadd.f32 %v4885, 1.0
        %v4939 = vadd.f32 %v4887, 1.0
        %v4940 = vadd.f32 %v4889, 1.0
        %v4941 = vadd.f32 %v4891, 1.0
        %v4942 = vadd.f32 %v4893, 1.0
        %v4943 = vadd.f32 %v4895, 1.0
        %v4944 = vadd.f32 %v4897, 1.0
        %v4945 = vadd.f32 %v4899, 1.0
        %v4946 = vadd.f32 %v4901, 1.0
        %v4947 = vadd.f32 %v4903, 1.0
        %v4948 = vadd.f32 %v4905, 1.0
        %v4949 = vadd.f32 %v4907, 1.0
        %v4950 = vadd.f32 %v4909, 1.0
        %v4951 = vadd.f32 %v4911, 1.0
        %v4952 = vadd.f32 %v4913, 1.0
        %v4953 = vadd.f32 %v4915, 1.0
        %v4954 = vadd.f32 %v4917, 1.0
        %v4955 = vadd.f32 %v4919, 1.0
        %v4956 = vadd.f32 %v4921, 1.0
        %v4957 = vadd.f32 %v4923, 1.0
        %v4958 = vadd.f32 %v4925, 1.0
        %v4959 = vadd.f32 %v4927, 1.0
        %v4960 = vrcp.pop %v4928
        %v4961 = vrcp.pop %v4929
        %v4962 = vrcp.pop %v4930
        %v4963 = vrcp.pop %v4931
        %v4964 = vrcp.pop %v4932
        %v4965 = vrcp.pop %v4933
        %v4966 = vrcp.pop %v4934
        %v4967 = vrcp.pop %v4935
        %v4968 = vrcp.pop %v4936
        %v4969 = vrcp.pop %v4937
        %v4970 = vrcp.pop %v4938
        %v4971 = vrcp.pop %v4939
        %v4972 = vrcp.pop %v4940
        %v4973 = vrcp.pop %v4941
        %v4974 = vrcp.pop %v4942
        %v4975 = vrcp.pop %v4943
        %v4976 = vrcp.pop %v4944
        %v4977 = vrcp.pop %v4945
        %v4978 = vrcp.pop %v4946
        %v4979 = vrcp.pop %v4947
        %v4980 = vrcp.pop %v4948
        %v4981 = vrcp.pop %v4949
        %v4982 = vrcp.pop %v4950
        %v4983 = vrcp.pop %v4951
        %v4984 = vrcp.pop %v4952
        %v4985 = vrcp.pop %v4953
        %v4986 = vrcp.pop %v4954
        %v4987 = vrcp.pop %v4955
        %v4988 = vrcp.pop %v4956
        %v4989 = vrcp.pop %v4957
        %v4990 = vrcp.pop %v4958
        %v4991 = vrcp.pop %v4959
        %v4992 = vmul.f32 %v4800, %v4960
        %v4993 = vmul.f32 %v4801, %v4961
        %v4994 = vmul.f32 %v4802, %v4962
        %v4995 = vmul.f32 %v4803, %v4963
        %v4996 = vmul.f32 %v4804, %v4964
        %v4997 = vmul.f32 %v4805, %v4965
        %v4998 = vmul.f32 %v4806, %v4966
        %v4999 = vmul.f32 %v4807, %v4967
        %v5000 = vmul.f32 %v4808, %v4968
        %v5001 = vmul.f32 %v4809, %v4969
        %v5002 = vmul.f32 %v4810, %v4970
        %v5003 = vmul.f32 %v4811, %v4971
        %v5004 = vmul.f32 %v4812, %v4972
        %v5005 = vmul.f32 %v4813, %v4973
        %v5006 = vmul.f32 %v4814, %v4974
        %v5007 = vmul.f32 %v4815, %v4975
        %v5008 = vmul.f32 %v4816, %v4976
        %v5009 = vmul.f32 %v4817, %v4977
        %v5010 = vmul.f32 %v4818, %v4978
        %v5011 = vmul.f32 %v4819, %v4979
        %v5012 = vmul.f32 %v4820, %v4980
        %v5013 = vmul.f32 %v4821, %v4981
        %v5014 = vmul.f32 %v4822, %v4982
        %v5015 = vmul.f32 %v4823, %v4983
        %v5016 = vmul.f32 %v4824, %v4984
        %v5017 = vmul.f32 %v4825, %v4985
        %v5018 = vmul.f32 %v4826, %v4986
        %v5019 = vmul.f32 %v4827, %v4987
        %v5020 = vmul.f32 %v4828, %v4988
        %v5021 = vmul.f32 %v4829, %v4989
        %v5022 = vmul.f32 %v4830, %v4990
        %v5023 = vmul.f32 %v4831, %v4991
        %5024 = vst [vmem:[#allocation2 + $0x18] sm:$0xff] %v4992
        %5025 = vst [vmem:[#allocation2 + $0x20] sm:$0xff] %v4993
        %5026 = vst [vmem:[#allocation2 + $0x28] sm:$0xff] %v4994
        %5027 = vst [vmem:[#allocation2 + $0x30] sm:$0xff] %v4995
        %5028 = vst [vmem:[#allocation2 + $0x38] sm:$0xff] %v4996
        %5029 = vst [vmem:[#allocation2 + $0x40] sm:$0xff] %v4997
        %5030 = vst [vmem:[#allocation2 + $0x48] sm:$0xff] %v4998
        %5031 = vst [vmem:[#allocation2 + $0x50] sm:$0xff] %v4999
        %5032 = vst [vmem:[#allocation2 + $0x58] sm:$0xff] %v5000
        %5033 = vst [vmem:[#allocation2 + $0x60] sm:$0xff] %v5001
        %5034 = vst [vmem:[#allocation2 + $0x68] sm:$0xff] %v5002
        %5035 = vst [vmem:[#allocation2 + $0x70] sm:$0xff] %v5003
        %5036 = vst [vmem:[#allocation2 + $0x78] sm:$0xff] %v5004
        %5037 = vst [vmem:[#allocation2 + $0x80] sm:$0xff] %v5005
        %5038 = vst [vmem:[#allocation2 + $0x88] sm:$0xff] %v5006
        %5039 = vst [vmem:[#allocation2 + $0x90] sm:$0xff] %v5007
        %5040 = vst [vmem:[#allocation2 + $0x98] sm:$0xff] %v5008
        %5041 = vst [vmem:[#allocation2 + $0xa0] sm:$0xff] %v5009
        %5042 = vst [vmem:[#allocation2 + $0xa8] sm:$0xff] %v5010
        %5043 = vst [vmem:[#allocation2 + $0xb0] sm:$0xff] %v5011
        %5044 = vst [vmem:[#allocation2 + $0xb8] sm:$0xff] %v5012
        %5045 = vst [vmem:[#allocation2 + $0xc0] sm:$0xff] %v5013
        %5046 = vst [vmem:[#allocation2 + $0xc8] sm:$0xff] %v5014
        %5047 = vst [vmem:[#allocation2 + $0xd0] sm:$0xff] %v5015
        %5048 = vst [vmem:[#allocation2 + $0xd8] sm:$0xff] %v5016
        %5049 = vst [vmem:[#allocation2 + $0xe0] sm:$0xff] %v5017
        %5050 = vst [vmem:[#allocation2 + $0xe8] sm:$0xff] %v5018
        %5051 = vst [vmem:[#allocation2 + $0xf0] sm:$0xff] %v5019
        %5052 = vst [vmem:[#allocation2 + $0xf8] sm:$0xff] %v5020
        %5053 = vst [vmem:[#allocation2 + $0x100] sm:$0xff] %v5021
        %5054 = vst [vmem:[#allocation2 + $0x108] sm:$0xff] %v5022
        %5055 = vst [vmem:[#allocation2 + $0x110] sm:$0xff] %v5023
        %v5056 = vld [vmem:[#allocation2 + $0x7] sm:$0xff]
        %v5057 = vld [vmem:[#allocation2 + $0xf] sm:$0xff]
        %v5058 = vld [vmem:[#allocation2 + $0x17] sm:$0xff]
        %v5059 = vld [vmem:[#allocation2 + $0x1f] sm:$0xff]
        %v5060 = vld [vmem:[#allocation2 + $0x27] sm:$0xff]
        %v5061 = vld [vmem:[#allocation2 + $0x2f] sm:$0xff]
        %v5062 = vld [vmem:[#allocation2 + $0x37] sm:$0xff]
        %v5063 = vld [vmem:[#allocation2 + $0x3f] sm:$0xff]
        %v5064 = vld [vmem:[#allocation2 + $0x47] sm:$0xff]
        %v5065 = vld [vmem:[#allocation2 + $0x4f] sm:$0xff]
        %v5066 = vld [vmem:[#allocation2 + $0x57] sm:$0xff]
        %v5067 = vld [vmem:[#allocation2 + $0x5f] sm:$0xff]
        %v5068 = vld [vmem:[#allocation2 + $0x67] sm:$0xff]
        %v5069 = vld [vmem:[#allocation2 + $0x6f] sm:$0xff]
        %v5070 = vld [vmem:[#allocation2 + $0x77] sm:$0xff]
        %v5071 = vld [vmem:[#allocation2 + $0x7f] sm:$0xff]
        %v5072 = vld [vmem:[#allocation2 + $0x87] sm:$0xff]
        %v5073 = vld [vmem:[#allocation2 + $0x8f] sm:$0xff]
        %v5074 = vld [vmem:[#allocation2 + $0x97] sm:$0xff]
        %v5075 = vld [vmem:[#allocation2 + $0x9f] sm:$0xff]
        %v5076 = vld [vmem:[#allocation2 + $0xa7] sm:$0xff]
        %v5077 = vld [vmem:[#allocation2 + $0xaf] sm:$0xff]
        %v5078 = vld [vmem:[#allocation2 + $0xb7] sm:$0xff]
        %v5079 = vld [vmem:[#allocation2 + $0xbf] sm:$0xff]
        %v5080 = vld [vmem:[#allocation2 + $0xc7] sm:$0xff]
        %v5081 = vld [vmem:[#allocation2 + $0xcf] sm:$0xff]
        %v5082 = vld [vmem:[#allocation2 + $0xd7] sm:$0xff]
        %v5083 = vld [vmem:[#allocation2 + $0xdf] sm:$0xff]
        %v5084 = vld [vmem:[#allocation2 + $0xe7] sm:$0xff]
        %v5085 = vld [vmem:[#allocation2 + $0xef] sm:$0xff]
        %v5086 = vld [vmem:[#allocation2 + $0xf7] sm:$0xff]
        %v5087 = vld [vmem:[#allocation2 + $0xff] sm:$0xff]
        %v5088 = vsel %vm1565, %v5056, 0.0
        %v5089 = vsel %vm1566, %v5057, 0.0
        %v5090 = vsel %vm1567, %v5058, 0.0
        %v5091 = vsel %vm1568, %v5059, 0.0
        %v5092 = vsel %vm1569, %v5060, 0.0
        %v5093 = vsel %vm1570, %v5061, 0.0
        %v5094 = vsel %vm1571, %v5062, 0.0
        %v5095 = vsel %vm1572, %v5063, 0.0
        %v5096 = vsel %vm1573, %v5064, 0.0
        %v5097 = vsel %vm1574, %v5065, 0.0
        %v5098 = vsel %vm1575, %v5066, 0.0
        %v5099 = vsel %vm1576, %v5067, 0.0
        %v5100 = vsel %vm1577, %v5068, 0.0
        %v5101 = vsel %vm1578, %v5069, 0.0
        %v5102 = vsel %vm1579, %v5070, 0.0
        %v5103 = vsel %vm1580, %v5071, 0.0
        %v5104 = vsel %vm1581, %v5072, 0.0
        %v5105 = vsel %vm1582, %v5073, 0.0
        %v5106 = vsel %vm1583, %v5074, 0.0
        %v5107 = vsel %vm1584, %v5075, 0.0
        %v5108 = vsel %vm1585, %v5076, 0.0
        %v5109 = vsel %vm1586, %v5077, 0.0
        %v5110 = vsel %vm1587, %v5078, 0.0
        %v5111 = vsel %vm1588, %v5079, 0.0
        %v5112 = vsel %vm1589, %v5080, 0.0
        %v5113 = vsel %vm1590, %v5081, 0.0
        %v5114 = vsel %vm1591, %v5082, 0.0
        %v5115 = vsel %vm1592, %v5083, 0.0
        %v5116 = vsel %vm1593, %v5084, 0.0
        %v5117 = vsel %vm1594, %v5085, 0.0
        %v5118 = vsel %vm1595, %v5086, 0.0
        %v5119 = vsel %vm1596, %v5087, 0.0
        %v5120 = vpack.c.bf16 %v5089, %v5088
        %v5121 = vpack.c.bf16 %v5091, %v5090
        %v5122 = vpack.c.bf16 %v5093, %v5092
        %v5123 = vpack.c.bf16 %v5095, %v5094
        %v5124 = vpack.c.bf16 %v5097, %v5096
        %v5125 = vpack.c.bf16 %v5099, %v5098
        %v5126 = vpack.c.bf16 %v5101, %v5100
        %v5127 = vpack.c.bf16 %v5103, %v5102
        %v5128 = vpack.c.bf16 %v5105, %v5104
        %v5129 = vpack.c.bf16 %v5107, %v5106
        %v5130 = vpack.c.bf16 %v5109, %v5108
        %v5131 = vpack.c.bf16 %v5111, %v5110
        %v5132 = vpack.c.bf16 %v5113, %v5112
        %v5133 = vpack.c.bf16 %v5115, %v5114
        %v5134 = vpack.c.bf16 %v5117, %v5116
        %v5135 = vpack.c.bf16 %v5119, %v5118
        %v5136 = vld [vmem:[#allocation9] sm:$0xf]
        %v5137 = vld [vmem:[#allocation9 + $0x4] sm:$0xf]
        %v5138 = vld [vmem:[#allocation9 + $0x8] sm:$0xf]
        %v5139 = vld [vmem:[#allocation9 + $0xc] sm:$0xf]
        %v5140 = vld [vmem:[#allocation9 + $0x10] sm:$0xf]
        %v5141 = vld [vmem:[#allocation9 + $0x14] sm:$0xf]
        %v5142 = vld [vmem:[#allocation9 + $0x18] sm:$0xf]
        %v5143 = vld [vmem:[#allocation9 + $0x1c] sm:$0xf]
        %v5144 = vld [vmem:[#allocation9 + $0x20] sm:$0xf]
        %v5145 = vld [vmem:[#allocation9 + $0x24] sm:$0xf]
        %v5146 = vld [vmem:[#allocation9 + $0x28] sm:$0xf]
        %v5147 = vld [vmem:[#allocation9 + $0x2c] sm:$0xf]
        %v5148 = vld [vmem:[#allocation9 + $0x30] sm:$0xf]
        %v5149 = vld [vmem:[#allocation9 + $0x34] sm:$0xf]
        %v5150 = vld [vmem:[#allocation9 + $0x38] sm:$0xf]
        %v5151 = vld [vmem:[#allocation9 + $0x3c] sm:$0xf]
        %v5152 = vld [vmem:[#allocation2 + $0x8] sm:$0xff]
        %v5153 = vld [vmem:[#allocation2 + $0x10] sm:$0xff]
        %v5154 = vld [vmem:[#allocation2 + $0x18] sm:$0xff]
        %v5155 = vld [vmem:[#allocation2 + $0x20] sm:$0xff]
        %v5156 = vld [vmem:[#allocation2 + $0x28] sm:$0xff]
        %v5157 = vld [vmem:[#allocation2 + $0x30] sm:$0xff]
        %v5158 = vld [vmem:[#allocation2 + $0x38] sm:$0xff]
        %v5159 = vld [vmem:[#allocation2 + $0x40] sm:$0xff]
        %v5160 = vld [vmem:[#allocation2 + $0x48] sm:$0xff]
        %v5161 = vld [vmem:[#allocation2 + $0x50] sm:$0xff]
        %v5162 = vld [vmem:[#allocation2 + $0x58] sm:$0xff]
        %v5163 = vld [vmem:[#allocation2 + $0x60] sm:$0xff]
        %v5164 = vld [vmem:[#allocation2 + $0x68] sm:$0xff]
        %v5165 = vld [vmem:[#allocation2 + $0x70] sm:$0xff]
        %v5166 = vld [vmem:[#allocation2 + $0x78] sm:$0xff]
        %v5167 = vld [vmem:[#allocation2 + $0x80] sm:$0xff]
        %v5168 = vld [vmem:[#allocation2 + $0x88] sm:$0xff]
        %v5169 = vld [vmem:[#allocation2 + $0x90] sm:$0xff]
        %v5170 = vld [vmem:[#allocation2 + $0x98] sm:$0xff]
        %v5171 = vld [vmem:[#allocation2 + $0xa0] sm:$0xff]
        %v5172 = vld [vmem:[#allocation2 + $0xa8] sm:$0xff]
        %v5173 = vld [vmem:[#allocation2 + $0xb0] sm:$0xff]
        %v5174 = vld [vmem:[#allocation2 + $0xb8] sm:$0xff]
        %v5175 = vld [vmem:[#allocation2 + $0xc0] sm:$0xff]
        %v5176 = vld [vmem:[#allocation2 + $0xc8] sm:$0xff]
        %v5177 = vld [vmem:[#allocation2 + $0xd0] sm:$0xff]
        %v5178 = vld [vmem:[#allocation2 + $0xd8] sm:$0xff]
        %v5179 = vld [vmem:[#allocation2 + $0xe0] sm:$0xff]
        %v5180 = vld [vmem:[#allocation2 + $0xe8] sm:$0xff]
        %v5181 = vld [vmem:[#allocation2 + $0xf0] sm:$0xff]
        %v5182 = vld [vmem:[#allocation2 + $0xf8] sm:$0xff]
        %v5183 = vld [vmem:[#allocation2 + $0x100] sm:$0xff]
        %v5184 = vpack.c.bf16 %v5153, %v5152
        %v5185 = vpack.c.bf16 %v5155, %v5154
        %v5186 = vpack.c.bf16 %v5157, %v5156
        %v5187 = vpack.c.bf16 %v5159, %v5158
        %v5188 = vpack.c.bf16 %v5161, %v5160
        %v5189 = vpack.c.bf16 %v5163, %v5162
        %v5190 = vpack.c.bf16 %v5165, %v5164
        %v5191 = vpack.c.bf16 %v5167, %v5166
        %v5192 = vpack.c.bf16 %v5169, %v5168
        %v5193 = vpack.c.bf16 %v5171, %v5170
        %v5194 = vpack.c.bf16 %v5173, %v5172
        %v5195 = vpack.c.bf16 %v5175, %v5174
        %v5196 = vpack.c.bf16 %v5177, %v5176
        %v5197 = vpack.c.bf16 %v5179, %v5178
        %v5198 = vpack.c.bf16 %v5181, %v5180
        %v5199 = vpack.c.bf16 %v5183, %v5182
        %s5200 = scalar_lea.vmem [#allocation9], 64
        %v5201 = vld [vmem:[%s5200] sm:$0xf]
        %v5202 = vld [vmem:[%s5200 + $0x4] sm:$0xf]
        %v5203 = vld [vmem:[%s5200 + $0x8] sm:$0xf]
        %v5204 = vld [vmem:[%s5200 + $0xc] sm:$0xf]
        %v5205 = vld [vmem:[%s5200 + $0x10] sm:$0xf]
        %v5206 = vld [vmem:[%s5200 + $0x14] sm:$0xf]
        %v5207 = vld [vmem:[%s5200 + $0x18] sm:$0xf]
        %v5208 = vld [vmem:[%s5200 + $0x1c] sm:$0xf]
        %v5209 = vld [vmem:[%s5200 + $0x20] sm:$0xf]
        %v5210 = vld [vmem:[%s5200 + $0x24] sm:$0xf]
        %v5211 = vld [vmem:[%s5200 + $0x28] sm:$0xf]
        %v5212 = vld [vmem:[%s5200 + $0x2c] sm:$0xf]
        %v5213 = vld [vmem:[%s5200 + $0x30] sm:$0xf]
        %v5214 = vld [vmem:[%s5200 + $0x34] sm:$0xf]
        %v5215 = vld [vmem:[%s5200 + $0x38] sm:$0xf]
        %v5216 = vld [vmem:[%s5200 + $0x3c] sm:$0xf]
        %v5233 = vunpack.c.l.b16 %v5201
        %v5234 = vunpack.c.l.b16 %v5202
        %v5235 = vunpack.c.l.b16 %v5203
        %v5236 = vunpack.c.l.b16 %v5204
        %v5237 = vunpack.c.l.b16 %v5205
        %v5238 = vunpack.c.l.b16 %v5206
        %v5239 = vunpack.c.l.b16 %v5207
        %v5240 = vunpack.c.l.b16 %v5208
        %v5241 = vunpack.c.l.b16 %v5209
        %v5242 = vunpack.c.l.b16 %v5210
        %v5243 = vunpack.c.l.b16 %v5211
        %v5244 = vunpack.c.l.b16 %v5212
        %v5245 = vunpack.c.l.b16 %v5213
        %v5246 = vunpack.c.l.b16 %v5214
        %v5247 = vunpack.c.l.b16 %v5215
        %v5248 = vunpack.c.l.b16 %v5216
        %v5249 = vpack.c.b16 %v5234, %v5233
        %v5250 = vpack.c.b16 %v5236, %v5235
        %v5251 = vpack.c.b16 %v5238, %v5237
        %v5252 = vpack.c.b16 %v5240, %v5239
        %v5253 = vpack.c.b16 %v5242, %v5241
        %v5254 = vpack.c.b16 %v5244, %v5243
        %v5255 = vpack.c.b16 %v5246, %v5245
        %v5256 = vpack.c.b16 %v5248, %v5247
        %5265 = vmatprep.subr.bf16.mxu0 0
        %5266 = vmatpush1.bf16.msra.mxu0 %v5256
        %5267 = vmatprep.subr.bf16.mxu0 0
        %5268 = vmatpush1.bf16.msra.mxu0 %v5255
        %5269 = vmatprep.subr.bf16.mxu0 0
        %5270 = vmatpush1.bf16.msra.mxu0 %v5254
        %5271 = vmatprep.subr.bf16.mxu0 0
        %5272 = vmatpush1.bf16.msra.mxu0 %v5253
        %5273 = vmatprep.subr.bf16.mxu0 0
        %5274 = vmatpush1.bf16.msra.mxu0 %v5252
        %5275 = vmatprep.subr.bf16.mxu0 0
        %5276 = vmatpush1.bf16.msra.mxu0 %v5251
        %5277 = vmatprep.subr.bf16.mxu0 0
        %5278 = vmatpush1.bf16.msra.mxu0 %v5250
        %5279 = vmatprep.subr.bf16.mxu0 0
        %5280 = vmatpush1.bf16.msra.mxu0 %v5249
        %5281 = vmatprep.subr.bf16.mxu0 0
        %5282 = vmatpush2.bf16.msra.mxu0 0
        %5283 = vmatprep.subr.bf16.mxu0 0
        %5284 = vmatpush2.bf16.msra.mxu0 0
        %5285 = vmatprep.subr.bf16.mxu0 0
        %5286 = vmatpush2.bf16.msra.mxu0 0
        %5287 = vmatprep.subr.bf16.mxu0 0
        %5288 = vmatpush2.bf16.msra.mxu0 0
        %5289 = vmatprep.subr.bf16.mxu0 0
        %5290 = vmatpush2.bf16.msra.mxu0 0
        %5291 = vmatprep.subr.bf16.mxu0 0
        %5292 = vmatpush2.bf16.msra.mxu0 0
        %5293 = vmatprep.subr.bf16.mxu0 0
        %5294 = vmatpush2.bf16.msra.mxu0 0
        %5295 = vmatprep.subr.bf16.mxu0 0
        %5296 = vmatpush2.bf16.msra.mxu0 0
        %5297 = vmatprep.mubr.bf16.mxu0 0
        %5298 = vmatmul.mubr.bf16.gmra.mxu0 %v5184
        %v5299 = vpop.f32.mrf.mxu0
        %v5300 = vadd.f32 0.0, %v5299
        %v5301 = vpop.f32.mrf.mxu0
        %v5302 = vpop.f32.mrf.mxu0
        %v5303 = vadd.f32 0.0, %v5302
        %v5304 = vpop.f32.mrf.mxu0
        %5305 = vmatprep.mubr.bf16.mxu0 0
        %5306 = vmatmul.mubr.bf16.gmra.mxu0 %v5185
        %v5307 = vpop.f32.mrf.mxu0
        %v5308 = vadd.f32 0.0, %v5307
        %v5309 = vpop.f32.mrf.mxu0
        %v5310 = vpop.f32.mrf.mxu0
        %v5311 = vadd.f32 0.0, %v5310
        %v5312 = vpop.f32.mrf.mxu0
        %5313 = vmatprep.mubr.bf16.mxu0 0
        %5314 = vmatmul.mubr.bf16.gmra.mxu0 %v5186
        %v5315 = vpop.f32.mrf.mxu0
        %v5316 = vadd.f32 0.0, %v5315
        %v5317 = vpop.f32.mrf.mxu0
        %v5318 = vpop.f32.mrf.mxu0
        %v5319 = vadd.f32 0.0, %v5318
        %v5320 = vpop.f32.mrf.mxu0
        %5321 = vmatprep.mubr.bf16.mxu0 0
        %5322 = vmatmul.mubr.bf16.gmra.mxu0 %v5187
        %v5323 = vpop.f32.mrf.mxu0
        %v5324 = vadd.f32 0.0, %v5323
        %v5325 = vpop.f32.mrf.mxu0
        %v5326 = vpop.f32.mrf.mxu0
        %v5327 = vadd.f32 0.0, %v5326
        %v5328 = vpop.f32.mrf.mxu0
        %5329 = vmatprep.mubr.bf16.mxu0 0
        %5330 = vmatmul.mubr.bf16.gmra.mxu0 %v5188
        %v5331 = vpop.f32.mrf.mxu0
        %v5332 = vadd.f32 0.0, %v5331
        %v5333 = vpop.f32.mrf.mxu0
        %v5334 = vpop.f32.mrf.mxu0
        %v5335 = vadd.f32 0.0, %v5334
        %v5336 = vpop.f32.mrf.mxu0
        %5337 = vmatprep.mubr.bf16.mxu0 0
        %5338 = vmatmul.mubr.bf16.gmra.mxu0 %v5189
        %v5339 = vpop.f32.mrf.mxu0
        %v5340 = vadd.f32 0.0, %v5339
        %v5341 = vpop.f32.mrf.mxu0
        %v5342 = vpop.f32.mrf.mxu0
        %v5343 = vadd.f32 0.0, %v5342
        %v5344 = vpop.f32.mrf.mxu0
        %5345 = vmatprep.mubr.bf16.mxu0 0
        %5346 = vmatmul.mubr.bf16.gmra.mxu0 %v5190
        %v5347 = vpop.f32.mrf.mxu0
        %v5348 = vadd.f32 0.0, %v5347
        %v5349 = vpop.f32.mrf.mxu0
        %v5350 = vpop.f32.mrf.mxu0
        %v5351 = vadd.f32 0.0, %v5350
        %v5352 = vpop.f32.mrf.mxu0
        %5353 = vmatprep.mubr.bf16.mxu0 0
        %5354 = vmatmul.mubr.bf16.gmra.mxu0 %v5191
        %v5355 = vpop.f32.mrf.mxu0
        %v5356 = vadd.f32 0.0, %v5355
        %v5357 = vpop.f32.mrf.mxu0
        %v5358 = vpop.f32.mrf.mxu0
        %v5359 = vadd.f32 0.0, %v5358
        %v5360 = vpop.f32.mrf.mxu0
        %5361 = vmatprep.mubr.bf16.mxu0 0
        %5362 = vmatmul.mubr.bf16.gmra.mxu0 %v5192
        %v5363 = vpop.f32.mrf.mxu0
        %v5364 = vadd.f32 0.0, %v5363
        %v5365 = vpop.f32.mrf.mxu0
        %v5366 = vpop.f32.mrf.mxu0
        %v5367 = vadd.f32 0.0, %v5366
        %v5368 = vpop.f32.mrf.mxu0
        %5369 = vmatprep.mubr.bf16.mxu0 0
        %5370 = vmatmul.mubr.bf16.gmra.mxu0 %v5193
        %v5371 = vpop.f32.mrf.mxu0
        %v5372 = vadd.f32 0.0, %v5371
        %v5373 = vpop.f32.mrf.mxu0
        %v5374 = vpop.f32.mrf.mxu0
        %v5375 = vadd.f32 0.0, %v5374
        %v5376 = vpop.f32.mrf.mxu0
        %5377 = vmatprep.mubr.bf16.mxu0 0
        %5378 = vmatmul.mubr.bf16.gmra.mxu0 %v5194
        %v5379 = vpop.f32.mrf.mxu0
        %v5380 = vadd.f32 0.0, %v5379
        %v5381 = vpop.f32.mrf.mxu0
        %v5382 = vpop.f32.mrf.mxu0
        %v5383 = vadd.f32 0.0, %v5382
        %v5384 = vpop.f32.mrf.mxu0
        %5385 = vmatprep.mubr.bf16.mxu0 0
        %5386 = vmatmul.mubr.bf16.gmra.mxu0 %v5195
        %v5387 = vpop.f32.mrf.mxu0
        %v5388 = vadd.f32 0.0, %v5387
        %v5389 = vpop.f32.mrf.mxu0
        %v5390 = vpop.f32.mrf.mxu0
        %v5391 = vadd.f32 0.0, %v5390
        %v5392 = vpop.f32.mrf.mxu0
        %5393 = vmatprep.mubr.bf16.mxu0 0
        %5394 = vmatmul.mubr.bf16.gmra.mxu0 %v5196
        %v5395 = vpop.f32.mrf.mxu0
        %v5396 = vadd.f32 0.0, %v5395
        %v5397 = vpop.f32.mrf.mxu0
        %v5398 = vpop.f32.mrf.mxu0
        %v5399 = vadd.f32 0.0, %v5398
        %v5400 = vpop.f32.mrf.mxu0
        %5401 = vmatprep.mubr.bf16.mxu0 0
        %5402 = vmatmul.mubr.bf16.gmra.mxu0 %v5197
        %v5403 = vpop.f32.mrf.mxu0
        %v5404 = vadd.f32 0.0, %v5403
        %v5405 = vpop.f32.mrf.mxu0
        %v5406 = vpop.f32.mrf.mxu0
        %v5407 = vadd.f32 0.0, %v5406
        %v5408 = vpop.f32.mrf.mxu0
        %5409 = vmatprep.mubr.bf16.mxu0 0
        %5410 = vmatmul.mubr.bf16.gmra.mxu0 %v5198
        %v5411 = vpop.f32.mrf.mxu0
        %v5412 = vadd.f32 0.0, %v5411
        %v5413 = vpop.f32.mrf.mxu0
        %v5414 = vpop.f32.mrf.mxu0
        %v5415 = vadd.f32 0.0, %v5414
        %v5416 = vpop.f32.mrf.mxu0
        %5417 = vmatprep.mubr.bf16.mxu0 0
        %5418 = vmatmul.mubr.bf16.gmra.mxu0 %v5199
        %v5419 = vpop.f32.mrf.mxu0
        %v5420 = vadd.f32 0.0, %v5419
        %v5421 = vpop.f32.mrf.mxu0
        %v5422 = vpop.f32.mrf.mxu0
        %v5423 = vadd.f32 0.0, %v5422
        %v5424 = vpop.f32.mrf.mxu0
        %5425 = vdwg.mxu0
        %v5442 = vunpack.c.l.b16 %v5136
        %v5443 = vunpack.c.l.b16 %v5137
        %v5444 = vunpack.c.l.b16 %v5138
        %v5445 = vunpack.c.l.b16 %v5139
        %v5446 = vunpack.c.l.b16 %v5140
        %v5447 = vunpack.c.l.b16 %v5141
        %v5448 = vunpack.c.l.b16 %v5142
        %v5449 = vunpack.c.l.b16 %v5143
        %v5450 = vunpack.c.l.b16 %v5144
        %v5451 = vunpack.c.l.b16 %v5145
        %v5452 = vunpack.c.l.b16 %v5146
        %v5453 = vunpack.c.l.b16 %v5147
        %v5454 = vunpack.c.l.b16 %v5148
        %v5455 = vunpack.c.l.b16 %v5149
        %v5456 = vunpack.c.l.b16 %v5150
        %v5457 = vunpack.c.l.b16 %v5151
        %v5458 = vpack.c.b16 %v5443, %v5442
        %v5459 = vpack.c.b16 %v5445, %v5444
        %v5460 = vpack.c.b16 %v5447, %v5446
        %v5461 = vpack.c.b16 %v5449, %v5448
        %v5462 = vpack.c.b16 %v5451, %v5450
        %v5463 = vpack.c.b16 %v5453, %v5452
        %v5464 = vpack.c.b16 %v5455, %v5454
        %v5465 = vpack.c.b16 %v5457, %v5456
        %5474 = vmatprep.subr.bf16.mxu0 0
        %5475 = vmatpush1.bf16.msra.mxu0 %v5465
        %5476 = vmatprep.subr.bf16.mxu0 0
        %5477 = vmatpush1.bf16.msra.mxu0 %v5464
        %5478 = vmatprep.subr.bf16.mxu0 0
        %5479 = vmatpush1.bf16.msra.mxu0 %v5463
        %5480 = vmatprep.subr.bf16.mxu0 0
        %5481 = vmatpush1.bf16.msra.mxu0 %v5462
        %5482 = vmatprep.subr.bf16.mxu0 0
        %5483 = vmatpush1.bf16.msra.mxu0 %v5461
        %5484 = vmatprep.subr.bf16.mxu0 0
        %5485 = vmatpush1.bf16.msra.mxu0 %v5460
        %5486 = vmatprep.subr.bf16.mxu0 0
        %5487 = vmatpush1.bf16.msra.mxu0 %v5459
        %5488 = vmatprep.subr.bf16.mxu0 0
        %5489 = vmatpush1.bf16.msra.mxu0 %v5458
        %5490 = vmatprep.subr.bf16.mxu0 0
        %5491 = vmatpush2.bf16.msra.mxu0 0
        %5492 = vmatprep.subr.bf16.mxu0 0
        %5493 = vmatpush2.bf16.msra.mxu0 0
        %5494 = vmatprep.subr.bf16.mxu0 0
        %5495 = vmatpush2.bf16.msra.mxu0 0
        %5496 = vmatprep.subr.bf16.mxu0 0
        %5497 = vmatpush2.bf16.msra.mxu0 0
        %5498 = vmatprep.subr.bf16.mxu0 0
        %5499 = vmatpush2.bf16.msra.mxu0 0
        %5500 = vmatprep.subr.bf16.mxu0 0
        %5501 = vmatpush2.bf16.msra.mxu0 0
        %5502 = vmatprep.subr.bf16.mxu0 0
        %5503 = vmatpush2.bf16.msra.mxu0 0
        %5504 = vmatprep.subr.bf16.mxu0 0
        %5505 = vmatpush2.bf16.msra.mxu0 0
        %5506 = vmatprep.mubr.bf16.mxu0 0
        %5507 = vmatmul.mubr.bf16.gmra.mxu0 %v5120
        %v5508 = vpop.f32.mrf.mxu0
        %v5509 = vadd.f32 %v5300, %v5508
        %v5510 = vpop.f32.mrf.mxu0
        %v5511 = vpop.f32.mrf.mxu0
        %v5512 = vadd.f32 %v5303, %v5511
        %v5513 = vpop.f32.mrf.mxu0
        %5514 = vmatprep.mubr.bf16.mxu0 0
        %5515 = vmatmul.mubr.bf16.gmra.mxu0 %v5121
        %v5516 = vpop.f32.mrf.mxu0
        %v5517 = vadd.f32 %v5308, %v5516
        %v5518 = vpop.f32.mrf.mxu0
        %v5519 = vpop.f32.mrf.mxu0
        %v5520 = vadd.f32 %v5311, %v5519
        %v5521 = vpop.f32.mrf.mxu0
        %5522 = vmatprep.mubr.bf16.mxu0 0
        %5523 = vmatmul.mubr.bf16.gmra.mxu0 %v5122
        %v5524 = vpop.f32.mrf.mxu0
        %v5525 = vadd.f32 %v5316, %v5524
        %v5526 = vpop.f32.mrf.mxu0
        %v5527 = vpop.f32.mrf.mxu0
        %v5528 = vadd.f32 %v5319, %v5527
        %v5529 = vpop.f32.mrf.mxu0
        %5530 = vmatprep.mubr.bf16.mxu0 0
        %5531 = vmatmul.mubr.bf16.gmra.mxu0 %v5123
        %v5532 = vpop.f32.mrf.mxu0
        %v5533 = vadd.f32 %v5324, %v5532
        %v5534 = vpop.f32.mrf.mxu0
        %v5535 = vpop.f32.mrf.mxu0
        %v5536 = vadd.f32 %v5327, %v5535
        %v5537 = vpop.f32.mrf.mxu0
        %5538 = vmatprep.mubr.bf16.mxu0 0
        %5539 = vmatmul.mubr.bf16.gmra.mxu0 %v5124
        %v5540 = vpop.f32.mrf.mxu0
        %v5541 = vadd.f32 %v5332, %v5540
        %v5542 = vpop.f32.mrf.mxu0
        %v5543 = vpop.f32.mrf.mxu0
        %v5544 = vadd.f32 %v5335, %v5543
        %v5545 = vpop.f32.mrf.mxu0
        %5546 = vmatprep.mubr.bf16.mxu0 0
        %5547 = vmatmul.mubr.bf16.gmra.mxu0 %v5125
        %v5548 = vpop.f32.mrf.mxu0
        %v5549 = vadd.f32 %v5340, %v5548
        %v5550 = vpop.f32.mrf.mxu0
        %v5551 = vpop.f32.mrf.mxu0
        %v5552 = vadd.f32 %v5343, %v5551
        %v5553 = vpop.f32.mrf.mxu0
        %5554 = vmatprep.mubr.bf16.mxu0 0
        %5555 = vmatmul.mubr.bf16.gmra.mxu0 %v5126
        %v5556 = vpop.f32.mrf.mxu0
        %v5557 = vadd.f32 %v5348, %v5556
        %v5558 = vpop.f32.mrf.mxu0
        %v5559 = vpop.f32.mrf.mxu0
        %v5560 = vadd.f32 %v5351, %v5559
        %v5561 = vpop.f32.mrf.mxu0
        %5562 = vmatprep.mubr.bf16.mxu0 0
        %5563 = vmatmul.mubr.bf16.gmra.mxu0 %v5127
        %v5564 = vpop.f32.mrf.mxu0
        %v5565 = vadd.f32 %v5356, %v5564
        %v5566 = vpop.f32.mrf.mxu0
        %v5567 = vpop.f32.mrf.mxu0
        %v5568 = vadd.f32 %v5359, %v5567
        %v5569 = vpop.f32.mrf.mxu0
        %5570 = vmatprep.mubr.bf16.mxu0 0
        %5571 = vmatmul.mubr.bf16.gmra.mxu0 %v5128
        %v5572 = vpop.f32.mrf.mxu0
        %v5573 = vadd.f32 %v5364, %v5572
        %v5574 = vpop.f32.mrf.mxu0
        %v5575 = vpop.f32.mrf.mxu0
        %v5576 = vadd.f32 %v5367, %v5575
        %v5577 = vpop.f32.mrf.mxu0
        %5578 = vmatprep.mubr.bf16.mxu0 0
        %5579 = vmatmul.mubr.bf16.gmra.mxu0 %v5129
        %v5580 = vpop.f32.mrf.mxu0
        %v5581 = vadd.f32 %v5372, %v5580
        %v5582 = vpop.f32.mrf.mxu0
        %v5583 = vpop.f32.mrf.mxu0
        %v5584 = vadd.f32 %v5375, %v5583
        %v5585 = vpop.f32.mrf.mxu0
        %5586 = vmatprep.mubr.bf16.mxu0 0
        %5587 = vmatmul.mubr.bf16.gmra.mxu0 %v5130
        %v5588 = vpop.f32.mrf.mxu0
        %v5589 = vadd.f32 %v5380, %v5588
        %v5590 = vpop.f32.mrf.mxu0
        %v5591 = vpop.f32.mrf.mxu0
        %v5592 = vadd.f32 %v5383, %v5591
        %v5593 = vpop.f32.mrf.mxu0
        %5594 = vmatprep.mubr.bf16.mxu0 0
        %5595 = vmatmul.mubr.bf16.gmra.mxu0 %v5131
        %v5596 = vpop.f32.mrf.mxu0
        %v5597 = vadd.f32 %v5388, %v5596
        %v5598 = vpop.f32.mrf.mxu0
        %v5599 = vpop.f32.mrf.mxu0
        %v5600 = vadd.f32 %v5391, %v5599
        %v5601 = vpop.f32.mrf.mxu0
        %5602 = vmatprep.mubr.bf16.mxu0 0
        %5603 = vmatmul.mubr.bf16.gmra.mxu0 %v5132
        %v5604 = vpop.f32.mrf.mxu0
        %v5605 = vadd.f32 %v5396, %v5604
        %v5606 = vpop.f32.mrf.mxu0
        %v5607 = vpop.f32.mrf.mxu0
        %v5608 = vadd.f32 %v5399, %v5607
        %v5609 = vpop.f32.mrf.mxu0
        %5610 = vmatprep.mubr.bf16.mxu0 0
        %5611 = vmatmul.mubr.bf16.gmra.mxu0 %v5133
        %v5612 = vpop.f32.mrf.mxu0
        %v5613 = vadd.f32 %v5404, %v5612
        %v5614 = vpop.f32.mrf.mxu0
        %v5615 = vpop.f32.mrf.mxu0
        %v5616 = vadd.f32 %v5407, %v5615
        %v5617 = vpop.f32.mrf.mxu0
        %5618 = vmatprep.mubr.bf16.mxu0 0
        %5619 = vmatmul.mubr.bf16.gmra.mxu0 %v5134
        %v5620 = vpop.f32.mrf.mxu0
        %v5621 = vadd.f32 %v5412, %v5620
        %v5622 = vpop.f32.mrf.mxu0
        %v5623 = vpop.f32.mrf.mxu0
        %v5624 = vadd.f32 %v5415, %v5623
        %v5625 = vpop.f32.mrf.mxu0
        %5626 = vmatprep.mubr.bf16.mxu0 0
        %5627 = vmatmul.mubr.bf16.gmra.mxu0 %v5135
        %v5628 = vpop.f32.mrf.mxu0
        %v5629 = vadd.f32 %v5420, %v5628
        %v5630 = vpop.f32.mrf.mxu0
        %v5631 = vpop.f32.mrf.mxu0
        %v5632 = vadd.f32 %v5423, %v5631
        %v5633 = vpop.f32.mrf.mxu0
        %5634 = vdwg.mxu0
        %v5635 = vld [vmem:[#allocation2 + $0x9] sm:$0xff]
        %v5636 = vld [vmem:[#allocation2 + $0x11] sm:$0xff]
        %v5637 = vld [vmem:[#allocation2 + $0x19] sm:$0xff]
        %v5638 = vld [vmem:[#allocation2 + $0x21] sm:$0xff]
        %v5639 = vld [vmem:[#allocation2 + $0x29] sm:$0xff]
        %v5640 = vld [vmem:[#allocation2 + $0x31] sm:$0xff]
        %v5641 = vld [vmem:[#allocation2 + $0x39] sm:$0xff]
        %v5642 = vld [vmem:[#allocation2 + $0x41] sm:$0xff]
        %v5643 = vld [vmem:[#allocation2 + $0x49] sm:$0xff]
        %v5644 = vld [vmem:[#allocation2 + $0x51] sm:$0xff]
        %v5645 = vld [vmem:[#allocation2 + $0x59] sm:$0xff]
        %v5646 = vld [vmem:[#allocation2 + $0x61] sm:$0xff]
        %v5647 = vld [vmem:[#allocation2 + $0x69] sm:$0xff]
        %v5648 = vld [vmem:[#allocation2 + $0x71] sm:$0xff]
        %v5649 = vld [vmem:[#allocation2 + $0x79] sm:$0xff]
        %v5650 = vld [vmem:[#allocation2 + $0x81] sm:$0xff]
        %v5651 = vld [vmem:[#allocation2 + $0x89] sm:$0xff]
        %v5652 = vld [vmem:[#allocation2 + $0x91] sm:$0xff]
        %v5653 = vld [vmem:[#allocation2 + $0x99] sm:$0xff]
        %v5654 = vld [vmem:[#allocation2 + $0xa1] sm:$0xff]
        %v5655 = vld [vmem:[#allocation2 + $0xa9] sm:$0xff]
        %v5656 = vld [vmem:[#allocation2 + $0xb1] sm:$0xff]
        %v5657 = vld [vmem:[#allocation2 + $0xb9] sm:$0xff]
        %v5658 = vld [vmem:[#allocation2 + $0xc1] sm:$0xff]
        %v5659 = vld [vmem:[#allocation2 + $0xc9] sm:$0xff]
        %v5660 = vld [vmem:[#allocation2 + $0xd1] sm:$0xff]
        %v5661 = vld [vmem:[#allocation2 + $0xd9] sm:$0xff]
        %v5662 = vld [vmem:[#allocation2 + $0xe1] sm:$0xff]
        %v5663 = vld [vmem:[#allocation2 + $0xe9] sm:$0xff]
        %v5664 = vld [vmem:[#allocation2 + $0xf1] sm:$0xff]
        %v5665 = vld [vmem:[#allocation2 + $0xf9] sm:$0xff]
        %v5666 = vld [vmem:[#allocation2 + $0x101] sm:$0xff]
        %v5667 = vsel %vm2208, %v5635, 0.0
        %v5668 = vsel %vm2209, %v5636, 0.0
        %v5669 = vsel %vm2210, %v5637, 0.0
        %v5670 = vsel %vm2211, %v5638, 0.0
        %v5671 = vsel %vm2212, %v5639, 0.0
        %v5672 = vsel %vm2213, %v5640, 0.0
        %v5673 = vsel %vm2214, %v5641, 0.0
        %v5674 = vsel %vm2215, %v5642, 0.0
        %v5675 = vsel %vm2216, %v5643, 0.0
        %v5676 = vsel %vm2217, %v5644, 0.0
        %v5677 = vsel %vm2218, %v5645, 0.0
        %v5678 = vsel %vm2219, %v5646, 0.0
        %v5679 = vsel %vm2220, %v5647, 0.0
        %v5680 = vsel %vm2221, %v5648, 0.0
        %v5681 = vsel %vm2222, %v5649, 0.0
        %v5682 = vsel %vm2223, %v5650, 0.0
        %v5683 = vsel %vm2224, %v5651, 0.0
        %v5684 = vsel %vm2225, %v5652, 0.0
        %v5685 = vsel %vm2226, %v5653, 0.0
        %v5686 = vsel %vm2227, %v5654, 0.0
        %v5687 = vsel %vm2228, %v5655, 0.0
        %v5688 = vsel %vm2229, %v5656, 0.0
        %v5689 = vsel %vm2230, %v5657, 0.0
        %v5690 = vsel %vm2231, %v5658, 0.0
        %v5691 = vsel %vm2232, %v5659, 0.0
        %v5692 = vsel %vm2233, %v5660, 0.0
        %v5693 = vsel %vm2234, %v5661, 0.0
        %v5694 = vsel %vm2235, %v5662, 0.0
        %v5695 = vsel %vm2236, %v5663, 0.0
        %v5696 = vsel %vm2237, %v5664, 0.0
        %v5697 = vsel %vm2238, %v5665, 0.0
        %v5698 = vsel %vm2239, %v5666, 0.0
        %v5699 = vpack.c.bf16 %v5668, %v5667
        %v5700 = vpack.c.bf16 %v5670, %v5669
        %v5701 = vpack.c.bf16 %v5672, %v5671
        %v5702 = vpack.c.bf16 %v5674, %v5673
        %v5703 = vpack.c.bf16 %v5676, %v5675
        %v5704 = vpack.c.bf16 %v5678, %v5677
        %v5705 = vpack.c.bf16 %v5680, %v5679
        %v5706 = vpack.c.bf16 %v5682, %v5681
        %v5707 = vpack.c.bf16 %v5684, %v5683
        %v5708 = vpack.c.bf16 %v5686, %v5685
        %v5709 = vpack.c.bf16 %v5688, %v5687
        %v5710 = vpack.c.bf16 %v5690, %v5689
        %v5711 = vpack.c.bf16 %v5692, %v5691
        %v5712 = vpack.c.bf16 %v5694, %v5693
        %v5713 = vpack.c.bf16 %v5696, %v5695
        %v5714 = vpack.c.bf16 %v5698, %v5697
        %s5715 = scalar_lea.vmem [#allocation9], 128
        %v5716 = vld [vmem:[%s5715] sm:$0xf]
        %v5717 = vld [vmem:[%s5715 + $0x4] sm:$0xf]
        %v5718 = vld [vmem:[%s5715 + $0x8] sm:$0xf]
        %v5719 = vld [vmem:[%s5715 + $0xc] sm:$0xf]
        %v5720 = vld [vmem:[%s5715 + $0x10] sm:$0xf]
        %v5721 = vld [vmem:[%s5715 + $0x14] sm:$0xf]
        %v5722 = vld [vmem:[%s5715 + $0x18] sm:$0xf]
        %v5723 = vld [vmem:[%s5715 + $0x1c] sm:$0xf]
        %v5724 = vld [vmem:[%s5715 + $0x20] sm:$0xf]
        %v5725 = vld [vmem:[%s5715 + $0x24] sm:$0xf]
        %v5726 = vld [vmem:[%s5715 + $0x28] sm:$0xf]
        %v5727 = vld [vmem:[%s5715 + $0x2c] sm:$0xf]
        %v5728 = vld [vmem:[%s5715 + $0x30] sm:$0xf]
        %v5729 = vld [vmem:[%s5715 + $0x34] sm:$0xf]
        %v5730 = vld [vmem:[%s5715 + $0x38] sm:$0xf]
        %v5731 = vld [vmem:[%s5715 + $0x3c] sm:$0xf]
        %v5748 = vunpack.c.l.b16 %v5716
        %v5749 = vunpack.c.l.b16 %v5717
        %v5750 = vunpack.c.l.b16 %v5718
        %v5751 = vunpack.c.l.b16 %v5719
        %v5752 = vunpack.c.l.b16 %v5720
        %v5753 = vunpack.c.l.b16 %v5721
        %v5754 = vunpack.c.l.b16 %v5722
        %v5755 = vunpack.c.l.b16 %v5723
        %v5756 = vunpack.c.l.b16 %v5724
        %v5757 = vunpack.c.l.b16 %v5725
        %v5758 = vunpack.c.l.b16 %v5726
        %v5759 = vunpack.c.l.b16 %v5727
        %v5760 = vunpack.c.l.b16 %v5728
        %v5761 = vunpack.c.l.b16 %v5729
        %v5762 = vunpack.c.l.b16 %v5730
        %v5763 = vunpack.c.l.b16 %v5731
        %v5764 = vpack.c.b16 %v5749, %v5748
        %v5765 = vpack.c.b16 %v5751, %v5750
        %v5766 = vpack.c.b16 %v5753, %v5752
        %v5767 = vpack.c.b16 %v5755, %v5754
        %v5768 = vpack.c.b16 %v5757, %v5756
        %v5769 = vpack.c.b16 %v5759, %v5758
        %v5770 = vpack.c.b16 %v5761, %v5760
        %v5771 = vpack.c.b16 %v5763, %v5762
        %5780 = vmatprep.subr.bf16.mxu0 0
        %5781 = vmatpush1.bf16.msra.mxu0 %v5771
        %5782 = vmatprep.subr.bf16.mxu0 0
        %5783 = vmatpush1.bf16.msra.mxu0 %v5770
        %5784 = vmatprep.subr.bf16.mxu0 0
        %5785 = vmatpush1.bf16.msra.mxu0 %v5769
        %5786 = vmatprep.subr.bf16.mxu0 0
        %5787 = vmatpush1.bf16.msra.mxu0 %v5768
        %5788 = vmatprep.subr.bf16.mxu0 0
        %5789 = vmatpush1.bf16.msra.mxu0 %v5767
        %5790 = vmatprep.subr.bf16.mxu0 0
        %5791 = vmatpush1.bf16.msra.mxu0 %v5766
        %5792 = vmatprep.subr.bf16.mxu0 0
        %5793 = vmatpush1.bf16.msra.mxu0 %v5765
        %5794 = vmatprep.subr.bf16.mxu0 0
        %5795 = vmatpush1.bf16.msra.mxu0 %v5764
        %5796 = vmatprep.subr.bf16.mxu0 0
        %5797 = vmatpush2.bf16.msra.mxu0 0
        %5798 = vmatprep.subr.bf16.mxu0 0
        %5799 = vmatpush2.bf16.msra.mxu0 0
        %5800 = vmatprep.subr.bf16.mxu0 0
        %5801 = vmatpush2.bf16.msra.mxu0 0
        %5802 = vmatprep.subr.bf16.mxu0 0
        %5803 = vmatpush2.bf16.msra.mxu0 0
        %5804 = vmatprep.subr.bf16.mxu0 0
        %5805 = vmatpush2.bf16.msra.mxu0 0
        %5806 = vmatprep.subr.bf16.mxu0 0
        %5807 = vmatpush2.bf16.msra.mxu0 0
        %5808 = vmatprep.subr.bf16.mxu0 0
        %5809 = vmatpush2.bf16.msra.mxu0 0
        %5810 = vmatprep.subr.bf16.mxu0 0
        %5811 = vmatpush2.bf16.msra.mxu0 0
        %5812 = vmatprep.mubr.bf16.mxu0 0
        %5813 = vmatmul.mubr.bf16.gmra.mxu0 %v5699
        %v5814 = vpop.f32.mrf.mxu0
        %v5815 = vadd.f32 0.0, %v5814
        %v5816 = vpop.f32.mrf.mxu0
        %v5817 = vpop.f32.mrf.mxu0
        %v5818 = vadd.f32 0.0, %v5817
        %v5819 = vpop.f32.mrf.mxu0
        %5820 = vmatprep.mubr.bf16.mxu0 0
        %5821 = vmatmul.mubr.bf16.gmra.mxu0 %v5700
        %v5822 = vpop.f32.mrf.mxu0
        %v5823 = vadd.f32 0.0, %v5822
        %v5824 = vpop.f32.mrf.mxu0
        %v5825 = vpop.f32.mrf.mxu0
        %v5826 = vadd.f32 0.0, %v5825
        %v5827 = vpop.f32.mrf.mxu0
        %5828 = vmatprep.mubr.bf16.mxu0 0
        %5829 = vmatmul.mubr.bf16.gmra.mxu0 %v5701
        %v5830 = vpop.f32.mrf.mxu0
        %v5831 = vadd.f32 0.0, %v5830
        %v5832 = vpop.f32.mrf.mxu0
        %v5833 = vpop.f32.mrf.mxu0
        %v5834 = vadd.f32 0.0, %v5833
        %v5835 = vpop.f32.mrf.mxu0
        %5836 = vmatprep.mubr.bf16.mxu0 0
        %5837 = vmatmul.mubr.bf16.gmra.mxu0 %v5702
        %v5838 = vpop.f32.mrf.mxu0
        %v5839 = vadd.f32 0.0, %v5838
        %v5840 = vpop.f32.mrf.mxu0
        %v5841 = vpop.f32.mrf.mxu0
        %v5842 = vadd.f32 0.0, %v5841
        %v5843 = vpop.f32.mrf.mxu0
        %5844 = vmatprep.mubr.bf16.mxu0 0
        %5845 = vmatmul.mubr.bf16.gmra.mxu0 %v5703
        %v5846 = vpop.f32.mrf.mxu0
        %v5847 = vadd.f32 0.0, %v5846
        %v5848 = vpop.f32.mrf.mxu0
        %v5849 = vpop.f32.mrf.mxu0
        %v5850 = vadd.f32 0.0, %v5849
        %v5851 = vpop.f32.mrf.mxu0
        %5852 = vmatprep.mubr.bf16.mxu0 0
        %5853 = vmatmul.mubr.bf16.gmra.mxu0 %v5704
        %v5854 = vpop.f32.mrf.mxu0
        %v5855 = vadd.f32 0.0, %v5854
        %v5856 = vpop.f32.mrf.mxu0
        %v5857 = vpop.f32.mrf.mxu0
        %v5858 = vadd.f32 0.0, %v5857
        %v5859 = vpop.f32.mrf.mxu0
        %5860 = vmatprep.mubr.bf16.mxu0 0
        %5861 = vmatmul.mubr.bf16.gmra.mxu0 %v5705
        %v5862 = vpop.f32.mrf.mxu0
        %v5863 = vadd.f32 0.0, %v5862
        %v5864 = vpop.f32.mrf.mxu0
        %v5865 = vpop.f32.mrf.mxu0
        %v5866 = vadd.f32 0.0, %v5865
        %v5867 = vpop.f32.mrf.mxu0
        %5868 = vmatprep.mubr.bf16.mxu0 0
        %5869 = vmatmul.mubr.bf16.gmra.mxu0 %v5706
        %v5870 = vpop.f32.mrf.mxu0
        %v5871 = vadd.f32 0.0, %v5870
        %v5872 = vpop.f32.mrf.mxu0
        %v5873 = vpop.f32.mrf.mxu0
        %v5874 = vadd.f32 0.0, %v5873
        %v5875 = vpop.f32.mrf.mxu0
        %5876 = vmatprep.mubr.bf16.mxu0 0
        %5877 = vmatmul.mubr.bf16.gmra.mxu0 %v5707
        %v5878 = vpop.f32.mrf.mxu0
        %v5879 = vadd.f32 0.0, %v5878
        %v5880 = vpop.f32.mrf.mxu0
        %v5881 = vpop.f32.mrf.mxu0
        %v5882 = vadd.f32 0.0, %v5881
        %v5883 = vpop.f32.mrf.mxu0
        %5884 = vmatprep.mubr.bf16.mxu0 0
        %5885 = vmatmul.mubr.bf16.gmra.mxu0 %v5708
        %v5886 = vpop.f32.mrf.mxu0
        %v5887 = vadd.f32 0.0, %v5886
        %v5888 = vpop.f32.mrf.mxu0
        %v5889 = vpop.f32.mrf.mxu0
        %v5890 = vadd.f32 0.0, %v5889
        %v5891 = vpop.f32.mrf.mxu0
        %5892 = vmatprep.mubr.bf16.mxu0 0
        %5893 = vmatmul.mubr.bf16.gmra.mxu0 %v5709
        %v5894 = vpop.f32.mrf.mxu0
        %v5895 = vadd.f32 0.0, %v5894
        %v5896 = vpop.f32.mrf.mxu0
        %v5897 = vpop.f32.mrf.mxu0
        %v5898 = vadd.f32 0.0, %v5897
        %v5899 = vpop.f32.mrf.mxu0
        %5900 = vmatprep.mubr.bf16.mxu0 0
        %5901 = vmatmul.mubr.bf16.gmra.mxu0 %v5710
        %v5902 = vpop.f32.mrf.mxu0
        %v5903 = vadd.f32 0.0, %v5902
        %v5904 = vpop.f32.mrf.mxu0
        %v5905 = vpop.f32.mrf.mxu0
        %v5906 = vadd.f32 0.0, %v5905
        %v5907 = vpop.f32.mrf.mxu0
        %5908 = vmatprep.mubr.bf16.mxu0 0
        %5909 = vmatmul.mubr.bf16.gmra.mxu0 %v5711
        %v5910 = vpop.f32.mrf.mxu0
        %v5911 = vadd.f32 0.0, %v5910
        %v5912 = vpop.f32.mrf.mxu0
        %v5913 = vpop.f32.mrf.mxu0
        %v5914 = vadd.f32 0.0, %v5913
        %v5915 = vpop.f32.mrf.mxu0
        %5916 = vmatprep.mubr.bf16.mxu0 0
        %5917 = vmatmul.mubr.bf16.gmra.mxu0 %v5712
        %v5918 = vpop.f32.mrf.mxu0
        %v5919 = vadd.f32 0.0, %v5918
        %v5920 = vpop.f32.mrf.mxu0
        %v5921 = vpop.f32.mrf.mxu0
        %v5922 = vadd.f32 0.0, %v5921
        %v5923 = vpop.f32.mrf.mxu0
        %5924 = vmatprep.mubr.bf16.mxu0 0
        %5925 = vmatmul.mubr.bf16.gmra.mxu0 %v5713
        %v5926 = vpop.f32.mrf.mxu0
        %v5927 = vadd.f32 0.0, %v5926
        %v5928 = vpop.f32.mrf.mxu0
        %v5929 = vpop.f32.mrf.mxu0
        %v5930 = vadd.f32 0.0, %v5929
        %v5931 = vpop.f32.mrf.mxu0
        %5932 = vmatprep.mubr.bf16.mxu0 0
        %5933 = vmatmul.mubr.bf16.gmra.mxu0 %v5714
        %v5934 = vpop.f32.mrf.mxu0
        %v5935 = vadd.f32 0.0, %v5934
        %v5936 = vpop.f32.mrf.mxu0
        %v5937 = vpop.f32.mrf.mxu0
        %v5938 = vadd.f32 0.0, %v5937
        %v5939 = vpop.f32.mrf.mxu0
        %5940 = vdwg.mxu0
        %v5941 = vadd.f32 %v5509, %v5815
        %v5942 = vadd.f32 %v5512, %v5818
        %v5943 = vadd.f32 %v5517, %v5823
        %v5944 = vadd.f32 %v5520, %v5826
        %v5945 = vadd.f32 %v5525, %v5831
        %v5946 = vadd.f32 %v5528, %v5834
        %v5947 = vadd.f32 %v5533, %v5839
        %v5948 = vadd.f32 %v5536, %v5842
        %v5949 = vadd.f32 %v5541, %v5847
        %v5950 = vadd.f32 %v5544, %v5850
        %v5951 = vadd.f32 %v5549, %v5855
        %v5952 = vadd.f32 %v5552, %v5858
        %v5953 = vadd.f32 %v5557, %v5863
        %v5954 = vadd.f32 %v5560, %v5866
        %v5955 = vadd.f32 %v5565, %v5871
        %v5956 = vadd.f32 %v5568, %v5874
        %v5957 = vadd.f32 %v5573, %v5879
        %v5958 = vadd.f32 %v5576, %v5882
        %v5959 = vadd.f32 %v5581, %v5887
        %v5960 = vadd.f32 %v5584, %v5890
        %v5961 = vadd.f32 %v5589, %v5895
        %v5962 = vadd.f32 %v5592, %v5898
        %v5963 = vadd.f32 %v5597, %v5903
        %v5964 = vadd.f32 %v5600, %v5906
        %v5965 = vadd.f32 %v5605, %v5911
        %v5966 = vadd.f32 %v5608, %v5914
        %v5967 = vadd.f32 %v5613, %v5919
        %v5968 = vadd.f32 %v5616, %v5922
        %v5969 = vadd.f32 %v5621, %v5927
        %v5970 = vadd.f32 %v5624, %v5930
        %v5971 = vadd.f32 %v5629, %v5935
        %v5972 = vadd.f32 %v5632, %v5938
        %v5973 = vld [vmem:[#allocation2 + $0x17] sm:$0xff]
        %v5974 = vld [vmem:[#allocation2 + $0x1f] sm:$0xff]
        %v5975 = vld [vmem:[#allocation2 + $0x27] sm:$0xff]
        %v5976 = vld [vmem:[#allocation2 + $0x2f] sm:$0xff]
        %v5977 = vld [vmem:[#allocation2 + $0x37] sm:$0xff]
        %v5978 = vld [vmem:[#allocation2 + $0x3f] sm:$0xff]
        %v5979 = vld [vmem:[#allocation2 + $0x47] sm:$0xff]
        %v5980 = vld [vmem:[#allocation2 + $0x4f] sm:$0xff]
        %v5981 = vld [vmem:[#allocation2 + $0x57] sm:$0xff]
        %v5982 = vld [vmem:[#allocation2 + $0x5f] sm:$0xff]
        %v5983 = vld [vmem:[#allocation2 + $0x67] sm:$0xff]
        %v5984 = vld [vmem:[#allocation2 + $0x6f] sm:$0xff]
        %v5985 = vld [vmem:[#allocation2 + $0x77] sm:$0xff]
        %v5986 = vld [vmem:[#allocation2 + $0x7f] sm:$0xff]
        %v5987 = vld [vmem:[#allocation2 + $0x87] sm:$0xff]
        %v5988 = vld [vmem:[#allocation2 + $0x8f] sm:$0xff]
        %v5989 = vld [vmem:[#allocation2 + $0x97] sm:$0xff]
        %v5990 = vld [vmem:[#allocation2 + $0x9f] sm:$0xff]
        %v5991 = vld [vmem:[#allocation2 + $0xa7] sm:$0xff]
        %v5992 = vld [vmem:[#allocation2 + $0xaf] sm:$0xff]
        %v5993 = vld [vmem:[#allocation2 + $0xb7] sm:$0xff]
        %v5994 = vld [vmem:[#allocation2 + $0xbf] sm:$0xff]
        %v5995 = vld [vmem:[#allocation2 + $0xc7] sm:$0xff]
        %v5996 = vld [vmem:[#allocation2 + $0xcf] sm:$0xff]
        %v5997 = vld [vmem:[#allocation2 + $0xd7] sm:$0xff]
        %v5998 = vld [vmem:[#allocation2 + $0xdf] sm:$0xff]
        %v5999 = vld [vmem:[#allocation2 + $0xe7] sm:$0xff]
        %v6000 = vld [vmem:[#allocation2 + $0xef] sm:$0xff]
        %v6001 = vld [vmem:[#allocation2 + $0xf7] sm:$0xff]
        %v6002 = vld [vmem:[#allocation2 + $0xff] sm:$0xff]
        %v6003 = vld [vmem:[#allocation2 + $0x107] sm:$0xff]
        %v6004 = vld [vmem:[#allocation2 + $0x10f] sm:$0xff]
        %v6005 = vsel %vm1565, %v5973, 0.0
        %v6006 = vsel %vm1566, %v5974, 0.0
        %v6007 = vsel %vm1567, %v5975, 0.0
        %v6008 = vsel %vm1568, %v5976, 0.0
        %v6009 = vsel %vm1569, %v5977, 0.0
        %v6010 = vsel %vm1570, %v5978, 0.0
        %v6011 = vsel %vm1571, %v5979, 0.0
        %v6012 = vsel %vm1572, %v5980, 0.0
        %v6013 = vsel %vm1573, %v5981, 0.0
        %v6014 = vsel %vm1574, %v5982, 0.0
        %v6015 = vsel %vm1575, %v5983, 0.0
        %v6016 = vsel %vm1576, %v5984, 0.0
        %v6017 = vsel %vm1577, %v5985, 0.0
        %v6018 = vsel %vm1578, %v5986, 0.0
        %v6019 = vsel %vm1579, %v5987, 0.0
        %v6020 = vsel %vm1580, %v5988, 0.0
        %v6021 = vsel %vm1581, %v5989, 0.0
        %v6022 = vsel %vm1582, %v5990, 0.0
        %v6023 = vsel %vm1583, %v5991, 0.0
        %v6024 = vsel %vm1584, %v5992, 0.0
        %v6025 = vsel %vm1585, %v5993, 0.0
        %v6026 = vsel %vm1586, %v5994, 0.0
        %v6027 = vsel %vm1587, %v5995, 0.0
        %v6028 = vsel %vm1588, %v5996, 0.0
        %v6029 = vsel %vm1589, %v5997, 0.0
        %v6030 = vsel %vm1590, %v5998, 0.0
        %v6031 = vsel %vm1591, %v5999, 0.0
        %v6032 = vsel %vm1592, %v6000, 0.0
        %v6033 = vsel %vm1593, %v6001, 0.0
        %v6034 = vsel %vm1594, %v6002, 0.0
        %v6035 = vsel %vm1595, %v6003, 0.0
        %v6036 = vsel %vm1596, %v6004, 0.0
        %v6037 = vpack.c.bf16 %v6006, %v6005
        %v6038 = vpack.c.bf16 %v6008, %v6007
        %v6039 = vpack.c.bf16 %v6010, %v6009
        %v6040 = vpack.c.bf16 %v6012, %v6011
        %v6041 = vpack.c.bf16 %v6014, %v6013
        %v6042 = vpack.c.bf16 %v6016, %v6015
        %v6043 = vpack.c.bf16 %v6018, %v6017
        %v6044 = vpack.c.bf16 %v6020, %v6019
        %v6045 = vpack.c.bf16 %v6022, %v6021
        %v6046 = vpack.c.bf16 %v6024, %v6023
        %v6047 = vpack.c.bf16 %v6026, %v6025
        %v6048 = vpack.c.bf16 %v6028, %v6027
        %v6049 = vpack.c.bf16 %v6030, %v6029
        %v6050 = vpack.c.bf16 %v6032, %v6031
        %v6051 = vpack.c.bf16 %v6034, %v6033
        %v6052 = vpack.c.bf16 %v6036, %v6035
        %s6053 = scalar_lea.vmem [#allocation9], 192
        %v6054 = vld [vmem:[%s6053] sm:$0xf]
        %v6055 = vld [vmem:[%s6053 + $0x4] sm:$0xf]
        %v6056 = vld [vmem:[%s6053 + $0x8] sm:$0xf]
        %v6057 = vld [vmem:[%s6053 + $0xc] sm:$0xf]
        %v6058 = vld [vmem:[%s6053 + $0x10] sm:$0xf]
        %v6059 = vld [vmem:[%s6053 + $0x14] sm:$0xf]
        %v6060 = vld [vmem:[%s6053 + $0x18] sm:$0xf]
        %v6061 = vld [vmem:[%s6053 + $0x1c] sm:$0xf]
        %v6062 = vld [vmem:[%s6053 + $0x20] sm:$0xf]
        %v6063 = vld [vmem:[%s6053 + $0x24] sm:$0xf]
        %v6064 = vld [vmem:[%s6053 + $0x28] sm:$0xf]
        %v6065 = vld [vmem:[%s6053 + $0x2c] sm:$0xf]
        %v6066 = vld [vmem:[%s6053 + $0x30] sm:$0xf]
        %v6067 = vld [vmem:[%s6053 + $0x34] sm:$0xf]
        %v6068 = vld [vmem:[%s6053 + $0x38] sm:$0xf]
        %v6069 = vld [vmem:[%s6053 + $0x3c] sm:$0xf]
        %v6086 = vunpack.c.l.b16 %v6054
        %v6087 = vunpack.c.l.b16 %v6055
        %v6088 = vunpack.c.l.b16 %v6056
        %v6089 = vunpack.c.l.b16 %v6057
        %v6090 = vunpack.c.l.b16 %v6058
        %v6091 = vunpack.c.l.b16 %v6059
        %v6092 = vunpack.c.l.b16 %v6060
        %v6093 = vunpack.c.l.b16 %v6061
        %v6094 = vunpack.c.l.b16 %v6062
        %v6095 = vunpack.c.l.b16 %v6063
        %v6096 = vunpack.c.l.b16 %v6064
        %v6097 = vunpack.c.l.b16 %v6065
        %v6098 = vunpack.c.l.b16 %v6066
        %v6099 = vunpack.c.l.b16 %v6067
        %v6100 = vunpack.c.l.b16 %v6068
        %v6101 = vunpack.c.l.b16 %v6069
        %v6102 = vpack.c.b16 %v6087, %v6086
        %v6103 = vpack.c.b16 %v6089, %v6088
        %v6104 = vpack.c.b16 %v6091, %v6090
        %v6105 = vpack.c.b16 %v6093, %v6092
        %v6106 = vpack.c.b16 %v6095, %v6094
        %v6107 = vpack.c.b16 %v6097, %v6096
        %v6108 = vpack.c.b16 %v6099, %v6098
        %v6109 = vpack.c.b16 %v6101, %v6100
        %6118 = vmatprep.subr.bf16.mxu0 0
        %6119 = vmatpush1.bf16.msra.mxu0 %v6109
        %6120 = vmatprep.subr.bf16.mxu0 0
        %6121 = vmatpush1.bf16.msra.mxu0 %v6108
        %6122 = vmatprep.subr.bf16.mxu0 0
        %6123 = vmatpush1.bf16.msra.mxu0 %v6107
        %6124 = vmatprep.subr.bf16.mxu0 0
        %6125 = vmatpush1.bf16.msra.mxu0 %v6106
        %6126 = vmatprep.subr.bf16.mxu0 0
        %6127 = vmatpush1.bf16.msra.mxu0 %v6105
        %6128 = vmatprep.subr.bf16.mxu0 0
        %6129 = vmatpush1.bf16.msra.mxu0 %v6104
        %6130 = vmatprep.subr.bf16.mxu0 0
        %6131 = vmatpush1.bf16.msra.mxu0 %v6103
        %6132 = vmatprep.subr.bf16.mxu0 0
        %6133 = vmatpush1.bf16.msra.mxu0 %v6102
        %6134 = vmatprep.subr.bf16.mxu0 0
        %6135 = vmatpush2.bf16.msra.mxu0 0
        %6136 = vmatprep.subr.bf16.mxu0 0
        %6137 = vmatpush2.bf16.msra.mxu0 0
        %6138 = vmatprep.subr.bf16.mxu0 0
        %6139 = vmatpush2.bf16.msra.mxu0 0
        %6140 = vmatprep.subr.bf16.mxu0 0
        %6141 = vmatpush2.bf16.msra.mxu0 0
        %6142 = vmatprep.subr.bf16.mxu0 0
        %6143 = vmatpush2.bf16.msra.mxu0 0
        %6144 = vmatprep.subr.bf16.mxu0 0
        %6145 = vmatpush2.bf16.msra.mxu0 0
        %6146 = vmatprep.subr.bf16.mxu0 0
        %6147 = vmatpush2.bf16.msra.mxu0 0
        %6148 = vmatprep.subr.bf16.mxu0 0
        %6149 = vmatpush2.bf16.msra.mxu0 0
        %6150 = vmatprep.mubr.bf16.mxu0 0
        %6151 = vmatmul.mubr.bf16.gmra.mxu0 %v6037
        %v6152 = vpop.f32.mrf.mxu0
        %v6153 = vadd.f32 0.0, %v6152
        %v6154 = vpop.f32.mrf.mxu0
        %v6155 = vpop.f32.mrf.mxu0
        %v6156 = vadd.f32 0.0, %v6155
        %v6157 = vpop.f32.mrf.mxu0
        %6158 = vmatprep.mubr.bf16.mxu0 0
        %6159 = vmatmul.mubr.bf16.gmra.mxu0 %v6038
        %v6160 = vpop.f32.mrf.mxu0
        %v6161 = vadd.f32 0.0, %v6160
        %v6162 = vpop.f32.mrf.mxu0
        %v6163 = vpop.f32.mrf.mxu0
        %v6164 = vadd.f32 0.0, %v6163
        %v6165 = vpop.f32.mrf.mxu0
        %6166 = vmatprep.mubr.bf16.mxu0 0
        %6167 = vmatmul.mubr.bf16.gmra.mxu0 %v6039
        %v6168 = vpop.f32.mrf.mxu0
        %v6169 = vadd.f32 0.0, %v6168
        %v6170 = vpop.f32.mrf.mxu0
        %v6171 = vpop.f32.mrf.mxu0
        %v6172 = vadd.f32 0.0, %v6171
        %v6173 = vpop.f32.mrf.mxu0
        %6174 = vmatprep.mubr.bf16.mxu0 0
        %6175 = vmatmul.mubr.bf16.gmra.mxu0 %v6040
        %v6176 = vpop.f32.mrf.mxu0
        %v6177 = vadd.f32 0.0, %v6176
        %v6178 = vpop.f32.mrf.mxu0
        %v6179 = vpop.f32.mrf.mxu0
        %v6180 = vadd.f32 0.0, %v6179
        %v6181 = vpop.f32.mrf.mxu0
        %6182 = vmatprep.mubr.bf16.mxu0 0
        %6183 = vmatmul.mubr.bf16.gmra.mxu0 %v6041
        %v6184 = vpop.f32.mrf.mxu0
        %v6185 = vadd.f32 0.0, %v6184
        %v6186 = vpop.f32.mrf.mxu0
        %v6187 = vpop.f32.mrf.mxu0
        %v6188 = vadd.f32 0.0, %v6187
        %v6189 = vpop.f32.mrf.mxu0
        %6190 = vmatprep.mubr.bf16.mxu0 0
        %6191 = vmatmul.mubr.bf16.gmra.mxu0 %v6042
        %v6192 = vpop.f32.mrf.mxu0
        %v6193 = vadd.f32 0.0, %v6192
        %v6194 = vpop.f32.mrf.mxu0
        %v6195 = vpop.f32.mrf.mxu0
        %v6196 = vadd.f32 0.0, %v6195
        %v6197 = vpop.f32.mrf.mxu0
        %6198 = vmatprep.mubr.bf16.mxu0 0
        %6199 = vmatmul.mubr.bf16.gmra.mxu0 %v6043
        %v6200 = vpop.f32.mrf.mxu0
        %v6201 = vadd.f32 0.0, %v6200
        %v6202 = vpop.f32.mrf.mxu0
        %v6203 = vpop.f32.mrf.mxu0
        %v6204 = vadd.f32 0.0, %v6203
        %v6205 = vpop.f32.mrf.mxu0
        %6206 = vmatprep.mubr.bf16.mxu0 0
        %6207 = vmatmul.mubr.bf16.gmra.mxu0 %v6044
        %v6208 = vpop.f32.mrf.mxu0
        %v6209 = vadd.f32 0.0, %v6208
        %v6210 = vpop.f32.mrf.mxu0
        %v6211 = vpop.f32.mrf.mxu0
        %v6212 = vadd.f32 0.0, %v6211
        %v6213 = vpop.f32.mrf.mxu0
        %6214 = vmatprep.mubr.bf16.mxu0 0
        %6215 = vmatmul.mubr.bf16.gmra.mxu0 %v6045
        %v6216 = vpop.f32.mrf.mxu0
        %v6217 = vadd.f32 0.0, %v6216
        %v6218 = vpop.f32.mrf.mxu0
        %v6219 = vpop.f32.mrf.mxu0
        %v6220 = vadd.f32 0.0, %v6219
        %v6221 = vpop.f32.mrf.mxu0
        %6222 = vmatprep.mubr.bf16.mxu0 0
        %6223 = vmatmul.mubr.bf16.gmra.mxu0 %v6046
        %v6224 = vpop.f32.mrf.mxu0
        %v6225 = vadd.f32 0.0, %v6224
        %v6226 = vpop.f32.mrf.mxu0
        %v6227 = vpop.f32.mrf.mxu0
        %v6228 = vadd.f32 0.0, %v6227
        %v6229 = vpop.f32.mrf.mxu0
        %6230 = vmatprep.mubr.bf16.mxu0 0
        %6231 = vmatmul.mubr.bf16.gmra.mxu0 %v6047
        %v6232 = vpop.f32.mrf.mxu0
        %v6233 = vadd.f32 0.0, %v6232
        %v6234 = vpop.f32.mrf.mxu0
        %v6235 = vpop.f32.mrf.mxu0
        %v6236 = vadd.f32 0.0, %v6235
        %v6237 = vpop.f32.mrf.mxu0
        %6238 = vmatprep.mubr.bf16.mxu0 0
        %6239 = vmatmul.mubr.bf16.gmra.mxu0 %v6048
        %v6240 = vpop.f32.mrf.mxu0
        %v6241 = vadd.f32 0.0, %v6240
        %v6242 = vpop.f32.mrf.mxu0
        %v6243 = vpop.f32.mrf.mxu0
        %v6244 = vadd.f32 0.0, %v6243
        %v6245 = vpop.f32.mrf.mxu0
        %6246 = vmatprep.mubr.bf16.mxu0 0
        %6247 = vmatmul.mubr.bf16.gmra.mxu0 %v6049
        %v6248 = vpop.f32.mrf.mxu0
        %v6249 = vadd.f32 0.0, %v6248
        %v6250 = vpop.f32.mrf.mxu0
        %v6251 = vpop.f32.mrf.mxu0
        %v6252 = vadd.f32 0.0, %v6251
        %v6253 = vpop.f32.mrf.mxu0
        %6254 = vmatprep.mubr.bf16.mxu0 0
        %6255 = vmatmul.mubr.bf16.gmra.mxu0 %v6050
        %v6256 = vpop.f32.mrf.mxu0
        %v6257 = vadd.f32 0.0, %v6256
        %v6258 = vpop.f32.mrf.mxu0
        %v6259 = vpop.f32.mrf.mxu0
        %v6260 = vadd.f32 0.0, %v6259
        %v6261 = vpop.f32.mrf.mxu0
        %6262 = vmatprep.mubr.bf16.mxu0 0
        %6263 = vmatmul.mubr.bf16.gmra.mxu0 %v6051
        %v6264 = vpop.f32.mrf.mxu0
        %v6265 = vadd.f32 0.0, %v6264
        %v6266 = vpop.f32.mrf.mxu0
        %v6267 = vpop.f32.mrf.mxu0
        %v6268 = vadd.f32 0.0, %v6267
        %v6269 = vpop.f32.mrf.mxu0
        %6270 = vmatprep.mubr.bf16.mxu0 0
        %6271 = vmatmul.mubr.bf16.gmra.mxu0 %v6052
        %v6272 = vpop.f32.mrf.mxu0
        %v6273 = vadd.f32 0.0, %v6272
        %v6274 = vpop.f32.mrf.mxu0
        %v6275 = vpop.f32.mrf.mxu0
        %v6276 = vadd.f32 0.0, %v6275
        %v6277 = vpop.f32.mrf.mxu0
        %6278 = vdwg.mxu0
        %v6279 = vadd.f32 %v5941, %v6153
        %v6280 = vadd.f32 %v5942, %v6156
        %v6281 = vadd.f32 %v5943, %v6161
        %v6282 = vadd.f32 %v5944, %v6164
        %v6283 = vadd.f32 %v5945, %v6169
        %v6284 = vadd.f32 %v5946, %v6172
        %v6285 = vadd.f32 %v5947, %v6177
        %v6286 = vadd.f32 %v5948, %v6180
        %v6287 = vadd.f32 %v5949, %v6185
        %v6288 = vadd.f32 %v5950, %v6188
        %v6289 = vadd.f32 %v5951, %v6193
        %v6290 = vadd.f32 %v5952, %v6196
        %v6291 = vadd.f32 %v5953, %v6201
        %v6292 = vadd.f32 %v5954, %v6204
        %v6293 = vadd.f32 %v5955, %v6209
        %v6294 = vadd.f32 %v5956, %v6212
        %v6295 = vadd.f32 %v5957, %v6217
        %v6296 = vadd.f32 %v5958, %v6220
        %v6297 = vadd.f32 %v5959, %v6225
        %v6298 = vadd.f32 %v5960, %v6228
        %v6299 = vadd.f32 %v5961, %v6233
        %v6300 = vadd.f32 %v5962, %v6236
        %v6301 = vadd.f32 %v5963, %v6241
        %v6302 = vadd.f32 %v5964, %v6244
        %v6303 = vadd.f32 %v5965, %v6249
        %v6304 = vadd.f32 %v5966, %v6252
        %v6305 = vadd.f32 %v5967, %v6257
        %v6306 = vadd.f32 %v5968, %v6260
        %v6307 = vadd.f32 %v5969, %v6265
        %v6308 = vadd.f32 %v5970, %v6268
        %v6309 = vadd.f32 %v5971, %v6273
        %v6310 = vadd.f32 %v5972, %v6276
        %v6311 = vld [vmem:[#allocation2 + $0x18] sm:$0xff]
        %v6312 = vld [vmem:[#allocation2 + $0x20] sm:$0xff]
        %v6313 = vld [vmem:[#allocation2 + $0x28] sm:$0xff]
        %v6314 = vld [vmem:[#allocation2 + $0x30] sm:$0xff]
        %v6315 = vld [vmem:[#allocation2 + $0x38] sm:$0xff]
        %v6316 = vld [vmem:[#allocation2 + $0x40] sm:$0xff]
        %v6317 = vld [vmem:[#allocation2 + $0x48] sm:$0xff]
        %v6318 = vld [vmem:[#allocation2 + $0x50] sm:$0xff]
        %v6319 = vld [vmem:[#allocation2 + $0x58] sm:$0xff]
        %v6320 = vld [vmem:[#allocation2 + $0x60] sm:$0xff]
        %v6321 = vld [vmem:[#allocation2 + $0x68] sm:$0xff]
        %v6322 = vld [vmem:[#allocation2 + $0x70] sm:$0xff]
        %v6323 = vld [vmem:[#allocation2 + $0x78] sm:$0xff]
        %v6324 = vld [vmem:[#allocation2 + $0x80] sm:$0xff]
        %v6325 = vld [vmem:[#allocation2 + $0x88] sm:$0xff]
        %v6326 = vld [vmem:[#allocation2 + $0x90] sm:$0xff]
        %v6327 = vld [vmem:[#allocation2 + $0x98] sm:$0xff]
        %v6328 = vld [vmem:[#allocation2 + $0xa0] sm:$0xff]
        %v6329 = vld [vmem:[#allocation2 + $0xa8] sm:$0xff]
        %v6330 = vld [vmem:[#allocation2 + $0xb0] sm:$0xff]
        %v6331 = vld [vmem:[#allocation2 + $0xb8] sm:$0xff]
        %v6332 = vld [vmem:[#allocation2 + $0xc0] sm:$0xff]
        %v6333 = vld [vmem:[#allocation2 + $0xc8] sm:$0xff]
        %v6334 = vld [vmem:[#allocation2 + $0xd0] sm:$0xff]
        %v6335 = vld [vmem:[#allocation2 + $0xd8] sm:$0xff]
        %v6336 = vld [vmem:[#allocation2 + $0xe0] sm:$0xff]
        %v6337 = vld [vmem:[#allocation2 + $0xe8] sm:$0xff]
        %v6338 = vld [vmem:[#allocation2 + $0xf0] sm:$0xff]
        %v6339 = vld [vmem:[#allocation2 + $0xf8] sm:$0xff]
        %v6340 = vld [vmem:[#allocation2 + $0x100] sm:$0xff]
        %v6341 = vld [vmem:[#allocation2 + $0x108] sm:$0xff]
        %v6342 = vld [vmem:[#allocation2 + $0x110] sm:$0xff]
        %v6343 = vpack.c.bf16 %v6312, %v6311
        %v6344 = vpack.c.bf16 %v6314, %v6313
        %v6345 = vpack.c.bf16 %v6316, %v6315
        %v6346 = vpack.c.bf16 %v6318, %v6317
        %v6347 = vpack.c.bf16 %v6320, %v6319
        %v6348 = vpack.c.bf16 %v6322, %v6321
        %v6349 = vpack.c.bf16 %v6324, %v6323
        %v6350 = vpack.c.bf16 %v6326, %v6325
        %v6351 = vpack.c.bf16 %v6328, %v6327
        %v6352 = vpack.c.bf16 %v6330, %v6329
        %v6353 = vpack.c.bf16 %v6332, %v6331
        %v6354 = vpack.c.bf16 %v6334, %v6333
        %v6355 = vpack.c.bf16 %v6336, %v6335
        %v6356 = vpack.c.bf16 %v6338, %v6337
        %v6357 = vpack.c.bf16 %v6340, %v6339
        %v6358 = vpack.c.bf16 %v6342, %v6341
        %s6359 = scalar_lea.vmem [#allocation9], 256
        %v6360 = vld [vmem:[%s6359] sm:$0xf]
        %v6361 = vld [vmem:[%s6359 + $0x4] sm:$0xf]
        %v6362 = vld [vmem:[%s6359 + $0x8] sm:$0xf]
        %v6363 = vld [vmem:[%s6359 + $0xc] sm:$0xf]
        %v6364 = vld [vmem:[%s6359 + $0x10] sm:$0xf]
        %v6365 = vld [vmem:[%s6359 + $0x14] sm:$0xf]
        %v6366 = vld [vmem:[%s6359 + $0x18] sm:$0xf]
        %v6367 = vld [vmem:[%s6359 + $0x1c] sm:$0xf]
        %v6368 = vld [vmem:[%s6359 + $0x20] sm:$0xf]
        %v6369 = vld [vmem:[%s6359 + $0x24] sm:$0xf]
        %v6370 = vld [vmem:[%s6359 + $0x28] sm:$0xf]
        %v6371 = vld [vmem:[%s6359 + $0x2c] sm:$0xf]
        %v6372 = vld [vmem:[%s6359 + $0x30] sm:$0xf]
        %v6373 = vld [vmem:[%s6359 + $0x34] sm:$0xf]
        %v6374 = vld [vmem:[%s6359 + $0x38] sm:$0xf]
        %v6375 = vld [vmem:[%s6359 + $0x3c] sm:$0xf]
        %v6392 = vunpack.c.l.b16 %v6360
        %v6393 = vunpack.c.l.b16 %v6361
        %v6394 = vunpack.c.l.b16 %v6362
        %v6395 = vunpack.c.l.b16 %v6363
        %v6396 = vunpack.c.l.b16 %v6364
        %v6397 = vunpack.c.l.b16 %v6365
        %v6398 = vunpack.c.l.b16 %v6366
        %v6399 = vunpack.c.l.b16 %v6367
        %v6400 = vunpack.c.l.b16 %v6368
        %v6401 = vunpack.c.l.b16 %v6369
        %v6402 = vunpack.c.l.b16 %v6370
        %v6403 = vunpack.c.l.b16 %v6371
        %v6404 = vunpack.c.l.b16 %v6372
        %v6405 = vunpack.c.l.b16 %v6373
        %v6406 = vunpack.c.l.b16 %v6374
        %v6407 = vunpack.c.l.b16 %v6375
        %v6408 = vpack.c.b16 %v6393, %v6392
        %v6409 = vpack.c.b16 %v6395, %v6394
        %v6410 = vpack.c.b16 %v6397, %v6396
        %v6411 = vpack.c.b16 %v6399, %v6398
        %v6412 = vpack.c.b16 %v6401, %v6400
        %v6413 = vpack.c.b16 %v6403, %v6402
        %v6414 = vpack.c.b16 %v6405, %v6404
        %v6415 = vpack.c.b16 %v6407, %v6406
        %6424 = vmatprep.subr.bf16.mxu0 0
        %6425 = vmatpush1.bf16.msra.mxu0 %v6415
        %6426 = vmatprep.subr.bf16.mxu0 0
        %6427 = vmatpush1.bf16.msra.mxu0 %v6414
        %6428 = vmatprep.subr.bf16.mxu0 0
        %6429 = vmatpush1.bf16.msra.mxu0 %v6413
        %6430 = vmatprep.subr.bf16.mxu0 0
        %6431 = vmatpush1.bf16.msra.mxu0 %v6412
        %6432 = vmatprep.subr.bf16.mxu0 0
        %6433 = vmatpush1.bf16.msra.mxu0 %v6411
        %6434 = vmatprep.subr.bf16.mxu0 0
        %6435 = vmatpush1.bf16.msra.mxu0 %v6410
        %6436 = vmatprep.subr.bf16.mxu0 0
        %6437 = vmatpush1.bf16.msra.mxu0 %v6409
        %6438 = vmatprep.subr.bf16.mxu0 0
        %6439 = vmatpush1.bf16.msra.mxu0 %v6408
        %6440 = vmatprep.subr.bf16.mxu0 0
        %6441 = vmatpush2.bf16.msra.mxu0 0
        %6442 = vmatprep.subr.bf16.mxu0 0
        %6443 = vmatpush2.bf16.msra.mxu0 0
        %6444 = vmatprep.subr.bf16.mxu0 0
        %6445 = vmatpush2.bf16.msra.mxu0 0
        %6446 = vmatprep.subr.bf16.mxu0 0
        %6447 = vmatpush2.bf16.msra.mxu0 0
        %6448 = vmatprep.subr.bf16.mxu0 0
        %6449 = vmatpush2.bf16.msra.mxu0 0
        %6450 = vmatprep.subr.bf16.mxu0 0
        %6451 = vmatpush2.bf16.msra.mxu0 0
        %6452 = vmatprep.subr.bf16.mxu0 0
        %6453 = vmatpush2.bf16.msra.mxu0 0
        %6454 = vmatprep.subr.bf16.mxu0 0
        %6455 = vmatpush2.bf16.msra.mxu0 0
        %6456 = vmatprep.mubr.bf16.mxu0 0
        %6457 = vmatmul.mubr.bf16.gmra.mxu0 %v6343
        %v6458 = vpop.f32.mrf.mxu0
        %v6459 = vadd.f32 0.0, %v6458
        %v6460 = vpop.f32.mrf.mxu0
        %v6461 = vpop.f32.mrf.mxu0
        %v6462 = vadd.f32 0.0, %v6461
        %v6463 = vpop.f32.mrf.mxu0
        %6464 = vmatprep.mubr.bf16.mxu0 0
        %6465 = vmatmul.mubr.bf16.gmra.mxu0 %v6344
        %v6466 = vpop.f32.mrf.mxu0
        %v6467 = vadd.f32 0.0, %v6466
        %v6468 = vpop.f32.mrf.mxu0
        %v6469 = vpop.f32.mrf.mxu0
        %v6470 = vadd.f32 0.0, %v6469
        %v6471 = vpop.f32.mrf.mxu0
        %6472 = vmatprep.mubr.bf16.mxu0 0
        %6473 = vmatmul.mubr.bf16.gmra.mxu0 %v6345
        %v6474 = vpop.f32.mrf.mxu0
        %v6475 = vadd.f32 0.0, %v6474
        %v6476 = vpop.f32.mrf.mxu0
        %v6477 = vpop.f32.mrf.mxu0
        %v6478 = vadd.f32 0.0, %v6477
        %v6479 = vpop.f32.mrf.mxu0
        %6480 = vmatprep.mubr.bf16.mxu0 0
        %6481 = vmatmul.mubr.bf16.gmra.mxu0 %v6346
        %v6482 = vpop.f32.mrf.mxu0
        %v6483 = vadd.f32 0.0, %v6482
        %v6484 = vpop.f32.mrf.mxu0
        %v6485 = vpop.f32.mrf.mxu0
        %v6486 = vadd.f32 0.0, %v6485
        %v6487 = vpop.f32.mrf.mxu0
        %6488 = vmatprep.mubr.bf16.mxu0 0
        %6489 = vmatmul.mubr.bf16.gmra.mxu0 %v6347
        %v6490 = vpop.f32.mrf.mxu0
        %v6491 = vadd.f32 0.0, %v6490
        %v6492 = vpop.f32.mrf.mxu0
        %v6493 = vpop.f32.mrf.mxu0
        %v6494 = vadd.f32 0.0, %v6493
        %v6495 = vpop.f32.mrf.mxu0
        %6496 = vmatprep.mubr.bf16.mxu0 0
        %6497 = vmatmul.mubr.bf16.gmra.mxu0 %v6348
        %v6498 = vpop.f32.mrf.mxu0
        %v6499 = vadd.f32 0.0, %v6498
        %v6500 = vpop.f32.mrf.mxu0
        %v6501 = vpop.f32.mrf.mxu0
        %v6502 = vadd.f32 0.0, %v6501
        %v6503 = vpop.f32.mrf.mxu0
        %6504 = vmatprep.mubr.bf16.mxu0 0
        %6505 = vmatmul.mubr.bf16.gmra.mxu0 %v6349
        %v6506 = vpop.f32.mrf.mxu0
        %v6507 = vadd.f32 0.0, %v6506
        %v6508 = vpop.f32.mrf.mxu0
        %v6509 = vpop.f32.mrf.mxu0
        %v6510 = vadd.f32 0.0, %v6509
        %v6511 = vpop.f32.mrf.mxu0
        %6512 = vmatprep.mubr.bf16.mxu0 0
        %6513 = vmatmul.mubr.bf16.gmra.mxu0 %v6350
        %v6514 = vpop.f32.mrf.mxu0
        %v6515 = vadd.f32 0.0, %v6514
        %v6516 = vpop.f32.mrf.mxu0
        %v6517 = vpop.f32.mrf.mxu0
        %v6518 = vadd.f32 0.0, %v6517
        %v6519 = vpop.f32.mrf.mxu0
        %6520 = vmatprep.mubr.bf16.mxu0 0
        %6521 = vmatmul.mubr.bf16.gmra.mxu0 %v6351
        %v6522 = vpop.f32.mrf.mxu0
        %v6523 = vadd.f32 0.0, %v6522
        %v6524 = vpop.f32.mrf.mxu0
        %v6525 = vpop.f32.mrf.mxu0
        %v6526 = vadd.f32 0.0, %v6525
        %v6527 = vpop.f32.mrf.mxu0
        %6528 = vmatprep.mubr.bf16.mxu0 0
        %6529 = vmatmul.mubr.bf16.gmra.mxu0 %v6352
        %v6530 = vpop.f32.mrf.mxu0
        %v6531 = vadd.f32 0.0, %v6530
        %v6532 = vpop.f32.mrf.mxu0
        %v6533 = vpop.f32.mrf.mxu0
        %v6534 = vadd.f32 0.0, %v6533
        %v6535 = vpop.f32.mrf.mxu0
        %6536 = vmatprep.mubr.bf16.mxu0 0
        %6537 = vmatmul.mubr.bf16.gmra.mxu0 %v6353
        %v6538 = vpop.f32.mrf.mxu0
        %v6539 = vadd.f32 0.0, %v6538
        %v6540 = vpop.f32.mrf.mxu0
        %v6541 = vpop.f32.mrf.mxu0
        %v6542 = vadd.f32 0.0, %v6541
        %v6543 = vpop.f32.mrf.mxu0
        %6544 = vmatprep.mubr.bf16.mxu0 0
        %6545 = vmatmul.mubr.bf16.gmra.mxu0 %v6354
        %v6546 = vpop.f32.mrf.mxu0
        %v6547 = vadd.f32 0.0, %v6546
        %v6548 = vpop.f32.mrf.mxu0
        %v6549 = vpop.f32.mrf.mxu0
        %v6550 = vadd.f32 0.0, %v6549
        %v6551 = vpop.f32.mrf.mxu0
        %6552 = vmatprep.mubr.bf16.mxu0 0
        %6553 = vmatmul.mubr.bf16.gmra.mxu0 %v6355
        %v6554 = vpop.f32.mrf.mxu0
        %v6555 = vadd.f32 0.0, %v6554
        %v6556 = vpop.f32.mrf.mxu0
        %v6557 = vpop.f32.mrf.mxu0
        %v6558 = vadd.f32 0.0, %v6557
        %v6559 = vpop.f32.mrf.mxu0
        %6560 = vmatprep.mubr.bf16.mxu0 0
        %6561 = vmatmul.mubr.bf16.gmra.mxu0 %v6356
        %v6562 = vpop.f32.mrf.mxu0
        %v6563 = vadd.f32 0.0, %v6562
        %v6564 = vpop.f32.mrf.mxu0
        %v6565 = vpop.f32.mrf.mxu0
        %v6566 = vadd.f32 0.0, %v6565
        %v6567 = vpop.f32.mrf.mxu0
        %6568 = vmatprep.mubr.bf16.mxu0 0
        %6569 = vmatmul.mubr.bf16.gmra.mxu0 %v6357
        %v6570 = vpop.f32.mrf.mxu0
        %v6571 = vadd.f32 0.0, %v6570
        %v6572 = vpop.f32.mrf.mxu0
        %v6573 = vpop.f32.mrf.mxu0
        %v6574 = vadd.f32 0.0, %v6573
        %v6575 = vpop.f32.mrf.mxu0
        %6576 = vmatprep.mubr.bf16.mxu0 0
        %6577 = vmatmul.mubr.bf16.gmra.mxu0 %v6358
        %v6578 = vpop.f32.mrf.mxu0
        %v6579 = vadd.f32 0.0, %v6578
        %v6580 = vpop.f32.mrf.mxu0
        %v6581 = vpop.f32.mrf.mxu0
        %v6582 = vadd.f32 0.0, %v6581
        %v6583 = vpop.f32.mrf.mxu0
        %6584 = vdwg.mxu0
        %v6585 = vadd.f32 %v6279, %v6459
        %v6586 = vadd.f32 %v6280, %v6462
        %v6587 = vadd.f32 %v6281, %v6467
        %v6588 = vadd.f32 %v6282, %v6470
        %v6589 = vadd.f32 %v6283, %v6475
        %v6590 = vadd.f32 %v6284, %v6478
        %v6591 = vadd.f32 %v6285, %v6483
        %v6592 = vadd.f32 %v6286, %v6486
        %v6593 = vadd.f32 %v6287, %v6491
        %v6594 = vadd.f32 %v6288, %v6494
        %v6595 = vadd.f32 %v6289, %v6499
        %v6596 = vadd.f32 %v6290, %v6502
        %v6597 = vadd.f32 %v6291, %v6507
        %v6598 = vadd.f32 %v6292, %v6510
        %v6599 = vadd.f32 %v6293, %v6515
        %v6600 = vadd.f32 %v6294, %v6518
        %v6601 = vadd.f32 %v6295, %v6523
        %v6602 = vadd.f32 %v6296, %v6526
        %v6603 = vadd.f32 %v6297, %v6531
        %v6604 = vadd.f32 %v6298, %v6534
        %v6605 = vadd.f32 %v6299, %v6539
        %v6606 = vadd.f32 %v6300, %v6542
        %v6607 = vadd.f32 %v6301, %v6547
        %v6608 = vadd.f32 %v6302, %v6550
        %v6609 = vadd.f32 %v6303, %v6555
        %v6610 = vadd.f32 %v6304, %v6558
        %v6611 = vadd.f32 %v6305, %v6563
        %v6612 = vadd.f32 %v6306, %v6566
        %v6613 = vadd.f32 %v6307, %v6571
        %v6614 = vadd.f32 %v6308, %v6574
        %v6615 = vadd.f32 %v6309, %v6579
        %v6616 = vadd.f32 %v6310, %v6582
        %v6617 = vld [vmem:[#allocation2 + $0x19] sm:$0xff]
        %v6618 = vld [vmem:[#allocation2 + $0x21] sm:$0xff]
        %v6619 = vld [vmem:[#allocation2 + $0x29] sm:$0xff]
        %v6620 = vld [vmem:[#allocation2 + $0x31] sm:$0xff]
        %v6621 = vld [vmem:[#allocation2 + $0x39] sm:$0xff]
        %v6622 = vld [vmem:[#allocation2 + $0x41] sm:$0xff]
        %v6623 = vld [vmem:[#allocation2 + $0x49] sm:$0xff]
        %v6624 = vld [vmem:[#allocation2 + $0x51] sm:$0xff]
        %v6625 = vld [vmem:[#allocation2 + $0x59] sm:$0xff]
        %v6626 = vld [vmem:[#allocation2 + $0x61] sm:$0xff]
        %v6627 = vld [vmem:[#allocation2 + $0x69] sm:$0xff]
        %v6628 = vld [vmem:[#allocation2 + $0x71] sm:$0xff]
        %v6629 = vld [vmem:[#allocation2 + $0x79] sm:$0xff]
        %v6630 = vld [vmem:[#allocation2 + $0x81] sm:$0xff]
        %v6631 = vld [vmem:[#allocation2 + $0x89] sm:$0xff]
        %v6632 = vld [vmem:[#allocation2 + $0x91] sm:$0xff]
        %v6633 = vld [vmem:[#allocation2 + $0x99] sm:$0xff]
        %v6634 = vld [vmem:[#allocation2 + $0xa1] sm:$0xff]
        %v6635 = vld [vmem:[#allocation2 + $0xa9] sm:$0xff]
        %v6636 = vld [vmem:[#allocation2 + $0xb1] sm:$0xff]
        %v6637 = vld [vmem:[#allocation2 + $0xb9] sm:$0xff]
        %v6638 = vld [vmem:[#allocation2 + $0xc1] sm:$0xff]
        %v6639 = vld [vmem:[#allocation2 + $0xc9] sm:$0xff]
        %v6640 = vld [vmem:[#allocation2 + $0xd1] sm:$0xff]
        %v6641 = vld [vmem:[#allocation2 + $0xd9] sm:$0xff]
        %v6642 = vld [vmem:[#allocation2 + $0xe1] sm:$0xff]
        %v6643 = vld [vmem:[#allocation2 + $0xe9] sm:$0xff]
        %v6644 = vld [vmem:[#allocation2 + $0xf1] sm:$0xff]
        %v6645 = vld [vmem:[#allocation2 + $0xf9] sm:$0xff]
        %v6646 = vld [vmem:[#allocation2 + $0x101] sm:$0xff]
        %v6647 = vld [vmem:[#allocation2 + $0x109] sm:$0xff]
        %v6648 = vld [vmem:[#allocation2 + $0x111] sm:$0xff]
        %v6649 = vsel %vm2208, %v6617, 0.0
        %v6650 = vsel %vm2209, %v6618, 0.0
        %v6651 = vsel %vm2210, %v6619, 0.0
        %v6652 = vsel %vm2211, %v6620, 0.0
        %v6653 = vsel %vm2212, %v6621, 0.0
        %v6654 = vsel %vm2213, %v6622, 0.0
        %v6655 = vsel %vm2214, %v6623, 0.0
        %v6656 = vsel %vm2215, %v6624, 0.0
        %v6657 = vsel %vm2216, %v6625, 0.0
        %v6658 = vsel %vm2217, %v6626, 0.0
        %v6659 = vsel %vm2218, %v6627, 0.0
        %v6660 = vsel %vm2219, %v6628, 0.0
        %v6661 = vsel %vm2220, %v6629, 0.0
        %v6662 = vsel %vm2221, %v6630, 0.0
        %v6663 = vsel %vm2222, %v6631, 0.0
        %v6664 = vsel %vm2223, %v6632, 0.0
        %v6665 = vsel %vm2224, %v6633, 0.0
        %v6666 = vsel %vm2225, %v6634, 0.0
        %v6667 = vsel %vm2226, %v6635, 0.0
        %v6668 = vsel %vm2227, %v6636, 0.0
        %v6669 = vsel %vm2228, %v6637, 0.0
        %v6670 = vsel %vm2229, %v6638, 0.0
        %v6671 = vsel %vm2230, %v6639, 0.0
        %v6672 = vsel %vm2231, %v6640, 0.0
        %v6673 = vsel %vm2232, %v6641, 0.0
        %v6674 = vsel %vm2233, %v6642, 0.0
        %v6675 = vsel %vm2234, %v6643, 0.0
        %v6676 = vsel %vm2235, %v6644, 0.0
        %v6677 = vsel %vm2236, %v6645, 0.0
        %v6678 = vsel %vm2237, %v6646, 0.0
        %v6679 = vsel %vm2238, %v6647, 0.0
        %v6680 = vsel %vm2239, %v6648, 0.0
        %v6681 = vpack.c.bf16 %v6650, %v6649
        %v6682 = vpack.c.bf16 %v6652, %v6651
        %v6683 = vpack.c.bf16 %v6654, %v6653
        %v6684 = vpack.c.bf16 %v6656, %v6655
        %v6685 = vpack.c.bf16 %v6658, %v6657
        %v6686 = vpack.c.bf16 %v6660, %v6659
        %v6687 = vpack.c.bf16 %v6662, %v6661
        %v6688 = vpack.c.bf16 %v6664, %v6663
        %v6689 = vpack.c.bf16 %v6666, %v6665
        %v6690 = vpack.c.bf16 %v6668, %v6667
        %v6691 = vpack.c.bf16 %v6670, %v6669
        %v6692 = vpack.c.bf16 %v6672, %v6671
        %v6693 = vpack.c.bf16 %v6674, %v6673
        %v6694 = vpack.c.bf16 %v6676, %v6675
        %v6695 = vpack.c.bf16 %v6678, %v6677
        %v6696 = vpack.c.bf16 %v6680, %v6679
        %s6697 = scalar_lea.vmem [#allocation9], 320
        %v6698 = vld [vmem:[%s6697] sm:$0xf]
        %v6699 = vld [vmem:[%s6697 + $0x4] sm:$0xf]
        %v6700 = vld [vmem:[%s6697 + $0x8] sm:$0xf]
        %v6701 = vld [vmem:[%s6697 + $0xc] sm:$0xf]
        %v6702 = vld [vmem:[%s6697 + $0x10] sm:$0xf]
        %v6703 = vld [vmem:[%s6697 + $0x14] sm:$0xf]
        %v6704 = vld [vmem:[%s6697 + $0x18] sm:$0xf]
        %v6705 = vld [vmem:[%s6697 + $0x1c] sm:$0xf]
        %v6706 = vld [vmem:[%s6697 + $0x20] sm:$0xf]
        %v6707 = vld [vmem:[%s6697 + $0x24] sm:$0xf]
        %v6708 = vld [vmem:[%s6697 + $0x28] sm:$0xf]
        %v6709 = vld [vmem:[%s6697 + $0x2c] sm:$0xf]
        %v6710 = vld [vmem:[%s6697 + $0x30] sm:$0xf]
        %v6711 = vld [vmem:[%s6697 + $0x34] sm:$0xf]
        %v6712 = vld [vmem:[%s6697 + $0x38] sm:$0xf]
        %v6713 = vld [vmem:[%s6697 + $0x3c] sm:$0xf]
        %v6730 = vunpack.c.l.b16 %v6698
        %v6731 = vunpack.c.l.b16 %v6699
        %v6732 = vunpack.c.l.b16 %v6700
        %v6733 = vunpack.c.l.b16 %v6701
        %v6734 = vunpack.c.l.b16 %v6702
        %v6735 = vunpack.c.l.b16 %v6703
        %v6736 = vunpack.c.l.b16 %v6704
        %v6737 = vunpack.c.l.b16 %v6705
        %v6738 = vunpack.c.l.b16 %v6706
        %v6739 = vunpack.c.l.b16 %v6707
        %v6740 = vunpack.c.l.b16 %v6708
        %v6741 = vunpack.c.l.b16 %v6709
        %v6742 = vunpack.c.l.b16 %v6710
        %v6743 = vunpack.c.l.b16 %v6711
        %v6744 = vunpack.c.l.b16 %v6712
        %v6745 = vunpack.c.l.b16 %v6713
        %v6746 = vpack.c.b16 %v6731, %v6730
        %v6747 = vpack.c.b16 %v6733, %v6732
        %v6748 = vpack.c.b16 %v6735, %v6734
        %v6749 = vpack.c.b16 %v6737, %v6736
        %v6750 = vpack.c.b16 %v6739, %v6738
        %v6751 = vpack.c.b16 %v6741, %v6740
        %v6752 = vpack.c.b16 %v6743, %v6742
        %v6753 = vpack.c.b16 %v6745, %v6744
        %6762 = vmatprep.subr.bf16.mxu0 0
        %6763 = vmatpush1.bf16.msra.mxu0 %v6753
        %6764 = vmatprep.subr.bf16.mxu0 0
        %6765 = vmatpush1.bf16.msra.mxu0 %v6752
        %6766 = vmatprep.subr.bf16.mxu0 0
        %6767 = vmatpush1.bf16.msra.mxu0 %v6751
        %6768 = vmatprep.subr.bf16.mxu0 0
        %6769 = vmatpush1.bf16.msra.mxu0 %v6750
        %6770 = vmatprep.subr.bf16.mxu0 0
        %6771 = vmatpush1.bf16.msra.mxu0 %v6749
        %6772 = vmatprep.subr.bf16.mxu0 0
        %6773 = vmatpush1.bf16.msra.mxu0 %v6748
        %6774 = vmatprep.subr.bf16.mxu0 0
        %6775 = vmatpush1.bf16.msra.mxu0 %v6747
        %6776 = vmatprep.subr.bf16.mxu0 0
        %6777 = vmatpush1.bf16.msra.mxu0 %v6746
        %6778 = vmatprep.subr.bf16.mxu0 0
        %6779 = vmatpush2.bf16.msra.mxu0 0
        %6780 = vmatprep.subr.bf16.mxu0 0
        %6781 = vmatpush2.bf16.msra.mxu0 0
        %6782 = vmatprep.subr.bf16.mxu0 0
        %6783 = vmatpush2.bf16.msra.mxu0 0
        %6784 = vmatprep.subr.bf16.mxu0 0
        %6785 = vmatpush2.bf16.msra.mxu0 0
        %6786 = vmatprep.subr.bf16.mxu0 0
        %6787 = vmatpush2.bf16.msra.mxu0 0
        %6788 = vmatprep.subr.bf16.mxu0 0
        %6789 = vmatpush2.bf16.msra.mxu0 0
        %6790 = vmatprep.subr.bf16.mxu0 0
        %6791 = vmatpush2.bf16.msra.mxu0 0
        %6792 = vmatprep.subr.bf16.mxu0 0
        %6793 = vmatpush2.bf16.msra.mxu0 0
        %6794 = vmatprep.mubr.bf16.mxu0 0
        %6795 = vmatmul.mubr.bf16.gmra.mxu0 %v6681
        %v6796 = vpop.f32.mrf.mxu0
        %v6797 = vadd.f32 0.0, %v6796
        %v6798 = vpop.f32.mrf.mxu0
        %v6799 = vpop.f32.mrf.mxu0
        %v6800 = vadd.f32 0.0, %v6799
        %v6801 = vpop.f32.mrf.mxu0
        %6802 = vmatprep.mubr.bf16.mxu0 0
        %6803 = vmatmul.mubr.bf16.gmra.mxu0 %v6682
        %v6804 = vpop.f32.mrf.mxu0
        %v6805 = vadd.f32 0.0, %v6804
        %v6806 = vpop.f32.mrf.mxu0
        %v6807 = vpop.f32.mrf.mxu0
        %v6808 = vadd.f32 0.0, %v6807
        %v6809 = vpop.f32.mrf.mxu0
        %6810 = vmatprep.mubr.bf16.mxu0 0
        %6811 = vmatmul.mubr.bf16.gmra.mxu0 %v6683
        %v6812 = vpop.f32.mrf.mxu0
        %v6813 = vadd.f32 0.0, %v6812
        %v6814 = vpop.f32.mrf.mxu0
        %v6815 = vpop.f32.mrf.mxu0
        %v6816 = vadd.f32 0.0, %v6815
        %v6817 = vpop.f32.mrf.mxu0
        %6818 = vmatprep.mubr.bf16.mxu0 0
        %6819 = vmatmul.mubr.bf16.gmra.mxu0 %v6684
        %v6820 = vpop.f32.mrf.mxu0
        %v6821 = vadd.f32 0.0, %v6820
        %v6822 = vpop.f32.mrf.mxu0
        %v6823 = vpop.f32.mrf.mxu0
        %v6824 = vadd.f32 0.0, %v6823
        %v6825 = vpop.f32.mrf.mxu0
        %6826 = vmatprep.mubr.bf16.mxu0 0
        %6827 = vmatmul.mubr.bf16.gmra.mxu0 %v6685
        %v6828 = vpop.f32.mrf.mxu0
        %v6829 = vadd.f32 0.0, %v6828
        %v6830 = vpop.f32.mrf.mxu0
        %v6831 = vpop.f32.mrf.mxu0
        %v6832 = vadd.f32 0.0, %v6831
        %v6833 = vpop.f32.mrf.mxu0
        %6834 = vmatprep.mubr.bf16.mxu0 0
        %6835 = vmatmul.mubr.bf16.gmra.mxu0 %v6686
        %v6836 = vpop.f32.mrf.mxu0
        %v6837 = vadd.f32 0.0, %v6836
        %v6838 = vpop.f32.mrf.mxu0
        %v6839 = vpop.f32.mrf.mxu0
        %v6840 = vadd.f32 0.0, %v6839
        %v6841 = vpop.f32.mrf.mxu0
        %6842 = vmatprep.mubr.bf16.mxu0 0
        %6843 = vmatmul.mubr.bf16.gmra.mxu0 %v6687
        %v6844 = vpop.f32.mrf.mxu0
        %v6845 = vadd.f32 0.0, %v6844
        %v6846 = vpop.f32.mrf.mxu0
        %v6847 = vpop.f32.mrf.mxu0
        %v6848 = vadd.f32 0.0, %v6847
        %v6849 = vpop.f32.mrf.mxu0
        %6850 = vmatprep.mubr.bf16.mxu0 0
        %6851 = vmatmul.mubr.bf16.gmra.mxu0 %v6688
        %v6852 = vpop.f32.mrf.mxu0
        %v6853 = vadd.f32 0.0, %v6852
        %v6854 = vpop.f32.mrf.mxu0
        %v6855 = vpop.f32.mrf.mxu0
        %v6856 = vadd.f32 0.0, %v6855
        %v6857 = vpop.f32.mrf.mxu0
        %6858 = vmatprep.mubr.bf16.mxu0 0
        %6859 = vmatmul.mubr.bf16.gmra.mxu0 %v6689
        %v6860 = vpop.f32.mrf.mxu0
        %v6861 = vadd.f32 0.0, %v6860
        %v6862 = vpop.f32.mrf.mxu0
        %v6863 = vpop.f32.mrf.mxu0
        %v6864 = vadd.f32 0.0, %v6863
        %v6865 = vpop.f32.mrf.mxu0
        %6866 = vmatprep.mubr.bf16.mxu0 0
        %6867 = vmatmul.mubr.bf16.gmra.mxu0 %v6690
        %v6868 = vpop.f32.mrf.mxu0
        %v6869 = vadd.f32 0.0, %v6868
        %v6870 = vpop.f32.mrf.mxu0
        %v6871 = vpop.f32.mrf.mxu0
        %v6872 = vadd.f32 0.0, %v6871
        %v6873 = vpop.f32.mrf.mxu0
        %6874 = vmatprep.mubr.bf16.mxu0 0
        %6875 = vmatmul.mubr.bf16.gmra.mxu0 %v6691
        %v6876 = vpop.f32.mrf.mxu0
        %v6877 = vadd.f32 0.0, %v6876
        %v6878 = vpop.f32.mrf.mxu0
        %v6879 = vpop.f32.mrf.mxu0
        %v6880 = vadd.f32 0.0, %v6879
        %v6881 = vpop.f32.mrf.mxu0
        %6882 = vmatprep.mubr.bf16.mxu0 0
        %6883 = vmatmul.mubr.bf16.gmra.mxu0 %v6692
        %v6884 = vpop.f32.mrf.mxu0
        %v6885 = vadd.f32 0.0, %v6884
        %v6886 = vpop.f32.mrf.mxu0
        %v6887 = vpop.f32.mrf.mxu0
        %v6888 = vadd.f32 0.0, %v6887
        %v6889 = vpop.f32.mrf.mxu0
        %6890 = vmatprep.mubr.bf16.mxu0 0
        %6891 = vmatmul.mubr.bf16.gmra.mxu0 %v6693
        %v6892 = vpop.f32.mrf.mxu0
        %v6893 = vadd.f32 0.0, %v6892
        %v6894 = vpop.f32.mrf.mxu0
        %v6895 = vpop.f32.mrf.mxu0
        %v6896 = vadd.f32 0.0, %v6895
        %v6897 = vpop.f32.mrf.mxu0
        %6898 = vmatprep.mubr.bf16.mxu0 0
        %6899 = vmatmul.mubr.bf16.gmra.mxu0 %v6694
        %v6900 = vpop.f32.mrf.mxu0
        %v6901 = vadd.f32 0.0, %v6900
        %v6902 = vpop.f32.mrf.mxu0
        %v6903 = vpop.f32.mrf.mxu0
        %v6904 = vadd.f32 0.0, %v6903
        %v6905 = vpop.f32.mrf.mxu0
        %6906 = vmatprep.mubr.bf16.mxu0 0
        %6907 = vmatmul.mubr.bf16.gmra.mxu0 %v6695
        %v6908 = vpop.f32.mrf.mxu0
        %v6909 = vadd.f32 0.0, %v6908
        %v6910 = vpop.f32.mrf.mxu0
        %v6911 = vpop.f32.mrf.mxu0
        %v6912 = vadd.f32 0.0, %v6911
        %v6913 = vpop.f32.mrf.mxu0
        %6914 = vmatprep.mubr.bf16.mxu0 0
        %6915 = vmatmul.mubr.bf16.gmra.mxu0 %v6696
        %v6916 = vpop.f32.mrf.mxu0
        %v6917 = vadd.f32 0.0, %v6916
        %v6918 = vpop.f32.mrf.mxu0
        %v6919 = vpop.f32.mrf.mxu0
        %v6920 = vadd.f32 0.0, %v6919
        %v6921 = vpop.f32.mrf.mxu0
        %6922 = vdwg.mxu0
        %v6923 = vadd.f32 %v6585, %v6797
        %v6924 = vadd.f32 %v6586, %v6800
        %v6925 = vadd.f32 %v6587, %v6805
        %v6926 = vadd.f32 %v6588, %v6808
        %v6927 = vadd.f32 %v6589, %v6813
        %v6928 = vadd.f32 %v6590, %v6816
        %v6929 = vadd.f32 %v6591, %v6821
        %v6930 = vadd.f32 %v6592, %v6824
        %v6931 = vadd.f32 %v6593, %v6829
        %v6932 = vadd.f32 %v6594, %v6832
        %v6933 = vadd.f32 %v6595, %v6837
        %v6934 = vadd.f32 %v6596, %v6840
        %v6935 = vadd.f32 %v6597, %v6845
        %v6936 = vadd.f32 %v6598, %v6848
        %v6937 = vadd.f32 %v6599, %v6853
        %v6938 = vadd.f32 %v6600, %v6856
        %v6939 = vadd.f32 %v6601, %v6861
        %v6940 = vadd.f32 %v6602, %v6864
        %v6941 = vadd.f32 %v6603, %v6869
        %v6942 = vadd.f32 %v6604, %v6872
        %v6943 = vadd.f32 %v6605, %v6877
        %v6944 = vadd.f32 %v6606, %v6880
        %v6945 = vadd.f32 %v6607, %v6885
        %v6946 = vadd.f32 %v6608, %v6888
        %v6947 = vadd.f32 %v6609, %v6893
        %v6948 = vadd.f32 %v6610, %v6896
        %v6949 = vadd.f32 %v6611, %v6901
        %v6950 = vadd.f32 %v6612, %v6904
        %v6951 = vadd.f32 %v6613, %v6909
        %v6952 = vadd.f32 %v6614, %v6912
        %v6953 = vadd.f32 %v6615, %v6917
        %v6954 = vadd.f32 %v6616, %v6920
        %v6955 = vld [vmem:[#allocation2 + $0x27] sm:$0xff]
        %v6956 = vld [vmem:[#allocation2 + $0x2f] sm:$0xff]
        %v6957 = vld [vmem:[#allocation2 + $0x37] sm:$0xff]
        %v6958 = vld [vmem:[#allocation2 + $0x3f] sm:$0xff]
        %v6959 = vld [vmem:[#allocation2 + $0x47] sm:$0xff]
        %v6960 = vld [vmem:[#allocation2 + $0x4f] sm:$0xff]
        %v6961 = vld [vmem:[#allocation2 + $0x57] sm:$0xff]
        %v6962 = vld [vmem:[#allocation2 + $0x5f] sm:$0xff]
        %v6963 = vld [vmem:[#allocation2 + $0x67] sm:$0xff]
        %v6964 = vld [vmem:[#allocation2 + $0x6f] sm:$0xff]
        %v6965 = vld [vmem:[#allocation2 + $0x77] sm:$0xff]
        %v6966 = vld [vmem:[#allocation2 + $0x7f] sm:$0xff]
        %v6967 = vld [vmem:[#allocation2 + $0x87] sm:$0xff]
        %v6968 = vld [vmem:[#allocation2 + $0x8f] sm:$0xff]
        %v6969 = vld [vmem:[#allocation2 + $0x97] sm:$0xff]
        %v6970 = vld [vmem:[#allocation2 + $0x9f] sm:$0xff]
        %v6971 = vld [vmem:[#allocation2 + $0xa7] sm:$0xff]
        %v6972 = vld [vmem:[#allocation2 + $0xaf] sm:$0xff]
        %v6973 = vld [vmem:[#allocation2 + $0xb7] sm:$0xff]
        %v6974 = vld [vmem:[#allocation2 + $0xbf] sm:$0xff]
        %v6975 = vld [vmem:[#allocation2 + $0xc7] sm:$0xff]
        %v6976 = vld [vmem:[#allocation2 + $0xcf] sm:$0xff]
        %v6977 = vld [vmem:[#allocation2 + $0xd7] sm:$0xff]
        %v6978 = vld [vmem:[#allocation2 + $0xdf] sm:$0xff]
        %v6979 = vld [vmem:[#allocation2 + $0xe7] sm:$0xff]
        %v6980 = vld [vmem:[#allocation2 + $0xef] sm:$0xff]
        %v6981 = vld [vmem:[#allocation2 + $0xf7] sm:$0xff]
        %v6982 = vld [vmem:[#allocation2 + $0xff] sm:$0xff]
        %v6983 = vld [vmem:[#allocation2 + $0x107] sm:$0xff]
        %v6984 = vld [vmem:[#allocation2 + $0x10f] sm:$0xff]
        %v6985 = vld [vmem:[#allocation2 + $0x117] sm:$0xff]
        %v6986 = vld [vmem:[#allocation2 + $0x11f] sm:$0xff]
        %v6987 = vsel %vm1565, %v6955, 0.0
        %v6988 = vsel %vm1566, %v6956, 0.0
        %v6989 = vsel %vm1567, %v6957, 0.0
        %v6990 = vsel %vm1568, %v6958, 0.0
        %v6991 = vsel %vm1569, %v6959, 0.0
        %v6992 = vsel %vm1570, %v6960, 0.0
        %v6993 = vsel %vm1571, %v6961, 0.0
        %v6994 = vsel %vm1572, %v6962, 0.0
        %v6995 = vsel %vm1573, %v6963, 0.0
        %v6996 = vsel %vm1574, %v6964, 0.0
        %v6997 = vsel %vm1575, %v6965, 0.0
        %v6998 = vsel %vm1576, %v6966, 0.0
        %v6999 = vsel %vm1577, %v6967, 0.0
        %v7000 = vsel %vm1578, %v6968, 0.0
        %v7001 = vsel %vm1579, %v6969, 0.0
        %v7002 = vsel %vm1580, %v6970, 0.0
        %v7003 = vsel %vm1581, %v6971, 0.0
        %v7004 = vsel %vm1582, %v6972, 0.0
        %v7005 = vsel %vm1583, %v6973, 0.0
        %v7006 = vsel %vm1584, %v6974, 0.0
        %v7007 = vsel %vm1585, %v6975, 0.0
        %v7008 = vsel %vm1586, %v6976, 0.0
        %v7009 = vsel %vm1587, %v6977, 0.0
        %v7010 = vsel %vm1588, %v6978, 0.0
        %v7011 = vsel %vm1589, %v6979, 0.0
        %v7012 = vsel %vm1590, %v6980, 0.0
        %v7013 = vsel %vm1591, %v6981, 0.0
        %v7014 = vsel %vm1592, %v6982, 0.0
        %v7015 = vsel %vm1593, %v6983, 0.0
        %v7016 = vsel %vm1594, %v6984, 0.0
        %v7017 = vsel %vm1595, %v6985, 0.0
        %v7018 = vsel %vm1596, %v6986, 0.0
        %v7019 = vpack.c.bf16 %v6988, %v6987
        %v7020 = vpack.c.bf16 %v6990, %v6989
        %v7021 = vpack.c.bf16 %v6992, %v6991
        %v7022 = vpack.c.bf16 %v6994, %v6993
        %v7023 = vpack.c.bf16 %v6996, %v6995
        %v7024 = vpack.c.bf16 %v6998, %v6997
        %v7025 = vpack.c.bf16 %v7000, %v6999
        %v7026 = vpack.c.bf16 %v7002, %v7001
        %v7027 = vpack.c.bf16 %v7004, %v7003
        %v7028 = vpack.c.bf16 %v7006, %v7005
        %v7029 = vpack.c.bf16 %v7008, %v7007
        %v7030 = vpack.c.bf16 %v7010, %v7009
        %v7031 = vpack.c.bf16 %v7012, %v7011
        %v7032 = vpack.c.bf16 %v7014, %v7013
        %v7033 = vpack.c.bf16 %v7016, %v7015
        %v7034 = vpack.c.bf16 %v7018, %v7017
        %s7035 = scalar_lea.vmem [#allocation9], 384
        %v7036 = vld [vmem:[%s7035] sm:$0xf]
        %v7037 = vld [vmem:[%s7035 + $0x4] sm:$0xf]
        %v7038 = vld [vmem:[%s7035 + $0x8] sm:$0xf]
        %v7039 = vld [vmem:[%s7035 + $0xc] sm:$0xf]
        %v7040 = vld [vmem:[%s7035 + $0x10] sm:$0xf]
        %v7041 = vld [vmem:[%s7035 + $0x14] sm:$0xf]
        %v7042 = vld [vmem:[%s7035 + $0x18] sm:$0xf]
        %v7043 = vld [vmem:[%s7035 + $0x1c] sm:$0xf]
        %v7044 = vld [vmem:[%s7035 + $0x20] sm:$0xf]
        %v7045 = vld [vmem:[%s7035 + $0x24] sm:$0xf]
        %v7046 = vld [vmem:[%s7035 + $0x28] sm:$0xf]
        %v7047 = vld [vmem:[%s7035 + $0x2c] sm:$0xf]
        %v7048 = vld [vmem:[%s7035 + $0x30] sm:$0xf]
        %v7049 = vld [vmem:[%s7035 + $0x34] sm:$0xf]
        %v7050 = vld [vmem:[%s7035 + $0x38] sm:$0xf]
        %v7051 = vld [vmem:[%s7035 + $0x3c] sm:$0xf]
        %v7068 = vunpack.c.l.b16 %v7036
        %v7069 = vunpack.c.l.b16 %v7037
        %v7070 = vunpack.c.l.b16 %v7038
        %v7071 = vunpack.c.l.b16 %v7039
        %v7072 = vunpack.c.l.b16 %v7040
        %v7073 = vunpack.c.l.b16 %v7041
        %v7074 = vunpack.c.l.b16 %v7042
        %v7075 = vunpack.c.l.b16 %v7043
        %v7076 = vunpack.c.l.b16 %v7044
        %v7077 = vunpack.c.l.b16 %v7045
        %v7078 = vunpack.c.l.b16 %v7046
        %v7079 = vunpack.c.l.b16 %v7047
        %v7080 = vunpack.c.l.b16 %v7048
        %v7081 = vunpack.c.l.b16 %v7049
        %v7082 = vunpack.c.l.b16 %v7050
        %v7083 = vunpack.c.l.b16 %v7051
        %v7084 = vpack.c.b16 %v7069, %v7068
        %v7085 = vpack.c.b16 %v7071, %v7070
        %v7086 = vpack.c.b16 %v7073, %v7072
        %v7087 = vpack.c.b16 %v7075, %v7074
        %v7088 = vpack.c.b16 %v7077, %v7076
        %v7089 = vpack.c.b16 %v7079, %v7078
        %v7090 = vpack.c.b16 %v7081, %v7080
        %v7091 = vpack.c.b16 %v7083, %v7082
        %7100 = vmatprep.subr.bf16.mxu0 0
        %7101 = vmatpush1.bf16.msra.mxu0 %v7091
        %7102 = vmatprep.subr.bf16.mxu0 0
        %7103 = vmatpush1.bf16.msra.mxu0 %v7090
        %7104 = vmatprep.subr.bf16.mxu0 0
        %7105 = vmatpush1.bf16.msra.mxu0 %v7089
        %7106 = vmatprep.subr.bf16.mxu0 0
        %7107 = vmatpush1.bf16.msra.mxu0 %v7088
        %7108 = vmatprep.subr.bf16.mxu0 0
        %7109 = vmatpush1.bf16.msra.mxu0 %v7087
        %7110 = vmatprep.subr.bf16.mxu0 0
        %7111 = vmatpush1.bf16.msra.mxu0 %v7086
        %7112 = vmatprep.subr.bf16.mxu0 0
        %7113 = vmatpush1.bf16.msra.mxu0 %v7085
        %7114 = vmatprep.subr.bf16.mxu0 0
        %7115 = vmatpush1.bf16.msra.mxu0 %v7084
        %7116 = vmatprep.subr.bf16.mxu0 0
        %7117 = vmatpush2.bf16.msra.mxu0 0
        %7118 = vmatprep.subr.bf16.mxu0 0
        %7119 = vmatpush2.bf16.msra.mxu0 0
        %7120 = vmatprep.subr.bf16.mxu0 0
        %7121 = vmatpush2.bf16.msra.mxu0 0
        %7122 = vmatprep.subr.bf16.mxu0 0
        %7123 = vmatpush2.bf16.msra.mxu0 0
        %7124 = vmatprep.subr.bf16.mxu0 0
        %7125 = vmatpush2.bf16.msra.mxu0 0
        %7126 = vmatprep.subr.bf16.mxu0 0
        %7127 = vmatpush2.bf16.msra.mxu0 0
        %7128 = vmatprep.subr.bf16.mxu0 0
        %7129 = vmatpush2.bf16.msra.mxu0 0
        %7130 = vmatprep.subr.bf16.mxu0 0
        %7131 = vmatpush2.bf16.msra.mxu0 0
        %7132 = vmatprep.mubr.bf16.mxu0 0
        %7133 = vmatmul.mubr.bf16.gmra.mxu0 %v7019
        %v7134 = vpop.f32.mrf.mxu0
        %v7135 = vadd.f32 0.0, %v7134
        %v7136 = vpop.f32.mrf.mxu0
        %v7137 = vpop.f32.mrf.mxu0
        %v7138 = vadd.f32 0.0, %v7137
        %v7139 = vpop.f32.mrf.mxu0
        %7140 = vmatprep.mubr.bf16.mxu0 0
        %7141 = vmatmul.mubr.bf16.gmra.mxu0 %v7020
        %v7142 = vpop.f32.mrf.mxu0
        %v7143 = vadd.f32 0.0, %v7142
        %v7144 = vpop.f32.mrf.mxu0
        %v7145 = vpop.f32.mrf.mxu0
        %v7146 = vadd.f32 0.0, %v7145
        %v7147 = vpop.f32.mrf.mxu0
        %7148 = vmatprep.mubr.bf16.mxu0 0
        %7149 = vmatmul.mubr.bf16.gmra.mxu0 %v7021
        %v7150 = vpop.f32.mrf.mxu0
        %v7151 = vadd.f32 0.0, %v7150
        %v7152 = vpop.f32.mrf.mxu0
        %v7153 = vpop.f32.mrf.mxu0
        %v7154 = vadd.f32 0.0, %v7153
        %v7155 = vpop.f32.mrf.mxu0
        %7156 = vmatprep.mubr.bf16.mxu0 0
        %7157 = vmatmul.mubr.bf16.gmra.mxu0 %v7022
        %v7158 = vpop.f32.mrf.mxu0
        %v7159 = vadd.f32 0.0, %v7158
        %v7160 = vpop.f32.mrf.mxu0
        %v7161 = vpop.f32.mrf.mxu0
        %v7162 = vadd.f32 0.0, %v7161
        %v7163 = vpop.f32.mrf.mxu0
        %7164 = vmatprep.mubr.bf16.mxu0 0
        %7165 = vmatmul.mubr.bf16.gmra.mxu0 %v7023
        %v7166 = vpop.f32.mrf.mxu0
        %v7167 = vadd.f32 0.0, %v7166
        %v7168 = vpop.f32.mrf.mxu0
        %v7169 = vpop.f32.mrf.mxu0
        %v7170 = vadd.f32 0.0, %v7169
        %v7171 = vpop.f32.mrf.mxu0
        %7172 = vmatprep.mubr.bf16.mxu0 0
        %7173 = vmatmul.mubr.bf16.gmra.mxu0 %v7024
        %v7174 = vpop.f32.mrf.mxu0
        %v7175 = vadd.f32 0.0, %v7174
        %v7176 = vpop.f32.mrf.mxu0
        %v7177 = vpop.f32.mrf.mxu0
        %v7178 = vadd.f32 0.0, %v7177
        %v7179 = vpop.f32.mrf.mxu0
        %7180 = vmatprep.mubr.bf16.mxu0 0
        %7181 = vmatmul.mubr.bf16.gmra.mxu0 %v7025
        %v7182 = vpop.f32.mrf.mxu0
        %v7183 = vadd.f32 0.0, %v7182
        %v7184 = vpop.f32.mrf.mxu0
        %v7185 = vpop.f32.mrf.mxu0
        %v7186 = vadd.f32 0.0, %v7185
        %v7187 = vpop.f32.mrf.mxu0
        %7188 = vmatprep.mubr.bf16.mxu0 0
        %7189 = vmatmul.mubr.bf16.gmra.mxu0 %v7026
        %v7190 = vpop.f32.mrf.mxu0
        %v7191 = vadd.f32 0.0, %v7190
        %v7192 = vpop.f32.mrf.mxu0
        %v7193 = vpop.f32.mrf.mxu0
        %v7194 = vadd.f32 0.0, %v7193
        %v7195 = vpop.f32.mrf.mxu0
        %7196 = vmatprep.mubr.bf16.mxu0 0
        %7197 = vmatmul.mubr.bf16.gmra.mxu0 %v7027
        %v7198 = vpop.f32.mrf.mxu0
        %v7199 = vadd.f32 0.0, %v7198
        %v7200 = vpop.f32.mrf.mxu0
        %v7201 = vpop.f32.mrf.mxu0
        %v7202 = vadd.f32 0.0, %v7201
        %v7203 = vpop.f32.mrf.mxu0
        %7204 = vmatprep.mubr.bf16.mxu0 0
        %7205 = vmatmul.mubr.bf16.gmra.mxu0 %v7028
        %v7206 = vpop.f32.mrf.mxu0
        %v7207 = vadd.f32 0.0, %v7206
        %v7208 = vpop.f32.mrf.mxu0
        %v7209 = vpop.f32.mrf.mxu0
        %v7210 = vadd.f32 0.0, %v7209
        %v7211 = vpop.f32.mrf.mxu0
        %7212 = vmatprep.mubr.bf16.mxu0 0
        %7213 = vmatmul.mubr.bf16.gmra.mxu0 %v7029
        %v7214 = vpop.f32.mrf.mxu0
        %v7215 = vadd.f32 0.0, %v7214
        %v7216 = vpop.f32.mrf.mxu0
        %v7217 = vpop.f32.mrf.mxu0
        %v7218 = vadd.f32 0.0, %v7217
        %v7219 = vpop.f32.mrf.mxu0
        %7220 = vmatprep.mubr.bf16.mxu0 0
        %7221 = vmatmul.mubr.bf16.gmra.mxu0 %v7030
        %v7222 = vpop.f32.mrf.mxu0
        %v7223 = vadd.f32 0.0, %v7222
        %v7224 = vpop.f32.mrf.mxu0
        %v7225 = vpop.f32.mrf.mxu0
        %v7226 = vadd.f32 0.0, %v7225
        %v7227 = vpop.f32.mrf.mxu0
        %7228 = vmatprep.mubr.bf16.mxu0 0
        %7229 = vmatmul.mubr.bf16.gmra.mxu0 %v7031
        %v7230 = vpop.f32.mrf.mxu0
        %v7231 = vadd.f32 0.0, %v7230
        %v7232 = vpop.f32.mrf.mxu0
        %v7233 = vpop.f32.mrf.mxu0
        %v7234 = vadd.f32 0.0, %v7233
        %v7235 = vpop.f32.mrf.mxu0
        %7236 = vmatprep.mubr.bf16.mxu0 0
        %7237 = vmatmul.mubr.bf16.gmra.mxu0 %v7032
        %v7238 = vpop.f32.mrf.mxu0
        %v7239 = vadd.f32 0.0, %v7238
        %v7240 = vpop.f32.mrf.mxu0
        %v7241 = vpop.f32.mrf.mxu0
        %v7242 = vadd.f32 0.0, %v7241
        %v7243 = vpop.f32.mrf.mxu0
        %7244 = vmatprep.mubr.bf16.mxu0 0
        %7245 = vmatmul.mubr.bf16.gmra.mxu0 %v7033
        %v7246 = vpop.f32.mrf.mxu0
        %v7247 = vadd.f32 0.0, %v7246
        %v7248 = vpop.f32.mrf.mxu0
        %v7249 = vpop.f32.mrf.mxu0
        %v7250 = vadd.f32 0.0, %v7249
        %v7251 = vpop.f32.mrf.mxu0
        %7252 = vmatprep.mubr.bf16.mxu0 0
        %7253 = vmatmul.mubr.bf16.gmra.mxu0 %v7034
        %v7254 = vpop.f32.mrf.mxu0
        %v7255 = vadd.f32 0.0, %v7254
        %v7256 = vpop.f32.mrf.mxu0
        %v7257 = vpop.f32.mrf.mxu0
        %v7258 = vadd.f32 0.0, %v7257
        %v7259 = vpop.f32.mrf.mxu0
        %7260 = vdwg.mxu0
        %v7261 = vadd.f32 %v6923, %v7135
        %v7262 = vadd.f32 %v6924, %v7138
        %v7263 = vadd.f32 %v6925, %v7143
        %v7264 = vadd.f32 %v6926, %v7146
        %v7265 = vadd.f32 %v6927, %v7151
        %v7266 = vadd.f32 %v6928, %v7154
        %v7267 = vadd.f32 %v6929, %v7159
        %v7268 = vadd.f32 %v6930, %v7162
        %v7269 = vadd.f32 %v6931, %v7167
        %v7270 = vadd.f32 %v6932, %v7170
        %v7271 = vadd.f32 %v6933, %v7175
        %v7272 = vadd.f32 %v6934, %v7178
        %v7273 = vadd.f32 %v6935, %v7183
        %v7274 = vadd.f32 %v6936, %v7186
        %v7275 = vadd.f32 %v6937, %v7191
        %v7276 = vadd.f32 %v6938, %v7194
        %v7277 = vadd.f32 %v6939, %v7199
        %v7278 = vadd.f32 %v6940, %v7202
        %v7279 = vadd.f32 %v6941, %v7207
        %v7280 = vadd.f32 %v6942, %v7210
        %v7281 = vadd.f32 %v6943, %v7215
        %v7282 = vadd.f32 %v6944, %v7218
        %v7283 = vadd.f32 %v6945, %v7223
        %v7284 = vadd.f32 %v6946, %v7226
        %v7285 = vadd.f32 %v6947, %v7231
        %v7286 = vadd.f32 %v6948, %v7234
        %v7287 = vadd.f32 %v6949, %v7239
        %v7288 = vadd.f32 %v6950, %v7242
        %v7289 = vadd.f32 %v6951, %v7247
        %v7290 = vadd.f32 %v6952, %v7250
        %v7291 = vadd.f32 %v6953, %v7255
        %v7292 = vadd.f32 %v6954, %v7258
        %v7293 = vld [vmem:[#allocation2 + $0x28] sm:$0xff]
        %v7294 = vld [vmem:[#allocation2 + $0x30] sm:$0xff]
        %v7295 = vld [vmem:[#allocation2 + $0x38] sm:$0xff]
        %v7296 = vld [vmem:[#allocation2 + $0x40] sm:$0xff]
        %v7297 = vld [vmem:[#allocation2 + $0x48] sm:$0xff]
        %v7298 = vld [vmem:[#allocation2 + $0x50] sm:$0xff]
        %v7299 = vld [vmem:[#allocation2 + $0x58] sm:$0xff]
        %v7300 = vld [vmem:[#allocation2 + $0x60] sm:$0xff]
        %v7301 = vld [vmem:[#allocation2 + $0x68] sm:$0xff]
        %v7302 = vld [vmem:[#allocation2 + $0x70] sm:$0xff]
        %v7303 = vld [vmem:[#allocation2 + $0x78] sm:$0xff]
        %v7304 = vld [vmem:[#allocation2 + $0x80] sm:$0xff]
        %v7305 = vld [vmem:[#allocation2 + $0x88] sm:$0xff]
        %v7306 = vld [vmem:[#allocation2 + $0x90] sm:$0xff]
        %v7307 = vld [vmem:[#allocation2 + $0x98] sm:$0xff]
        %v7308 = vld [vmem:[#allocation2 + $0xa0] sm:$0xff]
        %v7309 = vld [vmem:[#allocation2 + $0xa8] sm:$0xff]
        %v7310 = vld [vmem:[#allocation2 + $0xb0] sm:$0xff]
        %v7311 = vld [vmem:[#allocation2 + $0xb8] sm:$0xff]
        %v7312 = vld [vmem:[#allocation2 + $0xc0] sm:$0xff]
        %v7313 = vld [vmem:[#allocation2 + $0xc8] sm:$0xff]
        %v7314 = vld [vmem:[#allocation2 + $0xd0] sm:$0xff]
        %v7315 = vld [vmem:[#allocation2 + $0xd8] sm:$0xff]
        %v7316 = vld [vmem:[#allocation2 + $0xe0] sm:$0xff]
        %v7317 = vld [vmem:[#allocation2 + $0xe8] sm:$0xff]
        %v7318 = vld [vmem:[#allocation2 + $0xf0] sm:$0xff]
        %v7319 = vld [vmem:[#allocation2 + $0xf8] sm:$0xff]
        %v7320 = vld [vmem:[#allocation2 + $0x100] sm:$0xff]
        %v7321 = vld [vmem:[#allocation2 + $0x108] sm:$0xff]
        %v7322 = vld [vmem:[#allocation2 + $0x110] sm:$0xff]
        %v7323 = vld [vmem:[#allocation2 + $0x118] sm:$0xff]
        %v7324 = vld [vmem:[#allocation2 + $0x120] sm:$0xff]
        %v7325 = vpack.c.bf16 %v7294, %v7293
        %v7326 = vpack.c.bf16 %v7296, %v7295
        %v7327 = vpack.c.bf16 %v7298, %v7297
        %v7328 = vpack.c.bf16 %v7300, %v7299
        %v7329 = vpack.c.bf16 %v7302, %v7301
        %v7330 = vpack.c.bf16 %v7304, %v7303
        %v7331 = vpack.c.bf16 %v7306, %v7305
        %v7332 = vpack.c.bf16 %v7308, %v7307
        %v7333 = vpack.c.bf16 %v7310, %v7309
        %v7334 = vpack.c.bf16 %v7312, %v7311
        %v7335 = vpack.c.bf16 %v7314, %v7313
        %v7336 = vpack.c.bf16 %v7316, %v7315
        %v7337 = vpack.c.bf16 %v7318, %v7317
        %v7338 = vpack.c.bf16 %v7320, %v7319
        %v7339 = vpack.c.bf16 %v7322, %v7321
        %v7340 = vpack.c.bf16 %v7324, %v7323
        %s7341 = scalar_lea.vmem [#allocation9], 448
        %v7342 = vld [vmem:[%s7341] sm:$0xf]
        %v7343 = vld [vmem:[%s7341 + $0x4] sm:$0xf]
        %v7344 = vld [vmem:[%s7341 + $0x8] sm:$0xf]
        %v7345 = vld [vmem:[%s7341 + $0xc] sm:$0xf]
        %v7346 = vld [vmem:[%s7341 + $0x10] sm:$0xf]
        %v7347 = vld [vmem:[%s7341 + $0x14] sm:$0xf]
        %v7348 = vld [vmem:[%s7341 + $0x18] sm:$0xf]
        %v7349 = vld [vmem:[%s7341 + $0x1c] sm:$0xf]
        %v7350 = vld [vmem:[%s7341 + $0x20] sm:$0xf]
        %v7351 = vld [vmem:[%s7341 + $0x24] sm:$0xf]
        %v7352 = vld [vmem:[%s7341 + $0x28] sm:$0xf]
        %v7353 = vld [vmem:[%s7341 + $0x2c] sm:$0xf]
        %v7354 = vld [vmem:[%s7341 + $0x30] sm:$0xf]
        %v7355 = vld [vmem:[%s7341 + $0x34] sm:$0xf]
        %v7356 = vld [vmem:[%s7341 + $0x38] sm:$0xf]
        %v7357 = vld [vmem:[%s7341 + $0x3c] sm:$0xf]
        %v7374 = vunpack.c.l.b16 %v7342
        %v7375 = vunpack.c.l.b16 %v7343
        %v7376 = vunpack.c.l.b16 %v7344
        %v7377 = vunpack.c.l.b16 %v7345
        %v7378 = vunpack.c.l.b16 %v7346
        %v7379 = vunpack.c.l.b16 %v7347
        %v7380 = vunpack.c.l.b16 %v7348
        %v7381 = vunpack.c.l.b16 %v7349
        %v7382 = vunpack.c.l.b16 %v7350
        %v7383 = vunpack.c.l.b16 %v7351
        %v7384 = vunpack.c.l.b16 %v7352
        %v7385 = vunpack.c.l.b16 %v7353
        %v7386 = vunpack.c.l.b16 %v7354
        %v7387 = vunpack.c.l.b16 %v7355
        %v7388 = vunpack.c.l.b16 %v7356
        %v7389 = vunpack.c.l.b16 %v7357
        %v7390 = vpack.c.b16 %v7375, %v7374
        %v7391 = vpack.c.b16 %v7377, %v7376
        %v7392 = vpack.c.b16 %v7379, %v7378
        %v7393 = vpack.c.b16 %v7381, %v7380
        %v7394 = vpack.c.b16 %v7383, %v7382
        %v7395 = vpack.c.b16 %v7385, %v7384
        %v7396 = vpack.c.b16 %v7387, %v7386
        %v7397 = vpack.c.b16 %v7389, %v7388
        %7406 = vmatprep.subr.bf16.mxu0 0
        %7407 = vmatpush1.bf16.msra.mxu0 %v7397
        %7408 = vmatprep.subr.bf16.mxu0 0
        %7409 = vmatpush1.bf16.msra.mxu0 %v7396
        %7410 = vmatprep.subr.bf16.mxu0 0
        %7411 = vmatpush1.bf16.msra.mxu0 %v7395
        %7412 = vmatprep.subr.bf16.mxu0 0
        %7413 = vmatpush1.bf16.msra.mxu0 %v7394
        %7414 = vmatprep.subr.bf16.mxu0 0
        %7415 = vmatpush1.bf16.msra.mxu0 %v7393
        %7416 = vmatprep.subr.bf16.mxu0 0
        %7417 = vmatpush1.bf16.msra.mxu0 %v7392
        %7418 = vmatprep.subr.bf16.mxu0 0
        %7419 = vmatpush1.bf16.msra.mxu0 %v7391
        %7420 = vmatprep.subr.bf16.mxu0 0
        %7421 = vmatpush1.bf16.msra.mxu0 %v7390
        %7422 = vmatprep.subr.bf16.mxu0 0
        %7423 = vmatpush2.bf16.msra.mxu0 0
        %7424 = vmatprep.subr.bf16.mxu0 0
        %7425 = vmatpush2.bf16.msra.mxu0 0
        %7426 = vmatprep.subr.bf16.mxu0 0
        %7427 = vmatpush2.bf16.msra.mxu0 0
        %7428 = vmatprep.subr.bf16.mxu0 0
        %7429 = vmatpush2.bf16.msra.mxu0 0
        %7430 = vmatprep.subr.bf16.mxu0 0
        %7431 = vmatpush2.bf16.msra.mxu0 0
        %7432 = vmatprep.subr.bf16.mxu0 0
        %7433 = vmatpush2.bf16.msra.mxu0 0
        %7434 = vmatprep.subr.bf16.mxu0 0
        %7435 = vmatpush2.bf16.msra.mxu0 0
        %7436 = vmatprep.subr.bf16.mxu0 0
        %7437 = vmatpush2.bf16.msra.mxu0 0
        %7438 = vmatprep.mubr.bf16.mxu0 0
        %7439 = vmatmul.mubr.bf16.gmra.mxu0 %v7325
        %v7440 = vpop.f32.mrf.mxu0
        %v7441 = vadd.f32 0.0, %v7440
        %v7442 = vpop.f32.mrf.mxu0
        %v7443 = vpop.f32.mrf.mxu0
        %v7444 = vadd.f32 0.0, %v7443
        %v7445 = vpop.f32.mrf.mxu0
        %7446 = vmatprep.mubr.bf16.mxu0 0
        %7447 = vmatmul.mubr.bf16.gmra.mxu0 %v7326
        %v7448 = vpop.f32.mrf.mxu0
        %v7449 = vadd.f32 0.0, %v7448
        %v7450 = vpop.f32.mrf.mxu0
        %v7451 = vpop.f32.mrf.mxu0
        %v7452 = vadd.f32 0.0, %v7451
        %v7453 = vpop.f32.mrf.mxu0
        %7454 = vmatprep.mubr.bf16.mxu0 0
        %7455 = vmatmul.mubr.bf16.gmra.mxu0 %v7327
        %v7456 = vpop.f32.mrf.mxu0
        %v7457 = vadd.f32 0.0, %v7456
        %v7458 = vpop.f32.mrf.mxu0
        %v7459 = vpop.f32.mrf.mxu0
        %v7460 = vadd.f32 0.0, %v7459
        %v7461 = vpop.f32.mrf.mxu0
        %7462 = vmatprep.mubr.bf16.mxu0 0
        %7463 = vmatmul.mubr.bf16.gmra.mxu0 %v7328
        %v7464 = vpop.f32.mrf.mxu0
        %v7465 = vadd.f32 0.0, %v7464
        %v7466 = vpop.f32.mrf.mxu0
        %v7467 = vpop.f32.mrf.mxu0
        %v7468 = vadd.f32 0.0, %v7467
        %v7469 = vpop.f32.mrf.mxu0
        %7470 = vmatprep.mubr.bf16.mxu0 0
        %7471 = vmatmul.mubr.bf16.gmra.mxu0 %v7329
        %v7472 = vpop.f32.mrf.mxu0
        %v7473 = vadd.f32 0.0, %v7472
        %v7474 = vpop.f32.mrf.mxu0
        %v7475 = vpop.f32.mrf.mxu0
        %v7476 = vadd.f32 0.0, %v7475
        %v7477 = vpop.f32.mrf.mxu0
        %7478 = vmatprep.mubr.bf16.mxu0 0
        %7479 = vmatmul.mubr.bf16.gmra.mxu0 %v7330
        %v7480 = vpop.f32.mrf.mxu0
        %v7481 = vadd.f32 0.0, %v7480
        %v7482 = vpop.f32.mrf.mxu0
        %v7483 = vpop.f32.mrf.mxu0
        %v7484 = vadd.f32 0.0, %v7483
        %v7485 = vpop.f32.mrf.mxu0
        %7486 = vmatprep.mubr.bf16.mxu0 0
        %7487 = vmatmul.mubr.bf16.gmra.mxu0 %v7331
        %v7488 = vpop.f32.mrf.mxu0
        %v7489 = vadd.f32 0.0, %v7488
        %v7490 = vpop.f32.mrf.mxu0
        %v7491 = vpop.f32.mrf.mxu0
        %v7492 = vadd.f32 0.0, %v7491
        %v7493 = vpop.f32.mrf.mxu0
        %7494 = vmatprep.mubr.bf16.mxu0 0
        %7495 = vmatmul.mubr.bf16.gmra.mxu0 %v7332
        %v7496 = vpop.f32.mrf.mxu0
        %v7497 = vadd.f32 0.0, %v7496
        %v7498 = vpop.f32.mrf.mxu0
        %v7499 = vpop.f32.mrf.mxu0
        %v7500 = vadd.f32 0.0, %v7499
        %v7501 = vpop.f32.mrf.mxu0
        %7502 = vmatprep.mubr.bf16.mxu0 0
        %7503 = vmatmul.mubr.bf16.gmra.mxu0 %v7333
        %v7504 = vpop.f32.mrf.mxu0
        %v7505 = vadd.f32 0.0, %v7504
        %v7506 = vpop.f32.mrf.mxu0
        %v7507 = vpop.f32.mrf.mxu0
        %v7508 = vadd.f32 0.0, %v7507
        %v7509 = vpop.f32.mrf.mxu0
        %7510 = vmatprep.mubr.bf16.mxu0 0
        %7511 = vmatmul.mubr.bf16.gmra.mxu0 %v7334
        %v7512 = vpop.f32.mrf.mxu0
        %v7513 = vadd.f32 0.0, %v7512
        %v7514 = vpop.f32.mrf.mxu0
        %v7515 = vpop.f32.mrf.mxu0
        %v7516 = vadd.f32 0.0, %v7515
        %v7517 = vpop.f32.mrf.mxu0
        %7518 = vmatprep.mubr.bf16.mxu0 0
        %7519 = vmatmul.mubr.bf16.gmra.mxu0 %v7335
        %v7520 = vpop.f32.mrf.mxu0
        %v7521 = vadd.f32 0.0, %v7520
        %v7522 = vpop.f32.mrf.mxu0
        %v7523 = vpop.f32.mrf.mxu0
        %v7524 = vadd.f32 0.0, %v7523
        %v7525 = vpop.f32.mrf.mxu0
        %7526 = vmatprep.mubr.bf16.mxu0 0
        %7527 = vmatmul.mubr.bf16.gmra.mxu0 %v7336
        %v7528 = vpop.f32.mrf.mxu0
        %v7529 = vadd.f32 0.0, %v7528
        %v7530 = vpop.f32.mrf.mxu0
        %v7531 = vpop.f32.mrf.mxu0
        %v7532 = vadd.f32 0.0, %v7531
        %v7533 = vpop.f32.mrf.mxu0
        %7534 = vmatprep.mubr.bf16.mxu0 0
        %7535 = vmatmul.mubr.bf16.gmra.mxu0 %v7337
        %v7536 = vpop.f32.mrf.mxu0
        %v7537 = vadd.f32 0.0, %v7536
        %v7538 = vpop.f32.mrf.mxu0
        %v7539 = vpop.f32.mrf.mxu0
        %v7540 = vadd.f32 0.0, %v7539
        %v7541 = vpop.f32.mrf.mxu0
        %7542 = vmatprep.mubr.bf16.mxu0 0
        %7543 = vmatmul.mubr.bf16.gmra.mxu0 %v7338
        %v7544 = vpop.f32.mrf.mxu0
        %v7545 = vadd.f32 0.0, %v7544
        %v7546 = vpop.f32.mrf.mxu0
        %v7547 = vpop.f32.mrf.mxu0
        %v7548 = vadd.f32 0.0, %v7547
        %v7549 = vpop.f32.mrf.mxu0
        %7550 = vmatprep.mubr.bf16.mxu0 0
        %7551 = vmatmul.mubr.bf16.gmra.mxu0 %v7339
        %v7552 = vpop.f32.mrf.mxu0
        %v7553 = vadd.f32 0.0, %v7552
        %v7554 = vpop.f32.mrf.mxu0
        %v7555 = vpop.f32.mrf.mxu0
        %v7556 = vadd.f32 0.0, %v7555
        %v7557 = vpop.f32.mrf.mxu0
        %7558 = vmatprep.mubr.bf16.mxu0 0
        %7559 = vmatmul.mubr.bf16.gmra.mxu0 %v7340
        %v7560 = vpop.f32.mrf.mxu0
        %v7561 = vadd.f32 0.0, %v7560
        %v7562 = vpop.f32.mrf.mxu0
        %v7563 = vpop.f32.mrf.mxu0
        %v7564 = vadd.f32 0.0, %v7563
        %v7565 = vpop.f32.mrf.mxu0
        %7566 = vdwg.mxu0
        %v7567 = vadd.f32 %v7261, %v7441
        %v7568 = vadd.f32 %v7262, %v7444
        %v7569 = vadd.f32 %v7263, %v7449
        %v7570 = vadd.f32 %v7264, %v7452
        %v7571 = vadd.f32 %v7265, %v7457
        %v7572 = vadd.f32 %v7266, %v7460
        %v7573 = vadd.f32 %v7267, %v7465
        %v7574 = vadd.f32 %v7268, %v7468
        %v7575 = vadd.f32 %v7269, %v7473
        %v7576 = vadd.f32 %v7270, %v7476
        %v7577 = vadd.f32 %v7271, %v7481
        %v7578 = vadd.f32 %v7272, %v7484
        %v7579 = vadd.f32 %v7273, %v7489
        %v7580 = vadd.f32 %v7274, %v7492
        %v7581 = vadd.f32 %v7275, %v7497
        %v7582 = vadd.f32 %v7276, %v7500
        %v7583 = vadd.f32 %v7277, %v7505
        %v7584 = vadd.f32 %v7278, %v7508
        %v7585 = vadd.f32 %v7279, %v7513
        %v7586 = vadd.f32 %v7280, %v7516
        %v7587 = vadd.f32 %v7281, %v7521
        %v7588 = vadd.f32 %v7282, %v7524
        %v7589 = vadd.f32 %v7283, %v7529
        %v7590 = vadd.f32 %v7284, %v7532
        %v7591 = vadd.f32 %v7285, %v7537
        %v7592 = vadd.f32 %v7286, %v7540
        %v7593 = vadd.f32 %v7287, %v7545
        %v7594 = vadd.f32 %v7288, %v7548
        %v7595 = vadd.f32 %v7289, %v7553
        %v7596 = vadd.f32 %v7290, %v7556
        %v7597 = vadd.f32 %v7291, %v7561
        %v7598 = vadd.f32 %v7292, %v7564
        %v7599 = vld [vmem:[#allocation2 + $0x29] sm:$0xff]
        %v7600 = vld [vmem:[#allocation2 + $0x31] sm:$0xff]
        %v7601 = vld [vmem:[#allocation2 + $0x39] sm:$0xff]
        %v7602 = vld [vmem:[#allocation2 + $0x41] sm:$0xff]
        %v7603 = vld [vmem:[#allocation2 + $0x49] sm:$0xff]
        %v7604 = vld [vmem:[#allocation2 + $0x51] sm:$0xff]
        %v7605 = vld [vmem:[#allocation2 + $0x59] sm:$0xff]
        %v7606 = vld [vmem:[#allocation2 + $0x61] sm:$0xff]
        %v7607 = vld [vmem:[#allocation2 + $0x69] sm:$0xff]
        %v7608 = vld [vmem:[#allocation2 + $0x71] sm:$0xff]
        %v7609 = vld [vmem:[#allocation2 + $0x79] sm:$0xff]
        %v7610 = vld [vmem:[#allocation2 + $0x81] sm:$0xff]
        %v7611 = vld [vmem:[#allocation2 + $0x89] sm:$0xff]
        %v7612 = vld [vmem:[#allocation2 + $0x91] sm:$0xff]
        %v7613 = vld [vmem:[#allocation2 + $0x99] sm:$0xff]
        %v7614 = vld [vmem:[#allocation2 + $0xa1] sm:$0xff]
        %v7615 = vld [vmem:[#allocation2 + $0xa9] sm:$0xff]
        %v7616 = vld [vmem:[#allocation2 + $0xb1] sm:$0xff]
        %v7617 = vld [vmem:[#allocation2 + $0xb9] sm:$0xff]
        %v7618 = vld [vmem:[#allocation2 + $0xc1] sm:$0xff]
        %v7619 = vld [vmem:[#allocation2 + $0xc9] sm:$0xff]
        %v7620 = vld [vmem:[#allocation2 + $0xd1] sm:$0xff]
        %v7621 = vld [vmem:[#allocation2 + $0xd9] sm:$0xff]
        %v7622 = vld [vmem:[#allocation2 + $0xe1] sm:$0xff]
        %v7623 = vld [vmem:[#allocation2 + $0xe9] sm:$0xff]
        %v7624 = vld [vmem:[#allocation2 + $0xf1] sm:$0xff]
        %v7625 = vld [vmem:[#allocation2 + $0xf9] sm:$0xff]
        %v7626 = vld [vmem:[#allocation2 + $0x101] sm:$0xff]
        %v7627 = vld [vmem:[#allocation2 + $0x109] sm:$0xff]
        %v7628 = vld [vmem:[#allocation2 + $0x111] sm:$0xff]
        %v7629 = vld [vmem:[#allocation2 + $0x119] sm:$0xff]
        %v7630 = vld [vmem:[#allocation2 + $0x121] sm:$0xff]
        %v7631 = vsel %vm2208, %v7599, 0.0
        %v7632 = vsel %vm2209, %v7600, 0.0
        %v7633 = vsel %vm2210, %v7601, 0.0
        %v7634 = vsel %vm2211, %v7602, 0.0
        %v7635 = vsel %vm2212, %v7603, 0.0
        %v7636 = vsel %vm2213, %v7604, 0.0
        %v7637 = vsel %vm2214, %v7605, 0.0
        %v7638 = vsel %vm2215, %v7606, 0.0
        %v7639 = vsel %vm2216, %v7607, 0.0
        %v7640 = vsel %vm2217, %v7608, 0.0
        %v7641 = vsel %vm2218, %v7609, 0.0
        %v7642 = vsel %vm2219, %v7610, 0.0
        %v7643 = vsel %vm2220, %v7611, 0.0
        %v7644 = vsel %vm2221, %v7612, 0.0
        %v7645 = vsel %vm2222, %v7613, 0.0
        %v7646 = vsel %vm2223, %v7614, 0.0
        %v7647 = vsel %vm2224, %v7615, 0.0
        %v7648 = vsel %vm2225, %v7616, 0.0
        %v7649 = vsel %vm2226, %v7617, 0.0
        %v7650 = vsel %vm2227, %v7618, 0.0
        %v7651 = vsel %vm2228, %v7619, 0.0
        %v7652 = vsel %vm2229, %v7620, 0.0
        %v7653 = vsel %vm2230, %v7621, 0.0
        %v7654 = vsel %vm2231, %v7622, 0.0
        %v7655 = vsel %vm2232, %v7623, 0.0
        %v7656 = vsel %vm2233, %v7624, 0.0
        %v7657 = vsel %vm2234, %v7625, 0.0
        %v7658 = vsel %vm2235, %v7626, 0.0
        %v7659 = vsel %vm2236, %v7627, 0.0
        %v7660 = vsel %vm2237, %v7628, 0.0
        %v7661 = vsel %vm2238, %v7629, 0.0
        %v7662 = vsel %vm2239, %v7630, 0.0
        %v7663 = vpack.c.bf16 %v7632, %v7631
        %v7664 = vpack.c.bf16 %v7634, %v7633
        %v7665 = vpack.c.bf16 %v7636, %v7635
        %v7666 = vpack.c.bf16 %v7638, %v7637
        %v7667 = vpack.c.bf16 %v7640, %v7639
        %v7668 = vpack.c.bf16 %v7642, %v7641
        %v7669 = vpack.c.bf16 %v7644, %v7643
        %v7670 = vpack.c.bf16 %v7646, %v7645
        %v7671 = vpack.c.bf16 %v7648, %v7647
        %v7672 = vpack.c.bf16 %v7650, %v7649
        %v7673 = vpack.c.bf16 %v7652, %v7651
        %v7674 = vpack.c.bf16 %v7654, %v7653
        %v7675 = vpack.c.bf16 %v7656, %v7655
        %v7676 = vpack.c.bf16 %v7658, %v7657
        %v7677 = vpack.c.bf16 %v7660, %v7659
        %v7678 = vpack.c.bf16 %v7662, %v7661
        %s7679 = scalar_lea.vmem [#allocation9], 512
        %v7680 = vld [vmem:[%s7679] sm:$0xf]
        %v7681 = vld [vmem:[%s7679 + $0x4] sm:$0xf]
        %v7682 = vld [vmem:[%s7679 + $0x8] sm:$0xf]
        %v7683 = vld [vmem:[%s7679 + $0xc] sm:$0xf]
        %v7684 = vld [vmem:[%s7679 + $0x10] sm:$0xf]
        %v7685 = vld [vmem:[%s7679 + $0x14] sm:$0xf]
        %v7686 = vld [vmem:[%s7679 + $0x18] sm:$0xf]
        %v7687 = vld [vmem:[%s7679 + $0x1c] sm:$0xf]
        %v7688 = vld [vmem:[%s7679 + $0x20] sm:$0xf]
        %v7689 = vld [vmem:[%s7679 + $0x24] sm:$0xf]
        %v7690 = vld [vmem:[%s7679 + $0x28] sm:$0xf]
        %v7691 = vld [vmem:[%s7679 + $0x2c] sm:$0xf]
        %v7692 = vld [vmem:[%s7679 + $0x30] sm:$0xf]
        %v7693 = vld [vmem:[%s7679 + $0x34] sm:$0xf]
        %v7694 = vld [vmem:[%s7679 + $0x38] sm:$0xf]
        %v7695 = vld [vmem:[%s7679 + $0x3c] sm:$0xf]
        %v7712 = vunpack.c.l.b16 %v7680
        %v7713 = vunpack.c.l.b16 %v7681
        %v7714 = vunpack.c.l.b16 %v7682
        %v7715 = vunpack.c.l.b16 %v7683
        %v7716 = vunpack.c.l.b16 %v7684
        %v7717 = vunpack.c.l.b16 %v7685
        %v7718 = vunpack.c.l.b16 %v7686
        %v7719 = vunpack.c.l.b16 %v7687
        %v7720 = vunpack.c.l.b16 %v7688
        %v7721 = vunpack.c.l.b16 %v7689
        %v7722 = vunpack.c.l.b16 %v7690
        %v7723 = vunpack.c.l.b16 %v7691
        %v7724 = vunpack.c.l.b16 %v7692
        %v7725 = vunpack.c.l.b16 %v7693
        %v7726 = vunpack.c.l.b16 %v7694
        %v7727 = vunpack.c.l.b16 %v7695
        %v7728 = vpack.c.b16 %v7713, %v7712
        %v7729 = vpack.c.b16 %v7715, %v7714
        %v7730 = vpack.c.b16 %v7717, %v7716
        %v7731 = vpack.c.b16 %v7719, %v7718
        %v7732 = vpack.c.b16 %v7721, %v7720
        %v7733 = vpack.c.b16 %v7723, %v7722
        %v7734 = vpack.c.b16 %v7725, %v7724
        %v7735 = vpack.c.b16 %v7727, %v7726
        %7744 = vmatprep.subr.bf16.mxu0 0
        %7745 = vmatpush1.bf16.msra.mxu0 %v7735
        %7746 = vmatprep.subr.bf16.mxu0 0
        %7747 = vmatpush1.bf16.msra.mxu0 %v7734
        %7748 = vmatprep.subr.bf16.mxu0 0
        %7749 = vmatpush1.bf16.msra.mxu0 %v7733
        %7750 = vmatprep.subr.bf16.mxu0 0
        %7751 = vmatpush1.bf16.msra.mxu0 %v7732
        %7752 = vmatprep.subr.bf16.mxu0 0
        %7753 = vmatpush1.bf16.msra.mxu0 %v7731
        %7754 = vmatprep.subr.bf16.mxu0 0
        %7755 = vmatpush1.bf16.msra.mxu0 %v7730
        %7756 = vmatprep.subr.bf16.mxu0 0
        %7757 = vmatpush1.bf16.msra.mxu0 %v7729
        %7758 = vmatprep.subr.bf16.mxu0 0
        %7759 = vmatpush1.bf16.msra.mxu0 %v7728
        %7760 = vmatprep.subr.bf16.mxu0 0
        %7761 = vmatpush2.bf16.msra.mxu0 0
        %7762 = vmatprep.subr.bf16.mxu0 0
        %7763 = vmatpush2.bf16.msra.mxu0 0
        %7764 = vmatprep.subr.bf16.mxu0 0
        %7765 = vmatpush2.bf16.msra.mxu0 0
        %7766 = vmatprep.subr.bf16.mxu0 0
        %7767 = vmatpush2.bf16.msra.mxu0 0
        %7768 = vmatprep.subr.bf16.mxu0 0
        %7769 = vmatpush2.bf16.msra.mxu0 0
        %7770 = vmatprep.subr.bf16.mxu0 0
        %7771 = vmatpush2.bf16.msra.mxu0 0
        %7772 = vmatprep.subr.bf16.mxu0 0
        %7773 = vmatpush2.bf16.msra.mxu0 0
        %7774 = vmatprep.subr.bf16.mxu0 0
        %7775 = vmatpush2.bf16.msra.mxu0 0
        %7776 = vmatprep.mubr.bf16.mxu0 0
        %7777 = vmatmul.mubr.bf16.gmra.mxu0 %v7663
        %v7778 = vpop.f32.mrf.mxu0
        %v7779 = vadd.f32 0.0, %v7778
        %v7780 = vpop.f32.mrf.mxu0
        %v7781 = vpop.f32.mrf.mxu0
        %v7782 = vadd.f32 0.0, %v7781
        %v7783 = vpop.f32.mrf.mxu0
        %7784 = vmatprep.mubr.bf16.mxu0 0
        %7785 = vmatmul.mubr.bf16.gmra.mxu0 %v7664
        %v7786 = vpop.f32.mrf.mxu0
        %v7787 = vadd.f32 0.0, %v7786
        %v7788 = vpop.f32.mrf.mxu0
        %v7789 = vpop.f32.mrf.mxu0
        %v7790 = vadd.f32 0.0, %v7789
        %v7791 = vpop.f32.mrf.mxu0
        %7792 = vmatprep.mubr.bf16.mxu0 0
        %7793 = vmatmul.mubr.bf16.gmra.mxu0 %v7665
        %v7794 = vpop.f32.mrf.mxu0
        %v7795 = vadd.f32 0.0, %v7794
        %v7796 = vpop.f32.mrf.mxu0
        %v7797 = vpop.f32.mrf.mxu0
        %v7798 = vadd.f32 0.0, %v7797
        %v7799 = vpop.f32.mrf.mxu0
        %7800 = vmatprep.mubr.bf16.mxu0 0
        %7801 = vmatmul.mubr.bf16.gmra.mxu0 %v7666
        %v7802 = vpop.f32.mrf.mxu0
        %v7803 = vadd.f32 0.0, %v7802
        %v7804 = vpop.f32.mrf.mxu0
        %v7805 = vpop.f32.mrf.mxu0
        %v7806 = vadd.f32 0.0, %v7805
        %v7807 = vpop.f32.mrf.mxu0
        %7808 = vmatprep.mubr.bf16.mxu0 0
        %7809 = vmatmul.mubr.bf16.gmra.mxu0 %v7667
        %v7810 = vpop.f32.mrf.mxu0
        %v7811 = vadd.f32 0.0, %v7810
        %v7812 = vpop.f32.mrf.mxu0
        %v7813 = vpop.f32.mrf.mxu0
        %v7814 = vadd.f32 0.0, %v7813
        %v7815 = vpop.f32.mrf.mxu0
        %7816 = vmatprep.mubr.bf16.mxu0 0
        %7817 = vmatmul.mubr.bf16.gmra.mxu0 %v7668
        %v7818 = vpop.f32.mrf.mxu0
        %v7819 = vadd.f32 0.0, %v7818
        %v7820 = vpop.f32.mrf.mxu0
        %v7821 = vpop.f32.mrf.mxu0
        %v7822 = vadd.f32 0.0, %v7821
        %v7823 = vpop.f32.mrf.mxu0
        %7824 = vmatprep.mubr.bf16.mxu0 0
        %7825 = vmatmul.mubr.bf16.gmra.mxu0 %v7669
        %v7826 = vpop.f32.mrf.mxu0
        %v7827 = vadd.f32 0.0, %v7826
        %v7828 = vpop.f32.mrf.mxu0
        %v7829 = vpop.f32.mrf.mxu0
        %v7830 = vadd.f32 0.0, %v7829
        %v7831 = vpop.f32.mrf.mxu0
        %7832 = vmatprep.mubr.bf16.mxu0 0
        %7833 = vmatmul.mubr.bf16.gmra.mxu0 %v7670
        %v7834 = vpop.f32.mrf.mxu0
        %v7835 = vadd.f32 0.0, %v7834
        %v7836 = vpop.f32.mrf.mxu0
        %v7837 = vpop.f32.mrf.mxu0
        %v7838 = vadd.f32 0.0, %v7837
        %v7839 = vpop.f32.mrf.mxu0
        %7840 = vmatprep.mubr.bf16.mxu0 0
        %7841 = vmatmul.mubr.bf16.gmra.mxu0 %v7671
        %v7842 = vpop.f32.mrf.mxu0
        %v7843 = vadd.f32 0.0, %v7842
        %v7844 = vpop.f32.mrf.mxu0
        %v7845 = vpop.f32.mrf.mxu0
        %v7846 = vadd.f32 0.0, %v7845
        %v7847 = vpop.f32.mrf.mxu0
        %7848 = vmatprep.mubr.bf16.mxu0 0
        %7849 = vmatmul.mubr.bf16.gmra.mxu0 %v7672
        %v7850 = vpop.f32.mrf.mxu0
        %v7851 = vadd.f32 0.0, %v7850
        %v7852 = vpop.f32.mrf.mxu0
        %v7853 = vpop.f32.mrf.mxu0
        %v7854 = vadd.f32 0.0, %v7853
        %v7855 = vpop.f32.mrf.mxu0
        %7856 = vmatprep.mubr.bf16.mxu0 0
        %7857 = vmatmul.mubr.bf16.gmra.mxu0 %v7673
        %v7858 = vpop.f32.mrf.mxu0
        %v7859 = vadd.f32 0.0, %v7858
        %v7860 = vpop.f32.mrf.mxu0
        %v7861 = vpop.f32.mrf.mxu0
        %v7862 = vadd.f32 0.0, %v7861
        %v7863 = vpop.f32.mrf.mxu0
        %7864 = vmatprep.mubr.bf16.mxu0 0
        %7865 = vmatmul.mubr.bf16.gmra.mxu0 %v7674
        %v7866 = vpop.f32.mrf.mxu0
        %v7867 = vadd.f32 0.0, %v7866
        %v7868 = vpop.f32.mrf.mxu0
        %v7869 = vpop.f32.mrf.mxu0
        %v7870 = vadd.f32 0.0, %v7869
        %v7871 = vpop.f32.mrf.mxu0
        %7872 = vmatprep.mubr.bf16.mxu0 0
        %7873 = vmatmul.mubr.bf16.gmra.mxu0 %v7675
        %v7874 = vpop.f32.mrf.mxu0
        %v7875 = vadd.f32 0.0, %v7874
        %v7876 = vpop.f32.mrf.mxu0
        %v7877 = vpop.f32.mrf.mxu0
        %v7878 = vadd.f32 0.0, %v7877
        %v7879 = vpop.f32.mrf.mxu0
        %7880 = vmatprep.mubr.bf16.mxu0 0
        %7881 = vmatmul.mubr.bf16.gmra.mxu0 %v7676
        %v7882 = vpop.f32.mrf.mxu0
        %v7883 = vadd.f32 0.0, %v7882
        %v7884 = vpop.f32.mrf.mxu0
        %v7885 = vpop.f32.mrf.mxu0
        %v7886 = vadd.f32 0.0, %v7885
        %v7887 = vpop.f32.mrf.mxu0
        %7888 = vmatprep.mubr.bf16.mxu0 0
        %7889 = vmatmul.mubr.bf16.gmra.mxu0 %v7677
        %v7890 = vpop.f32.mrf.mxu0
        %v7891 = vadd.f32 0.0, %v7890
        %v7892 = vpop.f32.mrf.mxu0
        %v7893 = vpop.f32.mrf.mxu0
        %v7894 = vadd.f32 0.0, %v7893
        %v7895 = vpop.f32.mrf.mxu0
        %7896 = vmatprep.mubr.bf16.mxu0 0
        %7897 = vmatmul.mubr.bf16.gmra.mxu0 %v7678
        %v7898 = vpop.f32.mrf.mxu0
        %v7899 = vadd.f32 0.0, %v7898
        %v7900 = vpop.f32.mrf.mxu0
        %v7901 = vpop.f32.mrf.mxu0
        %v7902 = vadd.f32 0.0, %v7901
        %v7903 = vpop.f32.mrf.mxu0
        %7904 = vdwg.mxu0
        %v7905 = vadd.f32 %v7567, %v7779
        %v7906 = vadd.f32 %v7568, %v7782
        %v7907 = vadd.f32 %v7569, %v7787
        %v7908 = vadd.f32 %v7570, %v7790
        %v7909 = vadd.f32 %v7571, %v7795
        %v7910 = vadd.f32 %v7572, %v7798
        %v7911 = vadd.f32 %v7573, %v7803
        %v7912 = vadd.f32 %v7574, %v7806
        %v7913 = vadd.f32 %v7575, %v7811
        %v7914 = vadd.f32 %v7576, %v7814
        %v7915 = vadd.f32 %v7577, %v7819
        %v7916 = vadd.f32 %v7578, %v7822
        %v7917 = vadd.f32 %v7579, %v7827
        %v7918 = vadd.f32 %v7580, %v7830
        %v7919 = vadd.f32 %v7581, %v7835
        %v7920 = vadd.f32 %v7582, %v7838
        %v7921 = vadd.f32 %v7583, %v7843
        %v7922 = vadd.f32 %v7584, %v7846
        %v7923 = vadd.f32 %v7585, %v7851
        %v7924 = vadd.f32 %v7586, %v7854
        %v7925 = vadd.f32 %v7587, %v7859
        %v7926 = vadd.f32 %v7588, %v7862
        %v7927 = vadd.f32 %v7589, %v7867
        %v7928 = vadd.f32 %v7590, %v7870
        %v7929 = vadd.f32 %v7591, %v7875
        %v7930 = vadd.f32 %v7592, %v7878
        %v7931 = vadd.f32 %v7593, %v7883
        %v7932 = vadd.f32 %v7594, %v7886
        %v7933 = vadd.f32 %v7595, %v7891
        %v7934 = vadd.f32 %v7596, %v7894
        %v7935 = vadd.f32 %v7597, %v7899
        %v7936 = vadd.f32 %v7598, %v7902
        %v7937 = vld [vmem:[%s9] sm:$0x1]
        %v7939 = vlaneseq
        %v7940 = vshrl.u32 %v7939, 7
        %v7941 = vsub.s32 0, %v7940
        %v7942 = vrot.slane %v7937, %v7941
        %v7944 = vadd.f32 %v7905, %v7942
        %v7945 = vadd.f32 %v7906, %v7942
        %v7946 = vadd.f32 %v7907, %v7942
        %v7947 = vadd.f32 %v7908, %v7942
        %v7948 = vadd.f32 %v7909, %v7942
        %v7949 = vadd.f32 %v7910, %v7942
        %v7950 = vadd.f32 %v7911, %v7942
        %v7951 = vadd.f32 %v7912, %v7942
        %v7952 = vadd.f32 %v7913, %v7942
        %v7953 = vadd.f32 %v7914, %v7942
        %v7954 = vadd.f32 %v7915, %v7942
        %v7955 = vadd.f32 %v7916, %v7942
        %v7956 = vadd.f32 %v7917, %v7942
        %v7957 = vadd.f32 %v7918, %v7942
        %v7958 = vadd.f32 %v7919, %v7942
        %v7959 = vadd.f32 %v7920, %v7942
        %v7960 = vadd.f32 %v7921, %v7942
        %v7961 = vadd.f32 %v7922, %v7942
        %v7962 = vadd.f32 %v7923, %v7942
        %v7963 = vadd.f32 %v7924, %v7942
        %v7964 = vadd.f32 %v7925, %v7942
        %v7965 = vadd.f32 %v7926, %v7942
        %v7966 = vadd.f32 %v7927, %v7942
        %v7967 = vadd.f32 %v7928, %v7942
        %v7968 = vadd.f32 %v7929, %v7942
        %v7969 = vadd.f32 %v7930, %v7942
        %v7970 = vadd.f32 %v7931, %v7942
        %v7971 = vadd.f32 %v7932, %v7942
        %v7972 = vadd.f32 %v7933, %v7942
        %v7973 = vadd.f32 %v7934, %v7942
        %v7974 = vadd.f32 %v7935, %v7942
        %v7975 = vadd.f32 %v7936, %v7942
        %v7976 = vpack.c.bf16 %v511, %v510
        %v7977 = vpack.c.bf16 %v513, %v512
        %v7978 = vpack.c.bf16 %v515, %v514
        %v7979 = vpack.c.bf16 %v517, %v516
        %v7980 = vpack.c.bf16 %v519, %v518
        %v7981 = vpack.c.bf16 %v521, %v520
        %v7982 = vpack.c.bf16 %v523, %v522
        %v7983 = vpack.c.bf16 %v525, %v524
        %v7984 = vpack.c.bf16 %v527, %v526
        %v7985 = vpack.c.bf16 %v529, %v528
        %v7986 = vpack.c.bf16 %v531, %v530
        %v7987 = vpack.c.bf16 %v533, %v532
        %v7988 = vpack.c.bf16 %v535, %v534
        %v7989 = vpack.c.bf16 %v537, %v536
        %v7990 = vpack.c.bf16 %v539, %v538
        %v7991 = vpack.c.bf16 %v541, %v540
        %v7992 = vld [vmem:[#allocation11] sm:$0xf]
        %v7993 = vld [vmem:[#allocation11 + $0x4] sm:$0xf]
        %v7994 = vld [vmem:[#allocation11 + $0x8] sm:$0xf]
        %v7995 = vld [vmem:[#allocation11 + $0xc] sm:$0xf]
        %v7996 = vld [vmem:[#allocation11 + $0x10] sm:$0xf]
        %v7997 = vld [vmem:[#allocation11 + $0x14] sm:$0xf]
        %v7998 = vld [vmem:[#allocation11 + $0x18] sm:$0xf]
        %v7999 = vld [vmem:[#allocation11 + $0x1c] sm:$0xf]
        %v8000 = vld [vmem:[#allocation11 + $0x20] sm:$0xf]
        %v8001 = vld [vmem:[#allocation11 + $0x24] sm:$0xf]
        %v8002 = vld [vmem:[#allocation11 + $0x28] sm:$0xf]
        %v8003 = vld [vmem:[#allocation11 + $0x2c] sm:$0xf]
        %v8004 = vld [vmem:[#allocation11 + $0x30] sm:$0xf]
        %v8005 = vld [vmem:[#allocation11 + $0x34] sm:$0xf]
        %v8006 = vld [vmem:[#allocation11 + $0x38] sm:$0xf]
        %v8007 = vld [vmem:[#allocation11 + $0x3c] sm:$0xf]
        %v8008 = vld [vmem:[%s11] sm:$0x1]
        %v8010 = vlaneseq
        %v8011 = vshrl.u32 %v8010, 7
        %v8012 = vsub.s32 0, %v8011
        %v8013 = vrot.slane %v8008, %v8012
        %v8031 = vunpack.c.l.b16 %v7992
        %v8032 = vunpack.c.l.b16 %v7993
        %v8033 = vunpack.c.l.b16 %v7994
        %v8034 = vunpack.c.l.b16 %v7995
        %v8035 = vunpack.c.l.b16 %v7996
        %v8036 = vunpack.c.l.b16 %v7997
        %v8037 = vunpack.c.l.b16 %v7998
        %v8038 = vunpack.c.l.b16 %v7999
        %v8039 = vunpack.c.l.b16 %v8000
        %v8040 = vunpack.c.l.b16 %v8001
        %v8041 = vunpack.c.l.b16 %v8002
        %v8042 = vunpack.c.l.b16 %v8003
        %v8043 = vunpack.c.l.b16 %v8004
        %v8044 = vunpack.c.l.b16 %v8005
        %v8045 = vunpack.c.l.b16 %v8006
        %v8046 = vunpack.c.l.b16 %v8007
        %v8047 = vpack.c.b16 %v8032, %v8031
        %v8048 = vpack.c.b16 %v8034, %v8033
        %v8049 = vpack.c.b16 %v8036, %v8035
        %v8050 = vpack.c.b16 %v8038, %v8037
        %v8051 = vpack.c.b16 %v8040, %v8039
        %v8052 = vpack.c.b16 %v8042, %v8041
        %v8053 = vpack.c.b16 %v8044, %v8043
        %v8054 = vpack.c.b16 %v8046, %v8045
        %8063 = vmatprep.subr.bf16.mxu0 0
        %8064 = vmatpush1.bf16.msra.mxu0 %v8054
        %8065 = vmatprep.subr.bf16.mxu0 0
        %8066 = vmatpush1.bf16.msra.mxu0 %v8053
        %8067 = vmatprep.subr.bf16.mxu0 0
        %8068 = vmatpush1.bf16.msra.mxu0 %v8052
        %8069 = vmatprep.subr.bf16.mxu0 0
        %8070 = vmatpush1.bf16.msra.mxu0 %v8051
        %8071 = vmatprep.subr.bf16.mxu0 0
        %8072 = vmatpush1.bf16.msra.mxu0 %v8050
        %8073 = vmatprep.subr.bf16.mxu0 0
        %8074 = vmatpush1.bf16.msra.mxu0 %v8049
        %8075 = vmatprep.subr.bf16.mxu0 0
        %8076 = vmatpush1.bf16.msra.mxu0 %v8048
        %8077 = vmatprep.subr.bf16.mxu0 0
        %8078 = vmatpush1.bf16.msra.mxu0 %v8047
        %8079 = vmatprep.subr.bf16.mxu0 0
        %8080 = vmatpush2.bf16.msra.mxu0 0
        %8081 = vmatprep.subr.bf16.mxu0 0
        %8082 = vmatpush2.bf16.msra.mxu0 0
        %8083 = vmatprep.subr.bf16.mxu0 0
        %8084 = vmatpush2.bf16.msra.mxu0 0
        %8085 = vmatprep.subr.bf16.mxu0 0
        %8086 = vmatpush2.bf16.msra.mxu0 0
        %8087 = vmatprep.subr.bf16.mxu0 0
        %8088 = vmatpush2.bf16.msra.mxu0 0
        %8089 = vmatprep.subr.bf16.mxu0 0
        %8090 = vmatpush2.bf16.msra.mxu0 0
        %8091 = vmatprep.subr.bf16.mxu0 0
        %8092 = vmatpush2.bf16.msra.mxu0 0
        %8093 = vmatprep.subr.bf16.mxu0 0
        %8094 = vmatpush2.bf16.msra.mxu0 0
        %8095 = vmatprep.mubr.bf16.mxu0 0
        %8096 = vmatmul.mubr.bf16.gmra.mxu0 %v7976
        %v8097 = vpop.f32.mrf.mxu0
        %v8098 = vadd.f32 %v8013, %v8097
        %v8099 = vpop.f32.mrf.mxu0
        %v8100 = vpop.f32.mrf.mxu0
        %v8101 = vadd.f32 %v8013, %v8100
        %v8102 = vpop.f32.mrf.mxu0
        %8103 = vmatprep.mubr.bf16.mxu0 0
        %8104 = vmatmul.mubr.bf16.gmra.mxu0 %v7977
        %v8105 = vpop.f32.mrf.mxu0
        %v8106 = vadd.f32 %v8013, %v8105
        %v8107 = vpop.f32.mrf.mxu0
        %v8108 = vpop.f32.mrf.mxu0
        %v8109 = vadd.f32 %v8013, %v8108
        %v8110 = vpop.f32.mrf.mxu0
        %8111 = vmatprep.mubr.bf16.mxu0 0
        %8112 = vmatmul.mubr.bf16.gmra.mxu0 %v7978
        %v8113 = vpop.f32.mrf.mxu0
        %v8114 = vadd.f32 %v8013, %v8113
        %v8115 = vpop.f32.mrf.mxu0
        %v8116 = vpop.f32.mrf.mxu0
        %v8117 = vadd.f32 %v8013, %v8116
        %v8118 = vpop.f32.mrf.mxu0
        %8119 = vmatprep.mubr.bf16.mxu0 0
        %8120 = vmatmul.mubr.bf16.gmra.mxu0 %v7979
        %v8121 = vpop.f32.mrf.mxu0
        %v8122 = vadd.f32 %v8013, %v8121
        %v8123 = vpop.f32.mrf.mxu0
        %v8124 = vpop.f32.mrf.mxu0
        %v8125 = vadd.f32 %v8013, %v8124
        %v8126 = vpop.f32.mrf.mxu0
        %8127 = vmatprep.mubr.bf16.mxu0 0
        %8128 = vmatmul.mubr.bf16.gmra.mxu0 %v7980
        %v8129 = vpop.f32.mrf.mxu0
        %v8130 = vadd.f32 %v8013, %v8129
        %v8131 = vpop.f32.mrf.mxu0
        %v8132 = vpop.f32.mrf.mxu0
        %v8133 = vadd.f32 %v8013, %v8132
        %v8134 = vpop.f32.mrf.mxu0
        %8135 = vmatprep.mubr.bf16.mxu0 0
        %8136 = vmatmul.mubr.bf16.gmra.mxu0 %v7981
        %v8137 = vpop.f32.mrf.mxu0
        %v8138 = vadd.f32 %v8013, %v8137
        %v8139 = vpop.f32.mrf.mxu0
        %v8140 = vpop.f32.mrf.mxu0
        %v8141 = vadd.f32 %v8013, %v8140
        %v8142 = vpop.f32.mrf.mxu0
        %8143 = vmatprep.mubr.bf16.mxu0 0
        %8144 = vmatmul.mubr.bf16.gmra.mxu0 %v7982
        %v8145 = vpop.f32.mrf.mxu0
        %v8146 = vadd.f32 %v8013, %v8145
        %v8147 = vpop.f32.mrf.mxu0
        %v8148 = vpop.f32.mrf.mxu0
        %v8149 = vadd.f32 %v8013, %v8148
        %v8150 = vpop.f32.mrf.mxu0
        %8151 = vmatprep.mubr.bf16.mxu0 0
        %8152 = vmatmul.mubr.bf16.gmra.mxu0 %v7983
        %v8153 = vpop.f32.mrf.mxu0
        %v8154 = vadd.f32 %v8013, %v8153
        %v8155 = vpop.f32.mrf.mxu0
        %v8156 = vpop.f32.mrf.mxu0
        %v8157 = vadd.f32 %v8013, %v8156
        %v8158 = vpop.f32.mrf.mxu0
        %8159 = vmatprep.mubr.bf16.mxu0 0
        %8160 = vmatmul.mubr.bf16.gmra.mxu0 %v7984
        %v8161 = vpop.f32.mrf.mxu0
        %v8162 = vadd.f32 %v8013, %v8161
        %v8163 = vpop.f32.mrf.mxu0
        %v8164 = vpop.f32.mrf.mxu0
        %v8165 = vadd.f32 %v8013, %v8164
        %v8166 = vpop.f32.mrf.mxu0
        %8167 = vmatprep.mubr.bf16.mxu0 0
        %8168 = vmatmul.mubr.bf16.gmra.mxu0 %v7985
        %v8169 = vpop.f32.mrf.mxu0
        %v8170 = vadd.f32 %v8013, %v8169
        %v8171 = vpop.f32.mrf.mxu0
        %v8172 = vpop.f32.mrf.mxu0
        %v8173 = vadd.f32 %v8013, %v8172
        %v8174 = vpop.f32.mrf.mxu0
        %8175 = vmatprep.mubr.bf16.mxu0 0
        %8176 = vmatmul.mubr.bf16.gmra.mxu0 %v7986
        %v8177 = vpop.f32.mrf.mxu0
        %v8178 = vadd.f32 %v8013, %v8177
        %v8179 = vpop.f32.mrf.mxu0
        %v8180 = vpop.f32.mrf.mxu0
        %v8181 = vadd.f32 %v8013, %v8180
        %v8182 = vpop.f32.mrf.mxu0
        %8183 = vmatprep.mubr.bf16.mxu0 0
        %8184 = vmatmul.mubr.bf16.gmra.mxu0 %v7987
        %v8185 = vpop.f32.mrf.mxu0
        %v8186 = vadd.f32 %v8013, %v8185
        %v8187 = vpop.f32.mrf.mxu0
        %v8188 = vpop.f32.mrf.mxu0
        %v8189 = vadd.f32 %v8013, %v8188
        %v8190 = vpop.f32.mrf.mxu0
        %8191 = vmatprep.mubr.bf16.mxu0 0
        %8192 = vmatmul.mubr.bf16.gmra.mxu0 %v7988
        %v8193 = vpop.f32.mrf.mxu0
        %v8194 = vadd.f32 %v8013, %v8193
        %v8195 = vpop.f32.mrf.mxu0
        %v8196 = vpop.f32.mrf.mxu0
        %v8197 = vadd.f32 %v8013, %v8196
        %v8198 = vpop.f32.mrf.mxu0
        %8199 = vmatprep.mubr.bf16.mxu0 0
        %8200 = vmatmul.mubr.bf16.gmra.mxu0 %v7989
        %v8201 = vpop.f32.mrf.mxu0
        %v8202 = vadd.f32 %v8013, %v8201
        %v8203 = vpop.f32.mrf.mxu0
        %v8204 = vpop.f32.mrf.mxu0
        %v8205 = vadd.f32 %v8013, %v8204
        %v8206 = vpop.f32.mrf.mxu0
        %8207 = vmatprep.mubr.bf16.mxu0 0
        %8208 = vmatmul.mubr.bf16.gmra.mxu0 %v7990
        %v8209 = vpop.f32.mrf.mxu0
        %v8210 = vadd.f32 %v8013, %v8209
        %v8211 = vpop.f32.mrf.mxu0
        %v8212 = vpop.f32.mrf.mxu0
        %v8213 = vadd.f32 %v8013, %v8212
        %v8214 = vpop.f32.mrf.mxu0
        %8215 = vmatprep.mubr.bf16.mxu0 0
        %8216 = vmatmul.mubr.bf16.gmra.mxu0 %v7991
        %v8217 = vpop.f32.mrf.mxu0
        %v8218 = vadd.f32 %v8013, %v8217
        %v8219 = vpop.f32.mrf.mxu0
        %v8220 = vpop.f32.mrf.mxu0
        %v8221 = vadd.f32 %v8013, %v8220
        %v8222 = vpop.f32.mrf.mxu0
        %8223 = vdwg.mxu0
        %v8224 = vadd.f32 %v7944, %v8098
        %v8225 = vadd.f32 %v7945, %v8101
        %v8226 = vadd.f32 %v7946, %v8106
        %v8227 = vadd.f32 %v7947, %v8109
        %v8228 = vadd.f32 %v7948, %v8114
        %v8229 = vadd.f32 %v7949, %v8117
        %v8230 = vadd.f32 %v7950, %v8122
        %v8231 = vadd.f32 %v7951, %v8125
        %v8232 = vadd.f32 %v7952, %v8130
        %v8233 = vadd.f32 %v7953, %v8133
        %v8234 = vadd.f32 %v7954, %v8138
        %v8235 = vadd.f32 %v7955, %v8141
        %v8236 = vadd.f32 %v7956, %v8146
        %v8237 = vadd.f32 %v7957, %v8149
        %v8238 = vadd.f32 %v7958, %v8154
        %v8239 = vadd.f32 %v7959, %v8157
        %v8240 = vadd.f32 %v7960, %v8162
        %v8241 = vadd.f32 %v7961, %v8165
        %v8242 = vadd.f32 %v7962, %v8170
        %v8243 = vadd.f32 %v7963, %v8173
        %v8244 = vadd.f32 %v7964, %v8178
        %v8245 = vadd.f32 %v7965, %v8181
        %v8246 = vadd.f32 %v7966, %v8186
        %v8247 = vadd.f32 %v7967, %v8189
        %v8248 = vadd.f32 %v7968, %v8194
        %v8249 = vadd.f32 %v7969, %v8197
        %v8250 = vadd.f32 %v7970, %v8202
        %v8251 = vadd.f32 %v7971, %v8205
        %v8252 = vadd.f32 %v7972, %v8210
        %v8253 = vadd.f32 %v7973, %v8213
        %v8254 = vadd.f32 %v7974, %v8218
        %v8255 = vadd.f32 %v7975, %v8221
        %8256 = vst [vmem:[%s508] sm:$0xff] %v8224
        %8257 = vst [vmem:[%s508 + $0x8] sm:$0xff] %v8225
        %8258 = vst [vmem:[%s508 + $0x10] sm:$0xff] %v8226
        %8259 = vst [vmem:[%s508 + $0x18] sm:$0xff] %v8227
        %8260 = vst [vmem:[%s508 + $0x20] sm:$0xff] %v8228
        %8261 = vst [vmem:[%s508 + $0x28] sm:$0xff] %v8229
        %8262 = vst [vmem:[%s508 + $0x30] sm:$0xff] %v8230
        %8263 = vst [vmem:[%s508 + $0x38] sm:$0xff] %v8231
        %8264 = vst [vmem:[%s508 + $0x40] sm:$0xff] %v8232
        %8265 = vst [vmem:[%s508 + $0x48] sm:$0xff] %v8233
        %8266 = vst [vmem:[%s508 + $0x50] sm:$0xff] %v8234
        %8267 = vst [vmem:[%s508 + $0x58] sm:$0xff] %v8235
        %8268 = vst [vmem:[%s508 + $0x60] sm:$0xff] %v8236
        %8269 = vst [vmem:[%s508 + $0x68] sm:$0xff] %v8237
        %8270 = vst [vmem:[%s508 + $0x70] sm:$0xff] %v8238
        %8271 = vst [vmem:[%s508 + $0x78] sm:$0xff] %v8239
        %8272 = vst [vmem:[%s508 + $0x80] sm:$0xff] %v8240
        %8273 = vst [vmem:[%s508 + $0x88] sm:$0xff] %v8241
        %8274 = vst [vmem:[%s508 + $0x90] sm:$0xff] %v8242
        %8275 = vst [vmem:[%s508 + $0x98] sm:$0xff] %v8243
        %8276 = vst [vmem:[%s508 + $0xa0] sm:$0xff] %v8244
        %8277 = vst [vmem:[%s508 + $0xa8] sm:$0xff] %v8245
        %8278 = vst [vmem:[%s508 + $0xb0] sm:$0xff] %v8246
        %8279 = vst [vmem:[%s508 + $0xb8] sm:$0xff] %v8247
        %8280 = vst [vmem:[%s508 + $0xc0] sm:$0xff] %v8248
        %8281 = vst [vmem:[%s508 + $0xc8] sm:$0xff] %v8249
        %8282 = vst [vmem:[%s508 + $0xd0] sm:$0xff] %v8250
        %8283 = vst [vmem:[%s508 + $0xd8] sm:$0xff] %v8251
        %8284 = vst [vmem:[%s508 + $0xe0] sm:$0xff] %v8252
        %8285 = vst [vmem:[%s508 + $0xe8] sm:$0xff] %v8253
        %8286 = vst [vmem:[%s508 + $0xf0] sm:$0xff] %v8254
        %8287 = vst [vmem:[%s508 + $0xf8] sm:$0xff] %v8255
        %s8288 = sand.u32 %s303, 1
        %s8289 = scalar_lea.sflag [#allocation5], %s8288
        %s8290 = sand.u32 %s303, 1
        %s8291 = smul.addr %s8290, 256
        %s8292 = scalar_lea.vmem [#allocation12], %s8291
        // Predicated region
        $region89: #{tpu_custom_call.1} parent=67 // pred_check
          %p8293 = pneg %p313
        $region90: #{tpu_custom_call.1} parent=67 // pred_check_branch
          %8295 = sbr.rel (%p8293) target = $region92
        $region91: #{tpu_custom_call.1} parent=67 // pred_region
          %s8297 = ssub.s32 4096, 4096
          %8298 = vsyncadd %s8289, %s8297
          %s8299 = smul.addr %s33, 32
          %s8300 = smul.addr %s8299, 128
          %s8301 = scalar_lea.hbm %s12, %s8300
          %s8302 = sshll.u32 %s8292, 4
          %s8303 = int_to_ptr.vmem [resolvable:$true] %s8302
          %8308 = dma.vmem_to_hbm [thread:$0]  %s8303, 4096, %s8301, %s8289, 128, 128, 8
        $region92: #{tpu_custom_call.1} parent=67 // pred_fallthru
          _
      $region68: #{tpu_custom_call.1} parent=5 // pred_fallthru
        _
      %p8309 = scmp.le.s32.totalorder 2, %s28
      // Predicated region
      $region93: #{tpu_custom_call.1} parent=5 // pred_check
        %p8310 = pneg %p8309
      $region94: #{tpu_custom_call.1} parent=5 // pred_check_branch
        %8312 = sbr.rel (%p8310) target = $region96
      $region95: #{tpu_custom_call.1} parent=5 // pred_region
        %s8313 = ssub.s32 %s28, 2
        // Predicated region
        $region97: #{tpu_custom_call.1} parent=95 // pred_check
          %p8314 = pneg %p319
        $region98: #{tpu_custom_call.1} parent=95 // pred_check_branch
          %8316 = sbr.rel (%p8314) target = $region100
        $region99: #{tpu_custom_call.1} parent=95 // pred_region
          %s8317 = sand.u32 %s304, 1
          %s8318 = scalar_lea.sflag [#allocation5], %s8317
          %s8319 = sand.u32 %s304, 1
          %s8320 = smul.addr %s8319, 256
          %s8321 = scalar_lea.vmem [#allocation12], %s8320
          %8322 = dma.done %s8318, 4096
        $region100: #{tpu_custom_call.1} parent=95 // pred_fallthru
          _
      $region96: #{tpu_custom_call.1} parent=5 // pred_fallthru
        _
    $region6: #{tpu_custom_call.1} parent=1 // loop_footer
      %s32 = sadd.s32 1, %s28
    $region7: #{tpu_custom_call.1} parent=1 // loop_footer_branch
      %27 = sbr.rel target = $region3
    $region8: #{tpu_custom_call.1} parent=1 // loop_exit
      _
    %8323 = vsyncpa [#allocation4], 1
    %s8324 = scalar_lea.sflag [#allocation4], 1
    %8325 = vsyncpa %s8324, 1
    %8326 = vsyncpa [#allocation7], 1
    %s8327 = scalar_lea.sflag [#allocation7], 1
    %8328 = vsyncpa %s8327, 1
    %8329 = vsyncpa [#allocation10], 1
    %8330 = vsyncpa [#allocation5], 1
    %s8331 = scalar_lea.sflag [#allocation5], 1
    %8332 = vsyncpa %s8331, 1

</llo_original>
